<compile_context>
chip_gen: v7x
topology: tpu7x:2x2x1
jax: 0.10.0
libtpu: 0.0.40
codegen_flags: <defaults>
</compile_context>

<pallas_src>
import math

import jax
import jax.numpy as jnp
from jax.experimental import pallas as pl
from jax.experimental.pallas import tpu as pltpu


def _round_up(x, m):
    return ((x + m - 1) // m) * m


# ------------------------------ in-kernel math ------------------------------

def _layernorm_padded(x, gamma, beta, d_true, eps=1e-5):
    """LayerNorm over a zero-padded last dim.

    Padded lanes of x / gamma / beta are exactly zero, so the sums only see the
    real lanes; we divide by the true width d_true."""
    mu = jnp.sum(x, axis=-1, keepdims=True) / d_true
    msq = jnp.sum(x * x, axis=-1, keepdims=True) / d_true
    var = msq - mu * mu
    return (x - mu) * jax.lax.rsqrt(var + eps) * gamma + beta


_STACKED_ORDER = ('wqk', 'bqk', 'wv', 'bv', 'wo', 'bo', 'ln1_g', 'ln1_b',
                  'w1', 'b1', 'w2', 'b2', 'ln2_g', 'ln2_b')
_NUM_SCRATCH = 5


def _encoder_body(x_hbm, pos_ref, w, fn_g, fn_b, out_ref,
                  act_ref, qk_scr, v_scr, ctx_scr, dma_sem, *,
                  nhead, bt, seq, d_true, d_pad, hd_pad, pe_only_at_begin):
    """One grid step == one encoder layer for one batch tile.

    The activation is carried across layers in the f32 VMEM scratch act_ref."""
    b = pl.program_id(0)
    layer = pl.program_id(1)
    last = pl.num_programs(1) - 1
    rows = bt * seq
    D_p, hd_p = d_pad, hd_pad

    # ---- layer 0: DMA this batch tile's input HBM -> activation scratch.
    # x is never resident in VMEM beyond the scratch itself (review item).
    @pl.when(layer == 0)
    def _():
        cp = pltpu.make_async_copy(x_hbm.at[pl.ds(b * bt, bt)], act_ref, dma_sem)
        cp.start()
        cp.wait()

    x = act_ref[...].reshape(rows, D_p)           # f32; padded lanes stay 0

    # ---- fused Q|K projection (softmax scale pre-folded into Q weights) ----
    def project_qk(inp):
        return (jnp.dot(inp.astype(jnp.bfloat16), w['wqk'][0],
                        preferred_element_type=jnp.float32)
                + w['bqk'][0]).astype(jnp.bfloat16)

    if pos_ref is None:
        qk_scr[...] = project_qk(x)
    elif pe_only_at_begin:
        # Branch instead of zeros+select: pos work is skipped for layers > 0.
        @pl.when(layer == 0)
        def _():
            qk_scr[...] = project_qk(x + pos_ref[...].reshape(rows, D_p))

        @pl.when(layer > 0)
        def _():
            qk_scr[...] = project_qk(x)
    else:
        qk_scr[...] = project_qk(x + pos_ref[...].reshape(rows, D_p))

    # v does not get the positional embedding (DETR-style encoder).
    v_scr[...] = (jnp.dot(x.astype(jnp.bfloat16), w['wv'][0],
                          preferred_element_type=jnp.float32)
                  + w['bv'][0]).astype(jnp.bfloat16)

    # ---- multi-head attention ----
    # Per-head ctx is stored into a lane-dense scratch (128-aligned head
    # slices), then W_O is applied once with full K=D contraction.  Reading /
    # writing through VMEM scratch refs bounds live ranges even though the head
    # loop is unrolled (per-head temporaries die each iteration).
    # TODO(synk): flash-style KV tiling (online softmax) for production S.
    for h in range(nhead):
        q_h = qk_scr[:, h * hd_p:(h + 1) * hd_p].reshape(bt, seq, hd_p)
        k_h = qk_scr[:, D_p + h * hd_p: D_p + (h + 1) * hd_p].reshape(bt, seq, hd_p)
        v_h = v_scr[:, h * hd_p:(h + 1) * hd_p].reshape(bt, seq, hd_p)
        s = jnp.einsum('bqd,bkd->bqk', q_h, k_h,
                       preferred_element_type=jnp.float32)      # scale pre-folded
        s = s - jnp.max(s, axis=-1, keepdims=True)
        e = jnp.exp(s)
        p = (e * pl.reciprocal(jnp.sum(e, axis=-1, keepdims=True),
                               approx=True)).astype(jnp.bfloat16)
        ctx = jnp.einsum('bqk,bkd->bqd', p, v_h,
                         preferred_element_type=jnp.float32)
        ctx_scr[:, h * hd_p:(h + 1) * hd_p] = (
            ctx.reshape(rows, hd_p).astype(jnp.bfloat16))

    attn = jnp.dot(ctx_scr[...], w['wo'][0],
                   preferred_element_type=jnp.float32) + w['bo'][0]

    # residual + LayerNorm1 (post-norm; dropout == identity)
    y = _layernorm_padded(x + attn, w['ln1_g'][0], w['ln1_b'][0], d_true)

    # ---- feed-forward: linear1 -> relu -> (bf16 cast) -> linear2 ----
    # TODO(synk): row-tile the FFN for large B*S to bound the (rows, F) slab.
    h1 = jnp.maximum(
        jnp.dot(y.astype(jnp.bfloat16), w['w1'][0],
                preferred_element_type=jnp.float32) + w['b1'][0],
        0.0).astype(jnp.bfloat16)
    ff = jnp.dot(h1, w['w2'][0], preferred_element_type=jnp.float32) + w['b2'][0]
    out = _layernorm_padded(y + ff, w['ln2_g'][0], w['ln2_b'][0], d_true)

    # Carry to the next layer only when there is a next layer.
    @pl.when(layer < last)
    def _():
        act_ref[...] = out.reshape(bt, seq, D_p)

    # Output store (and fused final norm) only at the last layer (review item).
    @pl.when(layer == last)
    def _():
        final = out
        if fn_g is not None:
            final = _layernorm_padded(final, fn_g[...], fn_b[...], d_true)
        out_ref[...] = final.reshape(bt, seq, D_p).astype(out_ref.dtype)


def _make_kernel(*, nhead, bt, seq, d_true, d_pad, hd_pad, has_pos, has_norm,
                 pe_only_at_begin):
    n_w = len(_STACKED_ORDER)

    def kernel(*refs):
        i = 0
        x_hbm = refs[i]; i += 1
        pos_ref = None
        if has_pos:
            pos_ref = refs[i]; i += 1
        w = {name: refs[i + k] for k, name in enumerate(_STACKED_ORDER)}
        i += n_w
        fn_g = fn_b = None
        if has_norm:
            fn_g, fn_b = refs[i], refs[i + 1]; i += 2
        out_ref = refs[i]; i += 1
        act_ref, qk_scr, v_scr, ctx_scr, dma_sem = refs[i:i + _NUM_SCRATCH]
        _encoder_body(x_hbm, pos_ref, w, fn_g, fn_b, out_ref,
                      act_ref, qk_scr, v_scr, ctx_scr, dma_sem,
                      nhead=nhead, bt=bt, seq=seq, d_true=d_true,
                      d_pad=d_pad, hd_pad=hd_pad,
                      pe_only_at_begin=pe_only_at_begin)

    return kernel


# --------------------------- parameter preparation --------------------------

def stack_layer_params(layer_params_list, nhead, lane_pad=128):
    """Pad to 128-aligned (per-head) lane layouts, fold the softmax scale into
    the Q projection, fuse Wq|Wk, cast matmul weights to bf16 and stack layers
    along a new leading dim."""
    D = layer_params_list[0]['wq'].shape[0]
    F = layer_params_list[0]['w1'].shape[1]
    assert D % nhead == 0, "d_model must be divisible by nhead"
    hd = D // nhead
    hd_p = _round_up(hd, lane_pad)
    D_p = nhead * hd_p
    F_p = _round_up(F, lane_pad)
    scale = 1.0 / math.sqrt(hd)

    def pad_model_rows(a):          # (D, C) -> (D_p, C)
        return jnp.pad(a, ((0, D_p - a.shape[0]), (0, 0)))

    def pad_model_cols(a):          # (R, D) -> (R, D_p)
        return jnp.pad(a, ((0, 0), (0, D_p - a.shape[1])))

    def pad_head_cols(a):           # (R, nhead*hd) -> (R, nhead*hd_p), per head
        r = a.shape[0]
        a = a.reshape(r, nhead, hd)
        a = jnp.pad(a, ((0, 0), (0, 0), (0, hd_p - hd)))
        return a.reshape(r, D_p)

    def pad_head_rows(a):           # (nhead*hd, C) -> (nhead*hd_p, C), per head
        c = a.shape[1]
        a = a.reshape(nhead, hd, c)
        a = jnp.pad(a, ((0, 0), (0, hd_p - hd), (0, 0)))
        return a.reshape(D_p, c)

    per_layer = []
    for lp in layer_params_list:
        wq = pad_head_cols(pad_model_rows(lp['wq'] * scale))   # scale folded
        wk = pad_head_cols(pad_model_rows(lp['wk']))
        bq = pad_head_cols(lp['bq'] * scale)
        bk = pad_head_cols(lp['bk'])
        per_layer.append({
            'wqk': jnp.concatenate([wq, wk], axis=-1).astype(jnp.bfloat16),
            'bqk': jnp.concatenate([bq, bk], axis=-1),
            'wv': pad_head_cols(pad_model_rows(lp['wv'])).astype(jnp.bfloat16),
            'bv': pad_head_cols(lp['bv']),
            'wo': pad_model_cols(pad_head_rows(lp['wo'])).astype(jnp.bfloat16),
            'bo': pad_model_cols(lp['bo']),
            'ln1_g': pad_model_cols(lp['ln1_g']),
            'ln1_b': pad_model_cols(lp['ln1_b']),
            'w1': jnp.pad(lp['w1'], ((0, D_p - D), (0, F_p - F))).astype(jnp.bfloat16),
            'b1': jnp.pad(lp['b1'], ((0, 0), (0, F_p - F))),
            'w2': jnp.pad(lp['w2'], ((0, F_p - F), (0, D_p - D))).astype(jnp.bfloat16),
            'b2': pad_model_cols(lp['b2']),
            'ln2_g': pad_model_cols(lp['ln2_g']),
            'ln2_b': pad_model_cols(lp['ln2_b']),
        })

    stacked = {name: jnp.stack([e[name] for e in per_layer], axis=0)
               for name in _STACKED_ORDER}
    dims = {'d_model': D, 'd_pad': D_p, 'hd': hd, 'hd_pad': hd_p,
            'ff': F, 'ff_pad': F_p}
    return stacked, dims


def _vmem_limit_bytes(stacked, num_layers, bt, seq, d_pad, ff_pad, has_pos,
                      out_itemsize):
    """Explicit scoped-VMEM budget derived from the resident set (review item)."""
    rows = bt * seq
    per_layer_w = sum(int(a.size) * a.dtype.itemsize
                      for a in stacked.values()) // num_layers
    est = 2 * per_layer_w                        # double-buffered streamed weights
    est += bt * seq * d_pad * 4                  # f32 activation scratch
    est += rows * 4 * d_pad * 2                  # qk / v / ctx bf16 scratch
    if has_pos:
        est += 2 * bt * seq * d_pad * 4          # resident pos block
    est += 2 * bt * seq * d_pad * out_itemsize   # output block
    est += rows * ff_pad * 6                     # FFN intermediate (f32 + bf16)
    est += bt * seq * seq * 4 * 3                # per-head score/softmax temps
    est += rows * d_pad * 4 * 5                  # misc f32 temporaries
    return int(min(max(2 * est, 32 << 20), 100 << 20))


# --------------------------------- wrapper -----------------------------------

def transformer_encoder_pallas(src, pos, stacked, dims, *, nhead, num_layers,
                               pe_only_at_begin=False, norm_padded=None,
                               batch_tiles=1):
    B, S, D = src.shape
    assert D == dims['d_model']
    assert B % batch_tiles == 0, "batch_tiles must divide batch"
    D_p, hd_p, F_p = dims['d_pad'], dims['hd_pad'], dims['ff_pad']
    Bt = B // batch_tiles
    has_pos = pos is not None
    has_norm = norm_padded is not None

    def pad_act(a):  # end-pad model dim with zeros; f32 so the layer-0 DMA can
        return jnp.pad(a.astype(jnp.float32),        # land directly in act_ref
                       ((0, 0), (0, 0), (0, D_p - D)))

    args = [pad_act(src)]
    in_specs = [pl.BlockSpec(memory_space=pl.ANY)]   # x: HBM, DMA'd at layer 0
    if has_pos:
        args.append(pad_act(pos))
        in_specs.append(pl.BlockSpec((Bt, S, D_p), lambda b, l: (b, 0, 0)))
    for name in _STACKED_ORDER:
        arr = stacked[name]
        args.append(arr)
        # TODO(synk): on v7x (64 MiB VMEM) consider pipeline_mode=pl.Buffered(1)
        # on the large weight specs (wqk/w1/w2) if double-buffering does not fit.
        in_specs.append(pl.BlockSpec(
            (1,) + arr.shape[1:],
            lambda b, l, _nd=arr.ndim: (l,) + (0,) * (_nd - 1)))
    if has_norm:
        g, bta = norm_padded
        args += [g, bta]
        in_specs += [pl.BlockSpec((1, D_p), lambda b, l: (0, 0))] * 2

    kernel = _make_kernel(nhead=nhead, bt=Bt, seq=S, d_true=D, d_pad=D_p,
                          hd_pad=hd_p, has_pos=has_pos, has_norm=has_norm,
                          pe_only_at_begin=pe_only_at_begin)

    rows = Bt * S
    scratch_shapes = [
        pltpu.VMEM((Bt, S, D_p), jnp.float32),      # activation carried across layers
        pltpu.VMEM((rows, 2 * D_p), jnp.bfloat16),  # fused Q|K projection
        pltpu.VMEM((rows, D_p), jnp.bfloat16),      # V projection
        pltpu.VMEM((rows, D_p), jnp.bfloat16),      # per-head contexts -> one W_O matmul
        pltpu.SemaphoreType.DMA(()),                # layer-0 input DMA
    ]

    vmem_limit = _vmem_limit_bytes(stacked, num_layers, Bt, S, D_p, F_p,
                                   has_pos, jnp.dtype(src.dtype).itemsize)

    out = pl.pallas_call(
        kernel,
        out_shape=jax.ShapeDtypeStruct((B, S, D_p), src.dtype),
        grid_spec=pltpu.PrefetchScalarGridSpec(
            num_scalar_prefetch=0,
            grid=(batch_tiles, num_layers),          # layers innermost (carry)
            in_specs=in_specs,
            out_specs=pl.BlockSpec((Bt, S, D_p), lambda b, l: (b, 0, 0)),
            scratch_shapes=scratch_shapes),
        compiler_params=pltpu.CompilerParams(
            dimension_semantics=("parallel", "arbitrary"),
            vmem_limit_bytes=vmem_limit),
    )(*args)

    return out[:, :, :D]


class TransformerEncoderPallas:
    """Mirrors fusionnet TransformerEncoder.forward (norm optional,
    return_atten_map=False, masks=None, eval-mode dropout)."""

    def __init__(self, layer_params_list, nhead, norm_params=None,
                 pe_only_at_begin=False, batch_tiles=1, lane_pad=128):
        self.nhead = nhead
        self.num_layers = len(layer_params_list)
        self.pe_only_at_begin = pe_only_at_begin
        self.batch_tiles = batch_tiles
        self.stacked, self.dims = stack_layer_params(layer_params_list, nhead,
                                                     lane_pad)
        if norm_params is not None:
            D, D_p = self.dims['d_model'], self.dims['d_pad']
            g, b = norm_params
            self.norm_padded = (
                jnp.pad(g.astype(jnp.float32), ((0, 0), (0, D_p - D))),
                jnp.pad(b.astype(jnp.float32), ((0, 0), (0, D_p - D))))
        else:
            self.norm_padded = None

    def __call__(self, src, pos=None):
        return transformer_encoder_pallas(
            src, pos, self.stacked, self.dims, nhead=self.nhead,
            num_layers=self.num_layers, pe_only_at_begin=self.pe_only_at_begin,
            norm_padded=self.norm_padded, batch_tiles=self.batch_tiles)


# ----------------------------- init & reference -----------------------------

def _xavier_uniform(key, shape):
    fan_in, fan_out = shape[0], shape[1]
    bound = math.sqrt(6.0 / (fan_in + fan_out))
    return jax.random.uniform(key, shape, jnp.float32, -bound, bound)


def make_layer_params(key, d_model, dim_feedforward):
    ks = jax.random.split(key, 6)
    D, F = d_model, dim_feedforward
    return {
        'wq': _xavier_uniform(ks[0], (D, D)),
        'wk': _xavier_uniform(ks[1], (D, D)),
        'wv': _xavier_uniform(ks[2], (D, D)),
        'bq': jnp.zeros((1, D), jnp.float32),
        'bk': jnp.zeros((1, D), jnp.float32),
        'bv': jnp.zeros((1, D), jnp.float32),
        'wo': _xavier_uniform(ks[3], (D, D)),
        'bo': jnp.zeros((1, D), jnp.float32),
        'ln1_g': jnp.ones((1, D), jnp.float32),
        'ln1_b': jnp.zeros((1, D), jnp.float32),
        'w1': _xavier_uniform(ks[4], (D, F)),
        'b1': jnp.zeros((1, F), jnp.float32),
        'w2': _xavier_uniform(ks[5], (F, D)),
        'b2': jnp.zeros((1, D), jnp.float32),
        'ln2_g': jnp.ones((1, D), jnp.float32),
        'ln2_b': jnp.zeros((1, D), jnp.float32),
    }


def _layernorm(x, gamma, beta, eps=1e-5):
    mu = jnp.mean(x, axis=-1, keepdims=True)
    var = jnp.mean((x - mu) ** 2, axis=-1, keepdims=True)
    return (x - mu) * jax.lax.rsqrt(var + eps) * gamma + beta


def _encoder_reference(src, pos, layer_params_list, nhead,
                       pe_only_at_begin=False, norm_params=None):
    """Pure-JAX f32 reference (post-norm TransformerEncoder, eval mode)."""
    x = src.astype(jnp.float32)
    cur_pos = None if pos is None else pos.astype(jnp.float32)
    B, S, D = x.shape
    hd = D // nhead
    for lp in layer_params_list:
        p = cur_pos if cur_pos is not None else jnp.zeros_like(x)
        qk_in = x + p
        q = qk_in @ lp['wq'] + lp['bq']
        k = qk_in @ lp['wk'] + lp['bk']
        v = x @ lp['wv'] + lp['bv']
        qh = q.reshape(B, S, nhead, hd).transpose(0, 2, 1, 3)
        kh = k.reshape(B, S, nhead, hd).transpose(0, 2, 1, 3)
        vh = v.reshape(B, S, nhead, hd).transpose(0, 2, 1, 3)
        s = jnp.einsum('bhqd,bhkd->bhqk', qh, kh) / math.sqrt(hd)
        pm = jax.nn.softmax(s, axis=-1)
        ctx = jnp.einsum('bhqk,bhkd->bhqd', pm, vh)
        ctx = ctx.transpose(0, 2, 1, 3).reshape(B, S, D)
        attn = ctx @ lp['wo'] + lp['bo']
        y = _layernorm(x + attn, lp['ln1_g'], lp['ln1_b'])
        h1 = jnp.maximum(y @ lp['w1'] + lp['b1'], 0.0)
        ff = h1 @ lp['w2'] + lp['b2']
        x = _layernorm(y + ff, lp['ln2_g'], lp['ln2_b'])
        cur_pos = None if pe_only_at_begin else cur_pos
    if norm_params is not None:
        g, b = norm_params
        x = _layernorm(x, g, b)
    return x


if __name__ == "__main__":
    # Small shapes implied by the module: (batch, seq, d_model)
    B, S, D, NHEAD, FF, NUM_LAYERS = 2, 16, 32, 4, 64, 2

    key = jax.random.PRNGKey(0)
    k_src, k_pos, k_params = jax.random.split(key, 3)
    src = jax.random.normal(k_src, (B, S, D), jnp.float32)
    pos = jax.random.normal(k_pos, (B, S, D), jnp.float32)

    layer_keys = jax.random.split(k_params, NUM_LAYERS)
    layer_params = [make_layer_params(layer_keys[i], D, FF)
                    for i in range(NUM_LAYERS)]
    norm_params = (jnp.ones((1, D), jnp.float32), jnp.zeros((1, D), jnp.float32))

    # Config A: pos + fused final LayerNorm + batch-parallel grid axis.
    model_a = TransformerEncoderPallas(layer_params, nhead=NHEAD,
                                       norm_params=norm_params,
                                       pe_only_at_begin=False, batch_tiles=2)
    out_a = model_a(src, pos=pos)
    jax.block_until_ready(out_a)
    assert out_a.shape == (B, S, D)
    ref_a = _encoder_reference(src, pos, layer_params, NHEAD,
                               norm_params=norm_params)
    err_a = float(jnp.max(jnp.abs(out_a.astype(jnp.float32) - ref_a)))
    assert err_a < 0.35, f"config A: max abs err too large: {err_a}"

    # Config B: pe_only_at_begin branch, single batch tile, no final norm.
    model_b = TransformerEncoderPallas(layer_params, nhead=NHEAD,
                                       pe_only_at_begin=True, batch_tiles=1)
    out_b = model_b(src, pos=pos)
    jax.block_until_ready(out_b)
    ref_b = _encoder_reference(src, pos, layer_params, NHEAD,
                               pe_only_at_begin=True)
    err_b = float(jnp.max(jnp.abs(out_b.astype(jnp.float32) - ref_b)))
    assert err_b < 0.35, f"config B: max abs err too large: {err_b}"

    # Config C: pos=None path (torch forward default).
    out_c = model_b(src, pos=None)
    jax.block_until_ready(out_c)
    ref_c = _encoder_reference(src, None, layer_params, NHEAD)
    err_c = float(jnp.max(jnp.abs(out_c.astype(jnp.float32) - ref_c)))
    assert err_c < 0.35, f"config C: max abs err too large: {err_c}"

    print("KERNEL_OK")
</pallas_src>

<mosaic_0001>
module attributes {stable_mosaic.version = 11 : i64} {
  func.func @kernel(%arg0: i32, %arg1: i32, %arg2: memref<2x16x512xf32, #tpu.memory_space<any>>, %arg3: memref<1x16x512xf32, #tpu.memory_space<vmem>>, %arg4: memref<1x512x1024xbf16, #tpu.memory_space<vmem>>, %arg5: memref<1x1x1024xf32, #tpu.memory_space<vmem>>, %arg6: memref<1x512x512xbf16, #tpu.memory_space<vmem>>, %arg7: memref<1x1x512xf32, #tpu.memory_space<vmem>>, %arg8: memref<1x512x512xbf16, #tpu.memory_space<vmem>>, %arg9: memref<1x1x512xf32, #tpu.memory_space<vmem>>, %arg10: memref<1x1x512xf32, #tpu.memory_space<vmem>>, %arg11: memref<1x1x512xf32, #tpu.memory_space<vmem>>, %arg12: memref<1x512x128xbf16, #tpu.memory_space<vmem>>, %arg13: memref<1x1x128xf32, #tpu.memory_space<vmem>>, %arg14: memref<1x128x512xbf16, #tpu.memory_space<vmem>>, %arg15: memref<1x1x512xf32, #tpu.memory_space<vmem>>, %arg16: memref<1x1x512xf32, #tpu.memory_space<vmem>>, %arg17: memref<1x1x512xf32, #tpu.memory_space<vmem>>, %arg18: memref<1x512xf32, #tpu.memory_space<vmem>>, %arg19: memref<1x512xf32, #tpu.memory_space<vmem>>, %arg20: memref<1x16x512xf32, #tpu.memory_space<vmem>>, %arg21: memref<1x16x512xf32, #tpu.memory_space<vmem>>, %arg22: memref<16x1024xbf16, #tpu.memory_space<vmem>>, %arg23: memref<16x512xbf16, #tpu.memory_space<vmem>>, %arg24: memref<16x512xbf16, #tpu.memory_space<vmem>>, %arg25: memref<!tpu.dma_semaphore, #tpu.memory_space<semaphore_mem>>) attributes {dimension_semantics = [#tpu.dimension_semantics<parallel>, #tpu.dimension_semantics<arbitrary>], iteration_bounds = array<i64: 2, 2>, scalar_prefetch = 0 : i64, scratch_operands = 5 : i64, tpu.core_type = #tpu.core_type<tc>, window_params = [{}, {transform_indices = @transform_1, window_bounds = array<i64: 1, 16, 512>}, {transform_indices = @transform_2, window_bounds = array<i64: 1, 512, 1024>}, {transform_indices = @transform_3, window_bounds = array<i64: 1, 1, 1024>}, {transform_indices = @transform_4, window_bounds = array<i64: 1, 512, 512>}, {transform_indices = @transform_5, window_bounds = array<i64: 1, 1, 512>}, {transform_indices = @transform_6, window_bounds = array<i64: 1, 512, 512>}, {transform_indices = @transform_7, window_bounds = array<i64: 1, 1, 512>}, {transform_indices = @transform_8, window_bounds = array<i64: 1, 1, 512>}, {transform_indices = @transform_9, window_bounds = array<i64: 1, 1, 512>}, {transform_indices = @transform_10, window_bounds = array<i64: 1, 512, 128>}, {transform_indices = @transform_11, window_bounds = array<i64: 1, 1, 128>}, {transform_indices = @transform_12, window_bounds = array<i64: 1, 128, 512>}, {transform_indices = @transform_13, window_bounds = array<i64: 1, 1, 512>}, {transform_indices = @transform_14, window_bounds = array<i64: 1, 1, 512>}, {transform_indices = @transform_15, window_bounds = array<i64: 1, 1, 512>}, {pipeline_mode = #tpu.pipeline_mode<synchronous>, transform_indices = @transform_16, window_bounds = array<i64: 1, 512>}, {pipeline_mode = #tpu.pipeline_mode<synchronous>, transform_indices = @transform_17, window_bounds = array<i64: 1, 512>}, {transform_indices = @transform_18, window_bounds = array<i64: 1, 16, 512>}]} {
    %c0_i32 = arith.constant 0 : i32
    %0 = arith.cmpi eq, %arg1, %c0_i32 : i32
    %1 = arith.extui %0 : i1 to i32
    %c0_i32_0 = arith.constant 0 : i32
    %2 = arith.cmpi ne, %1, %c0_i32_0 : i32
    scf.if %2 {
      %c1_i32_113 = arith.constant 1 : i32
      %202 = arith.muli %arg0, %c1_i32_113 : i32
      %c0_i32_114 = arith.constant 0 : i32
      %c0_i32_115 = arith.constant 0 : i32
      %203 = tpu.memref_slice %arg2[%202, %c0_i32_114, %c0_i32_115] : memref<2x16x512xf32, #tpu.memory_space<any>> -> memref<1x16x512xf32, #tpu.memory_space<any>>
      tpu.enqueue_dma source(%203 : memref<1x16x512xf32, #tpu.memory_space<any>>) target(%arg21 : memref<1x16x512xf32, #tpu.memory_space<vmem>>) target_semaphore(%arg25 : memref<!tpu.dma_semaphore, #tpu.memory_space<semaphore_mem>>)
      %c0_i32_116 = arith.constant 0 : i32
      %c0_i32_117 = arith.constant 0 : i32
      %204 = tpu.memref_slice %arg2[%202, %c0_i32_116, %c0_i32_117] : memref<2x16x512xf32, #tpu.memory_space<any>> -> memref<1x16x512xf32, #tpu.memory_space<any>>
      tpu.wait_dma2 semaphore(%arg25 : memref<!tpu.dma_semaphore, #tpu.memory_space<semaphore_mem>>) src(%204 : memref<1x16x512xf32, #tpu.memory_space<any>>) dst(%arg21 : memref<1x16x512xf32, #tpu.memory_space<vmem>>)
    } else {
    }
    %c0 = arith.constant 0 : index
    %c0_1 = arith.constant 0 : index
    %c0_2 = arith.constant 0 : index
    %3 = vector.load %arg21[%c0, %c0_1, %c0_2] : memref<1x16x512xf32, #tpu.memory_space<vmem>>, vector<1x16x512xf32>
    %4 = vector.shape_cast %3 : vector<1x16x512xf32> to vector<16x512xf32>
    %c0_3 = arith.constant 0 : index
    %c0_4 = arith.constant 0 : index
    %c0_5 = arith.constant 0 : index
    %5 = vector.load %arg3[%c0_3, %c0_4, %c0_5] : memref<1x16x512xf32, #tpu.memory_space<vmem>>, vector<1x16x512xf32>
    %6 = vector.shape_cast %5 : vector<1x16x512xf32> to vector<16x512xf32>
    %7 = arith.addf %4, %6 : vector<16x512xf32>
    %8 = arith.truncf %7 : vector<16x512xf32> to vector<16x512xbf16>
    %c0_6 = arith.constant 0 : index
    %c0_7 = arith.constant 0 : index
    %c0_8 = arith.constant 0 : index
    %9 = vector.load %arg4[%c0_6, %c0_7, %c0_8] : memref<1x512x1024xbf16, #tpu.memory_space<vmem>>, vector<1x512x1024xbf16>
    %10 = vector.shape_cast %9 : vector<1x512x1024xbf16> to vector<512x1024xbf16>
    %cst = arith.constant dense<0.000000e+00> : vector<16x1024xf32>
    %11 = tpu.matmul %8, %10, %cst {dimension_numbers = #tpu.dot_dimension_numbers<[1], [0], [0], [1], [0, 0, 1, 1], [], []>} : vector<16x512xbf16>, vector<512x1024xbf16>, vector<16x1024xf32> -> vector<16x1024xf32>
    %c0_9 = arith.constant 0 : index
    %c0_10 = arith.constant 0 : index
    %c0_11 = arith.constant 0 : index
    %12 = vector.load %arg5[%c0_9, %c0_10, %c0_11] : memref<1x1x1024xf32, #tpu.memory_space<vmem>>, vector<1x1x1024xf32>
    %13 = vector.shape_cast %12 : vector<1x1x1024xf32> to vector<1x1024xf32>
    %14 = vector.broadcast %13 : vector<1x1024xf32> to vector<16x1024xf32>
    %15 = arith.addf %11, %14 : vector<16x1024xf32>
    %16 = arith.truncf %15 : vector<16x1024xf32> to vector<16x1024xbf16>
    %c0_12 = arith.constant 0 : index
    %c0_13 = arith.constant 0 : index
    %17 = vector.load %arg22[%c0_12, %c0_13] : memref<16x1024xbf16, #tpu.memory_space<vmem>>, vector<16x1024xbf16>
    tpu.vector_store %arg22[%c0_12, %c0_13], %16 {strides = array<i32>} : memref<16x1024xbf16, #tpu.memory_space<vmem>>, vector<16x1024xbf16>,
    %18 = arith.truncf %4 : vector<16x512xf32> to vector<16x512xbf16>
    %c0_14 = arith.constant 0 : index
    %c0_15 = arith.constant 0 : index
    %c0_16 = arith.constant 0 : index
    %19 = vector.load %arg6[%c0_14, %c0_15, %c0_16] : memref<1x512x512xbf16, #tpu.memory_space<vmem>>, vector<1x512x512xbf16>
    %20 = vector.shape_cast %19 : vector<1x512x512xbf16> to vector<512x512xbf16>
    %cst_17 = arith.constant dense<0.000000e+00> : vector<16x512xf32>
    %21 = tpu.matmul %18, %20, %cst_17 {dimension_numbers = #tpu.dot_dimension_numbers<[1], [0], [0], [1], [0, 0, 1, 1], [], []>} : vector<16x512xbf16>, vector<512x512xbf16>, vector<16x512xf32> -> vector<16x512xf32>
    %c0_18 = arith.constant 0 : index
    %c0_19 = arith.constant 0 : index
    %c0_20 = arith.constant 0 : index
    %22 = vector.load %arg7[%c0_18, %c0_19, %c0_20] : memref<1x1x512xf32, #tpu.memory_space<vmem>>, vector<1x1x512xf32>
    %23 = vector.shape_cast %22 : vector<1x1x512xf32> to vector<1x512xf32>
    %24 = vector.broadcast %23 : vector<1x512xf32> to vector<16x512xf32>
    %25 = arith.addf %21, %24 : vector<16x512xf32>
    %26 = arith.truncf %25 : vector<16x512xf32> to vector<16x512xbf16>
    %c0_21 = arith.constant 0 : index
    %c0_22 = arith.constant 0 : index
    %27 = vector.load %arg23[%c0_21, %c0_22] : memref<16x512xbf16, #tpu.memory_space<vmem>>, vector<16x512xbf16>
    tpu.vector_store %arg23[%c0_21, %c0_22], %26 {strides = array<i32>} : memref<16x512xbf16, #tpu.memory_space<vmem>>, vector<16x512xbf16>,
    %c0_23 = arith.constant 0 : index
    %c0_24 = arith.constant 0 : index
    %28 = vector.load %arg22[%c0_23, %c0_24] : memref<16x1024xbf16, #tpu.memory_space<vmem>>, vector<16x128xbf16>
    %29 = vector.shape_cast %28 : vector<16x128xbf16> to vector<1x16x128xbf16>
    %c0_25 = arith.constant 0 : index
    %c512 = arith.constant 512 : index
    %30 = vector.load %arg22[%c0_25, %c512] : memref<16x1024xbf16, #tpu.memory_space<vmem>>, vector<16x128xbf16>
    %31 = vector.shape_cast %30 : vector<16x128xbf16> to vector<1x16x128xbf16>
    %c0_26 = arith.constant 0 : index
    %c0_27 = arith.constant 0 : index
    %32 = vector.load %arg23[%c0_26, %c0_27] : memref<16x512xbf16, #tpu.memory_space<vmem>>, vector<16x128xbf16>
    %33 = vector.shape_cast %32 : vector<16x128xbf16> to vector<1x16x128xbf16>
    "tpu.trace_start"() <{level = 10 : i32, message = "bqd,bkd->bqk"}> : () -> ()
    %cst_28 = arith.constant dense<0.000000e+00> : vector<1x16x16xf32>
    %34 = tpu.matmul %29, %31, %cst_28 {dimension_numbers = #tpu.dot_dimension_numbers<[2], [2], [1], [1], [0, 0, 0, 1, 1, 1], [0], [0]>} : vector<1x16x128xbf16>, vector<1x16x128xbf16>, vector<1x16x16xf32> -> vector<1x16x16xf32>
    "tpu.trace_stop"() : () -> ()
    %cst_29 = arith.constant dense<0xFF800000> : vector<1x16xf32>
    %35 = vector.multi_reduction <maximumf>, %34, %cst_29 [2] : vector<1x16x16xf32> to vector<1x16xf32>
    %36 = vector.shape_cast %35 : vector<1x16xf32> to vector<1x16x1xf32>
    %37 = vector.broadcast %36 : vector<1x16x1xf32> to vector<1x16x16xf32>
    %38 = arith.subf %34, %37 : vector<1x16x16xf32>
    %39 = math.exp %38 : vector<1x16x16xf32>
    %cst_30 = arith.constant dense<0.000000e+00> : vector<1x16xf32>
    %40 = vector.multi_reduction <add>, %39, %cst_30 [2] : vector<1x16x16xf32> to vector<1x16xf32>
    %41 = vector.shape_cast %40 : vector<1x16xf32> to vector<1x16x1xf32>
    %42 = tpu.reciprocal %41 {approx = true} : vector<1x16x1xf32> -> vector<1x16x1xf32>
    %43 = vector.broadcast %42 : vector<1x16x1xf32> to vector<1x16x16xf32>
    %44 = arith.mulf %39, %43 : vector<1x16x16xf32>
    %45 = arith.truncf %44 : vector<1x16x16xf32> to vector<1x16x16xbf16>
    "tpu.trace_start"() <{level = 10 : i32, message = "bqk,bkd->bqd"}> : () -> ()
    %cst_31 = arith.constant dense<0.000000e+00> : vector<1x16x128xf32>
    %46 = tpu.matmul %45, %33, %cst_31 {dimension_numbers = #tpu.dot_dimension_numbers<[2], [1], [1], [2], [0, 0, 0, 1, 1, 2], [0], [0]>} : vector<1x16x16xbf16>, vector<1x16x128xbf16>, vector<1x16x128xf32> -> vector<1x16x128xf32>
    "tpu.trace_stop"() : () -> ()
    %47 = vector.shape_cast %46 : vector<1x16x128xf32> to vector<16x128xf32>
    %48 = arith.truncf %47 : vector<16x128xf32> to vector<16x128xbf16>
    %c0_32 = arith.constant 0 : index
    %c0_33 = arith.constant 0 : index
    %49 = vector.load %arg24[%c0_32, %c0_33] : memref<16x512xbf16, #tpu.memory_space<vmem>>, vector<16x128xbf16>
    tpu.vector_store %arg24[%c0_32, %c0_33], %48 {strides = array<i32>} : memref<16x512xbf16, #tpu.memory_space<vmem>>, vector<16x128xbf16>,
    %c0_34 = arith.constant 0 : index
    %c128 = arith.constant 128 : index
    %50 = vector.load %arg22[%c0_34, %c128] : memref<16x1024xbf16, #tpu.memory_space<vmem>>, vector<16x128xbf16>
    %51 = vector.shape_cast %50 : vector<16x128xbf16> to vector<1x16x128xbf16>
    %c0_35 = arith.constant 0 : index
    %c640 = arith.constant 640 : index
    %52 = vector.load %arg22[%c0_35, %c640] : memref<16x1024xbf16, #tpu.memory_space<vmem>>, vector<16x128xbf16>
    %53 = vector.shape_cast %52 : vector<16x128xbf16> to vector<1x16x128xbf16>
    %c0_36 = arith.constant 0 : index
    %c128_37 = arith.constant 128 : index
    %54 = vector.load %arg23[%c0_36, %c128_37] : memref<16x512xbf16, #tpu.memory_space<vmem>>, vector<16x128xbf16>
    %55 = vector.shape_cast %54 : vector<16x128xbf16> to vector<1x16x128xbf16>
    "tpu.trace_start"() <{level = 10 : i32, message = "bqd,bkd->bqk"}> : () -> ()
    %cst_38 = arith.constant dense<0.000000e+00> : vector<1x16x16xf32>
    %56 = tpu.matmul %51, %53, %cst_38 {dimension_numbers = #tpu.dot_dimension_numbers<[2], [2], [1], [1], [0, 0, 0, 1, 1, 1], [0], [0]>} : vector<1x16x128xbf16>, vector<1x16x128xbf16>, vector<1x16x16xf32> -> vector<1x16x16xf32>
    "tpu.trace_stop"() : () -> ()
    %cst_39 = arith.constant dense<0xFF800000> : vector<1x16xf32>
    %57 = vector.multi_reduction <maximumf>, %56, %cst_39 [2] : vector<1x16x16xf32> to vector<1x16xf32>
    %58 = vector.shape_cast %57 : vector<1x16xf32> to vector<1x16x1xf32>
    %59 = vector.broadcast %58 : vector<1x16x1xf32> to vector<1x16x16xf32>
    %60 = arith.subf %56, %59 : vector<1x16x16xf32>
    %61 = math.exp %60 : vector<1x16x16xf32>
    %cst_40 = arith.constant dense<0.000000e+00> : vector<1x16xf32>
    %62 = vector.multi_reduction <add>, %61, %cst_40 [2] : vector<1x16x16xf32> to vector<1x16xf32>
    %63 = vector.shape_cast %62 : vector<1x16xf32> to vector<1x16x1xf32>
    %64 = tpu.reciprocal %63 {approx = true} : vector<1x16x1xf32> -> vector<1x16x1xf32>
    %65 = vector.broadcast %64 : vector<1x16x1xf32> to vector<1x16x16xf32>
    %66 = arith.mulf %61, %65 : vector<1x16x16xf32>
    %67 = arith.truncf %66 : vector<1x16x16xf32> to vector<1x16x16xbf16>
    "tpu.trace_start"() <{level = 10 : i32, message = "bqk,bkd->bqd"}> : () -> ()
    %cst_41 = arith.constant dense<0.000000e+00> : vector<1x16x128xf32>
    %68 = tpu.matmul %67, %55, %cst_41 {dimension_numbers = #tpu.dot_dimension_numbers<[2], [1], [1], [2], [0, 0, 0, 1, 1, 2], [0], [0]>} : vector<1x16x16xbf16>, vector<1x16x128xbf16>, vector<1x16x128xf32> -> vector<1x16x128xf32>
    "tpu.trace_stop"() : () -> ()
    %69 = vector.shape_cast %68 : vector<1x16x128xf32> to vector<16x128xf32>
    %70 = arith.truncf %69 : vector<16x128xf32> to vector<16x128xbf16>
    %c0_42 = arith.constant 0 : index
    %c128_43 = arith.constant 128 : index
    %71 = vector.load %arg24[%c0_42, %c128_43] : memref<16x512xbf16, #tpu.memory_space<vmem>>, vector<16x128xbf16>
    tpu.vector_store %arg24[%c0_42, %c128_43], %70 {strides = array<i32>} : memref<16x512xbf16, #tpu.memory_space<vmem>>, vector<16x128xbf16>,
    %c0_44 = arith.constant 0 : index
    %c256 = arith.constant 256 : index
    %72 = vector.load %arg22[%c0_44, %c256] : memref<16x1024xbf16, #tpu.memory_space<vmem>>, vector<16x128xbf16>
    %73 = vector.shape_cast %72 : vector<16x128xbf16> to vector<1x16x128xbf16>
    %c0_45 = arith.constant 0 : index
    %c768 = arith.constant 768 : index
    %74 = vector.load %arg22[%c0_45, %c768] : memref<16x1024xbf16, #tpu.memory_space<vmem>>, vector<16x128xbf16>
    %75 = vector.shape_cast %74 : vector<16x128xbf16> to vector<1x16x128xbf16>
    %c0_46 = arith.constant 0 : index
    %c256_47 = arith.constant 256 : index
    %76 = vector.load %arg23[%c0_46, %c256_47] : memref<16x512xbf16, #tpu.memory_space<vmem>>, vector<16x128xbf16>
    %77 = vector.shape_cast %76 : vector<16x128xbf16> to vector<1x16x128xbf16>
    "tpu.trace_start"() <{level = 10 : i32, message = "bqd,bkd->bqk"}> : () -> ()
    %cst_48 = arith.constant dense<0.000000e+00> : vector<1x16x16xf32>
    %78 = tpu.matmul %73, %75, %cst_48 {dimension_numbers = #tpu.dot_dimension_numbers<[2], [2], [1], [1], [0, 0, 0, 1, 1, 1], [0], [0]>} : vector<1x16x128xbf16>, vector<1x16x128xbf16>, vector<1x16x16xf32> -> vector<1x16x16xf32>
    "tpu.trace_stop"() : () -> ()
    %cst_49 = arith.constant dense<0xFF800000> : vector<1x16xf32>
    %79 = vector.multi_reduction <maximumf>, %78, %cst_49 [2] : vector<1x16x16xf32> to vector<1x16xf32>
    %80 = vector.shape_cast %79 : vector<1x16xf32> to vector<1x16x1xf32>
    %81 = vector.broadcast %80 : vector<1x16x1xf32> to vector<1x16x16xf32>
    %82 = arith.subf %78, %81 : vector<1x16x16xf32>
    %83 = math.exp %82 : vector<1x16x16xf32>
    %cst_50 = arith.constant dense<0.000000e+00> : vector<1x16xf32>
    %84 = vector.multi_reduction <add>, %83, %cst_50 [2] : vector<1x16x16xf32> to vector<1x16xf32>
    %85 = vector.shape_cast %84 : vector<1x16xf32> to vector<1x16x1xf32>
    %86 = tpu.reciprocal %85 {approx = true} : vector<1x16x1xf32> -> vector<1x16x1xf32>
    %87 = vector.broadcast %86 : vector<1x16x1xf32> to vector<1x16x16xf32>
    %88 = arith.mulf %83, %87 : vector<1x16x16xf32>
    %89 = arith.truncf %88 : vector<1x16x16xf32> to vector<1x16x16xbf16>
    "tpu.trace_start"() <{level = 10 : i32, message = "bqk,bkd->bqd"}> : () -> ()
    %cst_51 = arith.constant dense<0.000000e+00> : vector<1x16x128xf32>
    %90 = tpu.matmul %89, %77, %cst_51 {dimension_numbers = #tpu.dot_dimension_numbers<[2], [1], [1], [2], [0, 0, 0, 1, 1, 2], [0], [0]>} : vector<1x16x16xbf16>, vector<1x16x128xbf16>, vector<1x16x128xf32> -> vector<1x16x128xf32>
    "tpu.trace_stop"() : () -> ()
    %91 = vector.shape_cast %90 : vector<1x16x128xf32> to vector<16x128xf32>
    %92 = arith.truncf %91 : vector<16x128xf32> to vector<16x128xbf16>
    %c0_52 = arith.constant 0 : index
    %c256_53 = arith.constant 256 : index
    %93 = vector.load %arg24[%c0_52, %c256_53] : memref<16x512xbf16, #tpu.memory_space<vmem>>, vector<16x128xbf16>
    tpu.vector_store %arg24[%c0_52, %c256_53], %92 {strides = array<i32>} : memref<16x512xbf16, #tpu.memory_space<vmem>>, vector<16x128xbf16>,
    %c0_54 = arith.constant 0 : index
    %c384 = arith.constant 384 : index
    %94 = vector.load %arg22[%c0_54, %c384] : memref<16x1024xbf16, #tpu.memory_space<vmem>>, vector<16x128xbf16>
    %95 = vector.shape_cast %94 : vector<16x128xbf16> to vector<1x16x128xbf16>
    %c0_55 = arith.constant 0 : index
    %c896 = arith.constant 896 : index
    %96 = vector.load %arg22[%c0_55, %c896] : memref<16x1024xbf16, #tpu.memory_space<vmem>>, vector<16x128xbf16>
    %97 = vector.shape_cast %96 : vector<16x128xbf16> to vector<1x16x128xbf16>
    %c0_56 = arith.constant 0 : index
    %c384_57 = arith.constant 384 : index
    %98 = vector.load %arg23[%c0_56, %c384_57] : memref<16x512xbf16, #tpu.memory_space<vmem>>, vector<16x128xbf16>
    %99 = vector.shape_cast %98 : vector<16x128xbf16> to vector<1x16x128xbf16>
    "tpu.trace_start"() <{level = 10 : i32, message = "bqd,bkd->bqk"}> : () -> ()
    %cst_58 = arith.constant dense<0.000000e+00> : vector<1x16x16xf32>
    %100 = tpu.matmul %95, %97, %cst_58 {dimension_numbers = #tpu.dot_dimension_numbers<[2], [2], [1], [1], [0, 0, 0, 1, 1, 1], [0], [0]>} : vector<1x16x128xbf16>, vector<1x16x128xbf16>, vector<1x16x16xf32> -> vector<1x16x16xf32>
    "tpu.trace_stop"() : () -> ()
    %cst_59 = arith.constant dense<0xFF800000> : vector<1x16xf32>
    %101 = vector.multi_reduction <maximumf>, %100, %cst_59 [2] : vector<1x16x16xf32> to vector<1x16xf32>
    %102 = vector.shape_cast %101 : vector<1x16xf32> to vector<1x16x1xf32>
    %103 = vector.broadcast %102 : vector<1x16x1xf32> to vector<1x16x16xf32>
    %104 = arith.subf %100, %103 : vector<1x16x16xf32>
    %105 = math.exp %104 : vector<1x16x16xf32>
    %cst_60 = arith.constant dense<0.000000e+00> : vector<1x16xf32>
    %106 = vector.multi_reduction <add>, %105, %cst_60 [2] : vector<1x16x16xf32> to vector<1x16xf32>
    %107 = vector.shape_cast %106 : vector<1x16xf32> to vector<1x16x1xf32>
    %108 = tpu.reciprocal %107 {approx = true} : vector<1x16x1xf32> -> vector<1x16x1xf32>
    %109 = vector.broadcast %108 : vector<1x16x1xf32> to vector<1x16x16xf32>
    %110 = arith.mulf %105, %109 : vector<1x16x16xf32>
    %111 = arith.truncf %110 : vector<1x16x16xf32> to vector<1x16x16xbf16>
    "tpu.trace_start"() <{level = 10 : i32, message = "bqk,bkd->bqd"}> : () -> ()
    %cst_61 = arith.constant dense<0.000000e+00> : vector<1x16x128xf32>
    %112 = tpu.matmul %111, %99, %cst_61 {dimension_numbers = #tpu.dot_dimension_numbers<[2], [1], [1], [2], [0, 0, 0, 1, 1, 2], [0], [0]>} : vector<1x16x16xbf16>, vector<1x16x128xbf16>, vector<1x16x128xf32> -> vector<1x16x128xf32>
    "tpu.trace_stop"() : () -> ()
    %113 = vector.shape_cast %112 : vector<1x16x128xf32> to vector<16x128xf32>
    %114 = arith.truncf %113 : vector<16x128xf32> to vector<16x128xbf16>
    %c0_62 = arith.constant 0 : index
    %c384_63 = arith.constant 384 : index
    %115 = vector.load %arg24[%c0_62, %c384_63] : memref<16x512xbf16, #tpu.memory_space<vmem>>, vector<16x128xbf16>
    tpu.vector_store %arg24[%c0_62, %c384_63], %114 {strides = array<i32>} : memref<16x512xbf16, #tpu.memory_space<vmem>>, vector<16x128xbf16>,
    %c0_64 = arith.constant 0 : index
    %c0_65 = arith.constant 0 : index
    %116 = vector.load %arg24[%c0_64, %c0_65] : memref<16x512xbf16, #tpu.memory_space<vmem>>, vector<16x512xbf16>
    %c0_66 = arith.constant 0 : index
    %c0_67 = arith.constant 0 : index
    %c0_68 = arith.constant 0 : index
    %117 = vector.load %arg8[%c0_66, %c0_67, %c0_68] : memref<1x512x512xbf16, #tpu.memory_space<vmem>>, vector<1x512x512xbf16>
    %118 = vector.shape_cast %117 : vector<1x512x512xbf16> to vector<512x512xbf16>
    %cst_69 = arith.constant dense<0.000000e+00> : vector<16x512xf32>
    %119 = tpu.matmul %116, %118, %cst_69 {dimension_numbers = #tpu.dot_dimension_numbers<[1], [0], [0], [1], [0, 0, 1, 1], [], []>} : vector<16x512xbf16>, vector<512x512xbf16>, vector<16x512xf32> -> vector<16x512xf32>
    %c0_70 = arith.constant 0 : index
    %c0_71 = arith.constant 0 : index
    %c0_72 = arith.constant 0 : index
    %120 = vector.load %arg9[%c0_70, %c0_71, %c0_72] : memref<1x1x512xf32, #tpu.memory_space<vmem>>, vector<1x1x512xf32>
    %121 = vector.shape_cast %120 : vector<1x1x512xf32> to vector<1x512xf32>
    %122 = vector.broadcast %121 : vector<1x512xf32> to vector<16x512xf32>
    %123 = arith.addf %119, %122 : vector<16x512xf32>
    %124 = arith.addf %4, %123 : vector<16x512xf32>
    %c0_73 = arith.constant 0 : index
    %c0_74 = arith.constant 0 : index
    %c0_75 = arith.constant 0 : index
    %125 = vector.load %arg10[%c0_73, %c0_74, %c0_75] : memref<1x1x512xf32, #tpu.memory_space<vmem>>, vector<1x1x512xf32>
    %126 = vector.shape_cast %125 : vector<1x1x512xf32> to vector<1x512xf32>
    %c0_76 = arith.constant 0 : index
    %c0_77 = arith.constant 0 : index
    %c0_78 = arith.constant 0 : index
    %127 = vector.load %arg11[%c0_76, %c0_77, %c0_78] : memref<1x1x512xf32, #tpu.memory_space<vmem>>, vector<1x1x512xf32>
    %128 = vector.shape_cast %127 : vector<1x1x512xf32> to vector<1x512xf32>
    %cst_79 = arith.constant dense<0.000000e+00> : vector<16xf32>
    %129 = vector.multi_reduction <add>, %124, %cst_79 [1] : vector<16x512xf32> to vector<16xf32>
    %130 = vector.shape_cast %129 : vector<16xf32> to vector<16x1xf32>
    %cst_80 = arith.constant 3.200000e+01 : f32
    %131 = vector.broadcast %cst_80 : f32 to vector<16x1xf32>
    %132 = arith.divf %130, %131 : vector<16x1xf32>
    %133 = arith.mulf %124, %124 : vector<16x512xf32>
    %cst_81 = arith.constant dense<0.000000e+00> : vector<16xf32>
    %134 = vector.multi_reduction <add>, %133, %cst_81 [1] : vector<16x512xf32> to vector<16xf32>
    %135 = vector.shape_cast %134 : vector<16xf32> to vector<16x1xf32>
    %cst_82 = arith.constant 3.200000e+01 : f32
    %136 = vector.broadcast %cst_82 : f32 to vector<16x1xf32>
    %137 = arith.divf %135, %136 : vector<16x1xf32>
    %138 = arith.mulf %132, %132 : vector<16x1xf32>
    %139 = arith.subf %137, %138 : vector<16x1xf32>
    %140 = vector.broadcast %132 : vector<16x1xf32> to vector<16x512xf32>
    %141 = arith.subf %124, %140 : vector<16x512xf32>
    %cst_83 = arith.constant 9.99999974E-6 : f32
    %142 = vector.broadcast %cst_83 : f32 to vector<16x1xf32>
    %143 = arith.addf %139, %142 : vector<16x1xf32>
    %144 = math.rsqrt %143 : vector<16x1xf32>
    %145 = vector.broadcast %144 : vector<16x1xf32> to vector<16x512xf32>
    %146 = arith.mulf %141, %145 : vector<16x512xf32>
    %147 = vector.broadcast %126 : vector<1x512xf32> to vector<16x512xf32>
    %148 = arith.mulf %146, %147 : vector<16x512xf32>
    %149 = vector.broadcast %128 : vector<1x512xf32> to vector<16x512xf32>
    %150 = arith.addf %148, %149 : vector<16x512xf32>
    %151 = arith.truncf %150 : vector<16x512xf32> to vector<16x512xbf16>
    %c0_84 = arith.constant 0 : index
    %c0_85 = arith.constant 0 : index
    %c0_86 = arith.constant 0 : index
    %152 = vector.load %arg12[%c0_84, %c0_85, %c0_86] : memref<1x512x128xbf16, #tpu.memory_space<vmem>>, vector<1x512x128xbf16>
    %153 = vector.shape_cast %152 : vector<1x512x128xbf16> to vector<512x128xbf16>
    %cst_87 = arith.constant dense<0.000000e+00> : vector<16x128xf32>
    %154 = tpu.matmul %151, %153, %cst_87 {dimension_numbers = #tpu.dot_dimension_numbers<[1], [0], [0], [1], [0, 0, 1, 1], [], []>} : vector<16x512xbf16>, vector<512x128xbf16>, vector<16x128xf32> -> vector<16x128xf32>
    %c0_88 = arith.constant 0 : index
    %c0_89 = arith.constant 0 : index
    %c0_90 = arith.constant 0 : index
    %155 = vector.load %arg13[%c0_88, %c0_89, %c0_90] : memref<1x1x128xf32, #tpu.memory_space<vmem>>, vector<1x1x128xf32>
    %156 = vector.shape_cast %155 : vector<1x1x128xf32> to vector<1x128xf32>
    %157 = vector.broadcast %156 : vector<1x128xf32> to vector<16x128xf32>
    %158 = arith.addf %154, %157 : vector<16x128xf32>
    %cst_91 = arith.constant 0.000000e+00 : f32
    %159 = vector.broadcast %cst_91 : f32 to vector<16x128xf32>
    %160 = arith.maximumf %158, %159 : vector<16x128xf32>
    %161 = arith.truncf %160 : vector<16x128xf32> to vector<16x128xbf16>
    %c0_92 = arith.constant 0 : index
    %c0_93 = arith.constant 0 : index
    %c0_94 = arith.constant 0 : index
    %162 = vector.load %arg14[%c0_92, %c0_93, %c0_94] : memref<1x128x512xbf16, #tpu.memory_space<vmem>>, vector<1x128x512xbf16>
    %163 = vector.shape_cast %162 : vector<1x128x512xbf16> to vector<128x512xbf16>
    %cst_95 = arith.constant dense<0.000000e+00> : vector<16x512xf32>
    %164 = tpu.matmul %161, %163, %cst_95 {dimension_numbers = #tpu.dot_dimension_numbers<[1], [0], [0], [1], [0, 0, 1, 1], [], []>} : vector<16x128xbf16>, vector<128x512xbf16>, vector<16x512xf32> -> vector<16x512xf32>
    %c0_96 = arith.constant 0 : index
    %c0_97 = arith.constant 0 : index
    %c0_98 = arith.constant 0 : index
    %165 = vector.load %arg15[%c0_96, %c0_97, %c0_98] : memref<1x1x512xf32, #tpu.memory_space<vmem>>, vector<1x1x512xf32>
    %166 = vector.shape_cast %165 : vector<1x1x512xf32> to vector<1x512xf32>
    %167 = vector.broadcast %166 : vector<1x512xf32> to vector<16x512xf32>
    %168 = arith.addf %164, %167 : vector<16x512xf32>
    %169 = arith.addf %150, %168 : vector<16x512xf32>
    %c0_99 = arith.constant 0 : index
    %c0_100 = arith.constant 0 : index
    %c0_101 = arith.constant 0 : index
    %170 = vector.load %arg16[%c0_99, %c0_100, %c0_101] : memref<1x1x512xf32, #tpu.memory_space<vmem>>, vector<1x1x512xf32>
    %171 = vector.shape_cast %170 : vector<1x1x512xf32> to vector<1x512xf32>
    %c0_102 = arith.constant 0 : index
    %c0_103 = arith.constant 0 : index
    %c0_104 = arith.constant 0 : index
    %172 = vector.load %arg17[%c0_102, %c0_103, %c0_104] : memref<1x1x512xf32, #tpu.memory_space<vmem>>, vector<1x1x512xf32>
    %173 = vector.shape_cast %172 : vector<1x1x512xf32> to vector<1x512xf32>
    %cst_105 = arith.constant dense<0.000000e+00> : vector<16xf32>
    %174 = vector.multi_reduction <add>, %169, %cst_105 [1] : vector<16x512xf32> to vector<16xf32>
    %175 = vector.shape_cast %174 : vector<16xf32> to vector<16x1xf32>
    %cst_106 = arith.constant 3.200000e+01 : f32
    %176 = vector.broadcast %cst_106 : f32 to vector<16x1xf32>
    %177 = arith.divf %175, %176 : vector<16x1xf32>
    %178 = arith.mulf %169, %169 : vector<16x512xf32>
    %cst_107 = arith.constant dense<0.000000e+00> : vector<16xf32>
    %179 = vector.multi_reduction <add>, %178, %cst_107 [1] : vector<16x512xf32> to vector<16xf32>
    %180 = vector.shape_cast %179 : vector<16xf32> to vector<16x1xf32>
    %cst_108 = arith.constant 3.200000e+01 : f32
    %181 = vector.broadcast %cst_108 : f32 to vector<16x1xf32>
    %182 = arith.divf %180, %181 : vector<16x1xf32>
    %183 = arith.mulf %177, %177 : vector<16x1xf32>
    %184 = arith.subf %182, %183 : vector<16x1xf32>
    %185 = vector.broadcast %177 : vector<16x1xf32> to vector<16x512xf32>
    %186 = arith.subf %169, %185 : vector<16x512xf32>
    %cst_109 = arith.constant 9.99999974E-6 : f32
    %187 = vector.broadcast %cst_109 : f32 to vector<16x1xf32>
    %188 = arith.addf %184, %187 : vector<16x1xf32>
    %189 = math.rsqrt %188 : vector<16x1xf32>
    %190 = vector.broadcast %189 : vector<16x1xf32> to vector<16x512xf32>
    %191 = arith.mulf %186, %190 : vector<16x512xf32>
    %192 = vector.broadcast %171 : vector<1x512xf32> to vector<16x512xf32>
    %193 = arith.mulf %191, %192 : vector<16x512xf32>
    %194 = vector.broadcast %173 : vector<1x512xf32> to vector<16x512xf32>
    %195 = arith.addf %193, %194 : vector<16x512xf32>
    %c1_i32 = arith.constant 1 : i32
    %196 = arith.cmpi slt, %arg1, %c1_i32 : i32
    %197 = arith.extui %196 : i1 to i32
    %c0_i32_110 = arith.constant 0 : i32
    %198 = arith.cmpi ne, %197, %c0_i32_110 : i32
    scf.if %198 {
      %202 = vector.shape_cast %195 : vector<16x512xf32> to vector<1x16x512xf32>
      %c0_113 = arith.constant 0 : index
      %c0_114 = arith.constant 0 : index
      %c0_115 = arith.constant 0 : index
      %203 = vector.load %arg21[%c0_113, %c0_114, %c0_115] : memref<1x16x512xf32, #tpu.memory_space<vmem>>, vector<1x16x512xf32>
      tpu.vector_store %arg21[%c0_113, %c0_114, %c0_115], %202 {strides = array<i32>} : memref<1x16x512xf32, #tpu.memory_space<vmem>>, vector<1x16x512xf32>,
    } else {
    }
    %c1_i32_111 = arith.constant 1 : i32
    %199 = arith.cmpi eq, %arg1, %c1_i32_111 : i32
    %200 = arith.extui %199 : i1 to i32
    %c0_i32_112 = arith.constant 0 : i32
    %201 = arith.cmpi ne, %200, %c0_i32_112 : i32
    scf.if %201 {
      %c0_113 = arith.constant 0 : index
      %c0_114 = arith.constant 0 : index
      %202 = vector.load %arg18[%c0_113, %c0_114] : memref<1x512xf32, #tpu.memory_space<vmem>>, vector<1x512xf32>
      %c0_115 = arith.constant 0 : index
      %c0_116 = arith.constant 0 : index
      %203 = vector.load %arg19[%c0_115, %c0_116] : memref<1x512xf32, #tpu.memory_space<vmem>>, vector<1x512xf32>
      %cst_117 = arith.constant dense<0.000000e+00> : vector<16xf32>
      %204 = vector.multi_reduction <add>, %195, %cst_117 [1] : vector<16x512xf32> to vector<16xf32>
      %205 = vector.shape_cast %204 : vector<16xf32> to vector<16x1xf32>
      %cst_118 = arith.constant 3.200000e+01 : f32
      %206 = vector.broadcast %cst_118 : f32 to vector<16x1xf32>
      %207 = arith.divf %205, %206 : vector<16x1xf32>
      %208 = arith.mulf %195, %195 : vector<16x512xf32>
      %cst_119 = arith.constant dense<0.000000e+00> : vector<16xf32>
      %209 = vector.multi_reduction <add>, %208, %cst_119 [1] : vector<16x512xf32> to vector<16xf32>
      %210 = vector.shape_cast %209 : vector<16xf32> to vector<16x1xf32>
      %cst_120 = arith.constant 3.200000e+01 : f32
      %211 = vector.broadcast %cst_120 : f32 to vector<16x1xf32>
      %212 = arith.divf %210, %211 : vector<16x1xf32>
      %213 = arith.mulf %207, %207 : vector<16x1xf32>
      %214 = arith.subf %212, %213 : vector<16x1xf32>
      %215 = vector.broadcast %207 : vector<16x1xf32> to vector<16x512xf32>
      %216 = arith.subf %195, %215 : vector<16x512xf32>
      %cst_121 = arith.constant 9.99999974E-6 : f32
      %217 = vector.broadcast %cst_121 : f32 to vector<16x1xf32>
      %218 = arith.addf %214, %217 : vector<16x1xf32>
      %219 = math.rsqrt %218 : vector<16x1xf32>
      %220 = vector.broadcast %219 : vector<16x1xf32> to vector<16x512xf32>
      %221 = arith.mulf %216, %220 : vector<16x512xf32>
      %222 = vector.broadcast %202 : vector<1x512xf32> to vector<16x512xf32>
      %223 = arith.mulf %221, %222 : vector<16x512xf32>
      %224 = vector.broadcast %203 : vector<1x512xf32> to vector<16x512xf32>
      %225 = arith.addf %223, %224 : vector<16x512xf32>
      %226 = vector.shape_cast %225 : vector<16x512xf32> to vector<1x16x512xf32>
      %c0_122 = arith.constant 0 : index
      %c0_123 = arith.constant 0 : index
      %c0_124 = arith.constant 0 : index
      %227 = vector.load %arg20[%c0_122, %c0_123, %c0_124] : memref<1x16x512xf32, #tpu.memory_space<vmem>>, vector<1x16x512xf32>
      tpu.vector_store %arg20[%c0_122, %c0_123, %c0_124], %226 {strides = array<i32>} : memref<1x16x512xf32, #tpu.memory_space<vmem>>, vector<1x16x512xf32>,
    } else {
    }
    return
  }
  func.func @transform_1(%arg0: i32, %arg1: i32) -> (i32, i32, i32) {
    %c0_i32 = arith.constant 0 : i32
    %c0_i32_0 = arith.constant 0 : i32
    %c0_i32_1 = arith.constant 0 : i32
    return %arg0, %c0_i32, %c0_i32_0 : i32, i32, i32
  }
  func.func @transform_2(%arg0: i32, %arg1: i32) -> (i32, i32, i32) {
    %c0_i32 = arith.constant 0 : i32
    %c0_i32_0 = arith.constant 0 : i32
    %c0_i32_1 = arith.constant 0 : i32
    return %arg1, %c0_i32, %c0_i32_0 : i32, i32, i32
  }
  func.func @transform_3(%arg0: i32, %arg1: i32) -> (i32, i32, i32) {
    %c0_i32 = arith.constant 0 : i32
    %c0_i32_0 = arith.constant 0 : i32
    %c0_i32_1 = arith.constant 0 : i32
    return %arg1, %c0_i32, %c0_i32_0 : i32, i32, i32
  }
  func.func @transform_4(%arg0: i32, %arg1: i32) -> (i32, i32, i32) {
    %c0_i32 = arith.constant 0 : i32
    %c0_i32_0 = arith.constant 0 : i32
    %c0_i32_1 = arith.constant 0 : i32
    return %arg1, %c0_i32, %c0_i32_0 : i32, i32, i32
  }
  func.func @transform_5(%arg0: i32, %arg1: i32) -> (i32, i32, i32) {
    %c0_i32 = arith.constant 0 : i32
    %c0_i32_0 = arith.constant 0 : i32
    %c0_i32_1 = arith.constant 0 : i32
    return %arg1, %c0_i32, %c0_i32_0 : i32, i32, i32
  }
  func.func @transform_6(%arg0: i32, %arg1: i32) -> (i32, i32, i32) {
    %c0_i32 = arith.constant 0 : i32
    %c0_i32_0 = arith.constant 0 : i32
    %c0_i32_1 = arith.constant 0 : i32
    return %arg1, %c0_i32, %c0_i32_0 : i32, i32, i32
  }
  func.func @transform_7(%arg0: i32, %arg1: i32) -> (i32, i32, i32) {
    %c0_i32 = arith.constant 0 : i32
    %c0_i32_0 = arith.constant 0 : i32
    %c0_i32_1 = arith.constant 0 : i32
    return %arg1, %c0_i32, %c0_i32_0 : i32, i32, i32
  }
  func.func @transform_8(%arg0: i32, %arg1: i32) -> (i32, i32, i32) {
    %c0_i32 = arith.constant 0 : i32
    %c0_i32_0 = arith.constant 0 : i32
    %c0_i32_1 = arith.constant 0 : i32
    return %arg1, %c0_i32, %c0_i32_0 : i32, i32, i32
  }
  func.func @transform_9(%arg0: i32, %arg1: i32) -> (i32, i32, i32) {
    %c0_i32 = arith.constant 0 : i32
    %c0_i32_0 = arith.constant 0 : i32
    %c0_i32_1 = arith.constant 0 : i32
    return %arg1, %c0_i32, %c0_i32_0 : i32, i32, i32
  }
  func.func @transform_10(%arg0: i32, %arg1: i32) -> (i32, i32, i32) {
    %c0_i32 = arith.constant 0 : i32
    %c0_i32_0 = arith.constant 0 : i32
    %c0_i32_1 = arith.constant 0 : i32
    return %arg1, %c0_i32, %c0_i32_0 : i32, i32, i32
  }
  func.func @transform_11(%arg0: i32, %arg1: i32) -> (i32, i32, i32) {
    %c0_i32 = arith.constant 0 : i32
    %c0_i32_0 = arith.constant 0 : i32
    %c0_i32_1 = arith.constant 0 : i32
    return %arg1, %c0_i32, %c0_i32_0 : i32, i32, i32
  }
  func.func @transform_12(%arg0: i32, %arg1: i32) -> (i32, i32, i32) {
    %c0_i32 = arith.constant 0 : i32
    %c0_i32_0 = arith.constant 0 : i32
    %c0_i32_1 = arith.constant 0 : i32
    return %arg1, %c0_i32, %c0_i32_0 : i32, i32, i32
  }
  func.func @transform_13(%arg0: i32, %arg1: i32) -> (i32, i32, i32) {
    %c0_i32 = arith.constant 0 : i32
    %c0_i32_0 = arith.constant 0 : i32
    %c0_i32_1 = arith.constant 0 : i32
    return %arg1, %c0_i32, %c0_i32_0 : i32, i32, i32
  }
  func.func @transform_14(%arg0: i32, %arg1: i32) -> (i32, i32, i32) {
    %c0_i32 = arith.constant 0 : i32
    %c0_i32_0 = arith.constant 0 : i32
    %c0_i32_1 = arith.constant 0 : i32
    return %arg1, %c0_i32, %c0_i32_0 : i32, i32, i32
  }
  func.func @transform_15(%arg0: i32, %arg1: i32) -> (i32, i32, i32) {
    %c0_i32 = arith.constant 0 : i32
    %c0_i32_0 = arith.constant 0 : i32
    %c0_i32_1 = arith.constant 0 : i32
    return %arg1, %c0_i32, %c0_i32_0 : i32, i32, i32
  }
  func.func @transform_16(%arg0: i32, %arg1: i32) -> (i32, i32) {
    %c0_i32 = arith.constant 0 : i32
    %c0_i32_0 = arith.constant 0 : i32
    %c0_i32_1 = arith.constant 0 : i32
    return %c0_i32, %c0_i32_0 : i32, i32
  }
  func.func @transform_17(%arg0: i32, %arg1: i32) -> (i32, i32) {
    %c0_i32 = arith.constant 0 : i32
    %c0_i32_0 = arith.constant 0 : i32
    %c0_i32_1 = arith.constant 0 : i32
    return %c0_i32, %c0_i32_0 : i32, i32
  }
  func.func @transform_18(%arg0: i32, %arg1: i32) -> (i32, i32, i32) {
    %c0_i32 = arith.constant 0 : i32
    %c0_i32_0 = arith.constant 0 : i32
    %c0_i32_1 = arith.constant 0 : i32
    return %arg0, %c0_i32, %c0_i32_0 : i32, i32, i32
  }
}

</mosaic_0001>

<llo_original>
// kernel: tpu_custom_call.1
$region0: #{tpu_custom_call.1}
  #allocation0 [shape = 'u32[]', space=smem, size = 0x4, offset = 0x4, fixed_abs, tag = 'smem constant byte address 0x4 - core index']
  #allocation1 [shape = 'u32[144,128]{1,0:T(1,128)}', space=vmem, size = 0x12000, scoped, tag = 'internal scratch']
  #allocation2 [shape = 'f32[1,16,512]{2,1,0:T(8,128)}', space=vmem, size = 0x8000, scoped, tag = 'scratch operand']
  #allocation3 [shape = 'bf16[16,1024]{1,0:T(16,128)(2,1)}', space=vmem, size = 0x8000, scoped, tag = 'scratch operand']
  #allocation4 [shape = 'bf16[16,512]{1,0:T(16,128)(2,1)}', space=vmem, size = 0x4000, scoped, tag = 'scratch operand']
  #allocation5 [shape = 'bf16[16,512]{1,0:T(16,128)(2,1)}', space=vmem, size = 0x4000, scoped, tag = 'scratch operand']
  #allocation6 [shape = 's32[1]{0}', space=sflag, size = 0x4, scoped, tag = 'scratch operand']
  #allocation35 [shape = 's32[]', space=sflag, size = 0x4, offset = 0, fixed_abs, tag = 'sflag constant byte address 0x0 - dummy sync flag']
  #allocation36 [shape = 's32[]', space=sflag, size = 0x4, offset = 0, fixed_abs, tag = 'sflag constant byte address 0x0 - dummy sync flag']
  #allocation37 [shape = 'u32[]', space=smem, size = 0x4, offset = 0x44, fixed_abs, tag = 'smem constant byte address 0x44 - assertion arg 0']
  #allocation38 [shape = 'u32[]', space=smem, size = 0x4, offset = 0x48, fixed_abs, tag = 'smem constant byte address 0x48 - assertion arg 1']
  %s0 = inlined_call_operand.hbm [shape: f32[2,16,512], index: 0, kind: input, shape index: {}]
  %s1 = inlined_call_operand.hbm [shape: f32[2,16,512], index: 1, kind: input, shape index: {}]
  %s2 = inlined_call_operand.hbm [shape: bf16[2,512,1024], index: 2, kind: input, shape index: {}]
  %s3 = inlined_call_operand.hbm [shape: f32[2,1,1024], index: 3, kind: input, shape index: {}]
  %s4 = inlined_call_operand.hbm [shape: bf16[2,512,512], index: 4, kind: input, shape index: {}]
  %s5 = inlined_call_operand.hbm [shape: f32[2,1,512], index: 5, kind: input, shape index: {}]
  %s6 = inlined_call_operand.hbm [shape: bf16[2,512,512], index: 6, kind: input, shape index: {}]
  %s7 = inlined_call_operand.hbm [shape: f32[2,1,512], index: 7, kind: input, shape index: {}]
  %s8 = inlined_call_operand.hbm [shape: f32[2,1,512], index: 8, kind: input, shape index: {}]
  %s9 = inlined_call_operand.hbm [shape: f32[2,1,512], index: 9, kind: input, shape index: {}]
  %s10 = inlined_call_operand.hbm [shape: bf16[2,512,128], index: 10, kind: input, shape index: {}]
  %s11 = inlined_call_operand.hbm [shape: f32[2,1,128], index: 11, kind: input, shape index: {}]
  %s12 = inlined_call_operand.hbm [shape: bf16[2,128,512], index: 12, kind: input, shape index: {}]
  %s13 = inlined_call_operand.hbm [shape: f32[2,1,512], index: 13, kind: input, shape index: {}]
  %s14 = inlined_call_operand.hbm [shape: f32[2,1,512], index: 14, kind: input, shape index: {}]
  %s15 = inlined_call_operand.hbm [shape: f32[2,1,512], index: 15, kind: input, shape index: {}]
  %s16 = inlined_call_operand.hbm [shape: f32[1,512], index: 16, kind: input, shape index: {}]
  %s17 = inlined_call_operand.hbm [shape: f32[1,512], index: 17, kind: input, shape index: {}]
  %s18 = inlined_call_operand.hbm [shape: f32[2,16,512], index: 18, kind: output, shape index: {}]
  %s19 = sld [smem:[#allocation0]]
  $region185: #{tpu_custom_call.1} parent=0
    _
  %s21 = ssub.s32 1, %s19
  %s22 = scalar_select 0, %s21, %s19
  $region1: #{tpu_custom_call.1} parent=0
    #allocation7 [shape = 'u8[65536]{0}', space=vmem, size = 0x10000, scoped, tag = 'input window, operand 1']
    #allocation8 [shape = 's32[2]{0}', space=sflag, size = 0x8, scoped, tag = 'scoped memory for tpu_custom_call.1']
    #allocation9 [shape = 's32[2]{0}', space=sflag, size = 0x8, scoped, tag = 'scoped memory for tpu_custom_call.1']
    #allocation10 [shape = 'u8[2097152]{0}', space=vmem, size = 0x200000, scoped, tag = 'input window, operand 2']
    #allocation11 [shape = 's32[2]{0}', space=sflag, size = 0x8, scoped, tag = 'scoped memory for tpu_custom_call.1']
    #allocation12 [shape = 'u8[8192]{0}', space=vmem, size = 0x2000, scoped, tag = 'input window, operand 3']
    #allocation13 [shape = 'u8[1048576]{0}', space=vmem, size = 0x100000, scoped, tag = 'input window, operand 4']
    #allocation14 [shape = 's32[2]{0}', space=sflag, size = 0x8, scoped, tag = 'scoped memory for tpu_custom_call.1']
    #allocation15 [shape = 'u8[4096]{0}', space=vmem, size = 0x1000, scoped, tag = 'input window, operand 5']
    #allocation16 [shape = 'u8[1048576]{0}', space=vmem, size = 0x100000, scoped, tag = 'input window, operand 6']
    #allocation17 [shape = 's32[2]{0}', space=sflag, size = 0x8, scoped, tag = 'scoped memory for tpu_custom_call.1']
    #allocation18 [shape = 'u8[4096]{0}', space=vmem, size = 0x1000, scoped, tag = 'input window, operand 7']
    #allocation19 [shape = 'u8[4096]{0}', space=vmem, size = 0x1000, scoped, tag = 'input window, operand 8']
    #allocation20 [shape = 's32[2]{0}', space=sflag, size = 0x8, scoped, tag = 'scoped memory for tpu_custom_call.1']
    #allocation21 [shape = 'u8[4096]{0}', space=vmem, size = 0x1000, scoped, tag = 'input window, operand 9']
    #allocation22 [shape = 'u8[262144]{0}', space=vmem, size = 0x40000, scoped, tag = 'input window, operand 10']
    #allocation23 [shape = 's32[2]{0}', space=sflag, size = 0x8, scoped, tag = 'scoped memory for tpu_custom_call.1']
    #allocation24 [shape = 'u8[1024]{0}', space=vmem, size = 0x400, scoped, tag = 'input window, operand 11']
    #allocation25 [shape = 'u8[262144]{0}', space=vmem, size = 0x40000, scoped, tag = 'input window, operand 12']
    #allocation26 [shape = 's32[2]{0}', space=sflag, size = 0x8, scoped, tag = 'scoped memory for tpu_custom_call.1']
    #allocation27 [shape = 'u8[4096]{0}', space=vmem, size = 0x1000, scoped, tag = 'input window, operand 13']
    #allocation28 [shape = 'u8[4096]{0}', space=vmem, size = 0x1000, scoped, tag = 'input window, operand 14']
    #allocation29 [shape = 's32[2]{0}', space=sflag, size = 0x8, scoped, tag = 'scoped memory for tpu_custom_call.1']
    #allocation30 [shape = 'u8[4096]{0}', space=vmem, size = 0x1000, scoped, tag = 'input window, operand 15']
    #allocation31 [shape = 'u8[2048]{0}', space=vmem, size = 0x800, scoped, tag = 'input window, operand 16, single buffered']
    #allocation32 [shape = 's32[1]{0}', space=sflag, size = 0x4, scoped, tag = 'scoped memory for tpu_custom_call.1']
    #allocation33 [shape = 'u8[2048]{0}', space=vmem, size = 0x800, scoped, tag = 'input window, operand 17, single buffered']
    #allocation34 [shape = 'u8[65536]{0}', space=vmem, size = 0x10000, scoped, tag = 'output window, operand 0']
    %23 = vsyncpa [#allocation8], 0
    %s24 = scalar_lea.sflag [#allocation8], 1
    %25 = vsyncpa %s24, 0
    %26 = vsyncpa [#allocation11], 0
    %s27 = scalar_lea.sflag [#allocation11], 1
    %28 = vsyncpa %s27, 0
    %29 = vsyncpa [#allocation14], 0
    %s30 = scalar_lea.sflag [#allocation14], 1
    %31 = vsyncpa %s30, 0
    %32 = vsyncpa [#allocation17], 0
    %s33 = scalar_lea.sflag [#allocation17], 1
    %34 = vsyncpa %s33, 0
    %35 = vsyncpa [#allocation20], 0
    %s36 = scalar_lea.sflag [#allocation20], 1
    %37 = vsyncpa %s36, 0
    %38 = vsyncpa [#allocation23], 0
    %s39 = scalar_lea.sflag [#allocation23], 1
    %40 = vsyncpa %s39, 0
    %41 = vsyncpa [#allocation26], 0
    %s42 = scalar_lea.sflag [#allocation26], 1
    %43 = vsyncpa %s42, 0
    %44 = vsyncpa [#allocation29], 0
    %s45 = scalar_lea.sflag [#allocation29], 1
    %46 = vsyncpa %s45, 0
    %47 = vsyncpa [#allocation32], 0
    %48 = vsyncpa [#allocation9], 0
    %s49 = scalar_lea.sflag [#allocation9], 1
    %50 = vsyncpa %s49, 0
    loop: start=0, step=1, limit=6
    $region2: #{tpu_custom_call.1} parent=1 // loop_pre_header
      _
    $region3: #{tpu_custom_call.1} parent=1 // loop_header
      %s52 = sphi 0, %s56
      %p53 = scmp.ge.s32.totalorder %s52, 6
      %s59 = sphi 0, %s71
      %s60 = sphi 0, %s67
      %s61 = sphi 0, %s59
      %s62 = sphi 0, %s60
      %s63 = sphi 0, %s61
      %s64 = sphi 0, %s62
      %s74 = sphi 0, %s76
      %s77 = sphi 0, %s74
      %s78 = sphi 0, %s77
      %s94 = sphi 0, %s78
      %s100 = sphi 0, %s102
      %s103 = sphi 0, %s100
      %s104 = sphi 0, %s103
      %s120 = sphi 0, %s104
      %s126 = sphi 0, %s128
      %s129 = sphi 0, %s126
      %s130 = sphi 0, %s129
      %s146 = sphi 0, %s130
      %s152 = sphi 0, %s154
      %s155 = sphi 0, %s152
      %s156 = sphi 0, %s155
      %s172 = sphi 0, %s156
      %s178 = sphi 0, %s180
      %s181 = sphi 0, %s178
      %s182 = sphi 0, %s181
      %s198 = sphi 0, %s182
      %s204 = sphi 0, %s206
      %s207 = sphi 0, %s204
      %s208 = sphi 0, %s207
      %s224 = sphi 0, %s208
      %s230 = sphi 0, %s232
      %s233 = sphi 0, %s230
      %s234 = sphi 0, %s233
      %s250 = sphi 0, %s234
      %s256 = sphi 0, %s258
      %s259 = sphi 0, %s256
      %s260 = sphi 0, %s259
      %s276 = sphi 0, %s260
      %s282 = sphi 0, %s284
      %s285 = sphi 0, %s282
      %s286 = sphi 0, %s285
      %s302 = sphi 0, %s286
      %s308 = sphi 0, %s310
      %s311 = sphi 0, %s308
      %s312 = sphi 0, %s311
      %s328 = sphi 0, %s312
      %s334 = sphi 0, %s336
      %s337 = sphi 0, %s334
      %s338 = sphi 0, %s337
      %s354 = sphi 0, %s338
      %s360 = sphi 0, %s362
      %s363 = sphi 0, %s360
      %s364 = sphi 0, %s363
      %s380 = sphi 0, %s364
      %s386 = sphi 0, %s388
      %s389 = sphi 0, %s386
      %s390 = sphi 0, %s389
      %s406 = sphi 0, %s390
      %s412 = sphi 0, %s414
      %s415 = sphi 0, %s412
      %s416 = sphi 0, %s415
      %s432 = sphi 0, %s416
      %s438 = sphi 0, %s440
      %s441 = sphi 0, %s438
      %s442 = sphi 0, %s441
      %s458 = sphi 0, %s442
      %s462 = sphi 0, %s462
      %s464 = sphi 0, %s462
      %s465 = sphi 0, %s464
      %s479 = sphi 0, %s465
      %s483 = sphi 0, %s483
      %s485 = sphi 0, %s483
      %s486 = sphi 0, %s485
      %s500 = sphi 0, %s486
      %s506 = sphi 0, %s508
      %s509 = sphi 0, %s506
      %s510 = sphi 0, %s509
      %s526 = sphi 0, %s510
    $region4: #{tpu_custom_call.1} parent=1 // loop_header_branch
      %55 = sbr.rel (%p53) target = $region8
    $region5: #{tpu_custom_call.1} parent=1 // loop_body
      %s57 = ssub.s32 %s52, 1
      %s58 = ssub.s32 %s52, 2
      %s65 = sadd.s32 1, %s60
      %p66 = scmp.ge.s32.totalorder %s65, 2
      %s67 = scalar_select %p66, 0, %s65
      %s68 = sadd.s32 1, %s59
      %s69 = scalar_select %p66, %s68, %s59
      %p70 = scmp.ge.s32.totalorder %s69, 2
      %s71 = scalar_select %p70, 0, %s69
      %s72 = ssub.s32 %s59, %s71
      %p73 = scmp.eq.s32.totalorder %s72, 0
      %s75 = sadd.s32 %s74, 1
      %s76 = scalar_select %p73, %s74, %s75
      %p79 = pneg %p73
      %p80 = scmp.eq.s32.totalorder %s52, 3
      %p81 = por %p79, %p80
      %p82 = scmp.ne.s32.totalorder %s74, %s77
      %p83 = scmp.eq.s32.totalorder %s52, 0
      %p84 = por %p82, %p83
      %p85 = scmp.ne.s32.totalorder %s74, %s77
      %p86 = scmp.eq.s32.totalorder %s57, 3
      %p87 = por %p85, %p86
      %p88 = scmp.ne.s32.totalorder %s77, %s78
      %p89 = scmp.eq.s32.totalorder %s57, 0
      %p90 = por %p88, %p89
      %p91 = scmp.ne.s32.totalorder %s77, %s78
      %p92 = scmp.eq.s32.totalorder %s58, 3
      %p93 = por %p91, %p92
      %p95 = scmp.ne.s32.totalorder %s78, %s94
      %p96 = scmp.eq.s32.totalorder %s58, 0
      %p97 = por %p95, %p96
      %s98 = ssub.s32 %s60, %s67
      %p99 = scmp.eq.s32.totalorder %s98, 0
      %s101 = sadd.s32 %s100, 1
      %s102 = scalar_select %p99, %s100, %s101
      %p105 = pneg %p99
      %p106 = scmp.eq.s32.totalorder %s52, 3
      %p107 = por %p105, %p106
      %p108 = scmp.ne.s32.totalorder %s100, %s103
      %p109 = scmp.eq.s32.totalorder %s52, 0
      %p110 = por %p108, %p109
      %p111 = scmp.ne.s32.totalorder %s100, %s103
      %p112 = scmp.eq.s32.totalorder %s57, 3
      %p113 = por %p111, %p112
      %p114 = scmp.ne.s32.totalorder %s103, %s104
      %p115 = scmp.eq.s32.totalorder %s57, 0
      %p116 = por %p114, %p115
      %p117 = scmp.ne.s32.totalorder %s103, %s104
      %p118 = scmp.eq.s32.totalorder %s58, 3
      %p119 = por %p117, %p118
      %p121 = scmp.ne.s32.totalorder %s104, %s120
      %p122 = scmp.eq.s32.totalorder %s58, 0
      %p123 = por %p121, %p122
      %s124 = ssub.s32 %s60, %s67
      %p125 = scmp.eq.s32.totalorder %s124, 0
      %s127 = sadd.s32 %s126, 1
      %s128 = scalar_select %p125, %s126, %s127
      %p131 = pneg %p125
      %p132 = scmp.eq.s32.totalorder %s52, 3
      %p133 = por %p131, %p132
      %p134 = scmp.ne.s32.totalorder %s126, %s129
      %p135 = scmp.eq.s32.totalorder %s52, 0
      %p136 = por %p134, %p135
      %p137 = scmp.ne.s32.totalorder %s126, %s129
      %p138 = scmp.eq.s32.totalorder %s57, 3
      %p139 = por %p137, %p138
      %p140 = scmp.ne.s32.totalorder %s129, %s130
      %p141 = scmp.eq.s32.totalorder %s57, 0
      %p142 = por %p140, %p141
      %p143 = scmp.ne.s32.totalorder %s129, %s130
      %p144 = scmp.eq.s32.totalorder %s58, 3
      %p145 = por %p143, %p144
      %p147 = scmp.ne.s32.totalorder %s130, %s146
      %p148 = scmp.eq.s32.totalorder %s58, 0
      %p149 = por %p147, %p148
      %s150 = ssub.s32 %s60, %s67
      %p151 = scmp.eq.s32.totalorder %s150, 0
      %s153 = sadd.s32 %s152, 1
      %s154 = scalar_select %p151, %s152, %s153
      %p157 = pneg %p151
      %p158 = scmp.eq.s32.totalorder %s52, 3
      %p159 = por %p157, %p158
      %p160 = scmp.ne.s32.totalorder %s152, %s155
      %p161 = scmp.eq.s32.totalorder %s52, 0
      %p162 = por %p160, %p161
      %p163 = scmp.ne.s32.totalorder %s152, %s155
      %p164 = scmp.eq.s32.totalorder %s57, 3
      %p165 = por %p163, %p164
      %p166 = scmp.ne.s32.totalorder %s155, %s156
      %p167 = scmp.eq.s32.totalorder %s57, 0
      %p168 = por %p166, %p167
      %p169 = scmp.ne.s32.totalorder %s155, %s156
      %p170 = scmp.eq.s32.totalorder %s58, 3
      %p171 = por %p169, %p170
      %p173 = scmp.ne.s32.totalorder %s156, %s172
      %p174 = scmp.eq.s32.totalorder %s58, 0
      %p175 = por %p173, %p174
      %s176 = ssub.s32 %s60, %s67
      %p177 = scmp.eq.s32.totalorder %s176, 0
      %s179 = sadd.s32 %s178, 1
      %s180 = scalar_select %p177, %s178, %s179
      %p183 = pneg %p177
      %p184 = scmp.eq.s32.totalorder %s52, 3
      %p185 = por %p183, %p184
      %p186 = scmp.ne.s32.totalorder %s178, %s181
      %p187 = scmp.eq.s32.totalorder %s52, 0
      %p188 = por %p186, %p187
      %p189 = scmp.ne.s32.totalorder %s178, %s181
      %p190 = scmp.eq.s32.totalorder %s57, 3
      %p191 = por %p189, %p190
      %p192 = scmp.ne.s32.totalorder %s181, %s182
      %p193 = scmp.eq.s32.totalorder %s57, 0
      %p194 = por %p192, %p193
      %p195 = scmp.ne.s32.totalorder %s181, %s182
      %p196 = scmp.eq.s32.totalorder %s58, 3
      %p197 = por %p195, %p196
      %p199 = scmp.ne.s32.totalorder %s182, %s198
      %p200 = scmp.eq.s32.totalorder %s58, 0
      %p201 = por %p199, %p200
      %s202 = ssub.s32 %s60, %s67
      %p203 = scmp.eq.s32.totalorder %s202, 0
      %s205 = sadd.s32 %s204, 1
      %s206 = scalar_select %p203, %s204, %s205
      %p209 = pneg %p203
      %p210 = scmp.eq.s32.totalorder %s52, 3
      %p211 = por %p209, %p210
      %p212 = scmp.ne.s32.totalorder %s204, %s207
      %p213 = scmp.eq.s32.totalorder %s52, 0
      %p214 = por %p212, %p213
      %p215 = scmp.ne.s32.totalorder %s204, %s207
      %p216 = scmp.eq.s32.totalorder %s57, 3
      %p217 = por %p215, %p216
      %p218 = scmp.ne.s32.totalorder %s207, %s208
      %p219 = scmp.eq.s32.totalorder %s57, 0
      %p220 = por %p218, %p219
      %p221 = scmp.ne.s32.totalorder %s207, %s208
      %p222 = scmp.eq.s32.totalorder %s58, 3
      %p223 = por %p221, %p222
      %p225 = scmp.ne.s32.totalorder %s208, %s224
      %p226 = scmp.eq.s32.totalorder %s58, 0
      %p227 = por %p225, %p226
      %s228 = ssub.s32 %s60, %s67
      %p229 = scmp.eq.s32.totalorder %s228, 0
      %s231 = sadd.s32 %s230, 1
      %s232 = scalar_select %p229, %s230, %s231
      %p235 = pneg %p229
      %p236 = scmp.eq.s32.totalorder %s52, 3
      %p237 = por %p235, %p236
      %p238 = scmp.ne.s32.totalorder %s230, %s233
      %p239 = scmp.eq.s32.totalorder %s52, 0
      %p240 = por %p238, %p239
      %p241 = scmp.ne.s32.totalorder %s230, %s233
      %p242 = scmp.eq.s32.totalorder %s57, 3
      %p243 = por %p241, %p242
      %p244 = scmp.ne.s32.totalorder %s233, %s234
      %p245 = scmp.eq.s32.totalorder %s57, 0
      %p246 = por %p244, %p245
      %p247 = scmp.ne.s32.totalorder %s233, %s234
      %p248 = scmp.eq.s32.totalorder %s58, 3
      %p249 = por %p247, %p248
      %p251 = scmp.ne.s32.totalorder %s234, %s250
      %p252 = scmp.eq.s32.totalorder %s58, 0
      %p253 = por %p251, %p252
      %s254 = ssub.s32 %s60, %s67
      %p255 = scmp.eq.s32.totalorder %s254, 0
      %s257 = sadd.s32 %s256, 1
      %s258 = scalar_select %p255, %s256, %s257
      %p261 = pneg %p255
      %p262 = scmp.eq.s32.totalorder %s52, 3
      %p263 = por %p261, %p262
      %p264 = scmp.ne.s32.totalorder %s256, %s259
      %p265 = scmp.eq.s32.totalorder %s52, 0
      %p266 = por %p264, %p265
      %p267 = scmp.ne.s32.totalorder %s256, %s259
      %p268 = scmp.eq.s32.totalorder %s57, 3
      %p269 = por %p267, %p268
      %p270 = scmp.ne.s32.totalorder %s259, %s260
      %p271 = scmp.eq.s32.totalorder %s57, 0
      %p272 = por %p270, %p271
      %p273 = scmp.ne.s32.totalorder %s259, %s260
      %p274 = scmp.eq.s32.totalorder %s58, 3
      %p275 = por %p273, %p274
      %p277 = scmp.ne.s32.totalorder %s260, %s276
      %p278 = scmp.eq.s32.totalorder %s58, 0
      %p279 = por %p277, %p278
      %s280 = ssub.s32 %s60, %s67
      %p281 = scmp.eq.s32.totalorder %s280, 0
      %s283 = sadd.s32 %s282, 1
      %s284 = scalar_select %p281, %s282, %s283
      %p287 = pneg %p281
      %p288 = scmp.eq.s32.totalorder %s52, 3
      %p289 = por %p287, %p288
      %p290 = scmp.ne.s32.totalorder %s282, %s285
      %p291 = scmp.eq.s32.totalorder %s52, 0
      %p292 = por %p290, %p291
      %p293 = scmp.ne.s32.totalorder %s282, %s285
      %p294 = scmp.eq.s32.totalorder %s57, 3
      %p295 = por %p293, %p294
      %p296 = scmp.ne.s32.totalorder %s285, %s286
      %p297 = scmp.eq.s32.totalorder %s57, 0
      %p298 = por %p296, %p297
      %p299 = scmp.ne.s32.totalorder %s285, %s286
      %p300 = scmp.eq.s32.totalorder %s58, 3
      %p301 = por %p299, %p300
      %p303 = scmp.ne.s32.totalorder %s286, %s302
      %p304 = scmp.eq.s32.totalorder %s58, 0
      %p305 = por %p303, %p304
      %s306 = ssub.s32 %s60, %s67
      %p307 = scmp.eq.s32.totalorder %s306, 0
      %s309 = sadd.s32 %s308, 1
      %s310 = scalar_select %p307, %s308, %s309
      %p313 = pneg %p307
      %p314 = scmp.eq.s32.totalorder %s52, 3
      %p315 = por %p313, %p314
      %p316 = scmp.ne.s32.totalorder %s308, %s311
      %p317 = scmp.eq.s32.totalorder %s52, 0
      %p318 = por %p316, %p317
      %p319 = scmp.ne.s32.totalorder %s308, %s311
      %p320 = scmp.eq.s32.totalorder %s57, 3
      %p321 = por %p319, %p320
      %p322 = scmp.ne.s32.totalorder %s311, %s312
      %p323 = scmp.eq.s32.totalorder %s57, 0
      %p324 = por %p322, %p323
      %p325 = scmp.ne.s32.totalorder %s311, %s312
      %p326 = scmp.eq.s32.totalorder %s58, 3
      %p327 = por %p325, %p326
      %p329 = scmp.ne.s32.totalorder %s312, %s328
      %p330 = scmp.eq.s32.totalorder %s58, 0
      %p331 = por %p329, %p330
      %s332 = ssub.s32 %s60, %s67
      %p333 = scmp.eq.s32.totalorder %s332, 0
      %s335 = sadd.s32 %s334, 1
      %s336 = scalar_select %p333, %s334, %s335
      %p339 = pneg %p333
      %p340 = scmp.eq.s32.totalorder %s52, 3
      %p341 = por %p339, %p340
      %p342 = scmp.ne.s32.totalorder %s334, %s337
      %p343 = scmp.eq.s32.totalorder %s52, 0
      %p344 = por %p342, %p343
      %p345 = scmp.ne.s32.totalorder %s334, %s337
      %p346 = scmp.eq.s32.totalorder %s57, 3
      %p347 = por %p345, %p346
      %p348 = scmp.ne.s32.totalorder %s337, %s338
      %p349 = scmp.eq.s32.totalorder %s57, 0
      %p350 = por %p348, %p349
      %p351 = scmp.ne.s32.totalorder %s337, %s338
      %p352 = scmp.eq.s32.totalorder %s58, 3
      %p353 = por %p351, %p352
      %p355 = scmp.ne.s32.totalorder %s338, %s354
      %p356 = scmp.eq.s32.totalorder %s58, 0
      %p357 = por %p355, %p356
      %s358 = ssub.s32 %s60, %s67
      %p359 = scmp.eq.s32.totalorder %s358, 0
      %s361 = sadd.s32 %s360, 1
      %s362 = scalar_select %p359, %s360, %s361
      %p365 = pneg %p359
      %p366 = scmp.eq.s32.totalorder %s52, 3
      %p367 = por %p365, %p366
      %p368 = scmp.ne.s32.totalorder %s360, %s363
      %p369 = scmp.eq.s32.totalorder %s52, 0
      %p370 = por %p368, %p369
      %p371 = scmp.ne.s32.totalorder %s360, %s363
      %p372 = scmp.eq.s32.totalorder %s57, 3
      %p373 = por %p371, %p372
      %p374 = scmp.ne.s32.totalorder %s363, %s364
      %p375 = scmp.eq.s32.totalorder %s57, 0
      %p376 = por %p374, %p375
      %p377 = scmp.ne.s32.totalorder %s363, %s364
      %p378 = scmp.eq.s32.totalorder %s58, 3
      %p379 = por %p377, %p378
      %p381 = scmp.ne.s32.totalorder %s364, %s380
      %p382 = scmp.eq.s32.totalorder %s58, 0
      %p383 = por %p381, %p382
      %s384 = ssub.s32 %s60, %s67
      %p385 = scmp.eq.s32.totalorder %s384, 0
      %s387 = sadd.s32 %s386, 1
      %s388 = scalar_select %p385, %s386, %s387
      %p391 = pneg %p385
      %p392 = scmp.eq.s32.totalorder %s52, 3
      %p393 = por %p391, %p392
      %p394 = scmp.ne.s32.totalorder %s386, %s389
      %p395 = scmp.eq.s32.totalorder %s52, 0
      %p396 = por %p394, %p395
      %p397 = scmp.ne.s32.totalorder %s386, %s389
      %p398 = scmp.eq.s32.totalorder %s57, 3
      %p399 = por %p397, %p398
      %p400 = scmp.ne.s32.totalorder %s389, %s390
      %p401 = scmp.eq.s32.totalorder %s57, 0
      %p402 = por %p400, %p401
      %p403 = scmp.ne.s32.totalorder %s389, %s390
      %p404 = scmp.eq.s32.totalorder %s58, 3
      %p405 = por %p403, %p404
      %p407 = scmp.ne.s32.totalorder %s390, %s406
      %p408 = scmp.eq.s32.totalorder %s58, 0
      %p409 = por %p407, %p408
      %s410 = ssub.s32 %s60, %s67
      %p411 = scmp.eq.s32.totalorder %s410, 0
      %s413 = sadd.s32 %s412, 1
      %s414 = scalar_select %p411, %s412, %s413
      %p417 = pneg %p411
      %p418 = scmp.eq.s32.totalorder %s52, 3
      %p419 = por %p417, %p418
      %p420 = scmp.ne.s32.totalorder %s412, %s415
      %p421 = scmp.eq.s32.totalorder %s52, 0
      %p422 = por %p420, %p421
      %p423 = scmp.ne.s32.totalorder %s412, %s415
      %p424 = scmp.eq.s32.totalorder %s57, 3
      %p425 = por %p423, %p424
      %p426 = scmp.ne.s32.totalorder %s415, %s416
      %p427 = scmp.eq.s32.totalorder %s57, 0
      %p428 = por %p426, %p427
      %p429 = scmp.ne.s32.totalorder %s415, %s416
      %p430 = scmp.eq.s32.totalorder %s58, 3
      %p431 = por %p429, %p430
      %p433 = scmp.ne.s32.totalorder %s416, %s432
      %p434 = scmp.eq.s32.totalorder %s58, 0
      %p435 = por %p433, %p434
      %s436 = ssub.s32 %s60, %s67
      %p437 = scmp.eq.s32.totalorder %s436, 0
      %s439 = sadd.s32 %s438, 1
      %s440 = scalar_select %p437, %s438, %s439
      %p443 = pneg %p437
      %p444 = scmp.eq.s32.totalorder %s52, 3
      %p445 = por %p443, %p444
      %p446 = scmp.ne.s32.totalorder %s438, %s441
      %p447 = scmp.eq.s32.totalorder %s52, 0
      %p448 = por %p446, %p447
      %p449 = scmp.ne.s32.totalorder %s438, %s441
      %p450 = scmp.eq.s32.totalorder %s57, 3
      %p451 = por %p449, %p450
      %p452 = scmp.ne.s32.totalorder %s441, %s442
      %p453 = scmp.eq.s32.totalorder %s57, 0
      %p454 = por %p452, %p453
      %p455 = scmp.ne.s32.totalorder %s441, %s442
      %p456 = scmp.eq.s32.totalorder %s58, 3
      %p457 = por %p455, %p456
      %p459 = scmp.ne.s32.totalorder %s442, %s458
      %p460 = scmp.eq.s32.totalorder %s58, 0
      %p461 = por %p459, %p460
      %s463 = sadd.s32 %s462, 1
      %p466 = scmp.eq.s32.totalorder %s52, 3
      %p467 = scmp.ne.s32.totalorder %s462, %s464
      %p468 = scmp.eq.s32.totalorder %s52, 0
      %p469 = por %p467, %p468
      %p470 = scmp.ne.s32.totalorder %s462, %s464
      %p471 = scmp.eq.s32.totalorder %s57, 3
      %p472 = por %p470, %p471
      %p473 = scmp.ne.s32.totalorder %s464, %s465
      %p474 = scmp.eq.s32.totalorder %s57, 0
      %p475 = por %p473, %p474
      %p476 = scmp.ne.s32.totalorder %s464, %s465
      %p477 = scmp.eq.s32.totalorder %s58, 3
      %p478 = por %p476, %p477
      %p480 = scmp.ne.s32.totalorder %s465, %s479
      %p481 = scmp.eq.s32.totalorder %s58, 0
      %p482 = por %p480, %p481
      %s484 = sadd.s32 %s483, 1
      %p487 = scmp.eq.s32.totalorder %s52, 3
      %p488 = scmp.ne.s32.totalorder %s483, %s485
      %p489 = scmp.eq.s32.totalorder %s52, 0
      %p490 = por %p488, %p489
      %p491 = scmp.ne.s32.totalorder %s483, %s485
      %p492 = scmp.eq.s32.totalorder %s57, 3
      %p493 = por %p491, %p492
      %p494 = scmp.ne.s32.totalorder %s485, %s486
      %p495 = scmp.eq.s32.totalorder %s57, 0
      %p496 = por %p494, %p495
      %p497 = scmp.ne.s32.totalorder %s485, %s486
      %p498 = scmp.eq.s32.totalorder %s58, 3
      %p499 = por %p497, %p498
      %p501 = scmp.ne.s32.totalorder %s486, %s500
      %p502 = scmp.eq.s32.totalorder %s58, 0
      %p503 = por %p501, %p502
      %s504 = ssub.s32 %s59, %s71
      %p505 = scmp.eq.s32.totalorder %s504, 0
      %s507 = sadd.s32 %s506, 1
      %s508 = scalar_select %p505, %s506, %s507
      %p511 = pneg %p505
      %p512 = scmp.eq.s32.totalorder %s52, 3
      %p513 = por %p511, %p512
      %p514 = scmp.ne.s32.totalorder %s506, %s509
      %p515 = scmp.eq.s32.totalorder %s52, 0
      %p516 = por %p514, %p515
      %p517 = scmp.ne.s32.totalorder %s506, %s509
      %p518 = scmp.eq.s32.totalorder %s57, 3
      %p519 = por %p517, %p518
      %p520 = scmp.ne.s32.totalorder %s509, %s510
      %p521 = scmp.eq.s32.totalorder %s57, 0
      %p522 = por %p520, %p521
      %p523 = scmp.ne.s32.totalorder %s509, %s510
      %p524 = scmp.eq.s32.totalorder %s58, 3
      %p525 = por %p523, %p524
      %p527 = scmp.ne.s32.totalorder %s510, %s526
      %p528 = scmp.eq.s32.totalorder %s58, 0
      %p529 = por %p527, %p528
      %p530 = scmp.le.s32.totalorder 1, %s52
      %p531 = scmp.lt.s32.totalorder %s52, 5
      %p532 = pnand %p530, %p531
      %p533 = pneg %p532
      // Predicated region
      $region9: #{tpu_custom_call.1} parent=5 // pred_check
        _
      $region10: #{tpu_custom_call.1} parent=5 // pred_check_branch
        %535 = sbr.rel (%p532) target = $region12
      $region11: #{tpu_custom_call.1} parent=5 // pred_region
        %s536 = ssub.s32 %s52, 1
        // Predicated region
        $region13: #{tpu_custom_call.1} parent=11 // pred_check
          %p537 = pneg %p475
        $region14: #{tpu_custom_call.1} parent=11 // pred_check_branch
          %539 = sbr.rel (%p537) target = $region16
        $region15: #{tpu_custom_call.1} parent=11 // pred_region
          %s541 = ssub.s32 64, 64
          %542 = vsyncadd [#allocation32], %s541
          %s544 = sshll.u32 [#allocation31], 4
          %s545 = int_to_ptr.vmem [resolvable:$true] %s544
          %547 = dma.hbm_to_vmem [thread:$0]  %s16, 64, %s545, [#allocation32]
        $region16: #{tpu_custom_call.1} parent=11 // pred_fallthru
          _
        // Predicated region
        $region17: #{tpu_custom_call.1} parent=11 // pred_check
          %p548 = pneg %p496
        $region18: #{tpu_custom_call.1} parent=11 // pred_check_branch
          %550 = sbr.rel (%p548) target = $region20
        $region19: #{tpu_custom_call.1} parent=11 // pred_region
          %s552 = ssub.s32 64, 64
          %553 = vsyncadd [#allocation32], %s552
          %s555 = sshll.u32 [#allocation33], 4
          %s556 = int_to_ptr.vmem [resolvable:$true] %s555
          %558 = dma.hbm_to_vmem [thread:$0]  %s17, 64, %s556, [#allocation32]
        $region20: #{tpu_custom_call.1} parent=11 // pred_fallthru
          _
      $region12: #{tpu_custom_call.1} parent=5 // pred_fallthru
        _
      %p559 = scmp.lt.s32.totalorder %s52, 4
      // Predicated region
      $region21: #{tpu_custom_call.1} parent=5 // pred_check
        %p560 = pneg %p559
      $region22: #{tpu_custom_call.1} parent=5 // pred_check_branch
        %562 = sbr.rel (%p560) target = $region24
      $region23: #{tpu_custom_call.1} parent=5 // pred_region
        // Predicated region
        $region25: #{tpu_custom_call.1} parent=23 // pred_check
          %p563 = pneg %p84
        $region26: #{tpu_custom_call.1} parent=23 // pred_check_branch
          %565 = sbr.rel (%p563) target = $region28
        $region27: #{tpu_custom_call.1} parent=23 // pred_region
          %s566 = sand.u32 %s74, 1
          %s567 = scalar_lea.sflag [#allocation8], %s566
          %s568 = sand.u32 %s74, 1
          %s569 = smul.addr %s568, 64
          %s570 = scalar_lea.vmem [#allocation7], %s569
          %s572 = ssub.s32 1024, 1024
          %573 = vsyncadd %s567, %s572
          %s574 = smul.addr %s59, 8
          %s575 = smul.addr %s574, 128
          %s576 = scalar_lea.hbm %s1, %s575
          %s577 = sshll.u32 %s570, 4
          %s578 = int_to_ptr.vmem [resolvable:$true] %s577
          %583 = dma.hbm_to_vmem [thread:$0]  %s576, 1024, %s578, %s567, 512, 512, 32
        $region28: #{tpu_custom_call.1} parent=23 // pred_fallthru
          _
        // Predicated region
        $region29: #{tpu_custom_call.1} parent=23 // pred_check
          %p584 = pneg %p110
        $region30: #{tpu_custom_call.1} parent=23 // pred_check_branch
          %586 = sbr.rel (%p584) target = $region32
        $region31: #{tpu_custom_call.1} parent=23 // pred_region
          %s587 = sand.u32 %s52, 1
          %s588 = scalar_lea.sflag [#allocation11], %s587
          %s589 = sand.u32 %s100, 1
          %s590 = smul.addr %s589, 2048
          %s591 = scalar_lea.vmem [#allocation10], %s590
          %s593 = ssub.s32 32768, 32768
          %594 = vsyncadd %s588, %s593
          %s595 = smul.addr %s60, 512
          %s596 = smul.addr %s595, 64
          %s597 = scalar_lea.hbm %s2, %s596
          %s598 = sshll.u32 %s591, 4
          %s599 = int_to_ptr.vmem [resolvable:$true] %s598
          %604 = dma.hbm_to_vmem [thread:$0]  %s597, 32768, %s599, %s588, 512, 512, 32
        $region32: #{tpu_custom_call.1} parent=23 // pred_fallthru
          _
        // Predicated region
        $region33: #{tpu_custom_call.1} parent=23 // pred_check
          %p605 = pneg %p136
        $region34: #{tpu_custom_call.1} parent=23 // pred_check_branch
          %607 = sbr.rel (%p605) target = $region36
        $region35: #{tpu_custom_call.1} parent=23 // pred_region
          %s608 = sand.u32 %s52, 1
          %s609 = scalar_lea.sflag [#allocation11], %s608
          %s610 = sand.u32 %s126, 1
          %s611 = smul.addr %s610, 8
          %s612 = scalar_lea.vmem [#allocation12], %s611
          %s614 = ssub.s32 128, 128
          %615 = vsyncadd %s609, %s614
          %s616 = smul.addr %s60, 8
          %s617 = smul.addr %s616, 16
          %s618 = scalar_lea.hbm %s3, %s617
          %s620 = sshll.u32 %s612, 4
          %s621 = int_to_ptr.vmem [resolvable:$true] %s620
          %623 = dma.hbm_to_vmem [thread:$0]  %s618, 128, %s621, %s609
        $region36: #{tpu_custom_call.1} parent=23 // pred_fallthru
          _
        // Predicated region
        $region37: #{tpu_custom_call.1} parent=23 // pred_check
          %p624 = pneg %p162
        $region38: #{tpu_custom_call.1} parent=23 // pred_check_branch
          %626 = sbr.rel (%p624) target = $region40
        $region39: #{tpu_custom_call.1} parent=23 // pred_region
          %s627 = sand.u32 %s52, 1
          %s628 = scalar_lea.sflag [#allocation14], %s627
          %s629 = sand.u32 %s152, 1
          %s630 = smul.addr %s629, 1024
          %s631 = scalar_lea.vmem [#allocation13], %s630
          %s633 = ssub.s32 16384, 16384
          %634 = vsyncadd %s628, %s633
          %s635 = smul.addr %s60, 256
          %s636 = smul.addr %s635, 64
          %s637 = scalar_lea.hbm %s4, %s636
          %s638 = sshll.u32 %s631, 4
          %s639 = int_to_ptr.vmem [resolvable:$true] %s638
          %644 = dma.hbm_to_vmem [thread:$0]  %s637, 16384, %s639, %s628, 256, 256, 16
        $region40: #{tpu_custom_call.1} parent=23 // pred_fallthru
          _
        // Predicated region
        $region41: #{tpu_custom_call.1} parent=23 // pred_check
          %p645 = pneg %p188
        $region42: #{tpu_custom_call.1} parent=23 // pred_check_branch
          %647 = sbr.rel (%p645) target = $region44
        $region43: #{tpu_custom_call.1} parent=23 // pred_region
          %s648 = sand.u32 %s52, 1
          %s649 = scalar_lea.sflag [#allocation14], %s648
          %s650 = sand.u32 %s178, 1
          %s651 = smul.addr %s650, 4
          %s652 = scalar_lea.vmem [#allocation15], %s651
          %s654 = ssub.s32 64, 64
          %655 = vsyncadd %s649, %s654
          %s656 = smul.addr %s60, 4
          %s657 = smul.addr %s656, 16
          %s658 = scalar_lea.hbm %s5, %s657
          %s660 = sshll.u32 %s652, 4
          %s661 = int_to_ptr.vmem [resolvable:$true] %s660
          %663 = dma.hbm_to_vmem [thread:$0]  %s658, 64, %s661, %s649
        $region44: #{tpu_custom_call.1} parent=23 // pred_fallthru
          _
        // Predicated region
        $region45: #{tpu_custom_call.1} parent=23 // pred_check
          %p664 = pneg %p214
        $region46: #{tpu_custom_call.1} parent=23 // pred_check_branch
          %666 = sbr.rel (%p664) target = $region48
        $region47: #{tpu_custom_call.1} parent=23 // pred_region
          %s667 = sand.u32 %s52, 1
          %s668 = scalar_lea.sflag [#allocation17], %s667
          %s669 = sand.u32 %s204, 1
          %s670 = smul.addr %s669, 1024
          %s671 = scalar_lea.vmem [#allocation16], %s670
          %s673 = ssub.s32 16384, 16384
          %674 = vsyncadd %s668, %s673
          %s675 = smul.addr %s60, 256
          %s676 = smul.addr %s675, 64
          %s677 = scalar_lea.hbm %s6, %s676
          %s678 = sshll.u32 %s671, 4
          %s679 = int_to_ptr.vmem [resolvable:$true] %s678
          %684 = dma.hbm_to_vmem [thread:$0]  %s677, 16384, %s679, %s668, 256, 256, 16
        $region48: #{tpu_custom_call.1} parent=23 // pred_fallthru
          _
        // Predicated region
        $region49: #{tpu_custom_call.1} parent=23 // pred_check
          %p685 = pneg %p240
        $region50: #{tpu_custom_call.1} parent=23 // pred_check_branch
          %687 = sbr.rel (%p685) target = $region52
        $region51: #{tpu_custom_call.1} parent=23 // pred_region
          %s688 = sand.u32 %s52, 1
          %s689 = scalar_lea.sflag [#allocation17], %s688
          %s690 = sand.u32 %s230, 1
          %s691 = smul.addr %s690, 4
          %s692 = scalar_lea.vmem [#allocation18], %s691
          %s694 = ssub.s32 64, 64
          %695 = vsyncadd %s689, %s694
          %s696 = smul.addr %s60, 4
          %s697 = smul.addr %s696, 16
          %s698 = scalar_lea.hbm %s7, %s697
          %s700 = sshll.u32 %s692, 4
          %s701 = int_to_ptr.vmem [resolvable:$true] %s700
          %703 = dma.hbm_to_vmem [thread:$0]  %s698, 64, %s701, %s689
        $region52: #{tpu_custom_call.1} parent=23 // pred_fallthru
          _
        // Predicated region
        $region53: #{tpu_custom_call.1} parent=23 // pred_check
          %p704 = pneg %p266
        $region54: #{tpu_custom_call.1} parent=23 // pred_check_branch
          %706 = sbr.rel (%p704) target = $region56
        $region55: #{tpu_custom_call.1} parent=23 // pred_region
          %s707 = sand.u32 %s52, 1
          %s708 = scalar_lea.sflag [#allocation20], %s707
          %s709 = sand.u32 %s256, 1
          %s710 = smul.addr %s709, 4
          %s711 = scalar_lea.vmem [#allocation19], %s710
          %s713 = ssub.s32 64, 64
          %714 = vsyncadd %s708, %s713
          %s715 = smul.addr %s60, 4
          %s716 = smul.addr %s715, 16
          %s717 = scalar_lea.hbm %s8, %s716
          %s719 = sshll.u32 %s711, 4
          %s720 = int_to_ptr.vmem [resolvable:$true] %s719
          %722 = dma.hbm_to_vmem [thread:$0]  %s717, 64, %s720, %s708
        $region56: #{tpu_custom_call.1} parent=23 // pred_fallthru
          _
        // Predicated region
        $region57: #{tpu_custom_call.1} parent=23 // pred_check
          %p723 = pneg %p292
        $region58: #{tpu_custom_call.1} parent=23 // pred_check_branch
          %725 = sbr.rel (%p723) target = $region60
        $region59: #{tpu_custom_call.1} parent=23 // pred_region
          %s726 = sand.u32 %s52, 1
          %s727 = scalar_lea.sflag [#allocation20], %s726
          %s728 = sand.u32 %s282, 1
          %s729 = smul.addr %s728, 4
          %s730 = scalar_lea.vmem [#allocation21], %s729
          %s732 = ssub.s32 64, 64
          %733 = vsyncadd %s727, %s732
          %s734 = smul.addr %s60, 4
          %s735 = smul.addr %s734, 16
          %s736 = scalar_lea.hbm %s9, %s735
          %s738 = sshll.u32 %s730, 4
          %s739 = int_to_ptr.vmem [resolvable:$true] %s738
          %741 = dma.hbm_to_vmem [thread:$0]  %s736, 64, %s739, %s727
        $region60: #{tpu_custom_call.1} parent=23 // pred_fallthru
          _
        // Predicated region
        $region61: #{tpu_custom_call.1} parent=23 // pred_check
          %p742 = pneg %p318
        $region62: #{tpu_custom_call.1} parent=23 // pred_check_branch
          %744 = sbr.rel (%p742) target = $region64
        $region63: #{tpu_custom_call.1} parent=23 // pred_region
          %s745 = sand.u32 %s52, 1
          %s746 = scalar_lea.sflag [#allocation23], %s745
          %s747 = sand.u32 %s308, 1
          %s748 = smul.addr %s747, 256
          %s749 = scalar_lea.vmem [#allocation22], %s748
          %s751 = ssub.s32 4096, 4096
          %752 = vsyncadd %s746, %s751
          %s753 = smul.addr %s60, 64
          %s754 = smul.addr %s753, 64
          %s755 = scalar_lea.hbm %s10, %s754
          %s756 = sshll.u32 %s749, 4
          %s757 = int_to_ptr.vmem [resolvable:$true] %s756
          %762 = dma.hbm_to_vmem [thread:$0]  %s755, 4096, %s757, %s746, 64, 64, 4
        $region64: #{tpu_custom_call.1} parent=23 // pred_fallthru
          _
        // Predicated region
        $region65: #{tpu_custom_call.1} parent=23 // pred_check
          %p763 = pneg %p344
        $region66: #{tpu_custom_call.1} parent=23 // pred_check_branch
          %765 = sbr.rel (%p763) target = $region68
        $region67: #{tpu_custom_call.1} parent=23 // pred_region
          %s766 = sand.u32 %s52, 1
          %s767 = scalar_lea.sflag [#allocation23], %s766
          %s768 = sand.u32 %s334, 1
          %s769 = scalar_lea.vmem [#allocation24], %s768
          %s771 = ssub.s32 16, 16
          %772 = vsyncadd %s767, %s771
          %s773 = smul.addr %s60, 16
          %s774 = scalar_lea.hbm %s11, %s773
          %s776 = sshll.u32 %s769, 4
          %s777 = int_to_ptr.vmem [resolvable:$true] %s776
          %779 = dma.hbm_to_vmem [thread:$0]  %s774, 16, %s777, %s767
        $region68: #{tpu_custom_call.1} parent=23 // pred_fallthru
          _
        // Predicated region
        $region69: #{tpu_custom_call.1} parent=23 // pred_check
          %p780 = pneg %p370
        $region70: #{tpu_custom_call.1} parent=23 // pred_check_branch
          %782 = sbr.rel (%p780) target = $region72
        $region71: #{tpu_custom_call.1} parent=23 // pred_region
          %s783 = sand.u32 %s52, 1
          %s784 = scalar_lea.sflag [#allocation26], %s783
          %s785 = sand.u32 %s360, 1
          %s786 = smul.addr %s785, 256
          %s787 = scalar_lea.vmem [#allocation25], %s786
          %s789 = ssub.s32 4096, 4096
          %790 = vsyncadd %s784, %s789
          %s791 = smul.addr %s60, 64
          %s792 = smul.addr %s791, 64
          %s793 = scalar_lea.hbm %s12, %s792
          %s794 = sshll.u32 %s787, 4
          %s795 = int_to_ptr.vmem [resolvable:$true] %s794
          %800 = dma.hbm_to_vmem [thread:$0]  %s793, 4096, %s795, %s784, 256, 256, 16
        $region72: #{tpu_custom_call.1} parent=23 // pred_fallthru
          _
        // Predicated region
        $region73: #{tpu_custom_call.1} parent=23 // pred_check
          %p801 = pneg %p396
        $region74: #{tpu_custom_call.1} parent=23 // pred_check_branch
          %803 = sbr.rel (%p801) target = $region76
        $region75: #{tpu_custom_call.1} parent=23 // pred_region
          %s804 = sand.u32 %s52, 1
          %s805 = scalar_lea.sflag [#allocation26], %s804
          %s806 = sand.u32 %s386, 1
          %s807 = smul.addr %s806, 4
          %s808 = scalar_lea.vmem [#allocation27], %s807
          %s810 = ssub.s32 64, 64
          %811 = vsyncadd %s805, %s810
          %s812 = smul.addr %s60, 4
          %s813 = smul.addr %s812, 16
          %s814 = scalar_lea.hbm %s13, %s813
          %s816 = sshll.u32 %s808, 4
          %s817 = int_to_ptr.vmem [resolvable:$true] %s816
          %819 = dma.hbm_to_vmem [thread:$0]  %s814, 64, %s817, %s805
        $region76: #{tpu_custom_call.1} parent=23 // pred_fallthru
          _
        // Predicated region
        $region77: #{tpu_custom_call.1} parent=23 // pred_check
          %p820 = pneg %p422
        $region78: #{tpu_custom_call.1} parent=23 // pred_check_branch
          %822 = sbr.rel (%p820) target = $region80
        $region79: #{tpu_custom_call.1} parent=23 // pred_region
          %s823 = sand.u32 %s52, 1
          %s824 = scalar_lea.sflag [#allocation29], %s823
          %s825 = sand.u32 %s412, 1
          %s826 = smul.addr %s825, 4
          %s827 = scalar_lea.vmem [#allocation28], %s826
          %s829 = ssub.s32 64, 64
          %830 = vsyncadd %s824, %s829
          %s831 = smul.addr %s60, 4
          %s832 = smul.addr %s831, 16
          %s833 = scalar_lea.hbm %s14, %s832
          %s835 = sshll.u32 %s827, 4
          %s836 = int_to_ptr.vmem [resolvable:$true] %s835
          %838 = dma.hbm_to_vmem [thread:$0]  %s833, 64, %s836, %s824
        $region80: #{tpu_custom_call.1} parent=23 // pred_fallthru
          _
        // Predicated region
        $region81: #{tpu_custom_call.1} parent=23 // pred_check
          %p839 = pneg %p448
        $region82: #{tpu_custom_call.1} parent=23 // pred_check_branch
          %841 = sbr.rel (%p839) target = $region84
        $region83: #{tpu_custom_call.1} parent=23 // pred_region
          %s842 = sand.u32 %s52, 1
          %s843 = scalar_lea.sflag [#allocation29], %s842
          %s844 = sand.u32 %s438, 1
          %s845 = smul.addr %s844, 4
          %s846 = scalar_lea.vmem [#allocation30], %s845
          %s848 = ssub.s32 64, 64
          %849 = vsyncadd %s843, %s848
          %s850 = smul.addr %s60, 4
          %s851 = smul.addr %s850, 16
          %s852 = scalar_lea.hbm %s15, %s851
          %s854 = sshll.u32 %s846, 4
          %s855 = int_to_ptr.vmem [resolvable:$true] %s854
          %857 = dma.hbm_to_vmem [thread:$0]  %s852, 64, %s855, %s843
        $region84: #{tpu_custom_call.1} parent=23 // pred_fallthru
          _
      $region24: #{tpu_custom_call.1} parent=5 // pred_fallthru
        _
      %p858 = scmp.le.s32.totalorder 1, %s52
      %p859 = scmp.lt.s32.totalorder %s52, 5
      %p860 = pnand %p858, %p859
      %p861 = pneg %p860
      // Predicated region
      $region85: #{tpu_custom_call.1} parent=5 // pred_check
        _
      $region86: #{tpu_custom_call.1} parent=5 // pred_check_branch
        %863 = sbr.rel (%p860) target = $region88
      $region87: #{tpu_custom_call.1} parent=5 // pred_region
        %s864 = ssub.s32 %s52, 1
        %s865 = sand.u32 %s77, 1
        %s866 = scalar_lea.sflag [#allocation8], %s865
        %s867 = sand.u32 %s77, 1
        %s868 = smul.addr %s867, 64
        %s869 = scalar_lea.vmem [#allocation7], %s868
        // Predicated region
        $region89: #{tpu_custom_call.1} parent=87 // pred_check
          %p870 = pneg %p90
        $region90: #{tpu_custom_call.1} parent=87 // pred_check_branch
          %872 = sbr.rel (%p870) target = $region92
        $region91: #{tpu_custom_call.1} parent=87 // pred_region
          %873 = dma.done %s866, 1024
        $region92: #{tpu_custom_call.1} parent=87 // pred_fallthru
          _
        %s874 = sand.u32 %s57, 1
        %s875 = scalar_lea.sflag [#allocation11], %s874
        %s876 = sand.u32 %s103, 1
        %s877 = smul.addr %s876, 2048
        %s878 = scalar_lea.vmem [#allocation10], %s877
        // Predicated region
        $region93: #{tpu_custom_call.1} parent=87 // pred_check
          %p879 = pneg %p116
        $region94: #{tpu_custom_call.1} parent=87 // pred_check_branch
          %881 = sbr.rel (%p879) target = $region96
        $region95: #{tpu_custom_call.1} parent=87 // pred_region
          %882 = dma.done %s875, 32768
        $region96: #{tpu_custom_call.1} parent=87 // pred_fallthru
          _
        %s883 = sand.u32 %s57, 1
        %s884 = scalar_lea.sflag [#allocation11], %s883
        %s885 = sand.u32 %s129, 1
        %s886 = smul.addr %s885, 8
        %s887 = scalar_lea.vmem [#allocation12], %s886
        // Predicated region
        $region97: #{tpu_custom_call.1} parent=87 // pred_check
          %p888 = pneg %p142
        $region98: #{tpu_custom_call.1} parent=87 // pred_check_branch
          %890 = sbr.rel (%p888) target = $region100
        $region99: #{tpu_custom_call.1} parent=87 // pred_region
          %891 = dma.done %s884, 128
        $region100: #{tpu_custom_call.1} parent=87 // pred_fallthru
          _
        %s892 = sand.u32 %s57, 1
        %s893 = scalar_lea.sflag [#allocation14], %s892
        %s894 = sand.u32 %s155, 1
        %s895 = smul.addr %s894, 1024
        %s896 = scalar_lea.vmem [#allocation13], %s895
        // Predicated region
        $region101: #{tpu_custom_call.1} parent=87 // pred_check
          %p897 = pneg %p168
        $region102: #{tpu_custom_call.1} parent=87 // pred_check_branch
          %899 = sbr.rel (%p897) target = $region104
        $region103: #{tpu_custom_call.1} parent=87 // pred_region
          %900 = dma.done %s893, 16384
        $region104: #{tpu_custom_call.1} parent=87 // pred_fallthru
          _
        %s901 = sand.u32 %s57, 1
        %s902 = scalar_lea.sflag [#allocation14], %s901
        %s903 = sand.u32 %s181, 1
        %s904 = smul.addr %s903, 4
        %s905 = scalar_lea.vmem [#allocation15], %s904
        // Predicated region
        $region105: #{tpu_custom_call.1} parent=87 // pred_check
          %p906 = pneg %p194
        $region106: #{tpu_custom_call.1} parent=87 // pred_check_branch
          %908 = sbr.rel (%p906) target = $region108
        $region107: #{tpu_custom_call.1} parent=87 // pred_region
          %909 = dma.done %s902, 64
        $region108: #{tpu_custom_call.1} parent=87 // pred_fallthru
          _
        %s910 = sand.u32 %s57, 1
        %s911 = scalar_lea.sflag [#allocation17], %s910
        %s912 = sand.u32 %s207, 1
        %s913 = smul.addr %s912, 1024
        %s914 = scalar_lea.vmem [#allocation16], %s913
        // Predicated region
        $region109: #{tpu_custom_call.1} parent=87 // pred_check
          %p915 = pneg %p220
        $region110: #{tpu_custom_call.1} parent=87 // pred_check_branch
          %917 = sbr.rel (%p915) target = $region112
        $region111: #{tpu_custom_call.1} parent=87 // pred_region
          %918 = dma.done %s911, 16384
        $region112: #{tpu_custom_call.1} parent=87 // pred_fallthru
          _
        %s919 = sand.u32 %s57, 1
        %s920 = scalar_lea.sflag [#allocation17], %s919
        %s921 = sand.u32 %s233, 1
        %s922 = smul.addr %s921, 4
        %s923 = scalar_lea.vmem [#allocation18], %s922
        // Predicated region
        $region113: #{tpu_custom_call.1} parent=87 // pred_check
          %p924 = pneg %p246
        $region114: #{tpu_custom_call.1} parent=87 // pred_check_branch
          %926 = sbr.rel (%p924) target = $region116
        $region115: #{tpu_custom_call.1} parent=87 // pred_region
          %927 = dma.done %s920, 64
        $region116: #{tpu_custom_call.1} parent=87 // pred_fallthru
          _
        %s928 = sand.u32 %s57, 1
        %s929 = scalar_lea.sflag [#allocation20], %s928
        %s930 = sand.u32 %s259, 1
        %s931 = smul.addr %s930, 4
        %s932 = scalar_lea.vmem [#allocation19], %s931
        // Predicated region
        $region117: #{tpu_custom_call.1} parent=87 // pred_check
          %p933 = pneg %p272
        $region118: #{tpu_custom_call.1} parent=87 // pred_check_branch
          %935 = sbr.rel (%p933) target = $region120
        $region119: #{tpu_custom_call.1} parent=87 // pred_region
          %936 = dma.done %s929, 64
        $region120: #{tpu_custom_call.1} parent=87 // pred_fallthru
          _
        %s937 = sand.u32 %s57, 1
        %s938 = scalar_lea.sflag [#allocation20], %s937
        %s939 = sand.u32 %s285, 1
        %s940 = smul.addr %s939, 4
        %s941 = scalar_lea.vmem [#allocation21], %s940
        // Predicated region
        $region121: #{tpu_custom_call.1} parent=87 // pred_check
          %p942 = pneg %p298
        $region122: #{tpu_custom_call.1} parent=87 // pred_check_branch
          %944 = sbr.rel (%p942) target = $region124
        $region123: #{tpu_custom_call.1} parent=87 // pred_region
          %945 = dma.done %s938, 64
        $region124: #{tpu_custom_call.1} parent=87 // pred_fallthru
          _
        %s946 = sand.u32 %s57, 1
        %s947 = scalar_lea.sflag [#allocation23], %s946
        %s948 = sand.u32 %s311, 1
        %s949 = smul.addr %s948, 256
        %s950 = scalar_lea.vmem [#allocation22], %s949
        // Predicated region
        $region125: #{tpu_custom_call.1} parent=87 // pred_check
          %p951 = pneg %p324
        $region126: #{tpu_custom_call.1} parent=87 // pred_check_branch
          %953 = sbr.rel (%p951) target = $region128
        $region127: #{tpu_custom_call.1} parent=87 // pred_region
          %954 = dma.done %s947, 4096
        $region128: #{tpu_custom_call.1} parent=87 // pred_fallthru
          _
        %s955 = sand.u32 %s57, 1
        %s956 = scalar_lea.sflag [#allocation23], %s955
        %s957 = sand.u32 %s337, 1
        %s958 = scalar_lea.vmem [#allocation24], %s957
        // Predicated region
        $region129: #{tpu_custom_call.1} parent=87 // pred_check
          %p959 = pneg %p350
        $region130: #{tpu_custom_call.1} parent=87 // pred_check_branch
          %961 = sbr.rel (%p959) target = $region132
        $region131: #{tpu_custom_call.1} parent=87 // pred_region
          %962 = dma.done %s956, 16
        $region132: #{tpu_custom_call.1} parent=87 // pred_fallthru
          _
        %s963 = sand.u32 %s57, 1
        %s964 = scalar_lea.sflag [#allocation26], %s963
        %s965 = sand.u32 %s363, 1
        %s966 = smul.addr %s965, 256
        %s967 = scalar_lea.vmem [#allocation25], %s966
        // Predicated region
        $region133: #{tpu_custom_call.1} parent=87 // pred_check
          %p968 = pneg %p376
        $region134: #{tpu_custom_call.1} parent=87 // pred_check_branch
          %970 = sbr.rel (%p968) target = $region136
        $region135: #{tpu_custom_call.1} parent=87 // pred_region
          %971 = dma.done %s964, 4096
        $region136: #{tpu_custom_call.1} parent=87 // pred_fallthru
          _
        %s972 = sand.u32 %s57, 1
        %s973 = scalar_lea.sflag [#allocation26], %s972
        %s974 = sand.u32 %s389, 1
        %s975 = smul.addr %s974, 4
        %s976 = scalar_lea.vmem [#allocation27], %s975
        // Predicated region
        $region137: #{tpu_custom_call.1} parent=87 // pred_check
          %p977 = pneg %p402
        $region138: #{tpu_custom_call.1} parent=87 // pred_check_branch
          %979 = sbr.rel (%p977) target = $region140
        $region139: #{tpu_custom_call.1} parent=87 // pred_region
          %980 = dma.done %s973, 64
        $region140: #{tpu_custom_call.1} parent=87 // pred_fallthru
          _
        %s981 = sand.u32 %s57, 1
        %s982 = scalar_lea.sflag [#allocation29], %s981
        %s983 = sand.u32 %s415, 1
        %s984 = smul.addr %s983, 4
        %s985 = scalar_lea.vmem [#allocation28], %s984
        // Predicated region
        $region141: #{tpu_custom_call.1} parent=87 // pred_check
          %p986 = pneg %p428
        $region142: #{tpu_custom_call.1} parent=87 // pred_check_branch
          %988 = sbr.rel (%p986) target = $region144
        $region143: #{tpu_custom_call.1} parent=87 // pred_region
          %989 = dma.done %s982, 64
        $region144: #{tpu_custom_call.1} parent=87 // pred_fallthru
          _
        %s990 = sand.u32 %s57, 1
        %s991 = scalar_lea.sflag [#allocation29], %s990
        %s992 = sand.u32 %s441, 1
        %s993 = smul.addr %s992, 4
        %s994 = scalar_lea.vmem [#allocation30], %s993
        // Predicated region
        $region145: #{tpu_custom_call.1} parent=87 // pred_check
          %p995 = pneg %p454
        $region146: #{tpu_custom_call.1} parent=87 // pred_check_branch
          %997 = sbr.rel (%p995) target = $region148
        $region147: #{tpu_custom_call.1} parent=87 // pred_region
          %998 = dma.done %s991, 64
        $region148: #{tpu_custom_call.1} parent=87 // pred_fallthru
          _
        // Predicated region
        $region149: #{tpu_custom_call.1} parent=87 // pred_check
          %p999 = pneg %p475
        $region150: #{tpu_custom_call.1} parent=87 // pred_check_branch
          %1001 = sbr.rel (%p999) target = $region152
        $region151: #{tpu_custom_call.1} parent=87 // pred_region
          %1002 = dma.done [#allocation32], 64
        $region152: #{tpu_custom_call.1} parent=87 // pred_fallthru
          _
        // Predicated region
        $region153: #{tpu_custom_call.1} parent=87 // pred_check
          %p1003 = pneg %p496
        $region154: #{tpu_custom_call.1} parent=87 // pred_check_branch
          %1005 = sbr.rel (%p1003) target = $region156
        $region155: #{tpu_custom_call.1} parent=87 // pred_region
          %1006 = dma.done [#allocation32], 64
        $region156: #{tpu_custom_call.1} parent=87 // pred_fallthru
          _
        %s1007 = sand.u32 %s77, 1
        %s1008 = scalar_lea.sflag [#allocation8], %s1007
        %s1009 = sand.u32 %s77, 1
        %s1010 = smul.addr %s1009, 64
        %s1011 = scalar_lea.vmem [#allocation7], %s1010
        %p1012 = pneg %p90
        %p1013 = pneg %p87
        %s1014 = sand.u32 %s57, 1
        %s1015 = scalar_lea.sflag [#allocation11], %s1014
        %s1016 = sand.u32 %s103, 1
        %s1017 = smul.addr %s1016, 2048
        %s1018 = scalar_lea.vmem [#allocation10], %s1017
        %p1019 = pneg %p116
        %p1020 = pneg %p113
        %s1021 = sand.u32 %s57, 1
        %s1022 = scalar_lea.sflag [#allocation11], %s1021
        %s1023 = sand.u32 %s129, 1
        %s1024 = smul.addr %s1023, 8
        %s1025 = scalar_lea.vmem [#allocation12], %s1024
        %p1026 = pneg %p142
        %p1027 = pneg %p139
        %s1028 = sand.u32 %s57, 1
        %s1029 = scalar_lea.sflag [#allocation14], %s1028
        %s1030 = sand.u32 %s155, 1
        %s1031 = smul.addr %s1030, 1024
        %s1032 = scalar_lea.vmem [#allocation13], %s1031
        %p1033 = pneg %p168
        %p1034 = pneg %p165
        %s1035 = sand.u32 %s57, 1
        %s1036 = scalar_lea.sflag [#allocation14], %s1035
        %s1037 = sand.u32 %s181, 1
        %s1038 = smul.addr %s1037, 4
        %s1039 = scalar_lea.vmem [#allocation15], %s1038
        %p1040 = pneg %p194
        %p1041 = pneg %p191
        %s1042 = sand.u32 %s57, 1
        %s1043 = scalar_lea.sflag [#allocation17], %s1042
        %s1044 = sand.u32 %s207, 1
        %s1045 = smul.addr %s1044, 1024
        %s1046 = scalar_lea.vmem [#allocation16], %s1045
        %p1047 = pneg %p220
        %p1048 = pneg %p217
        %s1049 = sand.u32 %s57, 1
        %s1050 = scalar_lea.sflag [#allocation17], %s1049
        %s1051 = sand.u32 %s233, 1
        %s1052 = smul.addr %s1051, 4
        %s1053 = scalar_lea.vmem [#allocation18], %s1052
        %p1054 = pneg %p246
        %p1055 = pneg %p243
        %s1056 = sand.u32 %s57, 1
        %s1057 = scalar_lea.sflag [#allocation20], %s1056
        %s1058 = sand.u32 %s259, 1
        %s1059 = smul.addr %s1058, 4
        %s1060 = scalar_lea.vmem [#allocation19], %s1059
        %p1061 = pneg %p272
        %p1062 = pneg %p269
        %s1063 = sand.u32 %s57, 1
        %s1064 = scalar_lea.sflag [#allocation20], %s1063
        %s1065 = sand.u32 %s285, 1
        %s1066 = smul.addr %s1065, 4
        %s1067 = scalar_lea.vmem [#allocation21], %s1066
        %p1068 = pneg %p298
        %p1069 = pneg %p295
        %s1070 = sand.u32 %s57, 1
        %s1071 = scalar_lea.sflag [#allocation23], %s1070
        %s1072 = sand.u32 %s311, 1
        %s1073 = smul.addr %s1072, 256
        %s1074 = scalar_lea.vmem [#allocation22], %s1073
        %p1075 = pneg %p324
        %p1076 = pneg %p321
        %s1077 = sand.u32 %s57, 1
        %s1078 = scalar_lea.sflag [#allocation23], %s1077
        %s1079 = sand.u32 %s337, 1
        %s1080 = scalar_lea.vmem [#allocation24], %s1079
        %p1081 = pneg %p350
        %p1082 = pneg %p347
        %s1083 = sand.u32 %s57, 1
        %s1084 = scalar_lea.sflag [#allocation26], %s1083
        %s1085 = sand.u32 %s363, 1
        %s1086 = smul.addr %s1085, 256
        %s1087 = scalar_lea.vmem [#allocation25], %s1086
        %p1088 = pneg %p376
        %p1089 = pneg %p373
        %s1090 = sand.u32 %s57, 1
        %s1091 = scalar_lea.sflag [#allocation26], %s1090
        %s1092 = sand.u32 %s389, 1
        %s1093 = smul.addr %s1092, 4
        %s1094 = scalar_lea.vmem [#allocation27], %s1093
        %p1095 = pneg %p402
        %p1096 = pneg %p399
        %s1097 = sand.u32 %s57, 1
        %s1098 = scalar_lea.sflag [#allocation29], %s1097
        %s1099 = sand.u32 %s415, 1
        %s1100 = smul.addr %s1099, 4
        %s1101 = scalar_lea.vmem [#allocation28], %s1100
        %p1102 = pneg %p428
        %p1103 = pneg %p425
        %s1104 = sand.u32 %s57, 1
        %s1105 = scalar_lea.sflag [#allocation29], %s1104
        %s1106 = sand.u32 %s441, 1
        %s1107 = smul.addr %s1106, 4
        %s1108 = scalar_lea.vmem [#allocation30], %s1107
        %p1109 = pneg %p454
        %p1110 = pneg %p451
        %p1111 = pneg %p475
        %p1112 = pneg %p472
        %p1113 = pneg %p496
        %p1114 = pneg %p493
        %p1115 = pneg %p522
        %p1116 = pneg %p519
        %s1117 = sand.u32 %s509, 1
        %s1118 = scalar_lea.sflag [#allocation9], %s1117
        %s1119 = sand.u32 %s509, 1
        %s1120 = smul.addr %s1119, 64
        %s1121 = scalar_lea.vmem [#allocation34], %s1120
        %p1123 = scmp.eq.s32.totalorder %s62, 0
        // Predicated region
        $region157: #{tpu_custom_call.1} parent=87 // pred_check
          %p1124 = pneg %p1123
        $region158: #{tpu_custom_call.1} parent=87 // pred_check_branch
          %1126 = sbr.rel (%p1124) target = $region160
        $region159: #{tpu_custom_call.1} parent=87 // pred_region
          %s1127 = smul.u32 %s61, 8
          %s1128 = smul.addr %s1127, 128
          %s1129 = scalar_lea.hbm %s0, %s1128
          // Predicated region
          $region161: #{tpu_custom_call.1} parent=159 // pred_check
            _
          $region162: #{tpu_custom_call.1} parent=159 // pred_check_branch
            %1131 = sbr.rel target = $region164
          $region163: #{tpu_custom_call.1} parent=159 // pred_region
            %1132 = sst [smem:[#allocation37]] [#allocation36]
            %1133 = sst [smem:[#allocation38]] [#allocation35]
          $region164: #{tpu_custom_call.1} parent=159 // pred_fallthru
            _
          %1135 = shalt.err (0)
          %s1137 = sshll.u32 [#allocation2], 4
          %s1138 = int_to_ptr.vmem [resolvable:$true] %s1137
          %1140 = dma.hbm_to_vmem [thread:$0]  %s1129, 1024, %s1138, [#allocation6]
          %s1141 = smul.u32 8, 1
          %s1142 = smul.u32 %s1141, 2
          %s1143 = smul.u32 %s1142, 4
          %s1144 = sshll.u32 %s1143, 4
          %1145 = dma.done [#allocation6], %s1144
        $region160: #{tpu_custom_call.1} parent=87 // pred_fallthru
          _
        %v1146 = vld [vmem:[#allocation2] sm:$0xff]
        %v1147 = vld [vmem:[#allocation2 + $0x8] sm:$0xff]
        %v1148 = vld [vmem:[#allocation2 + $0x10] sm:$0xff]
        %v1149 = vld [vmem:[#allocation2 + $0x18] sm:$0xff]
        %v1150 = vld [vmem:[#allocation2 + $0x20] sm:$0xff]
        %v1151 = vld [vmem:[#allocation2 + $0x28] sm:$0xff]
        %v1152 = vld [vmem:[#allocation2 + $0x30] sm:$0xff]
        %v1153 = vld [vmem:[#allocation2 + $0x38] sm:$0xff]
        %v1154 = vld [vmem:[%s869] sm:$0xff]
        %v1155 = vld [vmem:[%s869 + $0x8] sm:$0xff]
        %v1156 = vld [vmem:[%s869 + $0x10] sm:$0xff]
        %v1157 = vld [vmem:[%s869 + $0x18] sm:$0xff]
        %v1158 = vld [vmem:[%s869 + $0x20] sm:$0xff]
        %v1159 = vld [vmem:[%s869 + $0x28] sm:$0xff]
        %v1160 = vld [vmem:[%s869 + $0x30] sm:$0xff]
        %v1161 = vld [vmem:[%s869 + $0x38] sm:$0xff]
        %v1162 = vadd.f32 %v1146, %v1154
        %v1163 = vadd.f32 %v1147, %v1155
        %v1164 = vadd.f32 %v1148, %v1156
        %v1165 = vadd.f32 %v1149, %v1157
        %v1166 = vadd.f32 %v1150, %v1158
        %v1167 = vadd.f32 %v1151, %v1159
        %v1168 = vadd.f32 %v1152, %v1160
        %v1169 = vadd.f32 %v1153, %v1161
        %v1170 = vpack.c.bf16 %v1166, %v1162
        %v1171 = vpack.c.bf16 %v1167, %v1163
        %v1172 = vpack.c.bf16 %v1168, %v1164
        %v1173 = vpack.c.bf16 %v1169, %v1165
        %v1174 = vld [vmem:[%s878] sm:$0xff]
        %v1175 = vld [vmem:[%s878 + $0x8] sm:$0xff]
        %v1176 = vld [vmem:[%s878 + $0x10] sm:$0xff]
        %v1177 = vld [vmem:[%s878 + $0x18] sm:$0xff]
        %v1178 = vld [vmem:[%s878 + $0x20] sm:$0xff]
        %v1179 = vld [vmem:[%s878 + $0x28] sm:$0xff]
        %v1180 = vld [vmem:[%s878 + $0x30] sm:$0xff]
        %v1181 = vld [vmem:[%s878 + $0x38] sm:$0xff]
        %v1182 = vld [vmem:[%s878 + $0x40] sm:$0xff]
        %v1183 = vld [vmem:[%s878 + $0x48] sm:$0xff]
        %v1184 = vld [vmem:[%s878 + $0x50] sm:$0xff]
        %v1185 = vld [vmem:[%s878 + $0x58] sm:$0xff]
        %v1186 = vld [vmem:[%s878 + $0x60] sm:$0xff]
        %v1187 = vld [vmem:[%s878 + $0x68] sm:$0xff]
        %v1188 = vld [vmem:[%s878 + $0x70] sm:$0xff]
        %v1189 = vld [vmem:[%s878 + $0x78] sm:$0xff]
        %v1190 = vld [vmem:[%s878 + $0x80] sm:$0xff]
        %v1191 = vld [vmem:[%s878 + $0x88] sm:$0xff]
        %v1192 = vld [vmem:[%s878 + $0x90] sm:$0xff]
        %v1193 = vld [vmem:[%s878 + $0x98] sm:$0xff]
        %v1194 = vld [vmem:[%s878 + $0xa0] sm:$0xff]
        %v1195 = vld [vmem:[%s878 + $0xa8] sm:$0xff]
        %v1196 = vld [vmem:[%s878 + $0xb0] sm:$0xff]
        %v1197 = vld [vmem:[%s878 + $0xb8] sm:$0xff]
        %v1198 = vld [vmem:[%s878 + $0xc0] sm:$0xff]
        %v1199 = vld [vmem:[%s878 + $0xc8] sm:$0xff]
        %v1200 = vld [vmem:[%s878 + $0xd0] sm:$0xff]
        %v1201 = vld [vmem:[%s878 + $0xd8] sm:$0xff]
        %v1202 = vld [vmem:[%s878 + $0xe0] sm:$0xff]
        %v1203 = vld [vmem:[%s878 + $0xe8] sm:$0xff]
        %v1204 = vld [vmem:[%s878 + $0xf0] sm:$0xff]
        %v1205 = vld [vmem:[%s878 + $0xf8] sm:$0xff]
        %v1206 = vld [vmem:[%s878 + $0x100] sm:$0xff]
        %v1207 = vld [vmem:[%s878 + $0x108] sm:$0xff]
        %v1208 = vld [vmem:[%s878 + $0x110] sm:$0xff]
        %v1209 = vld [vmem:[%s878 + $0x118] sm:$0xff]
        %v1210 = vld [vmem:[%s878 + $0x120] sm:$0xff]
        %v1211 = vld [vmem:[%s878 + $0x128] sm:$0xff]
        %v1212 = vld [vmem:[%s878 + $0x130] sm:$0xff]
        %v1213 = vld [vmem:[%s878 + $0x138] sm:$0xff]
        %v1214 = vld [vmem:[%s878 + $0x140] sm:$0xff]
        %v1215 = vld [vmem:[%s878 + $0x148] sm:$0xff]
        %v1216 = vld [vmem:[%s878 + $0x150] sm:$0xff]
        %v1217 = vld [vmem:[%s878 + $0x158] sm:$0xff]
        %v1218 = vld [vmem:[%s878 + $0x160] sm:$0xff]
        %v1219 = vld [vmem:[%s878 + $0x168] sm:$0xff]
        %v1220 = vld [vmem:[%s878 + $0x170] sm:$0xff]
        %v1221 = vld [vmem:[%s878 + $0x178] sm:$0xff]
        %v1222 = vld [vmem:[%s878 + $0x180] sm:$0xff]
        %v1223 = vld [vmem:[%s878 + $0x188] sm:$0xff]
        %v1224 = vld [vmem:[%s878 + $0x190] sm:$0xff]
        %v1225 = vld [vmem:[%s878 + $0x198] sm:$0xff]
        %v1226 = vld [vmem:[%s878 + $0x1a0] sm:$0xff]
        %v1227 = vld [vmem:[%s878 + $0x1a8] sm:$0xff]
        %v1228 = vld [vmem:[%s878 + $0x1b0] sm:$0xff]
        %v1229 = vld [vmem:[%s878 + $0x1b8] sm:$0xff]
        %v1230 = vld [vmem:[%s878 + $0x1c0] sm:$0xff]
        %v1231 = vld [vmem:[%s878 + $0x1c8] sm:$0xff]
        %v1232 = vld [vmem:[%s878 + $0x1d0] sm:$0xff]
        %v1233 = vld [vmem:[%s878 + $0x1d8] sm:$0xff]
        %v1234 = vld [vmem:[%s878 + $0x1e0] sm:$0xff]
        %v1235 = vld [vmem:[%s878 + $0x1e8] sm:$0xff]
        %v1236 = vld [vmem:[%s878 + $0x1f0] sm:$0xff]
        %v1237 = vld [vmem:[%s878 + $0x1f8] sm:$0xff]
        %v1238 = vld [vmem:[%s878 + $0x200] sm:$0xff]
        %v1239 = vld [vmem:[%s878 + $0x208] sm:$0xff]
        %v1240 = vld [vmem:[%s878 + $0x210] sm:$0xff]
        %v1241 = vld [vmem:[%s878 + $0x218] sm:$0xff]
        %v1242 = vld [vmem:[%s878 + $0x220] sm:$0xff]
        %v1243 = vld [vmem:[%s878 + $0x228] sm:$0xff]
        %v1244 = vld [vmem:[%s878 + $0x230] sm:$0xff]
        %v1245 = vld [vmem:[%s878 + $0x238] sm:$0xff]
        %v1246 = vld [vmem:[%s878 + $0x240] sm:$0xff]
        %v1247 = vld [vmem:[%s878 + $0x248] sm:$0xff]
        %v1248 = vld [vmem:[%s878 + $0x250] sm:$0xff]
        %v1249 = vld [vmem:[%s878 + $0x258] sm:$0xff]
        %v1250 = vld [vmem:[%s878 + $0x260] sm:$0xff]
        %v1251 = vld [vmem:[%s878 + $0x268] sm:$0xff]
        %v1252 = vld [vmem:[%s878 + $0x270] sm:$0xff]
        %v1253 = vld [vmem:[%s878 + $0x278] sm:$0xff]
        %v1254 = vld [vmem:[%s878 + $0x280] sm:$0xff]
        %v1255 = vld [vmem:[%s878 + $0x288] sm:$0xff]
        %v1256 = vld [vmem:[%s878 + $0x290] sm:$0xff]
        %v1257 = vld [vmem:[%s878 + $0x298] sm:$0xff]
        %v1258 = vld [vmem:[%s878 + $0x2a0] sm:$0xff]
        %v1259 = vld [vmem:[%s878 + $0x2a8] sm:$0xff]
        %v1260 = vld [vmem:[%s878 + $0x2b0] sm:$0xff]
        %v1261 = vld [vmem:[%s878 + $0x2b8] sm:$0xff]
        %v1262 = vld [vmem:[%s878 + $0x2c0] sm:$0xff]
        %v1263 = vld [vmem:[%s878 + $0x2c8] sm:$0xff]
        %v1264 = vld [vmem:[%s878 + $0x2d0] sm:$0xff]
        %v1265 = vld [vmem:[%s878 + $0x2d8] sm:$0xff]
        %v1266 = vld [vmem:[%s878 + $0x2e0] sm:$0xff]
        %v1267 = vld [vmem:[%s878 + $0x2e8] sm:$0xff]
        %v1268 = vld [vmem:[%s878 + $0x2f0] sm:$0xff]
        %v1269 = vld [vmem:[%s878 + $0x2f8] sm:$0xff]
        %v1270 = vld [vmem:[%s878 + $0x300] sm:$0xff]
        %v1271 = vld [vmem:[%s878 + $0x308] sm:$0xff]
        %v1272 = vld [vmem:[%s878 + $0x310] sm:$0xff]
        %v1273 = vld [vmem:[%s878 + $0x318] sm:$0xff]
        %v1274 = vld [vmem:[%s878 + $0x320] sm:$0xff]
        %v1275 = vld [vmem:[%s878 + $0x328] sm:$0xff]
        %v1276 = vld [vmem:[%s878 + $0x330] sm:$0xff]
        %v1277 = vld [vmem:[%s878 + $0x338] sm:$0xff]
        %v1278 = vld [vmem:[%s878 + $0x340] sm:$0xff]
        %v1279 = vld [vmem:[%s878 + $0x348] sm:$0xff]
        %v1280 = vld [vmem:[%s878 + $0x350] sm:$0xff]
        %v1281 = vld [vmem:[%s878 + $0x358] sm:$0xff]
        %v1282 = vld [vmem:[%s878 + $0x360] sm:$0xff]
        %v1283 = vld [vmem:[%s878 + $0x368] sm:$0xff]
        %v1284 = vld [vmem:[%s878 + $0x370] sm:$0xff]
        %v1285 = vld [vmem:[%s878 + $0x378] sm:$0xff]
        %v1286 = vld [vmem:[%s878 + $0x380] sm:$0xff]
        %v1287 = vld [vmem:[%s878 + $0x388] sm:$0xff]
        %v1288 = vld [vmem:[%s878 + $0x390] sm:$0xff]
        %v1289 = vld [vmem:[%s878 + $0x398] sm:$0xff]
        %v1290 = vld [vmem:[%s878 + $0x3a0] sm:$0xff]
        %v1291 = vld [vmem:[%s878 + $0x3a8] sm:$0xff]
        %v1292 = vld [vmem:[%s878 + $0x3b0] sm:$0xff]
        %v1293 = vld [vmem:[%s878 + $0x3b8] sm:$0xff]
        %v1294 = vld [vmem:[%s878 + $0x3c0] sm:$0xff]
        %v1295 = vld [vmem:[%s878 + $0x3c8] sm:$0xff]
        %v1296 = vld [vmem:[%s878 + $0x3d0] sm:$0xff]
        %v1297 = vld [vmem:[%s878 + $0x3d8] sm:$0xff]
        %v1298 = vld [vmem:[%s878 + $0x3e0] sm:$0xff]
        %v1299 = vld [vmem:[%s878 + $0x3e8] sm:$0xff]
        %v1300 = vld [vmem:[%s878 + $0x3f0] sm:$0xff]
        %v1301 = vld [vmem:[%s878 + $0x3f8] sm:$0xff]
        %v1302 = vld [vmem:[%s878 + $0x400] sm:$0xff]
        %v1303 = vld [vmem:[%s878 + $0x408] sm:$0xff]
        %v1304 = vld [vmem:[%s878 + $0x410] sm:$0xff]
        %v1305 = vld [vmem:[%s878 + $0x418] sm:$0xff]
        %v1306 = vld [vmem:[%s878 + $0x420] sm:$0xff]
        %v1307 = vld [vmem:[%s878 + $0x428] sm:$0xff]
        %v1308 = vld [vmem:[%s878 + $0x430] sm:$0xff]
        %v1309 = vld [vmem:[%s878 + $0x438] sm:$0xff]
        %v1310 = vld [vmem:[%s878 + $0x440] sm:$0xff]
        %v1311 = vld [vmem:[%s878 + $0x448] sm:$0xff]
        %v1312 = vld [vmem:[%s878 + $0x450] sm:$0xff]
        %v1313 = vld [vmem:[%s878 + $0x458] sm:$0xff]
        %v1314 = vld [vmem:[%s878 + $0x460] sm:$0xff]
        %v1315 = vld [vmem:[%s878 + $0x468] sm:$0xff]
        %v1316 = vld [vmem:[%s878 + $0x470] sm:$0xff]
        %v1317 = vld [vmem:[%s878 + $0x478] sm:$0xff]
        %v1318 = vld [vmem:[%s878 + $0x480] sm:$0xff]
        %v1319 = vld [vmem:[%s878 + $0x488] sm:$0xff]
        %v1320 = vld [vmem:[%s878 + $0x490] sm:$0xff]
        %v1321 = vld [vmem:[%s878 + $0x498] sm:$0xff]
        %v1322 = vld [vmem:[%s878 + $0x4a0] sm:$0xff]
        %v1323 = vld [vmem:[%s878 + $0x4a8] sm:$0xff]
        %v1324 = vld [vmem:[%s878 + $0x4b0] sm:$0xff]
        %v1325 = vld [vmem:[%s878 + $0x4b8] sm:$0xff]
        %v1326 = vld [vmem:[%s878 + $0x4c0] sm:$0xff]
        %v1327 = vld [vmem:[%s878 + $0x4c8] sm:$0xff]
        %v1328 = vld [vmem:[%s878 + $0x4d0] sm:$0xff]
        %v1329 = vld [vmem:[%s878 + $0x4d8] sm:$0xff]
        %v1330 = vld [vmem:[%s878 + $0x4e0] sm:$0xff]
        %v1331 = vld [vmem:[%s878 + $0x4e8] sm:$0xff]
        %v1332 = vld [vmem:[%s878 + $0x4f0] sm:$0xff]
        %v1333 = vld [vmem:[%s878 + $0x4f8] sm:$0xff]
        %v1334 = vld [vmem:[%s878 + $0x500] sm:$0xff]
        %v1335 = vld [vmem:[%s878 + $0x508] sm:$0xff]
        %v1336 = vld [vmem:[%s878 + $0x510] sm:$0xff]
        %v1337 = vld [vmem:[%s878 + $0x518] sm:$0xff]
        %v1338 = vld [vmem:[%s878 + $0x520] sm:$0xff]
        %v1339 = vld [vmem:[%s878 + $0x528] sm:$0xff]
        %v1340 = vld [vmem:[%s878 + $0x530] sm:$0xff]
        %v1341 = vld [vmem:[%s878 + $0x538] sm:$0xff]
        %v1342 = vld [vmem:[%s878 + $0x540] sm:$0xff]
        %v1343 = vld [vmem:[%s878 + $0x548] sm:$0xff]
        %v1344 = vld [vmem:[%s878 + $0x550] sm:$0xff]
        %v1345 = vld [vmem:[%s878 + $0x558] sm:$0xff]
        %v1346 = vld [vmem:[%s878 + $0x560] sm:$0xff]
        %v1347 = vld [vmem:[%s878 + $0x568] sm:$0xff]
        %v1348 = vld [vmem:[%s878 + $0x570] sm:$0xff]
        %v1349 = vld [vmem:[%s878 + $0x578] sm:$0xff]
        %v1350 = vld [vmem:[%s878 + $0x580] sm:$0xff]
        %v1351 = vld [vmem:[%s878 + $0x588] sm:$0xff]
        %v1352 = vld [vmem:[%s878 + $0x590] sm:$0xff]
        %v1353 = vld [vmem:[%s878 + $0x598] sm:$0xff]
        %v1354 = vld [vmem:[%s878 + $0x5a0] sm:$0xff]
        %v1355 = vld [vmem:[%s878 + $0x5a8] sm:$0xff]
        %v1356 = vld [vmem:[%s878 + $0x5b0] sm:$0xff]
        %v1357 = vld [vmem:[%s878 + $0x5b8] sm:$0xff]
        %v1358 = vld [vmem:[%s878 + $0x5c0] sm:$0xff]
        %v1359 = vld [vmem:[%s878 + $0x5c8] sm:$0xff]
        %v1360 = vld [vmem:[%s878 + $0x5d0] sm:$0xff]
        %v1361 = vld [vmem:[%s878 + $0x5d8] sm:$0xff]
        %v1362 = vld [vmem:[%s878 + $0x5e0] sm:$0xff]
        %v1363 = vld [vmem:[%s878 + $0x5e8] sm:$0xff]
        %v1364 = vld [vmem:[%s878 + $0x5f0] sm:$0xff]
        %v1365 = vld [vmem:[%s878 + $0x5f8] sm:$0xff]
        %v1366 = vld [vmem:[%s878 + $0x600] sm:$0xff]
        %v1367 = vld [vmem:[%s878 + $0x608] sm:$0xff]
        %v1368 = vld [vmem:[%s878 + $0x610] sm:$0xff]
        %v1369 = vld [vmem:[%s878 + $0x618] sm:$0xff]
        %v1370 = vld [vmem:[%s878 + $0x620] sm:$0xff]
        %v1371 = vld [vmem:[%s878 + $0x628] sm:$0xff]
        %v1372 = vld [vmem:[%s878 + $0x630] sm:$0xff]
        %v1373 = vld [vmem:[%s878 + $0x638] sm:$0xff]
        %v1374 = vld [vmem:[%s878 + $0x640] sm:$0xff]
        %v1375 = vld [vmem:[%s878 + $0x648] sm:$0xff]
        %v1376 = vld [vmem:[%s878 + $0x650] sm:$0xff]
        %v1377 = vld [vmem:[%s878 + $0x658] sm:$0xff]
        %v1378 = vld [vmem:[%s878 + $0x660] sm:$0xff]
        %v1379 = vld [vmem:[%s878 + $0x668] sm:$0xff]
        %v1380 = vld [vmem:[%s878 + $0x670] sm:$0xff]
        %v1381 = vld [vmem:[%s878 + $0x678] sm:$0xff]
        %v1382 = vld [vmem:[%s878 + $0x680] sm:$0xff]
        %v1383 = vld [vmem:[%s878 + $0x688] sm:$0xff]
        %v1384 = vld [vmem:[%s878 + $0x690] sm:$0xff]
        %v1385 = vld [vmem:[%s878 + $0x698] sm:$0xff]
        %v1386 = vld [vmem:[%s878 + $0x6a0] sm:$0xff]
        %v1387 = vld [vmem:[%s878 + $0x6a8] sm:$0xff]
        %v1388 = vld [vmem:[%s878 + $0x6b0] sm:$0xff]
        %v1389 = vld [vmem:[%s878 + $0x6b8] sm:$0xff]
        %v1390 = vld [vmem:[%s878 + $0x6c0] sm:$0xff]
        %v1391 = vld [vmem:[%s878 + $0x6c8] sm:$0xff]
        %v1392 = vld [vmem:[%s878 + $0x6d0] sm:$0xff]
        %v1393 = vld [vmem:[%s878 + $0x6d8] sm:$0xff]
        %v1394 = vld [vmem:[%s878 + $0x6e0] sm:$0xff]
        %v1395 = vld [vmem:[%s878 + $0x6e8] sm:$0xff]
        %v1396 = vld [vmem:[%s878 + $0x6f0] sm:$0xff]
        %v1397 = vld [vmem:[%s878 + $0x6f8] sm:$0xff]
        %v1398 = vld [vmem:[%s878 + $0x700] sm:$0xff]
        %v1399 = vld [vmem:[%s878 + $0x708] sm:$0xff]
        %v1400 = vld [vmem:[%s878 + $0x710] sm:$0xff]
        %v1401 = vld [vmem:[%s878 + $0x718] sm:$0xff]
        %v1402 = vld [vmem:[%s878 + $0x720] sm:$0xff]
        %v1403 = vld [vmem:[%s878 + $0x728] sm:$0xff]
        %v1404 = vld [vmem:[%s878 + $0x730] sm:$0xff]
        %v1405 = vld [vmem:[%s878 + $0x738] sm:$0xff]
        %v1406 = vld [vmem:[%s878 + $0x740] sm:$0xff]
        %v1407 = vld [vmem:[%s878 + $0x748] sm:$0xff]
        %v1408 = vld [vmem:[%s878 + $0x750] sm:$0xff]
        %v1409 = vld [vmem:[%s878 + $0x758] sm:$0xff]
        %v1410 = vld [vmem:[%s878 + $0x760] sm:$0xff]
        %v1411 = vld [vmem:[%s878 + $0x768] sm:$0xff]
        %v1412 = vld [vmem:[%s878 + $0x770] sm:$0xff]
        %v1413 = vld [vmem:[%s878 + $0x778] sm:$0xff]
        %v1414 = vld [vmem:[%s878 + $0x780] sm:$0xff]
        %v1415 = vld [vmem:[%s878 + $0x788] sm:$0xff]
        %v1416 = vld [vmem:[%s878 + $0x790] sm:$0xff]
        %v1417 = vld [vmem:[%s878 + $0x798] sm:$0xff]
        %v1418 = vld [vmem:[%s878 + $0x7a0] sm:$0xff]
        %v1419 = vld [vmem:[%s878 + $0x7a8] sm:$0xff]
        %v1420 = vld [vmem:[%s878 + $0x7b0] sm:$0xff]
        %v1421 = vld [vmem:[%s878 + $0x7b8] sm:$0xff]
        %v1422 = vld [vmem:[%s878 + $0x7c0] sm:$0xff]
        %v1423 = vld [vmem:[%s878 + $0x7c8] sm:$0xff]
        %v1424 = vld [vmem:[%s878 + $0x7d0] sm:$0xff]
        %v1425 = vld [vmem:[%s878 + $0x7d8] sm:$0xff]
        %v1426 = vld [vmem:[%s878 + $0x7e0] sm:$0xff]
        %v1427 = vld [vmem:[%s878 + $0x7e8] sm:$0xff]
        %v1428 = vld [vmem:[%s878 + $0x7f0] sm:$0xff]
        %v1429 = vld [vmem:[%s878 + $0x7f8] sm:$0xff]
        %v1430 = vld [vmem:[%s887] sm:$0xff]
        %v1432 = vlaneseq
        %v1433 = vshrl.u32 %v1432, 7
        %v1434 = vsub.s32 0, %v1433
        %v1435 = vrot.slane %v1430, %v1434
        %v1436 = vlaneseq
        %v1437 = vshrl.u32 %v1436, 7
        %v1438 = vsub.s32 1, %v1437
        %v1439 = vrot.slane %v1430, %v1438
        %v1440 = vlaneseq
        %v1441 = vshrl.u32 %v1440, 7
        %v1442 = vsub.s32 2, %v1441
        %v1443 = vrot.slane %v1430, %v1442
        %v1444 = vlaneseq
        %v1445 = vshrl.u32 %v1444, 7
        %v1446 = vsub.s32 3, %v1445
        %v1447 = vrot.slane %v1430, %v1446
        %v1448 = vlaneseq
        %v1449 = vshrl.u32 %v1448, 7
        %v1450 = vsub.s32 4, %v1449
        %v1451 = vrot.slane %v1430, %v1450
        %v1452 = vlaneseq
        %v1453 = vshrl.u32 %v1452, 7
        %v1454 = vsub.s32 5, %v1453
        %v1455 = vrot.slane %v1430, %v1454
        %v1456 = vlaneseq
        %v1457 = vshrl.u32 %v1456, 7
        %v1458 = vsub.s32 6, %v1457
        %v1459 = vrot.slane %v1430, %v1458
        %v1460 = vlaneseq
        %v1461 = vshrl.u32 %v1460, 7
        %v1462 = vsub.s32 7, %v1461
        %v1463 = vrot.slane %v1430, %v1462
        %v1728 = vunpack.c.l.b16 %v1174
        %v1729 = vunpack.c.h.b16 %v1174
        %v1730 = vunpack.c.l.b16 %v1175
        %v1731 = vunpack.c.h.b16 %v1175
        %v1732 = vunpack.c.l.b16 %v1176
        %v1733 = vunpack.c.h.b16 %v1176
        %v1734 = vunpack.c.l.b16 %v1177
        %v1735 = vunpack.c.h.b16 %v1177
        %v1736 = vunpack.c.l.b16 %v1178
        %v1737 = vunpack.c.h.b16 %v1178
        %v1738 = vunpack.c.l.b16 %v1179
        %v1739 = vunpack.c.h.b16 %v1179
        %v1740 = vunpack.c.l.b16 %v1180
        %v1741 = vunpack.c.h.b16 %v1180
        %v1742 = vunpack.c.l.b16 %v1181
        %v1743 = vunpack.c.h.b16 %v1181
        %v1744 = vunpack.c.l.b16 %v1182
        %v1745 = vunpack.c.h.b16 %v1182
        %v1746 = vunpack.c.l.b16 %v1183
        %v1747 = vunpack.c.h.b16 %v1183
        %v1748 = vunpack.c.l.b16 %v1184
        %v1749 = vunpack.c.h.b16 %v1184
        %v1750 = vunpack.c.l.b16 %v1185
        %v1751 = vunpack.c.h.b16 %v1185
        %v1752 = vunpack.c.l.b16 %v1186
        %v1753 = vunpack.c.h.b16 %v1186
        %v1754 = vunpack.c.l.b16 %v1187
        %v1755 = vunpack.c.h.b16 %v1187
        %v1756 = vunpack.c.l.b16 %v1188
        %v1757 = vunpack.c.h.b16 %v1188
        %v1758 = vunpack.c.l.b16 %v1189
        %v1759 = vunpack.c.h.b16 %v1189
        %v1760 = vunpack.c.l.b16 %v1190
        %v1761 = vunpack.c.h.b16 %v1190
        %v1762 = vunpack.c.l.b16 %v1191
        %v1763 = vunpack.c.h.b16 %v1191
        %v1764 = vunpack.c.l.b16 %v1192
        %v1765 = vunpack.c.h.b16 %v1192
        %v1766 = vunpack.c.l.b16 %v1193
        %v1767 = vunpack.c.h.b16 %v1193
        %v1768 = vunpack.c.l.b16 %v1194
        %v1769 = vunpack.c.h.b16 %v1194
        %v1770 = vunpack.c.l.b16 %v1195
        %v1771 = vunpack.c.h.b16 %v1195
        %v1772 = vunpack.c.l.b16 %v1196
        %v1773 = vunpack.c.h.b16 %v1196
        %v1774 = vunpack.c.l.b16 %v1197
        %v1775 = vunpack.c.h.b16 %v1197
        %v1776 = vunpack.c.l.b16 %v1198
        %v1777 = vunpack.c.h.b16 %v1198
        %v1778 = vunpack.c.l.b16 %v1199
        %v1779 = vunpack.c.h.b16 %v1199
        %v1780 = vunpack.c.l.b16 %v1200
        %v1781 = vunpack.c.h.b16 %v1200
        %v1782 = vunpack.c.l.b16 %v1201
        %v1783 = vunpack.c.h.b16 %v1201
        %v1784 = vunpack.c.l.b16 %v1202
        %v1785 = vunpack.c.h.b16 %v1202
        %v1786 = vunpack.c.l.b16 %v1203
        %v1787 = vunpack.c.h.b16 %v1203
        %v1788 = vunpack.c.l.b16 %v1204
        %v1789 = vunpack.c.h.b16 %v1204
        %v1790 = vunpack.c.l.b16 %v1205
        %v1791 = vunpack.c.h.b16 %v1205
        %v1792 = vunpack.c.l.b16 %v1206
        %v1793 = vunpack.c.h.b16 %v1206
        %v1794 = vunpack.c.l.b16 %v1207
        %v1795 = vunpack.c.h.b16 %v1207
        %v1796 = vunpack.c.l.b16 %v1208
        %v1797 = vunpack.c.h.b16 %v1208
        %v1798 = vunpack.c.l.b16 %v1209
        %v1799 = vunpack.c.h.b16 %v1209
        %v1800 = vunpack.c.l.b16 %v1210
        %v1801 = vunpack.c.h.b16 %v1210
        %v1802 = vunpack.c.l.b16 %v1211
        %v1803 = vunpack.c.h.b16 %v1211
        %v1804 = vunpack.c.l.b16 %v1212
        %v1805 = vunpack.c.h.b16 %v1212
        %v1806 = vunpack.c.l.b16 %v1213
        %v1807 = vunpack.c.h.b16 %v1213
        %v1808 = vunpack.c.l.b16 %v1214
        %v1809 = vunpack.c.h.b16 %v1214
        %v1810 = vunpack.c.l.b16 %v1215
        %v1811 = vunpack.c.h.b16 %v1215
        %v1812 = vunpack.c.l.b16 %v1216
        %v1813 = vunpack.c.h.b16 %v1216
        %v1814 = vunpack.c.l.b16 %v1217
        %v1815 = vunpack.c.h.b16 %v1217
        %v1816 = vunpack.c.l.b16 %v1218
        %v1817 = vunpack.c.h.b16 %v1218
        %v1818 = vunpack.c.l.b16 %v1219
        %v1819 = vunpack.c.h.b16 %v1219
        %v1820 = vunpack.c.l.b16 %v1220
        %v1821 = vunpack.c.h.b16 %v1220
        %v1822 = vunpack.c.l.b16 %v1221
        %v1823 = vunpack.c.h.b16 %v1221
        %v1824 = vunpack.c.l.b16 %v1222
        %v1825 = vunpack.c.h.b16 %v1222
        %v1826 = vunpack.c.l.b16 %v1223
        %v1827 = vunpack.c.h.b16 %v1223
        %v1828 = vunpack.c.l.b16 %v1224
        %v1829 = vunpack.c.h.b16 %v1224
        %v1830 = vunpack.c.l.b16 %v1225
        %v1831 = vunpack.c.h.b16 %v1225
        %v1832 = vunpack.c.l.b16 %v1226
        %v1833 = vunpack.c.h.b16 %v1226
        %v1834 = vunpack.c.l.b16 %v1227
        %v1835 = vunpack.c.h.b16 %v1227
        %v1836 = vunpack.c.l.b16 %v1228
        %v1837 = vunpack.c.h.b16 %v1228
        %v1838 = vunpack.c.l.b16 %v1229
        %v1839 = vunpack.c.h.b16 %v1229
        %v1840 = vunpack.c.l.b16 %v1230
        %v1841 = vunpack.c.h.b16 %v1230
        %v1842 = vunpack.c.l.b16 %v1231
        %v1843 = vunpack.c.h.b16 %v1231
        %v1844 = vunpack.c.l.b16 %v1232
        %v1845 = vunpack.c.h.b16 %v1232
        %v1846 = vunpack.c.l.b16 %v1233
        %v1847 = vunpack.c.h.b16 %v1233
        %v1848 = vunpack.c.l.b16 %v1234
        %v1849 = vunpack.c.h.b16 %v1234
        %v1850 = vunpack.c.l.b16 %v1235
        %v1851 = vunpack.c.h.b16 %v1235
        %v1852 = vunpack.c.l.b16 %v1236
        %v1853 = vunpack.c.h.b16 %v1236
        %v1854 = vunpack.c.l.b16 %v1237
        %v1855 = vunpack.c.h.b16 %v1237
        %v1856 = vunpack.c.l.b16 %v1238
        %v1857 = vunpack.c.h.b16 %v1238
        %v1858 = vunpack.c.l.b16 %v1239
        %v1859 = vunpack.c.h.b16 %v1239
        %v1860 = vunpack.c.l.b16 %v1240
        %v1861 = vunpack.c.h.b16 %v1240
        %v1862 = vunpack.c.l.b16 %v1241
        %v1863 = vunpack.c.h.b16 %v1241
        %v1864 = vunpack.c.l.b16 %v1242
        %v1865 = vunpack.c.h.b16 %v1242
        %v1866 = vunpack.c.l.b16 %v1243
        %v1867 = vunpack.c.h.b16 %v1243
        %v1868 = vunpack.c.l.b16 %v1244
        %v1869 = vunpack.c.h.b16 %v1244
        %v1870 = vunpack.c.l.b16 %v1245
        %v1871 = vunpack.c.h.b16 %v1245
        %v1872 = vunpack.c.l.b16 %v1246
        %v1873 = vunpack.c.h.b16 %v1246
        %v1874 = vunpack.c.l.b16 %v1247
        %v1875 = vunpack.c.h.b16 %v1247
        %v1876 = vunpack.c.l.b16 %v1248
        %v1877 = vunpack.c.h.b16 %v1248
        %v1878 = vunpack.c.l.b16 %v1249
        %v1879 = vunpack.c.h.b16 %v1249
        %v1880 = vunpack.c.l.b16 %v1250
        %v1881 = vunpack.c.h.b16 %v1250
        %v1882 = vunpack.c.l.b16 %v1251
        %v1883 = vunpack.c.h.b16 %v1251
        %v1884 = vunpack.c.l.b16 %v1252
        %v1885 = vunpack.c.h.b16 %v1252
        %v1886 = vunpack.c.l.b16 %v1253
        %v1887 = vunpack.c.h.b16 %v1253
        %v1888 = vunpack.c.l.b16 %v1254
        %v1889 = vunpack.c.h.b16 %v1254
        %v1890 = vunpack.c.l.b16 %v1255
        %v1891 = vunpack.c.h.b16 %v1255
        %v1892 = vunpack.c.l.b16 %v1256
        %v1893 = vunpack.c.h.b16 %v1256
        %v1894 = vunpack.c.l.b16 %v1257
        %v1895 = vunpack.c.h.b16 %v1257
        %v1896 = vunpack.c.l.b16 %v1258
        %v1897 = vunpack.c.h.b16 %v1258
        %v1898 = vunpack.c.l.b16 %v1259
        %v1899 = vunpack.c.h.b16 %v1259
        %v1900 = vunpack.c.l.b16 %v1260
        %v1901 = vunpack.c.h.b16 %v1260
        %v1902 = vunpack.c.l.b16 %v1261
        %v1903 = vunpack.c.h.b16 %v1261
        %v1904 = vunpack.c.l.b16 %v1262
        %v1905 = vunpack.c.h.b16 %v1262
        %v1906 = vunpack.c.l.b16 %v1263
        %v1907 = vunpack.c.h.b16 %v1263
        %v1908 = vunpack.c.l.b16 %v1264
        %v1909 = vunpack.c.h.b16 %v1264
        %v1910 = vunpack.c.l.b16 %v1265
        %v1911 = vunpack.c.h.b16 %v1265
        %v1912 = vunpack.c.l.b16 %v1266
        %v1913 = vunpack.c.h.b16 %v1266
        %v1914 = vunpack.c.l.b16 %v1267
        %v1915 = vunpack.c.h.b16 %v1267
        %v1916 = vunpack.c.l.b16 %v1268
        %v1917 = vunpack.c.h.b16 %v1268
        %v1918 = vunpack.c.l.b16 %v1269
        %v1919 = vunpack.c.h.b16 %v1269
        %v1920 = vunpack.c.l.b16 %v1270
        %v1921 = vunpack.c.h.b16 %v1270
        %v1922 = vunpack.c.l.b16 %v1271
        %v1923 = vunpack.c.h.b16 %v1271
        %v1924 = vunpack.c.l.b16 %v1272
        %v1925 = vunpack.c.h.b16 %v1272
        %v1926 = vunpack.c.l.b16 %v1273
        %v1927 = vunpack.c.h.b16 %v1273
        %v1928 = vunpack.c.l.b16 %v1274
        %v1929 = vunpack.c.h.b16 %v1274
        %v1930 = vunpack.c.l.b16 %v1275
        %v1931 = vunpack.c.h.b16 %v1275
        %v1932 = vunpack.c.l.b16 %v1276
        %v1933 = vunpack.c.h.b16 %v1276
        %v1934 = vunpack.c.l.b16 %v1277
        %v1935 = vunpack.c.h.b16 %v1277
        %v1936 = vunpack.c.l.b16 %v1278
        %v1937 = vunpack.c.h.b16 %v1278
        %v1938 = vunpack.c.l.b16 %v1279
        %v1939 = vunpack.c.h.b16 %v1279
        %v1940 = vunpack.c.l.b16 %v1280
        %v1941 = vunpack.c.h.b16 %v1280
        %v1942 = vunpack.c.l.b16 %v1281
        %v1943 = vunpack.c.h.b16 %v1281
        %v1944 = vunpack.c.l.b16 %v1282
        %v1945 = vunpack.c.h.b16 %v1282
        %v1946 = vunpack.c.l.b16 %v1283
        %v1947 = vunpack.c.h.b16 %v1283
        %v1948 = vunpack.c.l.b16 %v1284
        %v1949 = vunpack.c.h.b16 %v1284
        %v1950 = vunpack.c.l.b16 %v1285
        %v1951 = vunpack.c.h.b16 %v1285
        %v1952 = vunpack.c.l.b16 %v1286
        %v1953 = vunpack.c.h.b16 %v1286
        %v1954 = vunpack.c.l.b16 %v1287
        %v1955 = vunpack.c.h.b16 %v1287
        %v1956 = vunpack.c.l.b16 %v1288
        %v1957 = vunpack.c.h.b16 %v1288
        %v1958 = vunpack.c.l.b16 %v1289
        %v1959 = vunpack.c.h.b16 %v1289
        %v1960 = vunpack.c.l.b16 %v1290
        %v1961 = vunpack.c.h.b16 %v1290
        %v1962 = vunpack.c.l.b16 %v1291
        %v1963 = vunpack.c.h.b16 %v1291
        %v1964 = vunpack.c.l.b16 %v1292
        %v1965 = vunpack.c.h.b16 %v1292
        %v1966 = vunpack.c.l.b16 %v1293
        %v1967 = vunpack.c.h.b16 %v1293
        %v1968 = vunpack.c.l.b16 %v1294
        %v1969 = vunpack.c.h.b16 %v1294
        %v1970 = vunpack.c.l.b16 %v1295
        %v1971 = vunpack.c.h.b16 %v1295
        %v1972 = vunpack.c.l.b16 %v1296
        %v1973 = vunpack.c.h.b16 %v1296
        %v1974 = vunpack.c.l.b16 %v1297
        %v1975 = vunpack.c.h.b16 %v1297
        %v1976 = vunpack.c.l.b16 %v1298
        %v1977 = vunpack.c.h.b16 %v1298
        %v1978 = vunpack.c.l.b16 %v1299
        %v1979 = vunpack.c.h.b16 %v1299
        %v1980 = vunpack.c.l.b16 %v1300
        %v1981 = vunpack.c.h.b16 %v1300
        %v1982 = vunpack.c.l.b16 %v1301
        %v1983 = vunpack.c.h.b16 %v1301
        %v1984 = vunpack.c.l.b16 %v1302
        %v1985 = vunpack.c.h.b16 %v1302
        %v1986 = vunpack.c.l.b16 %v1303
        %v1987 = vunpack.c.h.b16 %v1303
        %v1988 = vunpack.c.l.b16 %v1304
        %v1989 = vunpack.c.h.b16 %v1304
        %v1990 = vunpack.c.l.b16 %v1305
        %v1991 = vunpack.c.h.b16 %v1305
        %v1992 = vunpack.c.l.b16 %v1306
        %v1993 = vunpack.c.h.b16 %v1306
        %v1994 = vunpack.c.l.b16 %v1307
        %v1995 = vunpack.c.h.b16 %v1307
        %v1996 = vunpack.c.l.b16 %v1308
        %v1997 = vunpack.c.h.b16 %v1308
        %v1998 = vunpack.c.l.b16 %v1309
        %v1999 = vunpack.c.h.b16 %v1309
        %v2000 = vunpack.c.l.b16 %v1310
        %v2001 = vunpack.c.h.b16 %v1310
        %v2002 = vunpack.c.l.b16 %v1311
        %v2003 = vunpack.c.h.b16 %v1311
        %v2004 = vunpack.c.l.b16 %v1312
        %v2005 = vunpack.c.h.b16 %v1312
        %v2006 = vunpack.c.l.b16 %v1313
        %v2007 = vunpack.c.h.b16 %v1313
        %v2008 = vunpack.c.l.b16 %v1314
        %v2009 = vunpack.c.h.b16 %v1314
        %v2010 = vunpack.c.l.b16 %v1315
        %v2011 = vunpack.c.h.b16 %v1315
        %v2012 = vunpack.c.l.b16 %v1316
        %v2013 = vunpack.c.h.b16 %v1316
        %v2014 = vunpack.c.l.b16 %v1317
        %v2015 = vunpack.c.h.b16 %v1317
        %v2016 = vunpack.c.l.b16 %v1318
        %v2017 = vunpack.c.h.b16 %v1318
        %v2018 = vunpack.c.l.b16 %v1319
        %v2019 = vunpack.c.h.b16 %v1319
        %v2020 = vunpack.c.l.b16 %v1320
        %v2021 = vunpack.c.h.b16 %v1320
        %v2022 = vunpack.c.l.b16 %v1321
        %v2023 = vunpack.c.h.b16 %v1321
        %v2024 = vunpack.c.l.b16 %v1322
        %v2025 = vunpack.c.h.b16 %v1322
        %v2026 = vunpack.c.l.b16 %v1323
        %v2027 = vunpack.c.h.b16 %v1323
        %v2028 = vunpack.c.l.b16 %v1324
        %v2029 = vunpack.c.h.b16 %v1324
        %v2030 = vunpack.c.l.b16 %v1325
        %v2031 = vunpack.c.h.b16 %v1325
        %v2032 = vunpack.c.l.b16 %v1326
        %v2033 = vunpack.c.h.b16 %v1326
        %v2034 = vunpack.c.l.b16 %v1327
        %v2035 = vunpack.c.h.b16 %v1327
        %v2036 = vunpack.c.l.b16 %v1328
        %v2037 = vunpack.c.h.b16 %v1328
        %v2038 = vunpack.c.l.b16 %v1329
        %v2039 = vunpack.c.h.b16 %v1329
        %v2040 = vunpack.c.l.b16 %v1330
        %v2041 = vunpack.c.h.b16 %v1330
        %v2042 = vunpack.c.l.b16 %v1331
        %v2043 = vunpack.c.h.b16 %v1331
        %v2044 = vunpack.c.l.b16 %v1332
        %v2045 = vunpack.c.h.b16 %v1332
        %v2046 = vunpack.c.l.b16 %v1333
        %v2047 = vunpack.c.h.b16 %v1333
        %v2048 = vunpack.c.l.b16 %v1334
        %v2049 = vunpack.c.h.b16 %v1334
        %v2050 = vunpack.c.l.b16 %v1335
        %v2051 = vunpack.c.h.b16 %v1335
        %v2052 = vunpack.c.l.b16 %v1336
        %v2053 = vunpack.c.h.b16 %v1336
        %v2054 = vunpack.c.l.b16 %v1337
        %v2055 = vunpack.c.h.b16 %v1337
        %v2056 = vunpack.c.l.b16 %v1338
        %v2057 = vunpack.c.h.b16 %v1338
        %v2058 = vunpack.c.l.b16 %v1339
        %v2059 = vunpack.c.h.b16 %v1339
        %v2060 = vunpack.c.l.b16 %v1340
        %v2061 = vunpack.c.h.b16 %v1340
        %v2062 = vunpack.c.l.b16 %v1341
        %v2063 = vunpack.c.h.b16 %v1341
        %v2064 = vunpack.c.l.b16 %v1342
        %v2065 = vunpack.c.h.b16 %v1342
        %v2066 = vunpack.c.l.b16 %v1343
        %v2067 = vunpack.c.h.b16 %v1343
        %v2068 = vunpack.c.l.b16 %v1344
        %v2069 = vunpack.c.h.b16 %v1344
        %v2070 = vunpack.c.l.b16 %v1345
        %v2071 = vunpack.c.h.b16 %v1345
        %v2072 = vunpack.c.l.b16 %v1346
        %v2073 = vunpack.c.h.b16 %v1346
        %v2074 = vunpack.c.l.b16 %v1347
        %v2075 = vunpack.c.h.b16 %v1347
        %v2076 = vunpack.c.l.b16 %v1348
        %v2077 = vunpack.c.h.b16 %v1348
        %v2078 = vunpack.c.l.b16 %v1349
        %v2079 = vunpack.c.h.b16 %v1349
        %v2080 = vunpack.c.l.b16 %v1350
        %v2081 = vunpack.c.h.b16 %v1350
        %v2082 = vunpack.c.l.b16 %v1351
        %v2083 = vunpack.c.h.b16 %v1351
        %v2084 = vunpack.c.l.b16 %v1352
        %v2085 = vunpack.c.h.b16 %v1352
        %v2086 = vunpack.c.l.b16 %v1353
        %v2087 = vunpack.c.h.b16 %v1353
        %v2088 = vunpack.c.l.b16 %v1354
        %v2089 = vunpack.c.h.b16 %v1354
        %v2090 = vunpack.c.l.b16 %v1355
        %v2091 = vunpack.c.h.b16 %v1355
        %v2092 = vunpack.c.l.b16 %v1356
        %v2093 = vunpack.c.h.b16 %v1356
        %v2094 = vunpack.c.l.b16 %v1357
        %v2095 = vunpack.c.h.b16 %v1357
        %v2096 = vunpack.c.l.b16 %v1358
        %v2097 = vunpack.c.h.b16 %v1358
        %v2098 = vunpack.c.l.b16 %v1359
        %v2099 = vunpack.c.h.b16 %v1359
        %v2100 = vunpack.c.l.b16 %v1360
        %v2101 = vunpack.c.h.b16 %v1360
        %v2102 = vunpack.c.l.b16 %v1361
        %v2103 = vunpack.c.h.b16 %v1361
        %v2104 = vunpack.c.l.b16 %v1362
        %v2105 = vunpack.c.h.b16 %v1362
        %v2106 = vunpack.c.l.b16 %v1363
        %v2107 = vunpack.c.h.b16 %v1363
        %v2108 = vunpack.c.l.b16 %v1364
        %v2109 = vunpack.c.h.b16 %v1364
        %v2110 = vunpack.c.l.b16 %v1365
        %v2111 = vunpack.c.h.b16 %v1365
        %v2112 = vunpack.c.l.b16 %v1366
        %v2113 = vunpack.c.h.b16 %v1366
        %v2114 = vunpack.c.l.b16 %v1367
        %v2115 = vunpack.c.h.b16 %v1367
        %v2116 = vunpack.c.l.b16 %v1368
        %v2117 = vunpack.c.h.b16 %v1368
        %v2118 = vunpack.c.l.b16 %v1369
        %v2119 = vunpack.c.h.b16 %v1369
        %v2120 = vunpack.c.l.b16 %v1370
        %v2121 = vunpack.c.h.b16 %v1370
        %v2122 = vunpack.c.l.b16 %v1371
        %v2123 = vunpack.c.h.b16 %v1371
        %v2124 = vunpack.c.l.b16 %v1372
        %v2125 = vunpack.c.h.b16 %v1372
        %v2126 = vunpack.c.l.b16 %v1373
        %v2127 = vunpack.c.h.b16 %v1373
        %v2128 = vunpack.c.l.b16 %v1374
        %v2129 = vunpack.c.h.b16 %v1374
        %v2130 = vunpack.c.l.b16 %v1375
        %v2131 = vunpack.c.h.b16 %v1375
        %v2132 = vunpack.c.l.b16 %v1376
        %v2133 = vunpack.c.h.b16 %v1376
        %v2134 = vunpack.c.l.b16 %v1377
        %v2135 = vunpack.c.h.b16 %v1377
        %v2136 = vunpack.c.l.b16 %v1378
        %v2137 = vunpack.c.h.b16 %v1378
        %v2138 = vunpack.c.l.b16 %v1379
        %v2139 = vunpack.c.h.b16 %v1379
        %v2140 = vunpack.c.l.b16 %v1380
        %v2141 = vunpack.c.h.b16 %v1380
        %v2142 = vunpack.c.l.b16 %v1381
        %v2143 = vunpack.c.h.b16 %v1381
        %v2144 = vunpack.c.l.b16 %v1382
        %v2145 = vunpack.c.h.b16 %v1382
        %v2146 = vunpack.c.l.b16 %v1383
        %v2147 = vunpack.c.h.b16 %v1383
        %v2148 = vunpack.c.l.b16 %v1384
        %v2149 = vunpack.c.h.b16 %v1384
        %v2150 = vunpack.c.l.b16 %v1385
        %v2151 = vunpack.c.h.b16 %v1385
        %v2152 = vunpack.c.l.b16 %v1386
        %v2153 = vunpack.c.h.b16 %v1386
        %v2154 = vunpack.c.l.b16 %v1387
        %v2155 = vunpack.c.h.b16 %v1387
        %v2156 = vunpack.c.l.b16 %v1388
        %v2157 = vunpack.c.h.b16 %v1388
        %v2158 = vunpack.c.l.b16 %v1389
        %v2159 = vunpack.c.h.b16 %v1389
        %v2160 = vunpack.c.l.b16 %v1390
        %v2161 = vunpack.c.h.b16 %v1390
        %v2162 = vunpack.c.l.b16 %v1391
        %v2163 = vunpack.c.h.b16 %v1391
        %v2164 = vunpack.c.l.b16 %v1392
        %v2165 = vunpack.c.h.b16 %v1392
        %v2166 = vunpack.c.l.b16 %v1393
        %v2167 = vunpack.c.h.b16 %v1393
        %v2168 = vunpack.c.l.b16 %v1394
        %v2169 = vunpack.c.h.b16 %v1394
        %v2170 = vunpack.c.l.b16 %v1395
        %v2171 = vunpack.c.h.b16 %v1395
        %v2172 = vunpack.c.l.b16 %v1396
        %v2173 = vunpack.c.h.b16 %v1396
        %v2174 = vunpack.c.l.b16 %v1397
        %v2175 = vunpack.c.h.b16 %v1397
        %v2176 = vunpack.c.l.b16 %v1398
        %v2177 = vunpack.c.h.b16 %v1398
        %v2178 = vunpack.c.l.b16 %v1399
        %v2179 = vunpack.c.h.b16 %v1399
        %v2180 = vunpack.c.l.b16 %v1400
        %v2181 = vunpack.c.h.b16 %v1400
        %v2182 = vunpack.c.l.b16 %v1401
        %v2183 = vunpack.c.h.b16 %v1401
        %v2184 = vunpack.c.l.b16 %v1402
        %v2185 = vunpack.c.h.b16 %v1402
        %v2186 = vunpack.c.l.b16 %v1403
        %v2187 = vunpack.c.h.b16 %v1403
        %v2188 = vunpack.c.l.b16 %v1404
        %v2189 = vunpack.c.h.b16 %v1404
        %v2190 = vunpack.c.l.b16 %v1405
        %v2191 = vunpack.c.h.b16 %v1405
        %v2192 = vunpack.c.l.b16 %v1406
        %v2193 = vunpack.c.h.b16 %v1406
        %v2194 = vunpack.c.l.b16 %v1407
        %v2195 = vunpack.c.h.b16 %v1407
        %v2196 = vunpack.c.l.b16 %v1408
        %v2197 = vunpack.c.h.b16 %v1408
        %v2198 = vunpack.c.l.b16 %v1409
        %v2199 = vunpack.c.h.b16 %v1409
        %v2200 = vunpack.c.l.b16 %v1410
        %v2201 = vunpack.c.h.b16 %v1410
        %v2202 = vunpack.c.l.b16 %v1411
        %v2203 = vunpack.c.h.b16 %v1411
        %v2204 = vunpack.c.l.b16 %v1412
        %v2205 = vunpack.c.h.b16 %v1412
        %v2206 = vunpack.c.l.b16 %v1413
        %v2207 = vunpack.c.h.b16 %v1413
        %v2208 = vunpack.c.l.b16 %v1414
        %v2209 = vunpack.c.h.b16 %v1414
        %v2210 = vunpack.c.l.b16 %v1415
        %v2211 = vunpack.c.h.b16 %v1415
        %v2212 = vunpack.c.l.b16 %v1416
        %v2213 = vunpack.c.h.b16 %v1416
        %v2214 = vunpack.c.l.b16 %v1417
        %v2215 = vunpack.c.h.b16 %v1417
        %v2216 = vunpack.c.l.b16 %v1418
        %v2217 = vunpack.c.h.b16 %v1418
        %v2218 = vunpack.c.l.b16 %v1419
        %v2219 = vunpack.c.h.b16 %v1419
        %v2220 = vunpack.c.l.b16 %v1420
        %v2221 = vunpack.c.h.b16 %v1420
        %v2222 = vunpack.c.l.b16 %v1421
        %v2223 = vunpack.c.h.b16 %v1421
        %v2224 = vunpack.c.l.b16 %v1422
        %v2225 = vunpack.c.h.b16 %v1422
        %v2226 = vunpack.c.l.b16 %v1423
        %v2227 = vunpack.c.h.b16 %v1423
        %v2228 = vunpack.c.l.b16 %v1424
        %v2229 = vunpack.c.h.b16 %v1424
        %v2230 = vunpack.c.l.b16 %v1425
        %v2231 = vunpack.c.h.b16 %v1425
        %v2232 = vunpack.c.l.b16 %v1426
        %v2233 = vunpack.c.h.b16 %v1426
        %v2234 = vunpack.c.l.b16 %v1427
        %v2235 = vunpack.c.h.b16 %v1427
        %v2236 = vunpack.c.l.b16 %v1428
        %v2237 = vunpack.c.h.b16 %v1428
        %v2238 = vunpack.c.l.b16 %v1429
        %v2239 = vunpack.c.h.b16 %v1429
        %v2240 = vpack.c.b16 %v1736, %v1728
        %v2241 = vpack.c.b16 %v1737, %v1729
        %v2242 = vpack.c.b16 %v1738, %v1730
        %v2243 = vpack.c.b16 %v1739, %v1731
        %v2244 = vpack.c.b16 %v1740, %v1732
        %v2245 = vpack.c.b16 %v1741, %v1733
        %v2246 = vpack.c.b16 %v1742, %v1734
        %v2247 = vpack.c.b16 %v1743, %v1735
        %v2248 = vpack.c.b16 %v1752, %v1744
        %v2249 = vpack.c.b16 %v1753, %v1745
        %v2250 = vpack.c.b16 %v1754, %v1746
        %v2251 = vpack.c.b16 %v1755, %v1747
        %v2252 = vpack.c.b16 %v1756, %v1748
        %v2253 = vpack.c.b16 %v1757, %v1749
        %v2254 = vpack.c.b16 %v1758, %v1750
        %v2255 = vpack.c.b16 %v1759, %v1751
        %v2256 = vpack.c.b16 %v1768, %v1760
        %v2257 = vpack.c.b16 %v1769, %v1761
        %v2258 = vpack.c.b16 %v1770, %v1762
        %v2259 = vpack.c.b16 %v1771, %v1763
        %v2260 = vpack.c.b16 %v1772, %v1764
        %v2261 = vpack.c.b16 %v1773, %v1765
        %v2262 = vpack.c.b16 %v1774, %v1766
        %v2263 = vpack.c.b16 %v1775, %v1767
        %v2264 = vpack.c.b16 %v1784, %v1776
        %v2265 = vpack.c.b16 %v1785, %v1777
        %v2266 = vpack.c.b16 %v1786, %v1778
        %v2267 = vpack.c.b16 %v1787, %v1779
        %v2268 = vpack.c.b16 %v1788, %v1780
        %v2269 = vpack.c.b16 %v1789, %v1781
        %v2270 = vpack.c.b16 %v1790, %v1782
        %v2271 = vpack.c.b16 %v1791, %v1783
        %v2272 = vpack.c.b16 %v1800, %v1792
        %v2273 = vpack.c.b16 %v1801, %v1793
        %v2274 = vpack.c.b16 %v1802, %v1794
        %v2275 = vpack.c.b16 %v1803, %v1795
        %v2276 = vpack.c.b16 %v1804, %v1796
        %v2277 = vpack.c.b16 %v1805, %v1797
        %v2278 = vpack.c.b16 %v1806, %v1798
        %v2279 = vpack.c.b16 %v1807, %v1799
        %v2280 = vpack.c.b16 %v1816, %v1808
        %v2281 = vpack.c.b16 %v1817, %v1809
        %v2282 = vpack.c.b16 %v1818, %v1810
        %v2283 = vpack.c.b16 %v1819, %v1811
        %v2284 = vpack.c.b16 %v1820, %v1812
        %v2285 = vpack.c.b16 %v1821, %v1813
        %v2286 = vpack.c.b16 %v1822, %v1814
        %v2287 = vpack.c.b16 %v1823, %v1815
        %v2288 = vpack.c.b16 %v1832, %v1824
        %v2289 = vpack.c.b16 %v1833, %v1825
        %v2290 = vpack.c.b16 %v1834, %v1826
        %v2291 = vpack.c.b16 %v1835, %v1827
        %v2292 = vpack.c.b16 %v1836, %v1828
        %v2293 = vpack.c.b16 %v1837, %v1829
        %v2294 = vpack.c.b16 %v1838, %v1830
        %v2295 = vpack.c.b16 %v1839, %v1831
        %v2296 = vpack.c.b16 %v1848, %v1840
        %v2297 = vpack.c.b16 %v1849, %v1841
        %v2298 = vpack.c.b16 %v1850, %v1842
        %v2299 = vpack.c.b16 %v1851, %v1843
        %v2300 = vpack.c.b16 %v1852, %v1844
        %v2301 = vpack.c.b16 %v1853, %v1845
        %v2302 = vpack.c.b16 %v1854, %v1846
        %v2303 = vpack.c.b16 %v1855, %v1847
        %v2304 = vpack.c.b16 %v1864, %v1856
        %v2305 = vpack.c.b16 %v1865, %v1857
        %v2306 = vpack.c.b16 %v1866, %v1858
        %v2307 = vpack.c.b16 %v1867, %v1859
        %v2308 = vpack.c.b16 %v1868, %v1860
        %v2309 = vpack.c.b16 %v1869, %v1861
        %v2310 = vpack.c.b16 %v1870, %v1862
        %v2311 = vpack.c.b16 %v1871, %v1863
        %v2312 = vpack.c.b16 %v1880, %v1872
        %v2313 = vpack.c.b16 %v1881, %v1873
        %v2314 = vpack.c.b16 %v1882, %v1874
        %v2315 = vpack.c.b16 %v1883, %v1875
        %v2316 = vpack.c.b16 %v1884, %v1876
        %v2317 = vpack.c.b16 %v1885, %v1877
        %v2318 = vpack.c.b16 %v1886, %v1878
        %v2319 = vpack.c.b16 %v1887, %v1879
        %v2320 = vpack.c.b16 %v1896, %v1888
        %v2321 = vpack.c.b16 %v1897, %v1889
        %v2322 = vpack.c.b16 %v1898, %v1890
        %v2323 = vpack.c.b16 %v1899, %v1891
        %v2324 = vpack.c.b16 %v1900, %v1892
        %v2325 = vpack.c.b16 %v1901, %v1893
        %v2326 = vpack.c.b16 %v1902, %v1894
        %v2327 = vpack.c.b16 %v1903, %v1895
        %v2328 = vpack.c.b16 %v1912, %v1904
        %v2329 = vpack.c.b16 %v1913, %v1905
        %v2330 = vpack.c.b16 %v1914, %v1906
        %v2331 = vpack.c.b16 %v1915, %v1907
        %v2332 = vpack.c.b16 %v1916, %v1908
        %v2333 = vpack.c.b16 %v1917, %v1909
        %v2334 = vpack.c.b16 %v1918, %v1910
        %v2335 = vpack.c.b16 %v1919, %v1911
        %v2336 = vpack.c.b16 %v1928, %v1920
        %v2337 = vpack.c.b16 %v1929, %v1921
        %v2338 = vpack.c.b16 %v1930, %v1922
        %v2339 = vpack.c.b16 %v1931, %v1923
        %v2340 = vpack.c.b16 %v1932, %v1924
        %v2341 = vpack.c.b16 %v1933, %v1925
        %v2342 = vpack.c.b16 %v1934, %v1926
        %v2343 = vpack.c.b16 %v1935, %v1927
        %v2344 = vpack.c.b16 %v1944, %v1936
        %v2345 = vpack.c.b16 %v1945, %v1937
        %v2346 = vpack.c.b16 %v1946, %v1938
        %v2347 = vpack.c.b16 %v1947, %v1939
        %v2348 = vpack.c.b16 %v1948, %v1940
        %v2349 = vpack.c.b16 %v1949, %v1941
        %v2350 = vpack.c.b16 %v1950, %v1942
        %v2351 = vpack.c.b16 %v1951, %v1943
        %v2352 = vpack.c.b16 %v1960, %v1952
        %v2353 = vpack.c.b16 %v1961, %v1953
        %v2354 = vpack.c.b16 %v1962, %v1954
        %v2355 = vpack.c.b16 %v1963, %v1955
        %v2356 = vpack.c.b16 %v1964, %v1956
        %v2357 = vpack.c.b16 %v1965, %v1957
        %v2358 = vpack.c.b16 %v1966, %v1958
        %v2359 = vpack.c.b16 %v1967, %v1959
        %v2360 = vpack.c.b16 %v1976, %v1968
        %v2361 = vpack.c.b16 %v1977, %v1969
        %v2362 = vpack.c.b16 %v1978, %v1970
        %v2363 = vpack.c.b16 %v1979, %v1971
        %v2364 = vpack.c.b16 %v1980, %v1972
        %v2365 = vpack.c.b16 %v1981, %v1973
        %v2366 = vpack.c.b16 %v1982, %v1974
        %v2367 = vpack.c.b16 %v1983, %v1975
        %v2368 = vpack.c.b16 %v1992, %v1984
        %v2369 = vpack.c.b16 %v1993, %v1985
        %v2370 = vpack.c.b16 %v1994, %v1986
        %v2371 = vpack.c.b16 %v1995, %v1987
        %v2372 = vpack.c.b16 %v1996, %v1988
        %v2373 = vpack.c.b16 %v1997, %v1989
        %v2374 = vpack.c.b16 %v1998, %v1990
        %v2375 = vpack.c.b16 %v1999, %v1991
        %v2376 = vpack.c.b16 %v2008, %v2000
        %v2377 = vpack.c.b16 %v2009, %v2001
        %v2378 = vpack.c.b16 %v2010, %v2002
        %v2379 = vpack.c.b16 %v2011, %v2003
        %v2380 = vpack.c.b16 %v2012, %v2004
        %v2381 = vpack.c.b16 %v2013, %v2005
        %v2382 = vpack.c.b16 %v2014, %v2006
        %v2383 = vpack.c.b16 %v2015, %v2007
        %v2384 = vpack.c.b16 %v2024, %v2016
        %v2385 = vpack.c.b16 %v2025, %v2017
        %v2386 = vpack.c.b16 %v2026, %v2018
        %v2387 = vpack.c.b16 %v2027, %v2019
        %v2388 = vpack.c.b16 %v2028, %v2020
        %v2389 = vpack.c.b16 %v2029, %v2021
        %v2390 = vpack.c.b16 %v2030, %v2022
        %v2391 = vpack.c.b16 %v2031, %v2023
        %v2392 = vpack.c.b16 %v2040, %v2032
        %v2393 = vpack.c.b16 %v2041, %v2033
        %v2394 = vpack.c.b16 %v2042, %v2034
        %v2395 = vpack.c.b16 %v2043, %v2035
        %v2396 = vpack.c.b16 %v2044, %v2036
        %v2397 = vpack.c.b16 %v2045, %v2037
        %v2398 = vpack.c.b16 %v2046, %v2038
        %v2399 = vpack.c.b16 %v2047, %v2039
        %v2400 = vpack.c.b16 %v2056, %v2048
        %v2401 = vpack.c.b16 %v2057, %v2049
        %v2402 = vpack.c.b16 %v2058, %v2050
        %v2403 = vpack.c.b16 %v2059, %v2051
        %v2404 = vpack.c.b16 %v2060, %v2052
        %v2405 = vpack.c.b16 %v2061, %v2053
        %v2406 = vpack.c.b16 %v2062, %v2054
        %v2407 = vpack.c.b16 %v2063, %v2055
        %v2408 = vpack.c.b16 %v2072, %v2064
        %v2409 = vpack.c.b16 %v2073, %v2065
        %v2410 = vpack.c.b16 %v2074, %v2066
        %v2411 = vpack.c.b16 %v2075, %v2067
        %v2412 = vpack.c.b16 %v2076, %v2068
        %v2413 = vpack.c.b16 %v2077, %v2069
        %v2414 = vpack.c.b16 %v2078, %v2070
        %v2415 = vpack.c.b16 %v2079, %v2071
        %v2416 = vpack.c.b16 %v2088, %v2080
        %v2417 = vpack.c.b16 %v2089, %v2081
        %v2418 = vpack.c.b16 %v2090, %v2082
        %v2419 = vpack.c.b16 %v2091, %v2083
        %v2420 = vpack.c.b16 %v2092, %v2084
        %v2421 = vpack.c.b16 %v2093, %v2085
        %v2422 = vpack.c.b16 %v2094, %v2086
        %v2423 = vpack.c.b16 %v2095, %v2087
        %v2424 = vpack.c.b16 %v2104, %v2096
        %v2425 = vpack.c.b16 %v2105, %v2097
        %v2426 = vpack.c.b16 %v2106, %v2098
        %v2427 = vpack.c.b16 %v2107, %v2099
        %v2428 = vpack.c.b16 %v2108, %v2100
        %v2429 = vpack.c.b16 %v2109, %v2101
        %v2430 = vpack.c.b16 %v2110, %v2102
        %v2431 = vpack.c.b16 %v2111, %v2103
        %v2432 = vpack.c.b16 %v2120, %v2112
        %v2433 = vpack.c.b16 %v2121, %v2113
        %v2434 = vpack.c.b16 %v2122, %v2114
        %v2435 = vpack.c.b16 %v2123, %v2115
        %v2436 = vpack.c.b16 %v2124, %v2116
        %v2437 = vpack.c.b16 %v2125, %v2117
        %v2438 = vpack.c.b16 %v2126, %v2118
        %v2439 = vpack.c.b16 %v2127, %v2119
        %v2440 = vpack.c.b16 %v2136, %v2128
        %v2441 = vpack.c.b16 %v2137, %v2129
        %v2442 = vpack.c.b16 %v2138, %v2130
        %v2443 = vpack.c.b16 %v2139, %v2131
        %v2444 = vpack.c.b16 %v2140, %v2132
        %v2445 = vpack.c.b16 %v2141, %v2133
        %v2446 = vpack.c.b16 %v2142, %v2134
        %v2447 = vpack.c.b16 %v2143, %v2135
        %v2448 = vpack.c.b16 %v2152, %v2144
        %v2449 = vpack.c.b16 %v2153, %v2145
        %v2450 = vpack.c.b16 %v2154, %v2146
        %v2451 = vpack.c.b16 %v2155, %v2147
        %v2452 = vpack.c.b16 %v2156, %v2148
        %v2453 = vpack.c.b16 %v2157, %v2149
        %v2454 = vpack.c.b16 %v2158, %v2150
        %v2455 = vpack.c.b16 %v2159, %v2151
        %v2456 = vpack.c.b16 %v2168, %v2160
        %v2457 = vpack.c.b16 %v2169, %v2161
        %v2458 = vpack.c.b16 %v2170, %v2162
        %v2459 = vpack.c.b16 %v2171, %v2163
        %v2460 = vpack.c.b16 %v2172, %v2164
        %v2461 = vpack.c.b16 %v2173, %v2165
        %v2462 = vpack.c.b16 %v2174, %v2166
        %v2463 = vpack.c.b16 %v2175, %v2167
        %v2464 = vpack.c.b16 %v2184, %v2176
        %v2465 = vpack.c.b16 %v2185, %v2177
        %v2466 = vpack.c.b16 %v2186, %v2178
        %v2467 = vpack.c.b16 %v2187, %v2179
        %v2468 = vpack.c.b16 %v2188, %v2180
        %v2469 = vpack.c.b16 %v2189, %v2181
        %v2470 = vpack.c.b16 %v2190, %v2182
        %v2471 = vpack.c.b16 %v2191, %v2183
        %v2472 = vpack.c.b16 %v2200, %v2192
        %v2473 = vpack.c.b16 %v2201, %v2193
        %v2474 = vpack.c.b16 %v2202, %v2194
        %v2475 = vpack.c.b16 %v2203, %v2195
        %v2476 = vpack.c.b16 %v2204, %v2196
        %v2477 = vpack.c.b16 %v2205, %v2197
        %v2478 = vpack.c.b16 %v2206, %v2198
        %v2479 = vpack.c.b16 %v2207, %v2199
        %v2480 = vpack.c.b16 %v2216, %v2208
        %v2481 = vpack.c.b16 %v2217, %v2209
        %v2482 = vpack.c.b16 %v2218, %v2210
        %v2483 = vpack.c.b16 %v2219, %v2211
        %v2484 = vpack.c.b16 %v2220, %v2212
        %v2485 = vpack.c.b16 %v2221, %v2213
        %v2486 = vpack.c.b16 %v2222, %v2214
        %v2487 = vpack.c.b16 %v2223, %v2215
        %v2488 = vpack.c.b16 %v2232, %v2224
        %v2489 = vpack.c.b16 %v2233, %v2225
        %v2490 = vpack.c.b16 %v2234, %v2226
        %v2491 = vpack.c.b16 %v2235, %v2227
        %v2492 = vpack.c.b16 %v2236, %v2228
        %v2493 = vpack.c.b16 %v2237, %v2229
        %v2494 = vpack.c.b16 %v2238, %v2230
        %v2495 = vpack.c.b16 %v2239, %v2231
        %2752 = vmatprep.subr.bf16.mxu0 %v2241
        %2753 = vmatpush1.bf16.msra.mxu0 %v2240
        %2754 = vmatprep.subr.bf16.mxu0 %v2249
        %2755 = vmatpush1.bf16.msra.mxu0 %v2248
        %2756 = vmatprep.subr.bf16.mxu0 %v2257
        %2757 = vmatpush1.bf16.msra.mxu0 %v2256
        %2758 = vmatprep.subr.bf16.mxu0 %v2265
        %2759 = vmatpush1.bf16.msra.mxu0 %v2264
        %2760 = vmatprep.subr.bf16.mxu0 %v2273
        %2761 = vmatpush1.bf16.msra.mxu0 %v2272
        %2762 = vmatprep.subr.bf16.mxu0 %v2281
        %2763 = vmatpush1.bf16.msra.mxu0 %v2280
        %2764 = vmatprep.subr.bf16.mxu0 %v2289
        %2765 = vmatpush1.bf16.msra.mxu0 %v2288
        %2766 = vmatprep.subr.bf16.mxu0 %v2297
        %2767 = vmatpush1.bf16.msra.mxu0 %v2296
        %2768 = vmatprep.subr.bf16.mxu0 %v2305
        %2769 = vmatpush1.bf16.msra.mxu0 %v2304
        %2770 = vmatprep.subr.bf16.mxu0 %v2313
        %2771 = vmatpush1.bf16.msra.mxu0 %v2312
        %2772 = vmatprep.subr.bf16.mxu0 %v2321
        %2773 = vmatpush1.bf16.msra.mxu0 %v2320
        %2774 = vmatprep.subr.bf16.mxu0 %v2329
        %2775 = vmatpush1.bf16.msra.mxu0 %v2328
        %2776 = vmatprep.subr.bf16.mxu0 %v2337
        %2777 = vmatpush1.bf16.msra.mxu0 %v2336
        %2778 = vmatprep.subr.bf16.mxu0 %v2345
        %2779 = vmatpush1.bf16.msra.mxu0 %v2344
        %2780 = vmatprep.subr.bf16.mxu0 %v2353
        %2781 = vmatpush1.bf16.msra.mxu0 %v2352
        %2782 = vmatprep.subr.bf16.mxu0 %v2361
        %2783 = vmatpush1.bf16.msra.mxu0 %v2360
        %2784 = vmatprep.mubr.bf16.mxu0 %v1171
        %2785 = vmatmul.mubr.bf16.gmra.mrb[0].mxu0 %v1170
        %v2786 = vpop.f32.mrb[0].mxu0
        %v2787 = vadd.f32 %v1435, %v2786
        %v2788 = vpop.f32.mrb[0].mxu0
        %v2789 = vadd.f32 %v1439, %v2788
        %v2790 = vpop.f32.mrb[0].mxu0
        %v2791 = vadd.f32 %v1435, %v2790
        %v2792 = vpop.f32.mrb[0].mxu0
        %v2793 = vadd.f32 %v1439, %v2792
        %2794 = vdwg.mxu0
        %2795 = vmatprep.subr.bf16.mxu0 %v2369
        %2796 = vmatpush1.bf16.msra.mxu0 %v2368
        %2797 = vmatprep.subr.bf16.mxu0 %v2377
        %2798 = vmatpush1.bf16.msra.mxu0 %v2376
        %2799 = vmatprep.subr.bf16.mxu0 %v2385
        %2800 = vmatpush1.bf16.msra.mxu0 %v2384
        %2801 = vmatprep.subr.bf16.mxu0 %v2393
        %2802 = vmatpush1.bf16.msra.mxu0 %v2392
        %2803 = vmatprep.subr.bf16.mxu0 %v2401
        %2804 = vmatpush1.bf16.msra.mxu0 %v2400
        %2805 = vmatprep.subr.bf16.mxu0 %v2409
        %2806 = vmatpush1.bf16.msra.mxu0 %v2408
        %2807 = vmatprep.subr.bf16.mxu0 %v2417
        %2808 = vmatpush1.bf16.msra.mxu0 %v2416
        %2809 = vmatprep.subr.bf16.mxu0 %v2425
        %2810 = vmatpush1.bf16.msra.mxu0 %v2424
        %2811 = vmatprep.subr.bf16.mxu0 %v2433
        %2812 = vmatpush1.bf16.msra.mxu0 %v2432
        %2813 = vmatprep.subr.bf16.mxu0 %v2441
        %2814 = vmatpush1.bf16.msra.mxu0 %v2440
        %2815 = vmatprep.subr.bf16.mxu0 %v2449
        %2816 = vmatpush1.bf16.msra.mxu0 %v2448
        %2817 = vmatprep.subr.bf16.mxu0 %v2457
        %2818 = vmatpush1.bf16.msra.mxu0 %v2456
        %2819 = vmatprep.subr.bf16.mxu0 %v2465
        %2820 = vmatpush1.bf16.msra.mxu0 %v2464
        %2821 = vmatprep.subr.bf16.mxu0 %v2473
        %2822 = vmatpush1.bf16.msra.mxu0 %v2472
        %2823 = vmatprep.subr.bf16.mxu0 %v2481
        %2824 = vmatpush1.bf16.msra.mxu0 %v2480
        %2825 = vmatprep.subr.bf16.mxu0 %v2489
        %2826 = vmatpush1.bf16.msra.mxu0 %v2488
        %2827 = vmatprep.mubr.bf16.mxu0 %v1173
        %2828 = vmatmul.mubr.bf16.gmra.mrb[0].mxu0 %v1172
        %v2829 = vpop.f32.mrb[0].mxu0
        %v2830 = vadd.f32 %v2787, %v2829
        %v2831 = vpop.f32.mrb[0].mxu0
        %v2832 = vadd.f32 %v2789, %v2831
        %v2833 = vpop.f32.mrb[0].mxu0
        %v2834 = vadd.f32 %v2791, %v2833
        %v2835 = vpop.f32.mrb[0].mxu0
        %v2836 = vadd.f32 %v2793, %v2835
        %2837 = vdwg.mxu0
        %2838 = vmatprep.subr.bf16.mxu0 %v2243
        %2839 = vmatpush1.bf16.msra.mxu0 %v2242
        %2840 = vmatprep.subr.bf16.mxu0 %v2251
        %2841 = vmatpush1.bf16.msra.mxu0 %v2250
        %2842 = vmatprep.subr.bf16.mxu0 %v2259
        %2843 = vmatpush1.bf16.msra.mxu0 %v2258
        %2844 = vmatprep.subr.bf16.mxu0 %v2267
        %2845 = vmatpush1.bf16.msra.mxu0 %v2266
        %2846 = vmatprep.subr.bf16.mxu0 %v2275
        %2847 = vmatpush1.bf16.msra.mxu0 %v2274
        %2848 = vmatprep.subr.bf16.mxu0 %v2283
        %2849 = vmatpush1.bf16.msra.mxu0 %v2282
        %2850 = vmatprep.subr.bf16.mxu0 %v2291
        %2851 = vmatpush1.bf16.msra.mxu0 %v2290
        %2852 = vmatprep.subr.bf16.mxu0 %v2299
        %2853 = vmatpush1.bf16.msra.mxu0 %v2298
        %2854 = vmatprep.subr.bf16.mxu0 %v2307
        %2855 = vmatpush1.bf16.msra.mxu0 %v2306
        %2856 = vmatprep.subr.bf16.mxu0 %v2315
        %2857 = vmatpush1.bf16.msra.mxu0 %v2314
        %2858 = vmatprep.subr.bf16.mxu0 %v2323
        %2859 = vmatpush1.bf16.msra.mxu0 %v2322
        %2860 = vmatprep.subr.bf16.mxu0 %v2331
        %2861 = vmatpush1.bf16.msra.mxu0 %v2330
        %2862 = vmatprep.subr.bf16.mxu0 %v2339
        %2863 = vmatpush1.bf16.msra.mxu0 %v2338
        %2864 = vmatprep.subr.bf16.mxu0 %v2347
        %2865 = vmatpush1.bf16.msra.mxu0 %v2346
        %2866 = vmatprep.subr.bf16.mxu0 %v2355
        %2867 = vmatpush1.bf16.msra.mxu0 %v2354
        %2868 = vmatprep.subr.bf16.mxu0 %v2363
        %2869 = vmatpush1.bf16.msra.mxu0 %v2362
        %2870 = vmatprep.mubr.bf16.mxu0 %v1171
        %2871 = vmatmul.mubr.bf16.gmra.mrb[0].mxu0 %v1170
        %v2872 = vpop.f32.mrb[0].mxu0
        %v2873 = vadd.f32 %v1443, %v2872
        %v2874 = vpop.f32.mrb[0].mxu0
        %v2875 = vadd.f32 %v1447, %v2874
        %v2876 = vpop.f32.mrb[0].mxu0
        %v2877 = vadd.f32 %v1443, %v2876
        %v2878 = vpop.f32.mrb[0].mxu0
        %v2879 = vadd.f32 %v1447, %v2878
        %2880 = vdwg.mxu0
        %2881 = vmatprep.subr.bf16.mxu0 %v2371
        %2882 = vmatpush1.bf16.msra.mxu0 %v2370
        %2883 = vmatprep.subr.bf16.mxu0 %v2379
        %2884 = vmatpush1.bf16.msra.mxu0 %v2378
        %2885 = vmatprep.subr.bf16.mxu0 %v2387
        %2886 = vmatpush1.bf16.msra.mxu0 %v2386
        %2887 = vmatprep.subr.bf16.mxu0 %v2395
        %2888 = vmatpush1.bf16.msra.mxu0 %v2394
        %2889 = vmatprep.subr.bf16.mxu0 %v2403
        %2890 = vmatpush1.bf16.msra.mxu0 %v2402
        %2891 = vmatprep.subr.bf16.mxu0 %v2411
        %2892 = vmatpush1.bf16.msra.mxu0 %v2410
        %2893 = vmatprep.subr.bf16.mxu0 %v2419
        %2894 = vmatpush1.bf16.msra.mxu0 %v2418
        %2895 = vmatprep.subr.bf16.mxu0 %v2427
        %2896 = vmatpush1.bf16.msra.mxu0 %v2426
        %2897 = vmatprep.subr.bf16.mxu0 %v2435
        %2898 = vmatpush1.bf16.msra.mxu0 %v2434
        %2899 = vmatprep.subr.bf16.mxu0 %v2443
        %2900 = vmatpush1.bf16.msra.mxu0 %v2442
        %2901 = vmatprep.subr.bf16.mxu0 %v2451
        %2902 = vmatpush1.bf16.msra.mxu0 %v2450
        %2903 = vmatprep.subr.bf16.mxu0 %v2459
        %2904 = vmatpush1.bf16.msra.mxu0 %v2458
        %2905 = vmatprep.subr.bf16.mxu0 %v2467
        %2906 = vmatpush1.bf16.msra.mxu0 %v2466
        %2907 = vmatprep.subr.bf16.mxu0 %v2475
        %2908 = vmatpush1.bf16.msra.mxu0 %v2474
        %2909 = vmatprep.subr.bf16.mxu0 %v2483
        %2910 = vmatpush1.bf16.msra.mxu0 %v2482
        %2911 = vmatprep.subr.bf16.mxu0 %v2491
        %2912 = vmatpush1.bf16.msra.mxu0 %v2490
        %2913 = vmatprep.mubr.bf16.mxu0 %v1173
        %2914 = vmatmul.mubr.bf16.gmra.mrb[0].mxu0 %v1172
        %v2915 = vpop.f32.mrb[0].mxu0
        %v2916 = vadd.f32 %v2873, %v2915
        %v2917 = vpop.f32.mrb[0].mxu0
        %v2918 = vadd.f32 %v2875, %v2917
        %v2919 = vpop.f32.mrb[0].mxu0
        %v2920 = vadd.f32 %v2877, %v2919
        %v2921 = vpop.f32.mrb[0].mxu0
        %v2922 = vadd.f32 %v2879, %v2921
        %2923 = vdwg.mxu0
        %2924 = vmatprep.subr.bf16.mxu0 %v2245
        %2925 = vmatpush1.bf16.msra.mxu0 %v2244
        %2926 = vmatprep.subr.bf16.mxu0 %v2253
        %2927 = vmatpush1.bf16.msra.mxu0 %v2252
        %2928 = vmatprep.subr.bf16.mxu0 %v2261
        %2929 = vmatpush1.bf16.msra.mxu0 %v2260
        %2930 = vmatprep.subr.bf16.mxu0 %v2269
        %2931 = vmatpush1.bf16.msra.mxu0 %v2268
        %2932 = vmatprep.subr.bf16.mxu0 %v2277
        %2933 = vmatpush1.bf16.msra.mxu0 %v2276
        %2934 = vmatprep.subr.bf16.mxu0 %v2285
        %2935 = vmatpush1.bf16.msra.mxu0 %v2284
        %2936 = vmatprep.subr.bf16.mxu0 %v2293
        %2937 = vmatpush1.bf16.msra.mxu0 %v2292
        %2938 = vmatprep.subr.bf16.mxu0 %v2301
        %2939 = vmatpush1.bf16.msra.mxu0 %v2300
        %2940 = vmatprep.subr.bf16.mxu0 %v2309
        %2941 = vmatpush1.bf16.msra.mxu0 %v2308
        %2942 = vmatprep.subr.bf16.mxu0 %v2317
        %2943 = vmatpush1.bf16.msra.mxu0 %v2316
        %2944 = vmatprep.subr.bf16.mxu0 %v2325
        %2945 = vmatpush1.bf16.msra.mxu0 %v2324
        %2946 = vmatprep.subr.bf16.mxu0 %v2333
        %2947 = vmatpush1.bf16.msra.mxu0 %v2332
        %2948 = vmatprep.subr.bf16.mxu0 %v2341
        %2949 = vmatpush1.bf16.msra.mxu0 %v2340
        %2950 = vmatprep.subr.bf16.mxu0 %v2349
        %2951 = vmatpush1.bf16.msra.mxu0 %v2348
        %2952 = vmatprep.subr.bf16.mxu0 %v2357
        %2953 = vmatpush1.bf16.msra.mxu0 %v2356
        %2954 = vmatprep.subr.bf16.mxu0 %v2365
        %2955 = vmatpush1.bf16.msra.mxu0 %v2364
        %2956 = vmatprep.mubr.bf16.mxu0 %v1171
        %2957 = vmatmul.mubr.bf16.gmra.mrb[0].mxu0 %v1170
        %v2958 = vpop.f32.mrb[0].mxu0
        %v2959 = vadd.f32 %v1451, %v2958
        %v2960 = vpop.f32.mrb[0].mxu0
        %v2961 = vadd.f32 %v1455, %v2960
        %v2962 = vpop.f32.mrb[0].mxu0
        %v2963 = vadd.f32 %v1451, %v2962
        %v2964 = vpop.f32.mrb[0].mxu0
        %v2965 = vadd.f32 %v1455, %v2964
        %2966 = vdwg.mxu0
        %2967 = vmatprep.subr.bf16.mxu0 %v2373
        %2968 = vmatpush1.bf16.msra.mxu0 %v2372
        %2969 = vmatprep.subr.bf16.mxu0 %v2381
        %2970 = vmatpush1.bf16.msra.mxu0 %v2380
        %2971 = vmatprep.subr.bf16.mxu0 %v2389
        %2972 = vmatpush1.bf16.msra.mxu0 %v2388
        %2973 = vmatprep.subr.bf16.mxu0 %v2397
        %2974 = vmatpush1.bf16.msra.mxu0 %v2396
        %2975 = vmatprep.subr.bf16.mxu0 %v2405
        %2976 = vmatpush1.bf16.msra.mxu0 %v2404
        %2977 = vmatprep.subr.bf16.mxu0 %v2413
        %2978 = vmatpush1.bf16.msra.mxu0 %v2412
        %2979 = vmatprep.subr.bf16.mxu0 %v2421
        %2980 = vmatpush1.bf16.msra.mxu0 %v2420
        %2981 = vmatprep.subr.bf16.mxu0 %v2429
        %2982 = vmatpush1.bf16.msra.mxu0 %v2428
        %2983 = vmatprep.subr.bf16.mxu0 %v2437
        %2984 = vmatpush1.bf16.msra.mxu0 %v2436
        %2985 = vmatprep.subr.bf16.mxu0 %v2445
        %2986 = vmatpush1.bf16.msra.mxu0 %v2444
        %2987 = vmatprep.subr.bf16.mxu0 %v2453
        %2988 = vmatpush1.bf16.msra.mxu0 %v2452
        %2989 = vmatprep.subr.bf16.mxu0 %v2461
        %2990 = vmatpush1.bf16.msra.mxu0 %v2460
        %2991 = vmatprep.subr.bf16.mxu0 %v2469
        %2992 = vmatpush1.bf16.msra.mxu0 %v2468
        %2993 = vmatprep.subr.bf16.mxu0 %v2477
        %2994 = vmatpush1.bf16.msra.mxu0 %v2476
        %2995 = vmatprep.subr.bf16.mxu0 %v2485
        %2996 = vmatpush1.bf16.msra.mxu0 %v2484
        %2997 = vmatprep.subr.bf16.mxu0 %v2493
        %2998 = vmatpush1.bf16.msra.mxu0 %v2492
        %2999 = vmatprep.mubr.bf16.mxu0 %v1173
        %3000 = vmatmul.mubr.bf16.gmra.mrb[0].mxu0 %v1172
        %v3001 = vpop.f32.mrb[0].mxu0
        %v3002 = vadd.f32 %v2959, %v3001
        %v3003 = vpop.f32.mrb[0].mxu0
        %v3004 = vadd.f32 %v2961, %v3003
        %v3005 = vpop.f32.mrb[0].mxu0
        %v3006 = vadd.f32 %v2963, %v3005
        %v3007 = vpop.f32.mrb[0].mxu0
        %v3008 = vadd.f32 %v2965, %v3007
        %3009 = vdwg.mxu0
        %3010 = vmatprep.subr.bf16.mxu0 %v2247
        %3011 = vmatpush1.bf16.msra.mxu0 %v2246
        %3012 = vmatprep.subr.bf16.mxu0 %v2255
        %3013 = vmatpush1.bf16.msra.mxu0 %v2254
        %3014 = vmatprep.subr.bf16.mxu0 %v2263
        %3015 = vmatpush1.bf16.msra.mxu0 %v2262
        %3016 = vmatprep.subr.bf16.mxu0 %v2271
        %3017 = vmatpush1.bf16.msra.mxu0 %v2270
        %3018 = vmatprep.subr.bf16.mxu0 %v2279
        %3019 = vmatpush1.bf16.msra.mxu0 %v2278
        %3020 = vmatprep.subr.bf16.mxu0 %v2287
        %3021 = vmatpush1.bf16.msra.mxu0 %v2286
        %3022 = vmatprep.subr.bf16.mxu0 %v2295
        %3023 = vmatpush1.bf16.msra.mxu0 %v2294
        %3024 = vmatprep.subr.bf16.mxu0 %v2303
        %3025 = vmatpush1.bf16.msra.mxu0 %v2302
        %3026 = vmatprep.subr.bf16.mxu0 %v2311
        %3027 = vmatpush1.bf16.msra.mxu0 %v2310
        %3028 = vmatprep.subr.bf16.mxu0 %v2319
        %3029 = vmatpush1.bf16.msra.mxu0 %v2318
        %3030 = vmatprep.subr.bf16.mxu0 %v2327
        %3031 = vmatpush1.bf16.msra.mxu0 %v2326
        %3032 = vmatprep.subr.bf16.mxu0 %v2335
        %3033 = vmatpush1.bf16.msra.mxu0 %v2334
        %3034 = vmatprep.subr.bf16.mxu0 %v2343
        %3035 = vmatpush1.bf16.msra.mxu0 %v2342
        %3036 = vmatprep.subr.bf16.mxu0 %v2351
        %3037 = vmatpush1.bf16.msra.mxu0 %v2350
        %3038 = vmatprep.subr.bf16.mxu0 %v2359
        %3039 = vmatpush1.bf16.msra.mxu0 %v2358
        %3040 = vmatprep.subr.bf16.mxu0 %v2367
        %3041 = vmatpush1.bf16.msra.mxu0 %v2366
        %3042 = vmatprep.mubr.bf16.mxu0 %v1171
        %3043 = vmatmul.mubr.bf16.gmra.mrb[0].mxu0 %v1170
        %v3044 = vpop.f32.mrb[0].mxu0
        %v3045 = vadd.f32 %v1459, %v3044
        %v3046 = vpop.f32.mrb[0].mxu0
        %v3047 = vadd.f32 %v1463, %v3046
        %v3048 = vpop.f32.mrb[0].mxu0
        %v3049 = vadd.f32 %v1459, %v3048
        %v3050 = vpop.f32.mrb[0].mxu0
        %v3051 = vadd.f32 %v1463, %v3050
        %3052 = vdwg.mxu0
        %3053 = vmatprep.subr.bf16.mxu0 %v2375
        %3054 = vmatpush1.bf16.msra.mxu0 %v2374
        %3055 = vmatprep.subr.bf16.mxu0 %v2383
        %3056 = vmatpush1.bf16.msra.mxu0 %v2382
        %3057 = vmatprep.subr.bf16.mxu0 %v2391
        %3058 = vmatpush1.bf16.msra.mxu0 %v2390
        %3059 = vmatprep.subr.bf16.mxu0 %v2399
        %3060 = vmatpush1.bf16.msra.mxu0 %v2398
        %3061 = vmatprep.subr.bf16.mxu0 %v2407
        %3062 = vmatpush1.bf16.msra.mxu0 %v2406
        %3063 = vmatprep.subr.bf16.mxu0 %v2415
        %3064 = vmatpush1.bf16.msra.mxu0 %v2414
        %3065 = vmatprep.subr.bf16.mxu0 %v2423
        %3066 = vmatpush1.bf16.msra.mxu0 %v2422
        %3067 = vmatprep.subr.bf16.mxu0 %v2431
        %3068 = vmatpush1.bf16.msra.mxu0 %v2430
        %3069 = vmatprep.subr.bf16.mxu0 %v2439
        %3070 = vmatpush1.bf16.msra.mxu0 %v2438
        %3071 = vmatprep.subr.bf16.mxu0 %v2447
        %3072 = vmatpush1.bf16.msra.mxu0 %v2446
        %3073 = vmatprep.subr.bf16.mxu0 %v2455
        %3074 = vmatpush1.bf16.msra.mxu0 %v2454
        %3075 = vmatprep.subr.bf16.mxu0 %v2463
        %3076 = vmatpush1.bf16.msra.mxu0 %v2462
        %3077 = vmatprep.subr.bf16.mxu0 %v2471
        %3078 = vmatpush1.bf16.msra.mxu0 %v2470
        %3079 = vmatprep.subr.bf16.mxu0 %v2479
        %3080 = vmatpush1.bf16.msra.mxu0 %v2478
        %3081 = vmatprep.subr.bf16.mxu0 %v2487
        %3082 = vmatpush1.bf16.msra.mxu0 %v2486
        %3083 = vmatprep.subr.bf16.mxu0 %v2495
        %3084 = vmatpush1.bf16.msra.mxu0 %v2494
        %3085 = vmatprep.mubr.bf16.mxu0 %v1173
        %3086 = vmatmul.mubr.bf16.gmra.mrb[0].mxu0 %v1172
        %v3087 = vpop.f32.mrb[0].mxu0
        %v3088 = vadd.f32 %v3045, %v3087
        %v3089 = vpop.f32.mrb[0].mxu0
        %v3090 = vadd.f32 %v3047, %v3089
        %v3091 = vpop.f32.mrb[0].mxu0
        %v3092 = vadd.f32 %v3049, %v3091
        %v3093 = vpop.f32.mrb[0].mxu0
        %v3094 = vadd.f32 %v3051, %v3093
        %3095 = vdwg.mxu0
        %v3096 = vpack.c.bf16 %v2834, %v2830
        %v3097 = vpack.c.bf16 %v2836, %v2832
        %v3098 = vpack.c.bf16 %v2920, %v2916
        %v3099 = vpack.c.bf16 %v2922, %v2918
        %v3100 = vpack.c.bf16 %v3006, %v3002
        %v3101 = vpack.c.bf16 %v3008, %v3004
        %v3102 = vpack.c.bf16 %v3092, %v3088
        %v3103 = vpack.c.bf16 %v3094, %v3090
        %3104 = vst [vmem:[#allocation3] sm:$0xff] %v3096
        %3105 = vst [vmem:[#allocation3 + $0x8] sm:$0xff] %v3097
        %3106 = vst [vmem:[#allocation3 + $0x10] sm:$0xff] %v3098
        %3107 = vst [vmem:[#allocation3 + $0x18] sm:$0xff] %v3099
        %3108 = vst [vmem:[#allocation3 + $0x20] sm:$0xff] %v3100
        %3109 = vst [vmem:[#allocation3 + $0x28] sm:$0xff] %v3101
        %3110 = vst [vmem:[#allocation3 + $0x30] sm:$0xff] %v3102
        %3111 = vst [vmem:[#allocation3 + $0x38] sm:$0xff] %v3103
        %v3112 = vpack.c.bf16 %v1150, %v1146
        %v3113 = vpack.c.bf16 %v1151, %v1147
        %v3114 = vpack.c.bf16 %v1152, %v1148
        %v3115 = vpack.c.bf16 %v1153, %v1149
        %v3116 = vld [vmem:[%s896] sm:$0xff]
        %v3117 = vld [vmem:[%s896 + $0x8] sm:$0xff]
        %v3118 = vld [vmem:[%s896 + $0x10] sm:$0xff]
        %v3119 = vld [vmem:[%s896 + $0x18] sm:$0xff]
        %v3120 = vld [vmem:[%s896 + $0x20] sm:$0xff]
        %v3121 = vld [vmem:[%s896 + $0x28] sm:$0xff]
        %v3122 = vld [vmem:[%s896 + $0x30] sm:$0xff]
        %v3123 = vld [vmem:[%s896 + $0x38] sm:$0xff]
        %v3124 = vld [vmem:[%s896 + $0x40] sm:$0xff]
        %v3125 = vld [vmem:[%s896 + $0x48] sm:$0xff]
        %v3126 = vld [vmem:[%s896 + $0x50] sm:$0xff]
        %v3127 = vld [vmem:[%s896 + $0x58] sm:$0xff]
        %v3128 = vld [vmem:[%s896 + $0x60] sm:$0xff]
        %v3129 = vld [vmem:[%s896 + $0x68] sm:$0xff]
        %v3130 = vld [vmem:[%s896 + $0x70] sm:$0xff]
        %v3131 = vld [vmem:[%s896 + $0x78] sm:$0xff]
        %v3132 = vld [vmem:[%s896 + $0x80] sm:$0xff]
        %v3133 = vld [vmem:[%s896 + $0x88] sm:$0xff]
        %v3134 = vld [vmem:[%s896 + $0x90] sm:$0xff]
        %v3135 = vld [vmem:[%s896 + $0x98] sm:$0xff]
        %v3136 = vld [vmem:[%s896 + $0xa0] sm:$0xff]
        %v3137 = vld [vmem:[%s896 + $0xa8] sm:$0xff]
        %v3138 = vld [vmem:[%s896 + $0xb0] sm:$0xff]
        %v3139 = vld [vmem:[%s896 + $0xb8] sm:$0xff]
        %v3140 = vld [vmem:[%s896 + $0xc0] sm:$0xff]
        %v3141 = vld [vmem:[%s896 + $0xc8] sm:$0xff]
        %v3142 = vld [vmem:[%s896 + $0xd0] sm:$0xff]
        %v3143 = vld [vmem:[%s896 + $0xd8] sm:$0xff]
        %v3144 = vld [vmem:[%s896 + $0xe0] sm:$0xff]
        %v3145 = vld [vmem:[%s896 + $0xe8] sm:$0xff]
        %v3146 = vld [vmem:[%s896 + $0xf0] sm:$0xff]
        %v3147 = vld [vmem:[%s896 + $0xf8] sm:$0xff]
        %v3148 = vld [vmem:[%s896 + $0x100] sm:$0xff]
        %v3149 = vld [vmem:[%s896 + $0x108] sm:$0xff]
        %v3150 = vld [vmem:[%s896 + $0x110] sm:$0xff]
        %v3151 = vld [vmem:[%s896 + $0x118] sm:$0xff]
        %v3152 = vld [vmem:[%s896 + $0x120] sm:$0xff]
        %v3153 = vld [vmem:[%s896 + $0x128] sm:$0xff]
        %v3154 = vld [vmem:[%s896 + $0x130] sm:$0xff]
        %v3155 = vld [vmem:[%s896 + $0x138] sm:$0xff]
        %v3156 = vld [vmem:[%s896 + $0x140] sm:$0xff]
        %v3157 = vld [vmem:[%s896 + $0x148] sm:$0xff]
        %v3158 = vld [vmem:[%s896 + $0x150] sm:$0xff]
        %v3159 = vld [vmem:[%s896 + $0x158] sm:$0xff]
        %v3160 = vld [vmem:[%s896 + $0x160] sm:$0xff]
        %v3161 = vld [vmem:[%s896 + $0x168] sm:$0xff]
        %v3162 = vld [vmem:[%s896 + $0x170] sm:$0xff]
        %v3163 = vld [vmem:[%s896 + $0x178] sm:$0xff]
        %v3164 = vld [vmem:[%s896 + $0x180] sm:$0xff]
        %v3165 = vld [vmem:[%s896 + $0x188] sm:$0xff]
        %v3166 = vld [vmem:[%s896 + $0x190] sm:$0xff]
        %v3167 = vld [vmem:[%s896 + $0x198] sm:$0xff]
        %v3168 = vld [vmem:[%s896 + $0x1a0] sm:$0xff]
        %v3169 = vld [vmem:[%s896 + $0x1a8] sm:$0xff]
        %v3170 = vld [vmem:[%s896 + $0x1b0] sm:$0xff]
        %v3171 = vld [vmem:[%s896 + $0x1b8] sm:$0xff]
        %v3172 = vld [vmem:[%s896 + $0x1c0] sm:$0xff]
        %v3173 = vld [vmem:[%s896 + $0x1c8] sm:$0xff]
        %v3174 = vld [vmem:[%s896 + $0x1d0] sm:$0xff]
        %v3175 = vld [vmem:[%s896 + $0x1d8] sm:$0xff]
        %v3176 = vld [vmem:[%s896 + $0x1e0] sm:$0xff]
        %v3177 = vld [vmem:[%s896 + $0x1e8] sm:$0xff]
        %v3178 = vld [vmem:[%s896 + $0x1f0] sm:$0xff]
        %v3179 = vld [vmem:[%s896 + $0x1f8] sm:$0xff]
        %v3180 = vld [vmem:[%s896 + $0x200] sm:$0xff]
        %v3181 = vld [vmem:[%s896 + $0x208] sm:$0xff]
        %v3182 = vld [vmem:[%s896 + $0x210] sm:$0xff]
        %v3183 = vld [vmem:[%s896 + $0x218] sm:$0xff]
        %v3184 = vld [vmem:[%s896 + $0x220] sm:$0xff]
        %v3185 = vld [vmem:[%s896 + $0x228] sm:$0xff]
        %v3186 = vld [vmem:[%s896 + $0x230] sm:$0xff]
        %v3187 = vld [vmem:[%s896 + $0x238] sm:$0xff]
        %v3188 = vld [vmem:[%s896 + $0x240] sm:$0xff]
        %v3189 = vld [vmem:[%s896 + $0x248] sm:$0xff]
        %v3190 = vld [vmem:[%s896 + $0x250] sm:$0xff]
        %v3191 = vld [vmem:[%s896 + $0x258] sm:$0xff]
        %v3192 = vld [vmem:[%s896 + $0x260] sm:$0xff]
        %v3193 = vld [vmem:[%s896 + $0x268] sm:$0xff]
        %v3194 = vld [vmem:[%s896 + $0x270] sm:$0xff]
        %v3195 = vld [vmem:[%s896 + $0x278] sm:$0xff]
        %v3196 = vld [vmem:[%s896 + $0x280] sm:$0xff]
        %v3197 = vld [vmem:[%s896 + $0x288] sm:$0xff]
        %v3198 = vld [vmem:[%s896 + $0x290] sm:$0xff]
        %v3199 = vld [vmem:[%s896 + $0x298] sm:$0xff]
        %v3200 = vld [vmem:[%s896 + $0x2a0] sm:$0xff]
        %v3201 = vld [vmem:[%s896 + $0x2a8] sm:$0xff]
        %v3202 = vld [vmem:[%s896 + $0x2b0] sm:$0xff]
        %v3203 = vld [vmem:[%s896 + $0x2b8] sm:$0xff]
        %v3204 = vld [vmem:[%s896 + $0x2c0] sm:$0xff]
        %v3205 = vld [vmem:[%s896 + $0x2c8] sm:$0xff]
        %v3206 = vld [vmem:[%s896 + $0x2d0] sm:$0xff]
        %v3207 = vld [vmem:[%s896 + $0x2d8] sm:$0xff]
        %v3208 = vld [vmem:[%s896 + $0x2e0] sm:$0xff]
        %v3209 = vld [vmem:[%s896 + $0x2e8] sm:$0xff]
        %v3210 = vld [vmem:[%s896 + $0x2f0] sm:$0xff]
        %v3211 = vld [vmem:[%s896 + $0x2f8] sm:$0xff]
        %v3212 = vld [vmem:[%s896 + $0x300] sm:$0xff]
        %v3213 = vld [vmem:[%s896 + $0x308] sm:$0xff]
        %v3214 = vld [vmem:[%s896 + $0x310] sm:$0xff]
        %v3215 = vld [vmem:[%s896 + $0x318] sm:$0xff]
        %v3216 = vld [vmem:[%s896 + $0x320] sm:$0xff]
        %v3217 = vld [vmem:[%s896 + $0x328] sm:$0xff]
        %v3218 = vld [vmem:[%s896 + $0x330] sm:$0xff]
        %v3219 = vld [vmem:[%s896 + $0x338] sm:$0xff]
        %v3220 = vld [vmem:[%s896 + $0x340] sm:$0xff]
        %v3221 = vld [vmem:[%s896 + $0x348] sm:$0xff]
        %v3222 = vld [vmem:[%s896 + $0x350] sm:$0xff]
        %v3223 = vld [vmem:[%s896 + $0x358] sm:$0xff]
        %v3224 = vld [vmem:[%s896 + $0x360] sm:$0xff]
        %v3225 = vld [vmem:[%s896 + $0x368] sm:$0xff]
        %v3226 = vld [vmem:[%s896 + $0x370] sm:$0xff]
        %v3227 = vld [vmem:[%s896 + $0x378] sm:$0xff]
        %v3228 = vld [vmem:[%s896 + $0x380] sm:$0xff]
        %v3229 = vld [vmem:[%s896 + $0x388] sm:$0xff]
        %v3230 = vld [vmem:[%s896 + $0x390] sm:$0xff]
        %v3231 = vld [vmem:[%s896 + $0x398] sm:$0xff]
        %v3232 = vld [vmem:[%s896 + $0x3a0] sm:$0xff]
        %v3233 = vld [vmem:[%s896 + $0x3a8] sm:$0xff]
        %v3234 = vld [vmem:[%s896 + $0x3b0] sm:$0xff]
        %v3235 = vld [vmem:[%s896 + $0x3b8] sm:$0xff]
        %v3236 = vld [vmem:[%s896 + $0x3c0] sm:$0xff]
        %v3237 = vld [vmem:[%s896 + $0x3c8] sm:$0xff]
        %v3238 = vld [vmem:[%s896 + $0x3d0] sm:$0xff]
        %v3239 = vld [vmem:[%s896 + $0x3d8] sm:$0xff]
        %v3240 = vld [vmem:[%s896 + $0x3e0] sm:$0xff]
        %v3241 = vld [vmem:[%s896 + $0x3e8] sm:$0xff]
        %v3242 = vld [vmem:[%s896 + $0x3f0] sm:$0xff]
        %v3243 = vld [vmem:[%s896 + $0x3f8] sm:$0xff]
        %v3244 = vld [vmem:[%s905] sm:$0xf]
        %v3246 = vlaneseq
        %v3247 = vshrl.u32 %v3246, 7
        %v3248 = vsub.s32 0, %v3247
        %v3249 = vrot.slane %v3244, %v3248
        %v3250 = vlaneseq
        %v3251 = vshrl.u32 %v3250, 7
        %v3252 = vsub.s32 1, %v3251
        %v3253 = vrot.slane %v3244, %v3252
        %v3254 = vlaneseq
        %v3255 = vshrl.u32 %v3254, 7
        %v3256 = vsub.s32 2, %v3255
        %v3257 = vrot.slane %v3244, %v3256
        %v3258 = vlaneseq
        %v3259 = vshrl.u32 %v3258, 7
        %v3260 = vsub.s32 3, %v3259
        %v3261 = vrot.slane %v3244, %v3260
        %v3394 = vunpack.c.l.b16 %v3116
        %v3395 = vunpack.c.h.b16 %v3116
        %v3396 = vunpack.c.l.b16 %v3117
        %v3397 = vunpack.c.h.b16 %v3117
        %v3398 = vunpack.c.l.b16 %v3118
        %v3399 = vunpack.c.h.b16 %v3118
        %v3400 = vunpack.c.l.b16 %v3119
        %v3401 = vunpack.c.h.b16 %v3119
        %v3402 = vunpack.c.l.b16 %v3120
        %v3403 = vunpack.c.h.b16 %v3120
        %v3404 = vunpack.c.l.b16 %v3121
        %v3405 = vunpack.c.h.b16 %v3121
        %v3406 = vunpack.c.l.b16 %v3122
        %v3407 = vunpack.c.h.b16 %v3122
        %v3408 = vunpack.c.l.b16 %v3123
        %v3409 = vunpack.c.h.b16 %v3123
        %v3410 = vunpack.c.l.b16 %v3124
        %v3411 = vunpack.c.h.b16 %v3124
        %v3412 = vunpack.c.l.b16 %v3125
        %v3413 = vunpack.c.h.b16 %v3125
        %v3414 = vunpack.c.l.b16 %v3126
        %v3415 = vunpack.c.h.b16 %v3126
        %v3416 = vunpack.c.l.b16 %v3127
        %v3417 = vunpack.c.h.b16 %v3127
        %v3418 = vunpack.c.l.b16 %v3128
        %v3419 = vunpack.c.h.b16 %v3128
        %v3420 = vunpack.c.l.b16 %v3129
        %v3421 = vunpack.c.h.b16 %v3129
        %v3422 = vunpack.c.l.b16 %v3130
        %v3423 = vunpack.c.h.b16 %v3130
        %v3424 = vunpack.c.l.b16 %v3131
        %v3425 = vunpack.c.h.b16 %v3131
        %v3426 = vunpack.c.l.b16 %v3132
        %v3427 = vunpack.c.h.b16 %v3132
        %v3428 = vunpack.c.l.b16 %v3133
        %v3429 = vunpack.c.h.b16 %v3133
        %v3430 = vunpack.c.l.b16 %v3134
        %v3431 = vunpack.c.h.b16 %v3134
        %v3432 = vunpack.c.l.b16 %v3135
        %v3433 = vunpack.c.h.b16 %v3135
        %v3434 = vunpack.c.l.b16 %v3136
        %v3435 = vunpack.c.h.b16 %v3136
        %v3436 = vunpack.c.l.b16 %v3137
        %v3437 = vunpack.c.h.b16 %v3137
        %v3438 = vunpack.c.l.b16 %v3138
        %v3439 = vunpack.c.h.b16 %v3138
        %v3440 = vunpack.c.l.b16 %v3139
        %v3441 = vunpack.c.h.b16 %v3139
        %v3442 = vunpack.c.l.b16 %v3140
        %v3443 = vunpack.c.h.b16 %v3140
        %v3444 = vunpack.c.l.b16 %v3141
        %v3445 = vunpack.c.h.b16 %v3141
        %v3446 = vunpack.c.l.b16 %v3142
        %v3447 = vunpack.c.h.b16 %v3142
        %v3448 = vunpack.c.l.b16 %v3143
        %v3449 = vunpack.c.h.b16 %v3143
        %v3450 = vunpack.c.l.b16 %v3144
        %v3451 = vunpack.c.h.b16 %v3144
        %v3452 = vunpack.c.l.b16 %v3145
        %v3453 = vunpack.c.h.b16 %v3145
        %v3454 = vunpack.c.l.b16 %v3146
        %v3455 = vunpack.c.h.b16 %v3146
        %v3456 = vunpack.c.l.b16 %v3147
        %v3457 = vunpack.c.h.b16 %v3147
        %v3458 = vunpack.c.l.b16 %v3148
        %v3459 = vunpack.c.h.b16 %v3148
        %v3460 = vunpack.c.l.b16 %v3149
        %v3461 = vunpack.c.h.b16 %v3149
        %v3462 = vunpack.c.l.b16 %v3150
        %v3463 = vunpack.c.h.b16 %v3150
        %v3464 = vunpack.c.l.b16 %v3151
        %v3465 = vunpack.c.h.b16 %v3151
        %v3466 = vunpack.c.l.b16 %v3152
        %v3467 = vunpack.c.h.b16 %v3152
        %v3468 = vunpack.c.l.b16 %v3153
        %v3469 = vunpack.c.h.b16 %v3153
        %v3470 = vunpack.c.l.b16 %v3154
        %v3471 = vunpack.c.h.b16 %v3154
        %v3472 = vunpack.c.l.b16 %v3155
        %v3473 = vunpack.c.h.b16 %v3155
        %v3474 = vunpack.c.l.b16 %v3156
        %v3475 = vunpack.c.h.b16 %v3156
        %v3476 = vunpack.c.l.b16 %v3157
        %v3477 = vunpack.c.h.b16 %v3157
        %v3478 = vunpack.c.l.b16 %v3158
        %v3479 = vunpack.c.h.b16 %v3158
        %v3480 = vunpack.c.l.b16 %v3159
        %v3481 = vunpack.c.h.b16 %v3159
        %v3482 = vunpack.c.l.b16 %v3160
        %v3483 = vunpack.c.h.b16 %v3160
        %v3484 = vunpack.c.l.b16 %v3161
        %v3485 = vunpack.c.h.b16 %v3161
        %v3486 = vunpack.c.l.b16 %v3162
        %v3487 = vunpack.c.h.b16 %v3162
        %v3488 = vunpack.c.l.b16 %v3163
        %v3489 = vunpack.c.h.b16 %v3163
        %v3490 = vunpack.c.l.b16 %v3164
        %v3491 = vunpack.c.h.b16 %v3164
        %v3492 = vunpack.c.l.b16 %v3165
        %v3493 = vunpack.c.h.b16 %v3165
        %v3494 = vunpack.c.l.b16 %v3166
        %v3495 = vunpack.c.h.b16 %v3166
        %v3496 = vunpack.c.l.b16 %v3167
        %v3497 = vunpack.c.h.b16 %v3167
        %v3498 = vunpack.c.l.b16 %v3168
        %v3499 = vunpack.c.h.b16 %v3168
        %v3500 = vunpack.c.l.b16 %v3169
        %v3501 = vunpack.c.h.b16 %v3169
        %v3502 = vunpack.c.l.b16 %v3170
        %v3503 = vunpack.c.h.b16 %v3170
        %v3504 = vunpack.c.l.b16 %v3171
        %v3505 = vunpack.c.h.b16 %v3171
        %v3506 = vunpack.c.l.b16 %v3172
        %v3507 = vunpack.c.h.b16 %v3172
        %v3508 = vunpack.c.l.b16 %v3173
        %v3509 = vunpack.c.h.b16 %v3173
        %v3510 = vunpack.c.l.b16 %v3174
        %v3511 = vunpack.c.h.b16 %v3174
        %v3512 = vunpack.c.l.b16 %v3175
        %v3513 = vunpack.c.h.b16 %v3175
        %v3514 = vunpack.c.l.b16 %v3176
        %v3515 = vunpack.c.h.b16 %v3176
        %v3516 = vunpack.c.l.b16 %v3177
        %v3517 = vunpack.c.h.b16 %v3177
        %v3518 = vunpack.c.l.b16 %v3178
        %v3519 = vunpack.c.h.b16 %v3178
        %v3520 = vunpack.c.l.b16 %v3179
        %v3521 = vunpack.c.h.b16 %v3179
        %v3522 = vunpack.c.l.b16 %v3180
        %v3523 = vunpack.c.h.b16 %v3180
        %v3524 = vunpack.c.l.b16 %v3181
        %v3525 = vunpack.c.h.b16 %v3181
        %v3526 = vunpack.c.l.b16 %v3182
        %v3527 = vunpack.c.h.b16 %v3182
        %v3528 = vunpack.c.l.b16 %v3183
        %v3529 = vunpack.c.h.b16 %v3183
        %v3530 = vunpack.c.l.b16 %v3184
        %v3531 = vunpack.c.h.b16 %v3184
        %v3532 = vunpack.c.l.b16 %v3185
        %v3533 = vunpack.c.h.b16 %v3185
        %v3534 = vunpack.c.l.b16 %v3186
        %v3535 = vunpack.c.h.b16 %v3186
        %v3536 = vunpack.c.l.b16 %v3187
        %v3537 = vunpack.c.h.b16 %v3187
        %v3538 = vunpack.c.l.b16 %v3188
        %v3539 = vunpack.c.h.b16 %v3188
        %v3540 = vunpack.c.l.b16 %v3189
        %v3541 = vunpack.c.h.b16 %v3189
        %v3542 = vunpack.c.l.b16 %v3190
        %v3543 = vunpack.c.h.b16 %v3190
        %v3544 = vunpack.c.l.b16 %v3191
        %v3545 = vunpack.c.h.b16 %v3191
        %v3546 = vunpack.c.l.b16 %v3192
        %v3547 = vunpack.c.h.b16 %v3192
        %v3548 = vunpack.c.l.b16 %v3193
        %v3549 = vunpack.c.h.b16 %v3193
        %v3550 = vunpack.c.l.b16 %v3194
        %v3551 = vunpack.c.h.b16 %v3194
        %v3552 = vunpack.c.l.b16 %v3195
        %v3553 = vunpack.c.h.b16 %v3195
        %v3554 = vunpack.c.l.b16 %v3196
        %v3555 = vunpack.c.h.b16 %v3196
        %v3556 = vunpack.c.l.b16 %v3197
        %v3557 = vunpack.c.h.b16 %v3197
        %v3558 = vunpack.c.l.b16 %v3198
        %v3559 = vunpack.c.h.b16 %v3198
        %v3560 = vunpack.c.l.b16 %v3199
        %v3561 = vunpack.c.h.b16 %v3199
        %v3562 = vunpack.c.l.b16 %v3200
        %v3563 = vunpack.c.h.b16 %v3200
        %v3564 = vunpack.c.l.b16 %v3201
        %v3565 = vunpack.c.h.b16 %v3201
        %v3566 = vunpack.c.l.b16 %v3202
        %v3567 = vunpack.c.h.b16 %v3202
        %v3568 = vunpack.c.l.b16 %v3203
        %v3569 = vunpack.c.h.b16 %v3203
        %v3570 = vunpack.c.l.b16 %v3204
        %v3571 = vunpack.c.h.b16 %v3204
        %v3572 = vunpack.c.l.b16 %v3205
        %v3573 = vunpack.c.h.b16 %v3205
        %v3574 = vunpack.c.l.b16 %v3206
        %v3575 = vunpack.c.h.b16 %v3206
        %v3576 = vunpack.c.l.b16 %v3207
        %v3577 = vunpack.c.h.b16 %v3207
        %v3578 = vunpack.c.l.b16 %v3208
        %v3579 = vunpack.c.h.b16 %v3208
        %v3580 = vunpack.c.l.b16 %v3209
        %v3581 = vunpack.c.h.b16 %v3209
        %v3582 = vunpack.c.l.b16 %v3210
        %v3583 = vunpack.c.h.b16 %v3210
        %v3584 = vunpack.c.l.b16 %v3211
        %v3585 = vunpack.c.h.b16 %v3211
        %v3586 = vunpack.c.l.b16 %v3212
        %v3587 = vunpack.c.h.b16 %v3212
        %v3588 = vunpack.c.l.b16 %v3213
        %v3589 = vunpack.c.h.b16 %v3213
        %v3590 = vunpack.c.l.b16 %v3214
        %v3591 = vunpack.c.h.b16 %v3214
        %v3592 = vunpack.c.l.b16 %v3215
        %v3593 = vunpack.c.h.b16 %v3215
        %v3594 = vunpack.c.l.b16 %v3216
        %v3595 = vunpack.c.h.b16 %v3216
        %v3596 = vunpack.c.l.b16 %v3217
        %v3597 = vunpack.c.h.b16 %v3217
        %v3598 = vunpack.c.l.b16 %v3218
        %v3599 = vunpack.c.h.b16 %v3218
        %v3600 = vunpack.c.l.b16 %v3219
        %v3601 = vunpack.c.h.b16 %v3219
        %v3602 = vunpack.c.l.b16 %v3220
        %v3603 = vunpack.c.h.b16 %v3220
        %v3604 = vunpack.c.l.b16 %v3221
        %v3605 = vunpack.c.h.b16 %v3221
        %v3606 = vunpack.c.l.b16 %v3222
        %v3607 = vunpack.c.h.b16 %v3222
        %v3608 = vunpack.c.l.b16 %v3223
        %v3609 = vunpack.c.h.b16 %v3223
        %v3610 = vunpack.c.l.b16 %v3224
        %v3611 = vunpack.c.h.b16 %v3224
        %v3612 = vunpack.c.l.b16 %v3225
        %v3613 = vunpack.c.h.b16 %v3225
        %v3614 = vunpack.c.l.b16 %v3226
        %v3615 = vunpack.c.h.b16 %v3226
        %v3616 = vunpack.c.l.b16 %v3227
        %v3617 = vunpack.c.h.b16 %v3227
        %v3618 = vunpack.c.l.b16 %v3228
        %v3619 = vunpack.c.h.b16 %v3228
        %v3620 = vunpack.c.l.b16 %v3229
        %v3621 = vunpack.c.h.b16 %v3229
        %v3622 = vunpack.c.l.b16 %v3230
        %v3623 = vunpack.c.h.b16 %v3230
        %v3624 = vunpack.c.l.b16 %v3231
        %v3625 = vunpack.c.h.b16 %v3231
        %v3626 = vunpack.c.l.b16 %v3232
        %v3627 = vunpack.c.h.b16 %v3232
        %v3628 = vunpack.c.l.b16 %v3233
        %v3629 = vunpack.c.h.b16 %v3233
        %v3630 = vunpack.c.l.b16 %v3234
        %v3631 = vunpack.c.h.b16 %v3234
        %v3632 = vunpack.c.l.b16 %v3235
        %v3633 = vunpack.c.h.b16 %v3235
        %v3634 = vunpack.c.l.b16 %v3236
        %v3635 = vunpack.c.h.b16 %v3236
        %v3636 = vunpack.c.l.b16 %v3237
        %v3637 = vunpack.c.h.b16 %v3237
        %v3638 = vunpack.c.l.b16 %v3238
        %v3639 = vunpack.c.h.b16 %v3238
        %v3640 = vunpack.c.l.b16 %v3239
        %v3641 = vunpack.c.h.b16 %v3239
        %v3642 = vunpack.c.l.b16 %v3240
        %v3643 = vunpack.c.h.b16 %v3240
        %v3644 = vunpack.c.l.b16 %v3241
        %v3645 = vunpack.c.h.b16 %v3241
        %v3646 = vunpack.c.l.b16 %v3242
        %v3647 = vunpack.c.h.b16 %v3242
        %v3648 = vunpack.c.l.b16 %v3243
        %v3649 = vunpack.c.h.b16 %v3243
        %v3650 = vpack.c.b16 %v3398, %v3394
        %v3651 = vpack.c.b16 %v3399, %v3395
        %v3652 = vpack.c.b16 %v3400, %v3396
        %v3653 = vpack.c.b16 %v3401, %v3397
        %v3654 = vpack.c.b16 %v3406, %v3402
        %v3655 = vpack.c.b16 %v3407, %v3403
        %v3656 = vpack.c.b16 %v3408, %v3404
        %v3657 = vpack.c.b16 %v3409, %v3405
        %v3658 = vpack.c.b16 %v3414, %v3410
        %v3659 = vpack.c.b16 %v3415, %v3411
        %v3660 = vpack.c.b16 %v3416, %v3412
        %v3661 = vpack.c.b16 %v3417, %v3413
        %v3662 = vpack.c.b16 %v3422, %v3418
        %v3663 = vpack.c.b16 %v3423, %v3419
        %v3664 = vpack.c.b16 %v3424, %v3420
        %v3665 = vpack.c.b16 %v3425, %v3421
        %v3666 = vpack.c.b16 %v3430, %v3426
        %v3667 = vpack.c.b16 %v3431, %v3427
        %v3668 = vpack.c.b16 %v3432, %v3428
        %v3669 = vpack.c.b16 %v3433, %v3429
        %v3670 = vpack.c.b16 %v3438, %v3434
        %v3671 = vpack.c.b16 %v3439, %v3435
        %v3672 = vpack.c.b16 %v3440, %v3436
        %v3673 = vpack.c.b16 %v3441, %v3437
        %v3674 = vpack.c.b16 %v3446, %v3442
        %v3675 = vpack.c.b16 %v3447, %v3443
        %v3676 = vpack.c.b16 %v3448, %v3444
        %v3677 = vpack.c.b16 %v3449, %v3445
        %v3678 = vpack.c.b16 %v3454, %v3450
        %v3679 = vpack.c.b16 %v3455, %v3451
        %v3680 = vpack.c.b16 %v3456, %v3452
        %v3681 = vpack.c.b16 %v3457, %v3453
        %v3682 = vpack.c.b16 %v3462, %v3458
        %v3683 = vpack.c.b16 %v3463, %v3459
        %v3684 = vpack.c.b16 %v3464, %v3460
        %v3685 = vpack.c.b16 %v3465, %v3461
        %v3686 = vpack.c.b16 %v3470, %v3466
        %v3687 = vpack.c.b16 %v3471, %v3467
        %v3688 = vpack.c.b16 %v3472, %v3468
        %v3689 = vpack.c.b16 %v3473, %v3469
        %v3690 = vpack.c.b16 %v3478, %v3474
        %v3691 = vpack.c.b16 %v3479, %v3475
        %v3692 = vpack.c.b16 %v3480, %v3476
        %v3693 = vpack.c.b16 %v3481, %v3477
        %v3694 = vpack.c.b16 %v3486, %v3482
        %v3695 = vpack.c.b16 %v3487, %v3483
        %v3696 = vpack.c.b16 %v3488, %v3484
        %v3697 = vpack.c.b16 %v3489, %v3485
        %v3698 = vpack.c.b16 %v3494, %v3490
        %v3699 = vpack.c.b16 %v3495, %v3491
        %v3700 = vpack.c.b16 %v3496, %v3492
        %v3701 = vpack.c.b16 %v3497, %v3493
        %v3702 = vpack.c.b16 %v3502, %v3498
        %v3703 = vpack.c.b16 %v3503, %v3499
        %v3704 = vpack.c.b16 %v3504, %v3500
        %v3705 = vpack.c.b16 %v3505, %v3501
        %v3706 = vpack.c.b16 %v3510, %v3506
        %v3707 = vpack.c.b16 %v3511, %v3507
        %v3708 = vpack.c.b16 %v3512, %v3508
        %v3709 = vpack.c.b16 %v3513, %v3509
        %v3710 = vpack.c.b16 %v3518, %v3514
        %v3711 = vpack.c.b16 %v3519, %v3515
        %v3712 = vpack.c.b16 %v3520, %v3516
        %v3713 = vpack.c.b16 %v3521, %v3517
        %v3714 = vpack.c.b16 %v3526, %v3522
        %v3715 = vpack.c.b16 %v3527, %v3523
        %v3716 = vpack.c.b16 %v3528, %v3524
        %v3717 = vpack.c.b16 %v3529, %v3525
        %v3718 = vpack.c.b16 %v3534, %v3530
        %v3719 = vpack.c.b16 %v3535, %v3531
        %v3720 = vpack.c.b16 %v3536, %v3532
        %v3721 = vpack.c.b16 %v3537, %v3533
        %v3722 = vpack.c.b16 %v3542, %v3538
        %v3723 = vpack.c.b16 %v3543, %v3539
        %v3724 = vpack.c.b16 %v3544, %v3540
        %v3725 = vpack.c.b16 %v3545, %v3541
        %v3726 = vpack.c.b16 %v3550, %v3546
        %v3727 = vpack.c.b16 %v3551, %v3547
        %v3728 = vpack.c.b16 %v3552, %v3548
        %v3729 = vpack.c.b16 %v3553, %v3549
        %v3730 = vpack.c.b16 %v3558, %v3554
        %v3731 = vpack.c.b16 %v3559, %v3555
        %v3732 = vpack.c.b16 %v3560, %v3556
        %v3733 = vpack.c.b16 %v3561, %v3557
        %v3734 = vpack.c.b16 %v3566, %v3562
        %v3735 = vpack.c.b16 %v3567, %v3563
        %v3736 = vpack.c.b16 %v3568, %v3564
        %v3737 = vpack.c.b16 %v3569, %v3565
        %v3738 = vpack.c.b16 %v3574, %v3570
        %v3739 = vpack.c.b16 %v3575, %v3571
        %v3740 = vpack.c.b16 %v3576, %v3572
        %v3741 = vpack.c.b16 %v3577, %v3573
        %v3742 = vpack.c.b16 %v3582, %v3578
        %v3743 = vpack.c.b16 %v3583, %v3579
        %v3744 = vpack.c.b16 %v3584, %v3580
        %v3745 = vpack.c.b16 %v3585, %v3581
        %v3746 = vpack.c.b16 %v3590, %v3586
        %v3747 = vpack.c.b16 %v3591, %v3587
        %v3748 = vpack.c.b16 %v3592, %v3588
        %v3749 = vpack.c.b16 %v3593, %v3589
        %v3750 = vpack.c.b16 %v3598, %v3594
        %v3751 = vpack.c.b16 %v3599, %v3595
        %v3752 = vpack.c.b16 %v3600, %v3596
        %v3753 = vpack.c.b16 %v3601, %v3597
        %v3754 = vpack.c.b16 %v3606, %v3602
        %v3755 = vpack.c.b16 %v3607, %v3603
        %v3756 = vpack.c.b16 %v3608, %v3604
        %v3757 = vpack.c.b16 %v3609, %v3605
        %v3758 = vpack.c.b16 %v3614, %v3610
        %v3759 = vpack.c.b16 %v3615, %v3611
        %v3760 = vpack.c.b16 %v3616, %v3612
        %v3761 = vpack.c.b16 %v3617, %v3613
        %v3762 = vpack.c.b16 %v3622, %v3618
        %v3763 = vpack.c.b16 %v3623, %v3619
        %v3764 = vpack.c.b16 %v3624, %v3620
        %v3765 = vpack.c.b16 %v3625, %v3621
        %v3766 = vpack.c.b16 %v3630, %v3626
        %v3767 = vpack.c.b16 %v3631, %v3627
        %v3768 = vpack.c.b16 %v3632, %v3628
        %v3769 = vpack.c.b16 %v3633, %v3629
        %v3770 = vpack.c.b16 %v3638, %v3634
        %v3771 = vpack.c.b16 %v3639, %v3635
        %v3772 = vpack.c.b16 %v3640, %v3636
        %v3773 = vpack.c.b16 %v3641, %v3637
        %v3774 = vpack.c.b16 %v3646, %v3642
        %v3775 = vpack.c.b16 %v3647, %v3643
        %v3776 = vpack.c.b16 %v3648, %v3644
        %v3777 = vpack.c.b16 %v3649, %v3645
        %3906 = vmatprep.subr.bf16.mxu0 %v3651
        %3907 = vmatpush1.bf16.msra.mxu0 %v3650
        %3908 = vmatprep.subr.bf16.mxu0 %v3655
        %3909 = vmatpush1.bf16.msra.mxu0 %v3654
        %3910 = vmatprep.subr.bf16.mxu0 %v3659
        %3911 = vmatpush1.bf16.msra.mxu0 %v3658
        %3912 = vmatprep.subr.bf16.mxu0 %v3663
        %3913 = vmatpush1.bf16.msra.mxu0 %v3662
        %3914 = vmatprep.subr.bf16.mxu0 %v3667
        %3915 = vmatpush1.bf16.msra.mxu0 %v3666
        %3916 = vmatprep.subr.bf16.mxu0 %v3671
        %3917 = vmatpush1.bf16.msra.mxu0 %v3670
        %3918 = vmatprep.subr.bf16.mxu0 %v3675
        %3919 = vmatpush1.bf16.msra.mxu0 %v3674
        %3920 = vmatprep.subr.bf16.mxu0 %v3679
        %3921 = vmatpush1.bf16.msra.mxu0 %v3678
        %3922 = vmatprep.subr.bf16.mxu0 %v3683
        %3923 = vmatpush1.bf16.msra.mxu0 %v3682
        %3924 = vmatprep.subr.bf16.mxu0 %v3687
        %3925 = vmatpush1.bf16.msra.mxu0 %v3686
        %3926 = vmatprep.subr.bf16.mxu0 %v3691
        %3927 = vmatpush1.bf16.msra.mxu0 %v3690
        %3928 = vmatprep.subr.bf16.mxu0 %v3695
        %3929 = vmatpush1.bf16.msra.mxu0 %v3694
        %3930 = vmatprep.subr.bf16.mxu0 %v3699
        %3931 = vmatpush1.bf16.msra.mxu0 %v3698
        %3932 = vmatprep.subr.bf16.mxu0 %v3703
        %3933 = vmatpush1.bf16.msra.mxu0 %v3702
        %3934 = vmatprep.subr.bf16.mxu0 %v3707
        %3935 = vmatpush1.bf16.msra.mxu0 %v3706
        %3936 = vmatprep.subr.bf16.mxu0 %v3711
        %3937 = vmatpush1.bf16.msra.mxu0 %v3710
        %3938 = vmatprep.mubr.bf16.mxu0 %v3113
        %3939 = vmatmul.mubr.bf16.gmra.mrb[0].mxu0 %v3112
        %v3940 = vpop.f32.mrb[0].mxu0
        %v3941 = vadd.f32 %v3249, %v3940
        %v3942 = vpop.f32.mrb[0].mxu0
        %v3943 = vadd.f32 %v3253, %v3942
        %v3944 = vpop.f32.mrb[0].mxu0
        %v3945 = vadd.f32 %v3249, %v3944
        %v3946 = vpop.f32.mrb[0].mxu0
        %v3947 = vadd.f32 %v3253, %v3946
        %3948 = vdwg.mxu0
        %3949 = vmatprep.subr.bf16.mxu0 %v3715
        %3950 = vmatpush1.bf16.msra.mxu0 %v3714
        %3951 = vmatprep.subr.bf16.mxu0 %v3719
        %3952 = vmatpush1.bf16.msra.mxu0 %v3718
        %3953 = vmatprep.subr.bf16.mxu0 %v3723
        %3954 = vmatpush1.bf16.msra.mxu0 %v3722
        %3955 = vmatprep.subr.bf16.mxu0 %v3727
        %3956 = vmatpush1.bf16.msra.mxu0 %v3726
        %3957 = vmatprep.subr.bf16.mxu0 %v3731
        %3958 = vmatpush1.bf16.msra.mxu0 %v3730
        %3959 = vmatprep.subr.bf16.mxu0 %v3735
        %3960 = vmatpush1.bf16.msra.mxu0 %v3734
        %3961 = vmatprep.subr.bf16.mxu0 %v3739
        %3962 = vmatpush1.bf16.msra.mxu0 %v3738
        %3963 = vmatprep.subr.bf16.mxu0 %v3743
        %3964 = vmatpush1.bf16.msra.mxu0 %v3742
        %3965 = vmatprep.subr.bf16.mxu0 %v3747
        %3966 = vmatpush1.bf16.msra.mxu0 %v3746
        %3967 = vmatprep.subr.bf16.mxu0 %v3751
        %3968 = vmatpush1.bf16.msra.mxu0 %v3750
        %3969 = vmatprep.subr.bf16.mxu0 %v3755
        %3970 = vmatpush1.bf16.msra.mxu0 %v3754
        %3971 = vmatprep.subr.bf16.mxu0 %v3759
        %3972 = vmatpush1.bf16.msra.mxu0 %v3758
        %3973 = vmatprep.subr.bf16.mxu0 %v3763
        %3974 = vmatpush1.bf16.msra.mxu0 %v3762
        %3975 = vmatprep.subr.bf16.mxu0 %v3767
        %3976 = vmatpush1.bf16.msra.mxu0 %v3766
        %3977 = vmatprep.subr.bf16.mxu0 %v3771
        %3978 = vmatpush1.bf16.msra.mxu0 %v3770
        %3979 = vmatprep.subr.bf16.mxu0 %v3775
        %3980 = vmatpush1.bf16.msra.mxu0 %v3774
        %3981 = vmatprep.mubr.bf16.mxu0 %v3115
        %3982 = vmatmul.mubr.bf16.gmra.mrb[0].mxu0 %v3114
        %v3983 = vpop.f32.mrb[0].mxu0
        %v3984 = vadd.f32 %v3941, %v3983
        %v3985 = vpop.f32.mrb[0].mxu0
        %v3986 = vadd.f32 %v3943, %v3985
        %v3987 = vpop.f32.mrb[0].mxu0
        %v3988 = vadd.f32 %v3945, %v3987
        %v3989 = vpop.f32.mrb[0].mxu0
        %v3990 = vadd.f32 %v3947, %v3989
        %3991 = vdwg.mxu0
        %3992 = vmatprep.subr.bf16.mxu0 %v3653
        %3993 = vmatpush1.bf16.msra.mxu0 %v3652
        %3994 = vmatprep.subr.bf16.mxu0 %v3657
        %3995 = vmatpush1.bf16.msra.mxu0 %v3656
        %3996 = vmatprep.subr.bf16.mxu0 %v3661
        %3997 = vmatpush1.bf16.msra.mxu0 %v3660
        %3998 = vmatprep.subr.bf16.mxu0 %v3665
        %3999 = vmatpush1.bf16.msra.mxu0 %v3664
        %4000 = vmatprep.subr.bf16.mxu0 %v3669
        %4001 = vmatpush1.bf16.msra.mxu0 %v3668
        %4002 = vmatprep.subr.bf16.mxu0 %v3673
        %4003 = vmatpush1.bf16.msra.mxu0 %v3672
        %4004 = vmatprep.subr.bf16.mxu0 %v3677
        %4005 = vmatpush1.bf16.msra.mxu0 %v3676
        %4006 = vmatprep.subr.bf16.mxu0 %v3681
        %4007 = vmatpush1.bf16.msra.mxu0 %v3680
        %4008 = vmatprep.subr.bf16.mxu0 %v3685
        %4009 = vmatpush1.bf16.msra.mxu0 %v3684
        %4010 = vmatprep.subr.bf16.mxu0 %v3689
        %4011 = vmatpush1.bf16.msra.mxu0 %v3688
        %4012 = vmatprep.subr.bf16.mxu0 %v3693
        %4013 = vmatpush1.bf16.msra.mxu0 %v3692
        %4014 = vmatprep.subr.bf16.mxu0 %v3697
        %4015 = vmatpush1.bf16.msra.mxu0 %v3696
        %4016 = vmatprep.subr.bf16.mxu0 %v3701
        %4017 = vmatpush1.bf16.msra.mxu0 %v3700
        %4018 = vmatprep.subr.bf16.mxu0 %v3705
        %4019 = vmatpush1.bf16.msra.mxu0 %v3704
        %4020 = vmatprep.subr.bf16.mxu0 %v3709
        %4021 = vmatpush1.bf16.msra.mxu0 %v3708
        %4022 = vmatprep.subr.bf16.mxu0 %v3713
        %4023 = vmatpush1.bf16.msra.mxu0 %v3712
        %4024 = vmatprep.mubr.bf16.mxu0 %v3113
        %4025 = vmatmul.mubr.bf16.gmra.mrb[0].mxu0 %v3112
        %v4026 = vpop.f32.mrb[0].mxu0
        %v4027 = vadd.f32 %v3257, %v4026
        %v4028 = vpop.f32.mrb[0].mxu0
        %v4029 = vadd.f32 %v3261, %v4028
        %v4030 = vpop.f32.mrb[0].mxu0
        %v4031 = vadd.f32 %v3257, %v4030
        %v4032 = vpop.f32.mrb[0].mxu0
        %v4033 = vadd.f32 %v3261, %v4032
        %4034 = vdwg.mxu0
        %4035 = vmatprep.subr.bf16.mxu0 %v3717
        %4036 = vmatpush1.bf16.msra.mxu0 %v3716
        %4037 = vmatprep.subr.bf16.mxu0 %v3721
        %4038 = vmatpush1.bf16.msra.mxu0 %v3720
        %4039 = vmatprep.subr.bf16.mxu0 %v3725
        %4040 = vmatpush1.bf16.msra.mxu0 %v3724
        %4041 = vmatprep.subr.bf16.mxu0 %v3729
        %4042 = vmatpush1.bf16.msra.mxu0 %v3728
        %4043 = vmatprep.subr.bf16.mxu0 %v3733
        %4044 = vmatpush1.bf16.msra.mxu0 %v3732
        %4045 = vmatprep.subr.bf16.mxu0 %v3737
        %4046 = vmatpush1.bf16.msra.mxu0 %v3736
        %4047 = vmatprep.subr.bf16.mxu0 %v3741
        %4048 = vmatpush1.bf16.msra.mxu0 %v3740
        %4049 = vmatprep.subr.bf16.mxu0 %v3745
        %4050 = vmatpush1.bf16.msra.mxu0 %v3744
        %4051 = vmatprep.subr.bf16.mxu0 %v3749
        %4052 = vmatpush1.bf16.msra.mxu0 %v3748
        %4053 = vmatprep.subr.bf16.mxu0 %v3753
        %4054 = vmatpush1.bf16.msra.mxu0 %v3752
        %4055 = vmatprep.subr.bf16.mxu0 %v3757
        %4056 = vmatpush1.bf16.msra.mxu0 %v3756
        %4057 = vmatprep.subr.bf16.mxu0 %v3761
        %4058 = vmatpush1.bf16.msra.mxu0 %v3760
        %4059 = vmatprep.subr.bf16.mxu0 %v3765
        %4060 = vmatpush1.bf16.msra.mxu0 %v3764
        %4061 = vmatprep.subr.bf16.mxu0 %v3769
        %4062 = vmatpush1.bf16.msra.mxu0 %v3768
        %4063 = vmatprep.subr.bf16.mxu0 %v3773
        %4064 = vmatpush1.bf16.msra.mxu0 %v3772
        %4065 = vmatprep.subr.bf16.mxu0 %v3777
        %4066 = vmatpush1.bf16.msra.mxu0 %v3776
        %4067 = vmatprep.mubr.bf16.mxu0 %v3115
        %4068 = vmatmul.mubr.bf16.gmra.mrb[0].mxu0 %v3114
        %v4069 = vpop.f32.mrb[0].mxu0
        %v4070 = vadd.f32 %v4027, %v4069
        %v4071 = vpop.f32.mrb[0].mxu0
        %v4072 = vadd.f32 %v4029, %v4071
        %v4073 = vpop.f32.mrb[0].mxu0
        %v4074 = vadd.f32 %v4031, %v4073
        %v4075 = vpop.f32.mrb[0].mxu0
        %v4076 = vadd.f32 %v4033, %v4075
        %4077 = vdwg.mxu0
        %v4078 = vpack.c.bf16 %v3988, %v3984
        %v4079 = vpack.c.bf16 %v3990, %v3986
        %v4080 = vpack.c.bf16 %v4074, %v4070
        %v4081 = vpack.c.bf16 %v4076, %v4072
        %4082 = vst [vmem:[#allocation4] sm:$0xff] %v4078
        %4083 = vst [vmem:[#allocation4 + $0x8] sm:$0xff] %v4079
        %4084 = vst [vmem:[#allocation4 + $0x10] sm:$0xff] %v4080
        %4085 = vst [vmem:[#allocation4 + $0x18] sm:$0xff] %v4081
        %v4086 = vld [vmem:[#allocation3] sm:$0xff]
        %v4087 = vld [vmem:[#allocation3 + $0x20] sm:$0xff]
        %v4088 = vld [vmem:[#allocation4] sm:$0xff]
        %4089 = vmatprep.subr.bf16.mxu0 0
        %4090 = vmatpush1.bf16.xpose.msra.mxu0 %v4087
        %4091 = vmatprep.subr.bf16.mxu0 0
        %4092 = vmatpush1.bf16.xpose.msra.mxu0 0
        %4093 = vmatprep.subr.bf16.mxu0 0
        %4094 = vmatpush1.bf16.xpose.msra.mxu0 0
        %4095 = vmatprep.subr.bf16.mxu0 0
        %4096 = vmatpush1.bf16.xpose.msra.mxu0 0
        %4097 = vmatprep.subr.bf16.mxu0 0
        %4098 = vmatpush1.bf16.xpose.msra.mxu0 0
        %4099 = vmatprep.subr.bf16.mxu0 0
        %4100 = vmatpush1.bf16.xpose.msra.mxu0 0
        %4101 = vmatprep.subr.bf16.mxu0 0
        %4102 = vmatpush1.bf16.xpose.msra.mxu0 0
        %4103 = vmatprep.subr.bf16.mxu0 0
        %4104 = vmatpush1.bf16.xpose.msra.mxu0 0
        %4105 = vmatprep.subr.bf16.mxu0 0
        %4106 = vmatpush1.bf16.xpose.msra.mxu0 0
        %4107 = vmatprep.subr.bf16.mxu0 0
        %4108 = vmatpush1.bf16.xpose.msra.mxu0 0
        %4109 = vmatprep.subr.bf16.mxu0 0
        %4110 = vmatpush1.bf16.xpose.msra.mxu0 0
        %4111 = vmatprep.subr.bf16.mxu0 0
        %4112 = vmatpush1.bf16.xpose.msra.mxu0 0
        %4113 = vmatprep.subr.bf16.mxu0 0
        %4114 = vmatpush1.bf16.xpose.msra.mxu0 0
        %4115 = vmatprep.subr.bf16.mxu0 0
        %4116 = vmatpush1.bf16.xpose.msra.mxu0 0
        %4117 = vmatprep.subr.bf16.mxu0 0
        %4118 = vmatpush1.bf16.xpose.msra.mxu0 0
        %4119 = vmatprep.subr.bf16.mxu0 0
        %4120 = vmatpush1.bf16.xpose.msra.mxu0 0
        %4121 = vmatprep.mubr.bf16.mxu0 0
        %4122 = vmatmul.mubr.bf16.gmra.mrb[0].mxu0 %v4086
        %v4123 = vpop.f32.mrb[0].mxu0
        %v4124 = vadd.f32 0.0, %v4123
        %v4125 = vpop.f32.mrb[0].mxu0
        %v4126 = vpop.f32.mrb[0].mxu0
        %v4127 = vadd.f32 0.0, %v4126
        %v4128 = vpop.f32.mrb[0].mxu0
        %4129 = vdwg.mxu0
        %vm4130 = vcmask 130048
        %v4131 = vsel %vm4130, %v4124, -inf
        %4132 = vmax.xlane.f32.xlu0 %v4131
        %v4133 = vpop.xlane.xlu0 %4132
        %v4134 = vsel %vm4130, %v4127, -inf
        %4135 = vmax.xlane.f32.xlu0 %v4134
        %v4136 = vpop.xlane.xlu0 %4135
        %v4137 = vsub.f32 %v4124, %v4133
        %v4138 = vsub.f32 %v4127, %v4136
        %v4139 = vmul.f32 %v4137, 1.442695
        %v4140 = vpow.pop %v4139
        %v4141 = vmul.f32 %v4138, 1.442695
        %v4142 = vpow.pop %v4141
        %v4143 = vsel %vm4130, %v4140, 0.0
        %4144 = vadd.xlane.f32.xlu0 %v4143
        %v4145 = vpop.xlane.xlu0 %4144
        %v4146 = vsel %vm4130, %v4142, 0.0
        %4147 = vadd.xlane.f32.xlu0 %v4146
        %v4148 = vpop.xlane.xlu0 %4147
        %v4149 = vrcp.pop %v4145
        %v4150 = vrcp.pop %v4148
        %v4151 = vmul.f32 %v4140, %v4149
        %v4152 = vmul.f32 %v4142, %v4150
        %v4153 = vpack.c.bf16 %v4152, %v4151
        %v4155 = vsel %vm4130, %v4153, 0
        %4157 = vmatprep.subr.bf16.mxu0 0
        %4158 = vmatpush1.bf16.msra.mxu0 %v4088
        %4159 = vmatprep.subr.bf16.mxu0 0
        %4160 = vmatpush1.bf16.msra.mxu0 0
        %4161 = vmatprep.subr.bf16.mxu0 0
        %4162 = vmatpush1.bf16.msra.mxu0 0
        %4163 = vmatprep.subr.bf16.mxu0 0
        %4164 = vmatpush1.bf16.msra.mxu0 0
        %4165 = vmatprep.subr.bf16.mxu0 0
        %4166 = vmatpush1.bf16.msra.mxu0 0
        %4167 = vmatprep.subr.bf16.mxu0 0
        %4168 = vmatpush1.bf16.msra.mxu0 0
        %4169 = vmatprep.subr.bf16.mxu0 0
        %4170 = vmatpush1.bf16.msra.mxu0 0
        %4171 = vmatprep.subr.bf16.mxu0 0
        %4172 = vmatpush1.bf16.msra.mxu0 0
        %4173 = vmatprep.subr.bf16.mxu0 0
        %4174 = vmatpush1.bf16.msra.mxu0 0
        %4175 = vmatprep.subr.bf16.mxu0 0
        %4176 = vmatpush1.bf16.msra.mxu0 0
        %4177 = vmatprep.subr.bf16.mxu0 0
        %4178 = vmatpush1.bf16.msra.mxu0 0
        %4179 = vmatprep.subr.bf16.mxu0 0
        %4180 = vmatpush1.bf16.msra.mxu0 0
        %4181 = vmatprep.subr.bf16.mxu0 0
        %4182 = vmatpush1.bf16.msra.mxu0 0
        %4183 = vmatprep.subr.bf16.mxu0 0
        %4184 = vmatpush1.bf16.msra.mxu0 0
        %4185 = vmatprep.subr.bf16.mxu0 0
        %4186 = vmatpush1.bf16.msra.mxu0 0
        %4187 = vmatprep.subr.bf16.mxu0 0
        %4188 = vmatpush1.bf16.msra.mxu0 0
        %4189 = vmatprep.mubr.bf16.mxu0 0
        %4190 = vmatmul.mubr.bf16.gmra.mrb[0].mxu0 %v4155
        %v4191 = vpop.f32.mrb[0].mxu0
        %v4192 = vadd.f32 0.0, %v4191
        %v4193 = vpop.f32.mrb[0].mxu0
        %v4194 = vpop.f32.mrb[0].mxu0
        %v4195 = vadd.f32 0.0, %v4194
        %v4196 = vpop.f32.mrb[0].mxu0
        %4197 = vdwg.mxu0
        %v4198 = vpack.c.bf16 %v4195, %v4192
        %4199 = vst [vmem:[#allocation5] sm:$0xff] %v4198
        %v4200 = vld [vmem:[#allocation3 + $0x8] sm:$0xff]
        %v4201 = vld [vmem:[#allocation3 + $0x28] sm:$0xff]
        %v4202 = vld [vmem:[#allocation4 + $0x8] sm:$0xff]
        %4203 = vmatprep.subr.bf16.mxu0 0
        %4204 = vmatpush1.bf16.xpose.msra.mxu0 %v4201
        %4205 = vmatprep.subr.bf16.mxu0 0
        %4206 = vmatpush1.bf16.xpose.msra.mxu0 0
        %4207 = vmatprep.subr.bf16.mxu0 0
        %4208 = vmatpush1.bf16.xpose.msra.mxu0 0
        %4209 = vmatprep.subr.bf16.mxu0 0
        %4210 = vmatpush1.bf16.xpose.msra.mxu0 0
        %4211 = vmatprep.subr.bf16.mxu0 0
        %4212 = vmatpush1.bf16.xpose.msra.mxu0 0
        %4213 = vmatprep.subr.bf16.mxu0 0
        %4214 = vmatpush1.bf16.xpose.msra.mxu0 0
        %4215 = vmatprep.subr.bf16.mxu0 0
        %4216 = vmatpush1.bf16.xpose.msra.mxu0 0
        %4217 = vmatprep.subr.bf16.mxu0 0
        %4218 = vmatpush1.bf16.xpose.msra.mxu0 0
        %4219 = vmatprep.subr.bf16.mxu0 0
        %4220 = vmatpush1.bf16.xpose.msra.mxu0 0
        %4221 = vmatprep.subr.bf16.mxu0 0
        %4222 = vmatpush1.bf16.xpose.msra.mxu0 0
        %4223 = vmatprep.subr.bf16.mxu0 0
        %4224 = vmatpush1.bf16.xpose.msra.mxu0 0
        %4225 = vmatprep.subr.bf16.mxu0 0
        %4226 = vmatpush1.bf16.xpose.msra.mxu0 0
        %4227 = vmatprep.subr.bf16.mxu0 0
        %4228 = vmatpush1.bf16.xpose.msra.mxu0 0
        %4229 = vmatprep.subr.bf16.mxu0 0
        %4230 = vmatpush1.bf16.xpose.msra.mxu0 0
        %4231 = vmatprep.subr.bf16.mxu0 0
        %4232 = vmatpush1.bf16.xpose.msra.mxu0 0
        %4233 = vmatprep.subr.bf16.mxu0 0
        %4234 = vmatpush1.bf16.xpose.msra.mxu0 0
        %4235 = vmatprep.mubr.bf16.mxu0 0
        %4236 = vmatmul.mubr.bf16.gmra.mrb[0].mxu0 %v4200
        %v4237 = vpop.f32.mrb[0].mxu0
        %v4238 = vadd.f32 0.0, %v4237
        %v4239 = vpop.f32.mrb[0].mxu0
        %v4240 = vpop.f32.mrb[0].mxu0
        %v4241 = vadd.f32 0.0, %v4240
        %v4242 = vpop.f32.mrb[0].mxu0
        %4243 = vdwg.mxu0
        %v4244 = vsel %vm4130, %v4238, -inf
        %4245 = vmax.xlane.f32.xlu0 %v4244
        %v4246 = vpop.xlane.xlu0 %4245
        %v4247 = vsel %vm4130, %v4241, -inf
        %4248 = vmax.xlane.f32.xlu0 %v4247
        %v4249 = vpop.xlane.xlu0 %4248
        %v4250 = vsub.f32 %v4238, %v4246
        %v4251 = vsub.f32 %v4241, %v4249
        %v4252 = vmul.f32 %v4250, 1.442695
        %v4253 = vpow.pop %v4252
        %v4254 = vmul.f32 %v4251, 1.442695
        %v4255 = vpow.pop %v4254
        %v4256 = vsel %vm4130, %v4253, 0.0
        %4257 = vadd.xlane.f32.xlu0 %v4256
        %v4258 = vpop.xlane.xlu0 %4257
        %v4259 = vsel %vm4130, %v4255, 0.0
        %4260 = vadd.xlane.f32.xlu0 %v4259
        %v4261 = vpop.xlane.xlu0 %4260
        %v4262 = vrcp.pop %v4258
        %v4263 = vrcp.pop %v4261
        %v4264 = vmul.f32 %v4253, %v4262
        %v4265 = vmul.f32 %v4255, %v4263
        %v4266 = vpack.c.bf16 %v4265, %v4264
        %v4268 = vsel %vm4130, %v4266, 0
        %4270 = vmatprep.subr.bf16.mxu0 0
        %4271 = vmatpush1.bf16.msra.mxu0 %v4202
        %4272 = vmatprep.subr.bf16.mxu0 0
        %4273 = vmatpush1.bf16.msra.mxu0 0
        %4274 = vmatprep.subr.bf16.mxu0 0
        %4275 = vmatpush1.bf16.msra.mxu0 0
        %4276 = vmatprep.subr.bf16.mxu0 0
        %4277 = vmatpush1.bf16.msra.mxu0 0
        %4278 = vmatprep.subr.bf16.mxu0 0
        %4279 = vmatpush1.bf16.msra.mxu0 0
        %4280 = vmatprep.subr.bf16.mxu0 0
        %4281 = vmatpush1.bf16.msra.mxu0 0
        %4282 = vmatprep.subr.bf16.mxu0 0
        %4283 = vmatpush1.bf16.msra.mxu0 0
        %4284 = vmatprep.subr.bf16.mxu0 0
        %4285 = vmatpush1.bf16.msra.mxu0 0
        %4286 = vmatprep.subr.bf16.mxu0 0
        %4287 = vmatpush1.bf16.msra.mxu0 0
        %4288 = vmatprep.subr.bf16.mxu0 0
        %4289 = vmatpush1.bf16.msra.mxu0 0
        %4290 = vmatprep.subr.bf16.mxu0 0
        %4291 = vmatpush1.bf16.msra.mxu0 0
        %4292 = vmatprep.subr.bf16.mxu0 0
        %4293 = vmatpush1.bf16.msra.mxu0 0
        %4294 = vmatprep.subr.bf16.mxu0 0
        %4295 = vmatpush1.bf16.msra.mxu0 0
        %4296 = vmatprep.subr.bf16.mxu0 0
        %4297 = vmatpush1.bf16.msra.mxu0 0
        %4298 = vmatprep.subr.bf16.mxu0 0
        %4299 = vmatpush1.bf16.msra.mxu0 0
        %4300 = vmatprep.subr.bf16.mxu0 0
        %4301 = vmatpush1.bf16.msra.mxu0 0
        %4302 = vmatprep.mubr.bf16.mxu0 0
        %4303 = vmatmul.mubr.bf16.gmra.mrb[0].mxu0 %v4268
        %v4304 = vpop.f32.mrb[0].mxu0
        %v4305 = vadd.f32 0.0, %v4304
        %v4306 = vpop.f32.mrb[0].mxu0
        %v4307 = vpop.f32.mrb[0].mxu0
        %v4308 = vadd.f32 0.0, %v4307
        %v4309 = vpop.f32.mrb[0].mxu0
        %4310 = vdwg.mxu0
        %v4311 = vpack.c.bf16 %v4308, %v4305
        %4312 = vst [vmem:[#allocation5 + $0x8] sm:$0xff] %v4311
        %v4313 = vld [vmem:[#allocation3 + $0x10] sm:$0xff]
        %v4314 = vld [vmem:[#allocation3 + $0x30] sm:$0xff]
        %v4315 = vld [vmem:[#allocation4 + $0x10] sm:$0xff]
        %4316 = vmatprep.subr.bf16.mxu0 0
        %4317 = vmatpush1.bf16.xpose.msra.mxu0 %v4314
        %4318 = vmatprep.subr.bf16.mxu0 0
        %4319 = vmatpush1.bf16.xpose.msra.mxu0 0
        %4320 = vmatprep.subr.bf16.mxu0 0
        %4321 = vmatpush1.bf16.xpose.msra.mxu0 0
        %4322 = vmatprep.subr.bf16.mxu0 0
        %4323 = vmatpush1.bf16.xpose.msra.mxu0 0
        %4324 = vmatprep.subr.bf16.mxu0 0
        %4325 = vmatpush1.bf16.xpose.msra.mxu0 0
        %4326 = vmatprep.subr.bf16.mxu0 0
        %4327 = vmatpush1.bf16.xpose.msra.mxu0 0
        %4328 = vmatprep.subr.bf16.mxu0 0
        %4329 = vmatpush1.bf16.xpose.msra.mxu0 0
        %4330 = vmatprep.subr.bf16.mxu0 0
        %4331 = vmatpush1.bf16.xpose.msra.mxu0 0
        %4332 = vmatprep.subr.bf16.mxu0 0
        %4333 = vmatpush1.bf16.xpose.msra.mxu0 0
        %4334 = vmatprep.subr.bf16.mxu0 0
        %4335 = vmatpush1.bf16.xpose.msra.mxu0 0
        %4336 = vmatprep.subr.bf16.mxu0 0
        %4337 = vmatpush1.bf16.xpose.msra.mxu0 0
        %4338 = vmatprep.subr.bf16.mxu0 0
        %4339 = vmatpush1.bf16.xpose.msra.mxu0 0
        %4340 = vmatprep.subr.bf16.mxu0 0
        %4341 = vmatpush1.bf16.xpose.msra.mxu0 0
        %4342 = vmatprep.subr.bf16.mxu0 0
        %4343 = vmatpush1.bf16.xpose.msra.mxu0 0
        %4344 = vmatprep.subr.bf16.mxu0 0
        %4345 = vmatpush1.bf16.xpose.msra.mxu0 0
        %4346 = vmatprep.subr.bf16.mxu0 0
        %4347 = vmatpush1.bf16.xpose.msra.mxu0 0
        %4348 = vmatprep.mubr.bf16.mxu0 0
        %4349 = vmatmul.mubr.bf16.gmra.mrb[0].mxu0 %v4313
        %v4350 = vpop.f32.mrb[0].mxu0
        %v4351 = vadd.f32 0.0, %v4350
        %v4352 = vpop.f32.mrb[0].mxu0
        %v4353 = vpop.f32.mrb[0].mxu0
        %v4354 = vadd.f32 0.0, %v4353
        %v4355 = vpop.f32.mrb[0].mxu0
        %4356 = vdwg.mxu0
        %v4357 = vsel %vm4130, %v4351, -inf
        %4358 = vmax.xlane.f32.xlu0 %v4357
        %v4359 = vpop.xlane.xlu0 %4358
        %v4360 = vsel %vm4130, %v4354, -inf
        %4361 = vmax.xlane.f32.xlu0 %v4360
        %v4362 = vpop.xlane.xlu0 %4361
        %v4363 = vsub.f32 %v4351, %v4359
        %v4364 = vsub.f32 %v4354, %v4362
        %v4365 = vmul.f32 %v4363, 1.442695
        %v4366 = vpow.pop %v4365
        %v4367 = vmul.f32 %v4364, 1.442695
        %v4368 = vpow.pop %v4367
        %v4369 = vsel %vm4130, %v4366, 0.0
        %4370 = vadd.xlane.f32.xlu0 %v4369
        %v4371 = vpop.xlane.xlu0 %4370
        %v4372 = vsel %vm4130, %v4368, 0.0
        %4373 = vadd.xlane.f32.xlu0 %v4372
        %v4374 = vpop.xlane.xlu0 %4373
        %v4375 = vrcp.pop %v4371
        %v4376 = vrcp.pop %v4374
        %v4377 = vmul.f32 %v4366, %v4375
        %v4378 = vmul.f32 %v4368, %v4376
        %v4379 = vpack.c.bf16 %v4378, %v4377
        %v4381 = vsel %vm4130, %v4379, 0
        %4383 = vmatprep.subr.bf16.mxu0 0
        %4384 = vmatpush1.bf16.msra.mxu0 %v4315
        %4385 = vmatprep.subr.bf16.mxu0 0
        %4386 = vmatpush1.bf16.msra.mxu0 0
        %4387 = vmatprep.subr.bf16.mxu0 0
        %4388 = vmatpush1.bf16.msra.mxu0 0
        %4389 = vmatprep.subr.bf16.mxu0 0
        %4390 = vmatpush1.bf16.msra.mxu0 0
        %4391 = vmatprep.subr.bf16.mxu0 0
        %4392 = vmatpush1.bf16.msra.mxu0 0
        %4393 = vmatprep.subr.bf16.mxu0 0
        %4394 = vmatpush1.bf16.msra.mxu0 0
        %4395 = vmatprep.subr.bf16.mxu0 0
        %4396 = vmatpush1.bf16.msra.mxu0 0
        %4397 = vmatprep.subr.bf16.mxu0 0
        %4398 = vmatpush1.bf16.msra.mxu0 0
        %4399 = vmatprep.subr.bf16.mxu0 0
        %4400 = vmatpush1.bf16.msra.mxu0 0
        %4401 = vmatprep.subr.bf16.mxu0 0
        %4402 = vmatpush1.bf16.msra.mxu0 0
        %4403 = vmatprep.subr.bf16.mxu0 0
        %4404 = vmatpush1.bf16.msra.mxu0 0
        %4405 = vmatprep.subr.bf16.mxu0 0
        %4406 = vmatpush1.bf16.msra.mxu0 0
        %4407 = vmatprep.subr.bf16.mxu0 0
        %4408 = vmatpush1.bf16.msra.mxu0 0
        %4409 = vmatprep.subr.bf16.mxu0 0
        %4410 = vmatpush1.bf16.msra.mxu0 0
        %4411 = vmatprep.subr.bf16.mxu0 0
        %4412 = vmatpush1.bf16.msra.mxu0 0
        %4413 = vmatprep.subr.bf16.mxu0 0
        %4414 = vmatpush1.bf16.msra.mxu0 0
        %4415 = vmatprep.mubr.bf16.mxu0 0
        %4416 = vmatmul.mubr.bf16.gmra.mrb[0].mxu0 %v4381
        %v4417 = vpop.f32.mrb[0].mxu0
        %v4418 = vadd.f32 0.0, %v4417
        %v4419 = vpop.f32.mrb[0].mxu0
        %v4420 = vpop.f32.mrb[0].mxu0
        %v4421 = vadd.f32 0.0, %v4420
        %v4422 = vpop.f32.mrb[0].mxu0
        %4423 = vdwg.mxu0
        %v4424 = vpack.c.bf16 %v4421, %v4418
        %4425 = vst [vmem:[#allocation5 + $0x10] sm:$0xff] %v4424
        %v4426 = vld [vmem:[#allocation3 + $0x18] sm:$0xff]
        %v4427 = vld [vmem:[#allocation3 + $0x38] sm:$0xff]
        %v4428 = vld [vmem:[#allocation4 + $0x18] sm:$0xff]
        %4429 = vmatprep.subr.bf16.mxu0 0
        %4430 = vmatpush1.bf16.xpose.msra.mxu0 %v4427
        %4431 = vmatprep.subr.bf16.mxu0 0
        %4432 = vmatpush1.bf16.xpose.msra.mxu0 0
        %4433 = vmatprep.subr.bf16.mxu0 0
        %4434 = vmatpush1.bf16.xpose.msra.mxu0 0
        %4435 = vmatprep.subr.bf16.mxu0 0
        %4436 = vmatpush1.bf16.xpose.msra.mxu0 0
        %4437 = vmatprep.subr.bf16.mxu0 0
        %4438 = vmatpush1.bf16.xpose.msra.mxu0 0
        %4439 = vmatprep.subr.bf16.mxu0 0
        %4440 = vmatpush1.bf16.xpose.msra.mxu0 0
        %4441 = vmatprep.subr.bf16.mxu0 0
        %4442 = vmatpush1.bf16.xpose.msra.mxu0 0
        %4443 = vmatprep.subr.bf16.mxu0 0
        %4444 = vmatpush1.bf16.xpose.msra.mxu0 0
        %4445 = vmatprep.subr.bf16.mxu0 0
        %4446 = vmatpush1.bf16.xpose.msra.mxu0 0
        %4447 = vmatprep.subr.bf16.mxu0 0
        %4448 = vmatpush1.bf16.xpose.msra.mxu0 0
        %4449 = vmatprep.subr.bf16.mxu0 0
        %4450 = vmatpush1.bf16.xpose.msra.mxu0 0
        %4451 = vmatprep.subr.bf16.mxu0 0
        %4452 = vmatpush1.bf16.xpose.msra.mxu0 0
        %4453 = vmatprep.subr.bf16.mxu0 0
        %4454 = vmatpush1.bf16.xpose.msra.mxu0 0
        %4455 = vmatprep.subr.bf16.mxu0 0
        %4456 = vmatpush1.bf16.xpose.msra.mxu0 0
        %4457 = vmatprep.subr.bf16.mxu0 0
        %4458 = vmatpush1.bf16.xpose.msra.mxu0 0
        %4459 = vmatprep.subr.bf16.mxu0 0
        %4460 = vmatpush1.bf16.xpose.msra.mxu0 0
        %4461 = vmatprep.mubr.bf16.mxu0 0
        %4462 = vmatmul.mubr.bf16.gmra.mrb[0].mxu0 %v4426
        %v4463 = vpop.f32.mrb[0].mxu0
        %v4464 = vadd.f32 0.0, %v4463
        %v4465 = vpop.f32.mrb[0].mxu0
        %v4466 = vpop.f32.mrb[0].mxu0
        %v4467 = vadd.f32 0.0, %v4466
        %v4468 = vpop.f32.mrb[0].mxu0
        %4469 = vdwg.mxu0
        %v4470 = vsel %vm4130, %v4464, -inf
        %4471 = vmax.xlane.f32.xlu0 %v4470
        %v4472 = vpop.xlane.xlu0 %4471
        %v4473 = vsel %vm4130, %v4467, -inf
        %4474 = vmax.xlane.f32.xlu0 %v4473
        %v4475 = vpop.xlane.xlu0 %4474
        %v4476 = vsub.f32 %v4464, %v4472
        %v4477 = vsub.f32 %v4467, %v4475
        %v4478 = vmul.f32 %v4476, 1.442695
        %v4479 = vpow.pop %v4478
        %v4480 = vmul.f32 %v4477, 1.442695
        %v4481 = vpow.pop %v4480
        %v4482 = vsel %vm4130, %v4479, 0.0
        %4483 = vadd.xlane.f32.xlu0 %v4482
        %v4484 = vpop.xlane.xlu0 %4483
        %v4485 = vsel %vm4130, %v4481, 0.0
        %4486 = vadd.xlane.f32.xlu0 %v4485
        %v4487 = vpop.xlane.xlu0 %4486
        %v4488 = vrcp.pop %v4484
        %v4489 = vrcp.pop %v4487
        %v4490 = vmul.f32 %v4479, %v4488
        %v4491 = vmul.f32 %v4481, %v4489
        %v4492 = vpack.c.bf16 %v4491, %v4490
        %v4494 = vsel %vm4130, %v4492, 0
        %4496 = vmatprep.subr.bf16.mxu0 0
        %4497 = vmatpush1.bf16.msra.mxu0 %v4428
        %4498 = vmatprep.subr.bf16.mxu0 0
        %4499 = vmatpush1.bf16.msra.mxu0 0
        %4500 = vmatprep.subr.bf16.mxu0 0
        %4501 = vmatpush1.bf16.msra.mxu0 0
        %4502 = vmatprep.subr.bf16.mxu0 0
        %4503 = vmatpush1.bf16.msra.mxu0 0
        %4504 = vmatprep.subr.bf16.mxu0 0
        %4505 = vmatpush1.bf16.msra.mxu0 0
        %4506 = vmatprep.subr.bf16.mxu0 0
        %4507 = vmatpush1.bf16.msra.mxu0 0
        %4508 = vmatprep.subr.bf16.mxu0 0
        %4509 = vmatpush1.bf16.msra.mxu0 0
        %4510 = vmatprep.subr.bf16.mxu0 0
        %4511 = vmatpush1.bf16.msra.mxu0 0
        %4512 = vmatprep.subr.bf16.mxu0 0
        %4513 = vmatpush1.bf16.msra.mxu0 0
        %4514 = vmatprep.subr.bf16.mxu0 0
        %4515 = vmatpush1.bf16.msra.mxu0 0
        %4516 = vmatprep.subr.bf16.mxu0 0
        %4517 = vmatpush1.bf16.msra.mxu0 0
        %4518 = vmatprep.subr.bf16.mxu0 0
        %4519 = vmatpush1.bf16.msra.mxu0 0
        %4520 = vmatprep.subr.bf16.mxu0 0
        %4521 = vmatpush1.bf16.msra.mxu0 0
        %4522 = vmatprep.subr.bf16.mxu0 0
        %4523 = vmatpush1.bf16.msra.mxu0 0
        %4524 = vmatprep.subr.bf16.mxu0 0
        %4525 = vmatpush1.bf16.msra.mxu0 0
        %4526 = vmatprep.subr.bf16.mxu0 0
        %4527 = vmatpush1.bf16.msra.mxu0 0
        %4528 = vmatprep.mubr.bf16.mxu0 0
        %4529 = vmatmul.mubr.bf16.gmra.mrb[0].mxu0 %v4494
        %v4530 = vpop.f32.mrb[0].mxu0
        %v4531 = vadd.f32 0.0, %v4530
        %v4532 = vpop.f32.mrb[0].mxu0
        %v4533 = vpop.f32.mrb[0].mxu0
        %v4534 = vadd.f32 0.0, %v4533
        %v4535 = vpop.f32.mrb[0].mxu0
        %4536 = vdwg.mxu0
        %v4537 = vpack.c.bf16 %v4534, %v4531
        %4538 = vst [vmem:[#allocation5 + $0x18] sm:$0xff] %v4537
        %v4539 = vld [vmem:[#allocation5] sm:$0xff]
        %v4540 = vld [vmem:[#allocation5 + $0x8] sm:$0xff]
        %v4541 = vld [vmem:[#allocation5 + $0x10] sm:$0xff]
        %v4542 = vld [vmem:[#allocation5 + $0x18] sm:$0xff]
        %v4543 = vld [vmem:[%s914] sm:$0xff]
        %v4544 = vld [vmem:[%s914 + $0x8] sm:$0xff]
        %v4545 = vld [vmem:[%s914 + $0x10] sm:$0xff]
        %v4546 = vld [vmem:[%s914 + $0x18] sm:$0xff]
        %v4547 = vld [vmem:[%s914 + $0x20] sm:$0xff]
        %v4548 = vld [vmem:[%s914 + $0x28] sm:$0xff]
        %v4549 = vld [vmem:[%s914 + $0x30] sm:$0xff]
        %v4550 = vld [vmem:[%s914 + $0x38] sm:$0xff]
        %v4551 = vld [vmem:[%s914 + $0x40] sm:$0xff]
        %v4552 = vld [vmem:[%s914 + $0x48] sm:$0xff]
        %v4553 = vld [vmem:[%s914 + $0x50] sm:$0xff]
        %v4554 = vld [vmem:[%s914 + $0x58] sm:$0xff]
        %v4555 = vld [vmem:[%s914 + $0x60] sm:$0xff]
        %v4556 = vld [vmem:[%s914 + $0x68] sm:$0xff]
        %v4557 = vld [vmem:[%s914 + $0x70] sm:$0xff]
        %v4558 = vld [vmem:[%s914 + $0x78] sm:$0xff]
        %v4559 = vld [vmem:[%s914 + $0x80] sm:$0xff]
        %v4560 = vld [vmem:[%s914 + $0x88] sm:$0xff]
        %v4561 = vld [vmem:[%s914 + $0x90] sm:$0xff]
        %v4562 = vld [vmem:[%s914 + $0x98] sm:$0xff]
        %v4563 = vld [vmem:[%s914 + $0xa0] sm:$0xff]
        %v4564 = vld [vmem:[%s914 + $0xa8] sm:$0xff]
        %v4565 = vld [vmem:[%s914 + $0xb0] sm:$0xff]
        %v4566 = vld [vmem:[%s914 + $0xb8] sm:$0xff]
        %v4567 = vld [vmem:[%s914 + $0xc0] sm:$0xff]
        %v4568 = vld [vmem:[%s914 + $0xc8] sm:$0xff]
        %v4569 = vld [vmem:[%s914 + $0xd0] sm:$0xff]
        %v4570 = vld [vmem:[%s914 + $0xd8] sm:$0xff]
        %v4571 = vld [vmem:[%s914 + $0xe0] sm:$0xff]
        %v4572 = vld [vmem:[%s914 + $0xe8] sm:$0xff]
        %v4573 = vld [vmem:[%s914 + $0xf0] sm:$0xff]
        %v4574 = vld [vmem:[%s914 + $0xf8] sm:$0xff]
        %v4575 = vld [vmem:[%s914 + $0x100] sm:$0xff]
        %v4576 = vld [vmem:[%s914 + $0x108] sm:$0xff]
        %v4577 = vld [vmem:[%s914 + $0x110] sm:$0xff]
        %v4578 = vld [vmem:[%s914 + $0x118] sm:$0xff]
        %v4579 = vld [vmem:[%s914 + $0x120] sm:$0xff]
        %v4580 = vld [vmem:[%s914 + $0x128] sm:$0xff]
        %v4581 = vld [vmem:[%s914 + $0x130] sm:$0xff]
        %v4582 = vld [vmem:[%s914 + $0x138] sm:$0xff]
        %v4583 = vld [vmem:[%s914 + $0x140] sm:$0xff]
        %v4584 = vld [vmem:[%s914 + $0x148] sm:$0xff]
        %v4585 = vld [vmem:[%s914 + $0x150] sm:$0xff]
        %v4586 = vld [vmem:[%s914 + $0x158] sm:$0xff]
        %v4587 = vld [vmem:[%s914 + $0x160] sm:$0xff]
        %v4588 = vld [vmem:[%s914 + $0x168] sm:$0xff]
        %v4589 = vld [vmem:[%s914 + $0x170] sm:$0xff]
        %v4590 = vld [vmem:[%s914 + $0x178] sm:$0xff]
        %v4591 = vld [vmem:[%s914 + $0x180] sm:$0xff]
        %v4592 = vld [vmem:[%s914 + $0x188] sm:$0xff]
        %v4593 = vld [vmem:[%s914 + $0x190] sm:$0xff]
        %v4594 = vld [vmem:[%s914 + $0x198] sm:$0xff]
        %v4595 = vld [vmem:[%s914 + $0x1a0] sm:$0xff]
        %v4596 = vld [vmem:[%s914 + $0x1a8] sm:$0xff]
        %v4597 = vld [vmem:[%s914 + $0x1b0] sm:$0xff]
        %v4598 = vld [vmem:[%s914 + $0x1b8] sm:$0xff]
        %v4599 = vld [vmem:[%s914 + $0x1c0] sm:$0xff]
        %v4600 = vld [vmem:[%s914 + $0x1c8] sm:$0xff]
        %v4601 = vld [vmem:[%s914 + $0x1d0] sm:$0xff]
        %v4602 = vld [vmem:[%s914 + $0x1d8] sm:$0xff]
        %v4603 = vld [vmem:[%s914 + $0x1e0] sm:$0xff]
        %v4604 = vld [vmem:[%s914 + $0x1e8] sm:$0xff]
        %v4605 = vld [vmem:[%s914 + $0x1f0] sm:$0xff]
        %v4606 = vld [vmem:[%s914 + $0x1f8] sm:$0xff]
        %v4607 = vld [vmem:[%s914 + $0x200] sm:$0xff]
        %v4608 = vld [vmem:[%s914 + $0x208] sm:$0xff]
        %v4609 = vld [vmem:[%s914 + $0x210] sm:$0xff]
        %v4610 = vld [vmem:[%s914 + $0x218] sm:$0xff]
        %v4611 = vld [vmem:[%s914 + $0x220] sm:$0xff]
        %v4612 = vld [vmem:[%s914 + $0x228] sm:$0xff]
        %v4613 = vld [vmem:[%s914 + $0x230] sm:$0xff]
        %v4614 = vld [vmem:[%s914 + $0x238] sm:$0xff]
        %v4615 = vld [vmem:[%s914 + $0x240] sm:$0xff]
        %v4616 = vld [vmem:[%s914 + $0x248] sm:$0xff]
        %v4617 = vld [vmem:[%s914 + $0x250] sm:$0xff]
        %v4618 = vld [vmem:[%s914 + $0x258] sm:$0xff]
        %v4619 = vld [vmem:[%s914 + $0x260] sm:$0xff]
        %v4620 = vld [vmem:[%s914 + $0x268] sm:$0xff]
        %v4621 = vld [vmem:[%s914 + $0x270] sm:$0xff]
        %v4622 = vld [vmem:[%s914 + $0x278] sm:$0xff]
        %v4623 = vld [vmem:[%s914 + $0x280] sm:$0xff]
        %v4624 = vld [vmem:[%s914 + $0x288] sm:$0xff]
        %v4625 = vld [vmem:[%s914 + $0x290] sm:$0xff]
        %v4626 = vld [vmem:[%s914 + $0x298] sm:$0xff]
        %v4627 = vld [vmem:[%s914 + $0x2a0] sm:$0xff]
        %v4628 = vld [vmem:[%s914 + $0x2a8] sm:$0xff]
        %v4629 = vld [vmem:[%s914 + $0x2b0] sm:$0xff]
        %v4630 = vld [vmem:[%s914 + $0x2b8] sm:$0xff]
        %v4631 = vld [vmem:[%s914 + $0x2c0] sm:$0xff]
        %v4632 = vld [vmem:[%s914 + $0x2c8] sm:$0xff]
        %v4633 = vld [vmem:[%s914 + $0x2d0] sm:$0xff]
        %v4634 = vld [vmem:[%s914 + $0x2d8] sm:$0xff]
        %v4635 = vld [vmem:[%s914 + $0x2e0] sm:$0xff]
        %v4636 = vld [vmem:[%s914 + $0x2e8] sm:$0xff]
        %v4637 = vld [vmem:[%s914 + $0x2f0] sm:$0xff]
        %v4638 = vld [vmem:[%s914 + $0x2f8] sm:$0xff]
        %v4639 = vld [vmem:[%s914 + $0x300] sm:$0xff]
        %v4640 = vld [vmem:[%s914 + $0x308] sm:$0xff]
        %v4641 = vld [vmem:[%s914 + $0x310] sm:$0xff]
        %v4642 = vld [vmem:[%s914 + $0x318] sm:$0xff]
        %v4643 = vld [vmem:[%s914 + $0x320] sm:$0xff]
        %v4644 = vld [vmem:[%s914 + $0x328] sm:$0xff]
        %v4645 = vld [vmem:[%s914 + $0x330] sm:$0xff]
        %v4646 = vld [vmem:[%s914 + $0x338] sm:$0xff]
        %v4647 = vld [vmem:[%s914 + $0x340] sm:$0xff]
        %v4648 = vld [vmem:[%s914 + $0x348] sm:$0xff]
        %v4649 = vld [vmem:[%s914 + $0x350] sm:$0xff]
        %v4650 = vld [vmem:[%s914 + $0x358] sm:$0xff]
        %v4651 = vld [vmem:[%s914 + $0x360] sm:$0xff]
        %v4652 = vld [vmem:[%s914 + $0x368] sm:$0xff]
        %v4653 = vld [vmem:[%s914 + $0x370] sm:$0xff]
        %v4654 = vld [vmem:[%s914 + $0x378] sm:$0xff]
        %v4655 = vld [vmem:[%s914 + $0x380] sm:$0xff]
        %v4656 = vld [vmem:[%s914 + $0x388] sm:$0xff]
        %v4657 = vld [vmem:[%s914 + $0x390] sm:$0xff]
        %v4658 = vld [vmem:[%s914 + $0x398] sm:$0xff]
        %v4659 = vld [vmem:[%s914 + $0x3a0] sm:$0xff]
        %v4660 = vld [vmem:[%s914 + $0x3a8] sm:$0xff]
        %v4661 = vld [vmem:[%s914 + $0x3b0] sm:$0xff]
        %v4662 = vld [vmem:[%s914 + $0x3b8] sm:$0xff]
        %v4663 = vld [vmem:[%s914 + $0x3c0] sm:$0xff]
        %v4664 = vld [vmem:[%s914 + $0x3c8] sm:$0xff]
        %v4665 = vld [vmem:[%s914 + $0x3d0] sm:$0xff]
        %v4666 = vld [vmem:[%s914 + $0x3d8] sm:$0xff]
        %v4667 = vld [vmem:[%s914 + $0x3e0] sm:$0xff]
        %v4668 = vld [vmem:[%s914 + $0x3e8] sm:$0xff]
        %v4669 = vld [vmem:[%s914 + $0x3f0] sm:$0xff]
        %v4670 = vld [vmem:[%s914 + $0x3f8] sm:$0xff]
        %v4671 = vld [vmem:[%s923] sm:$0xf]
        %v4673 = vlaneseq
        %v4674 = vshrl.u32 %v4673, 7
        %v4675 = vsub.s32 0, %v4674
        %v4676 = vrot.slane %v4671, %v4675
        %v4677 = vlaneseq
        %v4678 = vshrl.u32 %v4677, 7
        %v4679 = vsub.s32 1, %v4678
        %v4680 = vrot.slane %v4671, %v4679
        %v4681 = vlaneseq
        %v4682 = vshrl.u32 %v4681, 7
        %v4683 = vsub.s32 2, %v4682
        %v4684 = vrot.slane %v4671, %v4683
        %v4685 = vlaneseq
        %v4686 = vshrl.u32 %v4685, 7
        %v4687 = vsub.s32 3, %v4686
        %v4688 = vrot.slane %v4671, %v4687
        %v4821 = vunpack.c.l.b16 %v4543
        %v4822 = vunpack.c.h.b16 %v4543
        %v4823 = vunpack.c.l.b16 %v4544
        %v4824 = vunpack.c.h.b16 %v4544
        %v4825 = vunpack.c.l.b16 %v4545
        %v4826 = vunpack.c.h.b16 %v4545
        %v4827 = vunpack.c.l.b16 %v4546
        %v4828 = vunpack.c.h.b16 %v4546
        %v4829 = vunpack.c.l.b16 %v4547
        %v4830 = vunpack.c.h.b16 %v4547
        %v4831 = vunpack.c.l.b16 %v4548
        %v4832 = vunpack.c.h.b16 %v4548
        %v4833 = vunpack.c.l.b16 %v4549
        %v4834 = vunpack.c.h.b16 %v4549
        %v4835 = vunpack.c.l.b16 %v4550
        %v4836 = vunpack.c.h.b16 %v4550
        %v4837 = vunpack.c.l.b16 %v4551
        %v4838 = vunpack.c.h.b16 %v4551
        %v4839 = vunpack.c.l.b16 %v4552
        %v4840 = vunpack.c.h.b16 %v4552
        %v4841 = vunpack.c.l.b16 %v4553
        %v4842 = vunpack.c.h.b16 %v4553
        %v4843 = vunpack.c.l.b16 %v4554
        %v4844 = vunpack.c.h.b16 %v4554
        %v4845 = vunpack.c.l.b16 %v4555
        %v4846 = vunpack.c.h.b16 %v4555
        %v4847 = vunpack.c.l.b16 %v4556
        %v4848 = vunpack.c.h.b16 %v4556
        %v4849 = vunpack.c.l.b16 %v4557
        %v4850 = vunpack.c.h.b16 %v4557
        %v4851 = vunpack.c.l.b16 %v4558
        %v4852 = vunpack.c.h.b16 %v4558
        %v4853 = vunpack.c.l.b16 %v4559
        %v4854 = vunpack.c.h.b16 %v4559
        %v4855 = vunpack.c.l.b16 %v4560
        %v4856 = vunpack.c.h.b16 %v4560
        %v4857 = vunpack.c.l.b16 %v4561
        %v4858 = vunpack.c.h.b16 %v4561
        %v4859 = vunpack.c.l.b16 %v4562
        %v4860 = vunpack.c.h.b16 %v4562
        %v4861 = vunpack.c.l.b16 %v4563
        %v4862 = vunpack.c.h.b16 %v4563
        %v4863 = vunpack.c.l.b16 %v4564
        %v4864 = vunpack.c.h.b16 %v4564
        %v4865 = vunpack.c.l.b16 %v4565
        %v4866 = vunpack.c.h.b16 %v4565
        %v4867 = vunpack.c.l.b16 %v4566
        %v4868 = vunpack.c.h.b16 %v4566
        %v4869 = vunpack.c.l.b16 %v4567
        %v4870 = vunpack.c.h.b16 %v4567
        %v4871 = vunpack.c.l.b16 %v4568
        %v4872 = vunpack.c.h.b16 %v4568
        %v4873 = vunpack.c.l.b16 %v4569
        %v4874 = vunpack.c.h.b16 %v4569
        %v4875 = vunpack.c.l.b16 %v4570
        %v4876 = vunpack.c.h.b16 %v4570
        %v4877 = vunpack.c.l.b16 %v4571
        %v4878 = vunpack.c.h.b16 %v4571
        %v4879 = vunpack.c.l.b16 %v4572
        %v4880 = vunpack.c.h.b16 %v4572
        %v4881 = vunpack.c.l.b16 %v4573
        %v4882 = vunpack.c.h.b16 %v4573
        %v4883 = vunpack.c.l.b16 %v4574
        %v4884 = vunpack.c.h.b16 %v4574
        %v4885 = vunpack.c.l.b16 %v4575
        %v4886 = vunpack.c.h.b16 %v4575
        %v4887 = vunpack.c.l.b16 %v4576
        %v4888 = vunpack.c.h.b16 %v4576
        %v4889 = vunpack.c.l.b16 %v4577
        %v4890 = vunpack.c.h.b16 %v4577
        %v4891 = vunpack.c.l.b16 %v4578
        %v4892 = vunpack.c.h.b16 %v4578
        %v4893 = vunpack.c.l.b16 %v4579
        %v4894 = vunpack.c.h.b16 %v4579
        %v4895 = vunpack.c.l.b16 %v4580
        %v4896 = vunpack.c.h.b16 %v4580
        %v4897 = vunpack.c.l.b16 %v4581
        %v4898 = vunpack.c.h.b16 %v4581
        %v4899 = vunpack.c.l.b16 %v4582
        %v4900 = vunpack.c.h.b16 %v4582
        %v4901 = vunpack.c.l.b16 %v4583
        %v4902 = vunpack.c.h.b16 %v4583
        %v4903 = vunpack.c.l.b16 %v4584
        %v4904 = vunpack.c.h.b16 %v4584
        %v4905 = vunpack.c.l.b16 %v4585
        %v4906 = vunpack.c.h.b16 %v4585
        %v4907 = vunpack.c.l.b16 %v4586
        %v4908 = vunpack.c.h.b16 %v4586
        %v4909 = vunpack.c.l.b16 %v4587
        %v4910 = vunpack.c.h.b16 %v4587
        %v4911 = vunpack.c.l.b16 %v4588
        %v4912 = vunpack.c.h.b16 %v4588
        %v4913 = vunpack.c.l.b16 %v4589
        %v4914 = vunpack.c.h.b16 %v4589
        %v4915 = vunpack.c.l.b16 %v4590
        %v4916 = vunpack.c.h.b16 %v4590
        %v4917 = vunpack.c.l.b16 %v4591
        %v4918 = vunpack.c.h.b16 %v4591
        %v4919 = vunpack.c.l.b16 %v4592
        %v4920 = vunpack.c.h.b16 %v4592
        %v4921 = vunpack.c.l.b16 %v4593
        %v4922 = vunpack.c.h.b16 %v4593
        %v4923 = vunpack.c.l.b16 %v4594
        %v4924 = vunpack.c.h.b16 %v4594
        %v4925 = vunpack.c.l.b16 %v4595
        %v4926 = vunpack.c.h.b16 %v4595
        %v4927 = vunpack.c.l.b16 %v4596
        %v4928 = vunpack.c.h.b16 %v4596
        %v4929 = vunpack.c.l.b16 %v4597
        %v4930 = vunpack.c.h.b16 %v4597
        %v4931 = vunpack.c.l.b16 %v4598
        %v4932 = vunpack.c.h.b16 %v4598
        %v4933 = vunpack.c.l.b16 %v4599
        %v4934 = vunpack.c.h.b16 %v4599
        %v4935 = vunpack.c.l.b16 %v4600
        %v4936 = vunpack.c.h.b16 %v4600
        %v4937 = vunpack.c.l.b16 %v4601
        %v4938 = vunpack.c.h.b16 %v4601
        %v4939 = vunpack.c.l.b16 %v4602
        %v4940 = vunpack.c.h.b16 %v4602
        %v4941 = vunpack.c.l.b16 %v4603
        %v4942 = vunpack.c.h.b16 %v4603
        %v4943 = vunpack.c.l.b16 %v4604
        %v4944 = vunpack.c.h.b16 %v4604
        %v4945 = vunpack.c.l.b16 %v4605
        %v4946 = vunpack.c.h.b16 %v4605
        %v4947 = vunpack.c.l.b16 %v4606
        %v4948 = vunpack.c.h.b16 %v4606
        %v4949 = vunpack.c.l.b16 %v4607
        %v4950 = vunpack.c.h.b16 %v4607
        %v4951 = vunpack.c.l.b16 %v4608
        %v4952 = vunpack.c.h.b16 %v4608
        %v4953 = vunpack.c.l.b16 %v4609
        %v4954 = vunpack.c.h.b16 %v4609
        %v4955 = vunpack.c.l.b16 %v4610
        %v4956 = vunpack.c.h.b16 %v4610
        %v4957 = vunpack.c.l.b16 %v4611
        %v4958 = vunpack.c.h.b16 %v4611
        %v4959 = vunpack.c.l.b16 %v4612
        %v4960 = vunpack.c.h.b16 %v4612
        %v4961 = vunpack.c.l.b16 %v4613
        %v4962 = vunpack.c.h.b16 %v4613
        %v4963 = vunpack.c.l.b16 %v4614
        %v4964 = vunpack.c.h.b16 %v4614
        %v4965 = vunpack.c.l.b16 %v4615
        %v4966 = vunpack.c.h.b16 %v4615
        %v4967 = vunpack.c.l.b16 %v4616
        %v4968 = vunpack.c.h.b16 %v4616
        %v4969 = vunpack.c.l.b16 %v4617
        %v4970 = vunpack.c.h.b16 %v4617
        %v4971 = vunpack.c.l.b16 %v4618
        %v4972 = vunpack.c.h.b16 %v4618
        %v4973 = vunpack.c.l.b16 %v4619
        %v4974 = vunpack.c.h.b16 %v4619
        %v4975 = vunpack.c.l.b16 %v4620
        %v4976 = vunpack.c.h.b16 %v4620
        %v4977 = vunpack.c.l.b16 %v4621
        %v4978 = vunpack.c.h.b16 %v4621
        %v4979 = vunpack.c.l.b16 %v4622
        %v4980 = vunpack.c.h.b16 %v4622
        %v4981 = vunpack.c.l.b16 %v4623
        %v4982 = vunpack.c.h.b16 %v4623
        %v4983 = vunpack.c.l.b16 %v4624
        %v4984 = vunpack.c.h.b16 %v4624
        %v4985 = vunpack.c.l.b16 %v4625
        %v4986 = vunpack.c.h.b16 %v4625
        %v4987 = vunpack.c.l.b16 %v4626
        %v4988 = vunpack.c.h.b16 %v4626
        %v4989 = vunpack.c.l.b16 %v4627
        %v4990 = vunpack.c.h.b16 %v4627
        %v4991 = vunpack.c.l.b16 %v4628
        %v4992 = vunpack.c.h.b16 %v4628
        %v4993 = vunpack.c.l.b16 %v4629
        %v4994 = vunpack.c.h.b16 %v4629
        %v4995 = vunpack.c.l.b16 %v4630
        %v4996 = vunpack.c.h.b16 %v4630
        %v4997 = vunpack.c.l.b16 %v4631
        %v4998 = vunpack.c.h.b16 %v4631
        %v4999 = vunpack.c.l.b16 %v4632
        %v5000 = vunpack.c.h.b16 %v4632
        %v5001 = vunpack.c.l.b16 %v4633
        %v5002 = vunpack.c.h.b16 %v4633
        %v5003 = vunpack.c.l.b16 %v4634
        %v5004 = vunpack.c.h.b16 %v4634
        %v5005 = vunpack.c.l.b16 %v4635
        %v5006 = vunpack.c.h.b16 %v4635
        %v5007 = vunpack.c.l.b16 %v4636
        %v5008 = vunpack.c.h.b16 %v4636
        %v5009 = vunpack.c.l.b16 %v4637
        %v5010 = vunpack.c.h.b16 %v4637
        %v5011 = vunpack.c.l.b16 %v4638
        %v5012 = vunpack.c.h.b16 %v4638
        %v5013 = vunpack.c.l.b16 %v4639
        %v5014 = vunpack.c.h.b16 %v4639
        %v5015 = vunpack.c.l.b16 %v4640
        %v5016 = vunpack.c.h.b16 %v4640
        %v5017 = vunpack.c.l.b16 %v4641
        %v5018 = vunpack.c.h.b16 %v4641
        %v5019 = vunpack.c.l.b16 %v4642
        %v5020 = vunpack.c.h.b16 %v4642
        %v5021 = vunpack.c.l.b16 %v4643
        %v5022 = vunpack.c.h.b16 %v4643
        %v5023 = vunpack.c.l.b16 %v4644
        %v5024 = vunpack.c.h.b16 %v4644
        %v5025 = vunpack.c.l.b16 %v4645
        %v5026 = vunpack.c.h.b16 %v4645
        %v5027 = vunpack.c.l.b16 %v4646
        %v5028 = vunpack.c.h.b16 %v4646
        %v5029 = vunpack.c.l.b16 %v4647
        %v5030 = vunpack.c.h.b16 %v4647
        %v5031 = vunpack.c.l.b16 %v4648
        %v5032 = vunpack.c.h.b16 %v4648
        %v5033 = vunpack.c.l.b16 %v4649
        %v5034 = vunpack.c.h.b16 %v4649
        %v5035 = vunpack.c.l.b16 %v4650
        %v5036 = vunpack.c.h.b16 %v4650
        %v5037 = vunpack.c.l.b16 %v4651
        %v5038 = vunpack.c.h.b16 %v4651
        %v5039 = vunpack.c.l.b16 %v4652
        %v5040 = vunpack.c.h.b16 %v4652
        %v5041 = vunpack.c.l.b16 %v4653
        %v5042 = vunpack.c.h.b16 %v4653
        %v5043 = vunpack.c.l.b16 %v4654
        %v5044 = vunpack.c.h.b16 %v4654
        %v5045 = vunpack.c.l.b16 %v4655
        %v5046 = vunpack.c.h.b16 %v4655
        %v5047 = vunpack.c.l.b16 %v4656
        %v5048 = vunpack.c.h.b16 %v4656
        %v5049 = vunpack.c.l.b16 %v4657
        %v5050 = vunpack.c.h.b16 %v4657
        %v5051 = vunpack.c.l.b16 %v4658
        %v5052 = vunpack.c.h.b16 %v4658
        %v5053 = vunpack.c.l.b16 %v4659
        %v5054 = vunpack.c.h.b16 %v4659
        %v5055 = vunpack.c.l.b16 %v4660
        %v5056 = vunpack.c.h.b16 %v4660
        %v5057 = vunpack.c.l.b16 %v4661
        %v5058 = vunpack.c.h.b16 %v4661
        %v5059 = vunpack.c.l.b16 %v4662
        %v5060 = vunpack.c.h.b16 %v4662
        %v5061 = vunpack.c.l.b16 %v4663
        %v5062 = vunpack.c.h.b16 %v4663
        %v5063 = vunpack.c.l.b16 %v4664
        %v5064 = vunpack.c.h.b16 %v4664
        %v5065 = vunpack.c.l.b16 %v4665
        %v5066 = vunpack.c.h.b16 %v4665
        %v5067 = vunpack.c.l.b16 %v4666
        %v5068 = vunpack.c.h.b16 %v4666
        %v5069 = vunpack.c.l.b16 %v4667
        %v5070 = vunpack.c.h.b16 %v4667
        %v5071 = vunpack.c.l.b16 %v4668
        %v5072 = vunpack.c.h.b16 %v4668
        %v5073 = vunpack.c.l.b16 %v4669
        %v5074 = vunpack.c.h.b16 %v4669
        %v5075 = vunpack.c.l.b16 %v4670
        %v5076 = vunpack.c.h.b16 %v4670
        %v5077 = vpack.c.b16 %v4825, %v4821
        %v5078 = vpack.c.b16 %v4826, %v4822
        %v5079 = vpack.c.b16 %v4827, %v4823
        %v5080 = vpack.c.b16 %v4828, %v4824
        %v5081 = vpack.c.b16 %v4833, %v4829
        %v5082 = vpack.c.b16 %v4834, %v4830
        %v5083 = vpack.c.b16 %v4835, %v4831
        %v5084 = vpack.c.b16 %v4836, %v4832
        %v5085 = vpack.c.b16 %v4841, %v4837
        %v5086 = vpack.c.b16 %v4842, %v4838
        %v5087 = vpack.c.b16 %v4843, %v4839
        %v5088 = vpack.c.b16 %v4844, %v4840
        %v5089 = vpack.c.b16 %v4849, %v4845
        %v5090 = vpack.c.b16 %v4850, %v4846
        %v5091 = vpack.c.b16 %v4851, %v4847
        %v5092 = vpack.c.b16 %v4852, %v4848
        %v5093 = vpack.c.b16 %v4857, %v4853
        %v5094 = vpack.c.b16 %v4858, %v4854
        %v5095 = vpack.c.b16 %v4859, %v4855
        %v5096 = vpack.c.b16 %v4860, %v4856
        %v5097 = vpack.c.b16 %v4865, %v4861
        %v5098 = vpack.c.b16 %v4866, %v4862
        %v5099 = vpack.c.b16 %v4867, %v4863
        %v5100 = vpack.c.b16 %v4868, %v4864
        %v5101 = vpack.c.b16 %v4873, %v4869
        %v5102 = vpack.c.b16 %v4874, %v4870
        %v5103 = vpack.c.b16 %v4875, %v4871
        %v5104 = vpack.c.b16 %v4876, %v4872
        %v5105 = vpack.c.b16 %v4881, %v4877
        %v5106 = vpack.c.b16 %v4882, %v4878
        %v5107 = vpack.c.b16 %v4883, %v4879
        %v5108 = vpack.c.b16 %v4884, %v4880
        %v5109 = vpack.c.b16 %v4889, %v4885
        %v5110 = vpack.c.b16 %v4890, %v4886
        %v5111 = vpack.c.b16 %v4891, %v4887
        %v5112 = vpack.c.b16 %v4892, %v4888
        %v5113 = vpack.c.b16 %v4897, %v4893
        %v5114 = vpack.c.b16 %v4898, %v4894
        %v5115 = vpack.c.b16 %v4899, %v4895
        %v5116 = vpack.c.b16 %v4900, %v4896
        %v5117 = vpack.c.b16 %v4905, %v4901
        %v5118 = vpack.c.b16 %v4906, %v4902
        %v5119 = vpack.c.b16 %v4907, %v4903
        %v5120 = vpack.c.b16 %v4908, %v4904
        %v5121 = vpack.c.b16 %v4913, %v4909
        %v5122 = vpack.c.b16 %v4914, %v4910
        %v5123 = vpack.c.b16 %v4915, %v4911
        %v5124 = vpack.c.b16 %v4916, %v4912
        %v5125 = vpack.c.b16 %v4921, %v4917
        %v5126 = vpack.c.b16 %v4922, %v4918
        %v5127 = vpack.c.b16 %v4923, %v4919
        %v5128 = vpack.c.b16 %v4924, %v4920
        %v5129 = vpack.c.b16 %v4929, %v4925
        %v5130 = vpack.c.b16 %v4930, %v4926
        %v5131 = vpack.c.b16 %v4931, %v4927
        %v5132 = vpack.c.b16 %v4932, %v4928
        %v5133 = vpack.c.b16 %v4937, %v4933
        %v5134 = vpack.c.b16 %v4938, %v4934
        %v5135 = vpack.c.b16 %v4939, %v4935
        %v5136 = vpack.c.b16 %v4940, %v4936
        %v5137 = vpack.c.b16 %v4945, %v4941
        %v5138 = vpack.c.b16 %v4946, %v4942
        %v5139 = vpack.c.b16 %v4947, %v4943
        %v5140 = vpack.c.b16 %v4948, %v4944
        %v5141 = vpack.c.b16 %v4953, %v4949
        %v5142 = vpack.c.b16 %v4954, %v4950
        %v5143 = vpack.c.b16 %v4955, %v4951
        %v5144 = vpack.c.b16 %v4956, %v4952
        %v5145 = vpack.c.b16 %v4961, %v4957
        %v5146 = vpack.c.b16 %v4962, %v4958
        %v5147 = vpack.c.b16 %v4963, %v4959
        %v5148 = vpack.c.b16 %v4964, %v4960
        %v5149 = vpack.c.b16 %v4969, %v4965
        %v5150 = vpack.c.b16 %v4970, %v4966
        %v5151 = vpack.c.b16 %v4971, %v4967
        %v5152 = vpack.c.b16 %v4972, %v4968
        %v5153 = vpack.c.b16 %v4977, %v4973
        %v5154 = vpack.c.b16 %v4978, %v4974
        %v5155 = vpack.c.b16 %v4979, %v4975
        %v5156 = vpack.c.b16 %v4980, %v4976
        %v5157 = vpack.c.b16 %v4985, %v4981
        %v5158 = vpack.c.b16 %v4986, %v4982
        %v5159 = vpack.c.b16 %v4987, %v4983
        %v5160 = vpack.c.b16 %v4988, %v4984
        %v5161 = vpack.c.b16 %v4993, %v4989
        %v5162 = vpack.c.b16 %v4994, %v4990
        %v5163 = vpack.c.b16 %v4995, %v4991
        %v5164 = vpack.c.b16 %v4996, %v4992
        %v5165 = vpack.c.b16 %v5001, %v4997
        %v5166 = vpack.c.b16 %v5002, %v4998
        %v5167 = vpack.c.b16 %v5003, %v4999
        %v5168 = vpack.c.b16 %v5004, %v5000
        %v5169 = vpack.c.b16 %v5009, %v5005
        %v5170 = vpack.c.b16 %v5010, %v5006
        %v5171 = vpack.c.b16 %v5011, %v5007
        %v5172 = vpack.c.b16 %v5012, %v5008
        %v5173 = vpack.c.b16 %v5017, %v5013
        %v5174 = vpack.c.b16 %v5018, %v5014
        %v5175 = vpack.c.b16 %v5019, %v5015
        %v5176 = vpack.c.b16 %v5020, %v5016
        %v5177 = vpack.c.b16 %v5025, %v5021
        %v5178 = vpack.c.b16 %v5026, %v5022
        %v5179 = vpack.c.b16 %v5027, %v5023
        %v5180 = vpack.c.b16 %v5028, %v5024
        %v5181 = vpack.c.b16 %v5033, %v5029
        %v5182 = vpack.c.b16 %v5034, %v5030
        %v5183 = vpack.c.b16 %v5035, %v5031
        %v5184 = vpack.c.b16 %v5036, %v5032
        %v5185 = vpack.c.b16 %v5041, %v5037
        %v5186 = vpack.c.b16 %v5042, %v5038
        %v5187 = vpack.c.b16 %v5043, %v5039
        %v5188 = vpack.c.b16 %v5044, %v5040
        %v5189 = vpack.c.b16 %v5049, %v5045
        %v5190 = vpack.c.b16 %v5050, %v5046
        %v5191 = vpack.c.b16 %v5051, %v5047
        %v5192 = vpack.c.b16 %v5052, %v5048
        %v5193 = vpack.c.b16 %v5057, %v5053
        %v5194 = vpack.c.b16 %v5058, %v5054
        %v5195 = vpack.c.b16 %v5059, %v5055
        %v5196 = vpack.c.b16 %v5060, %v5056
        %v5197 = vpack.c.b16 %v5065, %v5061
        %v5198 = vpack.c.b16 %v5066, %v5062
        %v5199 = vpack.c.b16 %v5067, %v5063
        %v5200 = vpack.c.b16 %v5068, %v5064
        %v5201 = vpack.c.b16 %v5073, %v5069
        %v5202 = vpack.c.b16 %v5074, %v5070
        %v5203 = vpack.c.b16 %v5075, %v5071
        %v5204 = vpack.c.b16 %v5076, %v5072
        %5333 = vmatprep.subr.bf16.mxu0 %v5078
        %5334 = vmatpush1.bf16.msra.mxu0 %v5077
        %5335 = vmatprep.subr.bf16.mxu0 %v5082
        %5336 = vmatpush1.bf16.msra.mxu0 %v5081
        %5337 = vmatprep.subr.bf16.mxu0 %v5086
        %5338 = vmatpush1.bf16.msra.mxu0 %v5085
        %5339 = vmatprep.subr.bf16.mxu0 %v5090
        %5340 = vmatpush1.bf16.msra.mxu0 %v5089
        %5341 = vmatprep.subr.bf16.mxu0 %v5094
        %5342 = vmatpush1.bf16.msra.mxu0 %v5093
        %5343 = vmatprep.subr.bf16.mxu0 %v5098
        %5344 = vmatpush1.bf16.msra.mxu0 %v5097
        %5345 = vmatprep.subr.bf16.mxu0 %v5102
        %5346 = vmatpush1.bf16.msra.mxu0 %v5101
        %5347 = vmatprep.subr.bf16.mxu0 %v5106
        %5348 = vmatpush1.bf16.msra.mxu0 %v5105
        %5349 = vmatprep.subr.bf16.mxu0 %v5110
        %5350 = vmatpush1.bf16.msra.mxu0 %v5109
        %5351 = vmatprep.subr.bf16.mxu0 %v5114
        %5352 = vmatpush1.bf16.msra.mxu0 %v5113
        %5353 = vmatprep.subr.bf16.mxu0 %v5118
        %5354 = vmatpush1.bf16.msra.mxu0 %v5117
        %5355 = vmatprep.subr.bf16.mxu0 %v5122
        %5356 = vmatpush1.bf16.msra.mxu0 %v5121
        %5357 = vmatprep.subr.bf16.mxu0 %v5126
        %5358 = vmatpush1.bf16.msra.mxu0 %v5125
        %5359 = vmatprep.subr.bf16.mxu0 %v5130
        %5360 = vmatpush1.bf16.msra.mxu0 %v5129
        %5361 = vmatprep.subr.bf16.mxu0 %v5134
        %5362 = vmatpush1.bf16.msra.mxu0 %v5133
        %5363 = vmatprep.subr.bf16.mxu0 %v5138
        %5364 = vmatpush1.bf16.msra.mxu0 %v5137
        %5365 = vmatprep.mubr.bf16.mxu0 %v4540
        %5366 = vmatmul.mubr.bf16.gmra.mrb[0].mxu0 %v4539
        %v5367 = vpop.f32.mrb[0].mxu0
        %v5368 = vadd.f32 %v4676, %v5367
        %v5369 = vpop.f32.mrb[0].mxu0
        %v5370 = vadd.f32 %v4680, %v5369
        %v5371 = vpop.f32.mrb[0].mxu0
        %v5372 = vadd.f32 %v4676, %v5371
        %v5373 = vpop.f32.mrb[0].mxu0
        %v5374 = vadd.f32 %v4680, %v5373
        %5375 = vdwg.mxu0
        %5376 = vmatprep.subr.bf16.mxu0 %v5142
        %5377 = vmatpush1.bf16.msra.mxu0 %v5141
        %5378 = vmatprep.subr.bf16.mxu0 %v5146
        %5379 = vmatpush1.bf16.msra.mxu0 %v5145
        %5380 = vmatprep.subr.bf16.mxu0 %v5150
        %5381 = vmatpush1.bf16.msra.mxu0 %v5149
        %5382 = vmatprep.subr.bf16.mxu0 %v5154
        %5383 = vmatpush1.bf16.msra.mxu0 %v5153
        %5384 = vmatprep.subr.bf16.mxu0 %v5158
        %5385 = vmatpush1.bf16.msra.mxu0 %v5157
        %5386 = vmatprep.subr.bf16.mxu0 %v5162
        %5387 = vmatpush1.bf16.msra.mxu0 %v5161
        %5388 = vmatprep.subr.bf16.mxu0 %v5166
        %5389 = vmatpush1.bf16.msra.mxu0 %v5165
        %5390 = vmatprep.subr.bf16.mxu0 %v5170
        %5391 = vmatpush1.bf16.msra.mxu0 %v5169
        %5392 = vmatprep.subr.bf16.mxu0 %v5174
        %5393 = vmatpush1.bf16.msra.mxu0 %v5173
        %5394 = vmatprep.subr.bf16.mxu0 %v5178
        %5395 = vmatpush1.bf16.msra.mxu0 %v5177
        %5396 = vmatprep.subr.bf16.mxu0 %v5182
        %5397 = vmatpush1.bf16.msra.mxu0 %v5181
        %5398 = vmatprep.subr.bf16.mxu0 %v5186
        %5399 = vmatpush1.bf16.msra.mxu0 %v5185
        %5400 = vmatprep.subr.bf16.mxu0 %v5190
        %5401 = vmatpush1.bf16.msra.mxu0 %v5189
        %5402 = vmatprep.subr.bf16.mxu0 %v5194
        %5403 = vmatpush1.bf16.msra.mxu0 %v5193
        %5404 = vmatprep.subr.bf16.mxu0 %v5198
        %5405 = vmatpush1.bf16.msra.mxu0 %v5197
        %5406 = vmatprep.subr.bf16.mxu0 %v5202
        %5407 = vmatpush1.bf16.msra.mxu0 %v5201
        %5408 = vmatprep.mubr.bf16.mxu0 %v4542
        %5409 = vmatmul.mubr.bf16.gmra.mrb[0].mxu0 %v4541
        %v5410 = vpop.f32.mrb[0].mxu0
        %v5411 = vadd.f32 %v5368, %v5410
        %v5412 = vpop.f32.mrb[0].mxu0
        %v5413 = vadd.f32 %v5370, %v5412
        %v5414 = vpop.f32.mrb[0].mxu0
        %v5415 = vadd.f32 %v5372, %v5414
        %v5416 = vpop.f32.mrb[0].mxu0
        %v5417 = vadd.f32 %v5374, %v5416
        %5418 = vdwg.mxu0
        %5419 = vmatprep.subr.bf16.mxu0 %v5080
        %5420 = vmatpush1.bf16.msra.mxu0 %v5079
        %5421 = vmatprep.subr.bf16.mxu0 %v5084
        %5422 = vmatpush1.bf16.msra.mxu0 %v5083
        %5423 = vmatprep.subr.bf16.mxu0 %v5088
        %5424 = vmatpush1.bf16.msra.mxu0 %v5087
        %5425 = vmatprep.subr.bf16.mxu0 %v5092
        %5426 = vmatpush1.bf16.msra.mxu0 %v5091
        %5427 = vmatprep.subr.bf16.mxu0 %v5096
        %5428 = vmatpush1.bf16.msra.mxu0 %v5095
        %5429 = vmatprep.subr.bf16.mxu0 %v5100
        %5430 = vmatpush1.bf16.msra.mxu0 %v5099
        %5431 = vmatprep.subr.bf16.mxu0 %v5104
        %5432 = vmatpush1.bf16.msra.mxu0 %v5103
        %5433 = vmatprep.subr.bf16.mxu0 %v5108
        %5434 = vmatpush1.bf16.msra.mxu0 %v5107
        %5435 = vmatprep.subr.bf16.mxu0 %v5112
        %5436 = vmatpush1.bf16.msra.mxu0 %v5111
        %5437 = vmatprep.subr.bf16.mxu0 %v5116
        %5438 = vmatpush1.bf16.msra.mxu0 %v5115
        %5439 = vmatprep.subr.bf16.mxu0 %v5120
        %5440 = vmatpush1.bf16.msra.mxu0 %v5119
        %5441 = vmatprep.subr.bf16.mxu0 %v5124
        %5442 = vmatpush1.bf16.msra.mxu0 %v5123
        %5443 = vmatprep.subr.bf16.mxu0 %v5128
        %5444 = vmatpush1.bf16.msra.mxu0 %v5127
        %5445 = vmatprep.subr.bf16.mxu0 %v5132
        %5446 = vmatpush1.bf16.msra.mxu0 %v5131
        %5447 = vmatprep.subr.bf16.mxu0 %v5136
        %5448 = vmatpush1.bf16.msra.mxu0 %v5135
        %5449 = vmatprep.subr.bf16.mxu0 %v5140
        %5450 = vmatpush1.bf16.msra.mxu0 %v5139
        %5451 = vmatprep.mubr.bf16.mxu0 %v4540
        %5452 = vmatmul.mubr.bf16.gmra.mrb[0].mxu0 %v4539
        %v5453 = vpop.f32.mrb[0].mxu0
        %v5454 = vadd.f32 %v4684, %v5453
        %v5455 = vpop.f32.mrb[0].mxu0
        %v5456 = vadd.f32 %v4688, %v5455
        %v5457 = vpop.f32.mrb[0].mxu0
        %v5458 = vadd.f32 %v4684, %v5457
        %v5459 = vpop.f32.mrb[0].mxu0
        %v5460 = vadd.f32 %v4688, %v5459
        %5461 = vdwg.mxu0
        %5462 = vmatprep.subr.bf16.mxu0 %v5144
        %5463 = vmatpush1.bf16.msra.mxu0 %v5143
        %5464 = vmatprep.subr.bf16.mxu0 %v5148
        %5465 = vmatpush1.bf16.msra.mxu0 %v5147
        %5466 = vmatprep.subr.bf16.mxu0 %v5152
        %5467 = vmatpush1.bf16.msra.mxu0 %v5151
        %5468 = vmatprep.subr.bf16.mxu0 %v5156
        %5469 = vmatpush1.bf16.msra.mxu0 %v5155
        %5470 = vmatprep.subr.bf16.mxu0 %v5160
        %5471 = vmatpush1.bf16.msra.mxu0 %v5159
        %5472 = vmatprep.subr.bf16.mxu0 %v5164
        %5473 = vmatpush1.bf16.msra.mxu0 %v5163
        %5474 = vmatprep.subr.bf16.mxu0 %v5168
        %5475 = vmatpush1.bf16.msra.mxu0 %v5167
        %5476 = vmatprep.subr.bf16.mxu0 %v5172
        %5477 = vmatpush1.bf16.msra.mxu0 %v5171
        %5478 = vmatprep.subr.bf16.mxu0 %v5176
        %5479 = vmatpush1.bf16.msra.mxu0 %v5175
        %5480 = vmatprep.subr.bf16.mxu0 %v5180
        %5481 = vmatpush1.bf16.msra.mxu0 %v5179
        %5482 = vmatprep.subr.bf16.mxu0 %v5184
        %5483 = vmatpush1.bf16.msra.mxu0 %v5183
        %5484 = vmatprep.subr.bf16.mxu0 %v5188
        %5485 = vmatpush1.bf16.msra.mxu0 %v5187
        %5486 = vmatprep.subr.bf16.mxu0 %v5192
        %5487 = vmatpush1.bf16.msra.mxu0 %v5191
        %5488 = vmatprep.subr.bf16.mxu0 %v5196
        %5489 = vmatpush1.bf16.msra.mxu0 %v5195
        %5490 = vmatprep.subr.bf16.mxu0 %v5200
        %5491 = vmatpush1.bf16.msra.mxu0 %v5199
        %5492 = vmatprep.subr.bf16.mxu0 %v5204
        %5493 = vmatpush1.bf16.msra.mxu0 %v5203
        %5494 = vmatprep.mubr.bf16.mxu0 %v4542
        %5495 = vmatmul.mubr.bf16.gmra.mrb[0].mxu0 %v4541
        %v5496 = vpop.f32.mrb[0].mxu0
        %v5497 = vadd.f32 %v5454, %v5496
        %v5498 = vpop.f32.mrb[0].mxu0
        %v5499 = vadd.f32 %v5456, %v5498
        %v5500 = vpop.f32.mrb[0].mxu0
        %v5501 = vadd.f32 %v5458, %v5500
        %v5502 = vpop.f32.mrb[0].mxu0
        %v5503 = vadd.f32 %v5460, %v5502
        %5504 = vdwg.mxu0
        %v5505 = vadd.f32 %v1146, %v5411
        %v5506 = vadd.f32 %v1147, %v5413
        %v5507 = vadd.f32 %v1148, %v5497
        %v5508 = vadd.f32 %v1149, %v5499
        %v5509 = vadd.f32 %v1150, %v5415
        %v5510 = vadd.f32 %v1151, %v5417
        %v5511 = vadd.f32 %v1152, %v5501
        %v5512 = vadd.f32 %v1153, %v5503
        %v5513 = vld [vmem:[%s932] sm:$0xf]
        %v5514 = vld [vmem:[%s941] sm:$0xf]
        %v5515 = vadd.f32 %v5505, %v5506
        %v5516 = vadd.f32 %v5515, %v5507
        %v5517 = vadd.f32 %v5516, %v5508
        %5518 = vadd.xlane.f32.xlu0 %v5517
        %v5519 = vpop.xlane.xlu0 %5518
        %v5520 = vadd.f32 %v5509, %v5510
        %v5521 = vadd.f32 %v5520, %v5511
        %v5522 = vadd.f32 %v5521, %v5512
        %5523 = vadd.xlane.f32.xlu0 %v5522
        %v5524 = vpop.xlane.xlu0 %5523
        %v5525 = vrcp.pop 32.0
        %v5526 = vmul.f32 %v5519, %v5525
        %v5527 = vmul.f32 %v5524, %v5525
        %v5528 = vmul.f32 %v5505, %v5505
        %v5529 = vmul.f32 %v5506, %v5506
        %v5530 = vmul.f32 %v5507, %v5507
        %v5531 = vmul.f32 %v5508, %v5508
        %v5532 = vmul.f32 %v5509, %v5509
        %v5533 = vmul.f32 %v5510, %v5510
        %v5534 = vmul.f32 %v5511, %v5511
        %v5535 = vmul.f32 %v5512, %v5512
        %v5536 = vadd.f32 %v5528, %v5529
        %v5537 = vadd.f32 %v5536, %v5530
        %v5538 = vadd.f32 %v5537, %v5531
        %5539 = vadd.xlane.f32.xlu0 %v5538
        %v5540 = vpop.xlane.xlu0 %5539
        %v5541 = vadd.f32 %v5532, %v5533
        %v5542 = vadd.f32 %v5541, %v5534
        %v5543 = vadd.f32 %v5542, %v5535
        %5544 = vadd.xlane.f32.xlu0 %v5543
        %v5545 = vpop.xlane.xlu0 %5544
        %v5546 = vmul.f32 %v5540, %v5525
        %v5547 = vmul.f32 %v5545, %v5525
        %v5548 = vmul.f32 %v5526, %v5526
        %v5549 = vmul.f32 %v5527, %v5527
        %v5550 = vsub.f32 %v5546, %v5548
        %v5551 = vsub.f32 %v5547, %v5549
        %v5552 = vsub.f32 %v5505, %v5526
        %v5553 = vsub.f32 %v5506, %v5526
        %v5554 = vsub.f32 %v5507, %v5526
        %v5555 = vsub.f32 %v5508, %v5526
        %v5556 = vsub.f32 %v5509, %v5527
        %v5557 = vsub.f32 %v5510, %v5527
        %v5558 = vsub.f32 %v5511, %v5527
        %v5559 = vsub.f32 %v5512, %v5527
        %v5560 = vadd.f32 %v5550, 1e-05
        %v5561 = vadd.f32 %v5551, 1e-05
        %v5562 = vrsqrt.pop %v5560
        %v5563 = vrsqrt.pop %v5561
        %v5564 = vmul.f32 %v5552, %v5562
        %v5565 = vmul.f32 %v5553, %v5562
        %v5566 = vmul.f32 %v5554, %v5562
        %v5567 = vmul.f32 %v5555, %v5562
        %v5568 = vmul.f32 %v5556, %v5563
        %v5569 = vmul.f32 %v5557, %v5563
        %v5570 = vmul.f32 %v5558, %v5563
        %v5571 = vmul.f32 %v5559, %v5563
        %v5573 = vlaneseq
        %v5574 = vshrl.u32 %v5573, 7
        %v5575 = vsub.s32 0, %v5574
        %v5576 = vrot.slane %v5513, %v5575
        %v5577 = vlaneseq
        %v5578 = vshrl.u32 %v5577, 7
        %v5579 = vsub.s32 1, %v5578
        %v5580 = vrot.slane %v5513, %v5579
        %v5581 = vlaneseq
        %v5582 = vshrl.u32 %v5581, 7
        %v5583 = vsub.s32 2, %v5582
        %v5584 = vrot.slane %v5513, %v5583
        %v5585 = vlaneseq
        %v5586 = vshrl.u32 %v5585, 7
        %v5587 = vsub.s32 3, %v5586
        %v5588 = vrot.slane %v5513, %v5587
        %v5593 = vmul.f32 %v5564, %v5576
        %v5594 = vmul.f32 %v5565, %v5580
        %v5595 = vmul.f32 %v5566, %v5584
        %v5596 = vmul.f32 %v5567, %v5588
        %v5597 = vmul.f32 %v5568, %v5576
        %v5598 = vmul.f32 %v5569, %v5580
        %v5599 = vmul.f32 %v5570, %v5584
        %v5600 = vmul.f32 %v5571, %v5588
        %v5602 = vlaneseq
        %v5603 = vshrl.u32 %v5602, 7
        %v5604 = vsub.s32 0, %v5603
        %v5605 = vrot.slane %v5514, %v5604
        %v5606 = vlaneseq
        %v5607 = vshrl.u32 %v5606, 7
        %v5608 = vsub.s32 1, %v5607
        %v5609 = vrot.slane %v5514, %v5608
        %v5610 = vlaneseq
        %v5611 = vshrl.u32 %v5610, 7
        %v5612 = vsub.s32 2, %v5611
        %v5613 = vrot.slane %v5514, %v5612
        %v5614 = vlaneseq
        %v5615 = vshrl.u32 %v5614, 7
        %v5616 = vsub.s32 3, %v5615
        %v5617 = vrot.slane %v5514, %v5616
        %v5622 = vadd.f32 %v5593, %v5605
        %v5623 = vadd.f32 %v5594, %v5609
        %v5624 = vadd.f32 %v5595, %v5613
        %v5625 = vadd.f32 %v5596, %v5617
        %v5626 = vadd.f32 %v5597, %v5605
        %v5627 = vadd.f32 %v5598, %v5609
        %v5628 = vadd.f32 %v5599, %v5613
        %v5629 = vadd.f32 %v5600, %v5617
        %v5630 = vpack.c.bf16 %v5626, %v5622
        %v5631 = vpack.c.bf16 %v5627, %v5623
        %v5632 = vpack.c.bf16 %v5628, %v5624
        %v5633 = vpack.c.bf16 %v5629, %v5625
        %v5634 = vld [vmem:[%s950] sm:$0xf]
        %v5635 = vld [vmem:[%s950 + $0x4] sm:$0xf]
        %v5636 = vld [vmem:[%s950 + $0x8] sm:$0xf]
        %v5637 = vld [vmem:[%s950 + $0xc] sm:$0xf]
        %v5638 = vld [vmem:[%s950 + $0x10] sm:$0xf]
        %v5639 = vld [vmem:[%s950 + $0x14] sm:$0xf]
        %v5640 = vld [vmem:[%s950 + $0x18] sm:$0xf]
        %v5641 = vld [vmem:[%s950 + $0x1c] sm:$0xf]
        %v5642 = vld [vmem:[%s950 + $0x20] sm:$0xf]
        %v5643 = vld [vmem:[%s950 + $0x24] sm:$0xf]
        %v5644 = vld [vmem:[%s950 + $0x28] sm:$0xf]
        %v5645 = vld [vmem:[%s950 + $0x2c] sm:$0xf]
        %v5646 = vld [vmem:[%s950 + $0x30] sm:$0xf]
        %v5647 = vld [vmem:[%s950 + $0x34] sm:$0xf]
        %v5648 = vld [vmem:[%s950 + $0x38] sm:$0xf]
        %v5649 = vld [vmem:[%s950 + $0x3c] sm:$0xf]
        %v5650 = vld [vmem:[%s950 + $0x40] sm:$0xf]
        %v5651 = vld [vmem:[%s950 + $0x44] sm:$0xf]
        %v5652 = vld [vmem:[%s950 + $0x48] sm:$0xf]
        %v5653 = vld [vmem:[%s950 + $0x4c] sm:$0xf]
        %v5654 = vld [vmem:[%s950 + $0x50] sm:$0xf]
        %v5655 = vld [vmem:[%s950 + $0x54] sm:$0xf]
        %v5656 = vld [vmem:[%s950 + $0x58] sm:$0xf]
        %v5657 = vld [vmem:[%s950 + $0x5c] sm:$0xf]
        %v5658 = vld [vmem:[%s950 + $0x60] sm:$0xf]
        %v5659 = vld [vmem:[%s950 + $0x64] sm:$0xf]
        %v5660 = vld [vmem:[%s950 + $0x68] sm:$0xf]
        %v5661 = vld [vmem:[%s950 + $0x6c] sm:$0xf]
        %v5662 = vld [vmem:[%s950 + $0x70] sm:$0xf]
        %v5663 = vld [vmem:[%s950 + $0x74] sm:$0xf]
        %v5664 = vld [vmem:[%s950 + $0x78] sm:$0xf]
        %v5665 = vld [vmem:[%s950 + $0x7c] sm:$0xf]
        %v5666 = vld [vmem:[%s950 + $0x80] sm:$0xf]
        %v5667 = vld [vmem:[%s950 + $0x84] sm:$0xf]
        %v5668 = vld [vmem:[%s950 + $0x88] sm:$0xf]
        %v5669 = vld [vmem:[%s950 + $0x8c] sm:$0xf]
        %v5670 = vld [vmem:[%s950 + $0x90] sm:$0xf]
        %v5671 = vld [vmem:[%s950 + $0x94] sm:$0xf]
        %v5672 = vld [vmem:[%s950 + $0x98] sm:$0xf]
        %v5673 = vld [vmem:[%s950 + $0x9c] sm:$0xf]
        %v5674 = vld [vmem:[%s950 + $0xa0] sm:$0xf]
        %v5675 = vld [vmem:[%s950 + $0xa4] sm:$0xf]
        %v5676 = vld [vmem:[%s950 + $0xa8] sm:$0xf]
        %v5677 = vld [vmem:[%s950 + $0xac] sm:$0xf]
        %v5678 = vld [vmem:[%s950 + $0xb0] sm:$0xf]
        %v5679 = vld [vmem:[%s950 + $0xb4] sm:$0xf]
        %v5680 = vld [vmem:[%s950 + $0xb8] sm:$0xf]
        %v5681 = vld [vmem:[%s950 + $0xbc] sm:$0xf]
        %v5682 = vld [vmem:[%s950 + $0xc0] sm:$0xf]
        %v5683 = vld [vmem:[%s950 + $0xc4] sm:$0xf]
        %v5684 = vld [vmem:[%s950 + $0xc8] sm:$0xf]
        %v5685 = vld [vmem:[%s950 + $0xcc] sm:$0xf]
        %v5686 = vld [vmem:[%s950 + $0xd0] sm:$0xf]
        %v5687 = vld [vmem:[%s950 + $0xd4] sm:$0xf]
        %v5688 = vld [vmem:[%s950 + $0xd8] sm:$0xf]
        %v5689 = vld [vmem:[%s950 + $0xdc] sm:$0xf]
        %v5690 = vld [vmem:[%s950 + $0xe0] sm:$0xf]
        %v5691 = vld [vmem:[%s950 + $0xe4] sm:$0xf]
        %v5692 = vld [vmem:[%s950 + $0xe8] sm:$0xf]
        %v5693 = vld [vmem:[%s950 + $0xec] sm:$0xf]
        %v5694 = vld [vmem:[%s950 + $0xf0] sm:$0xf]
        %v5695 = vld [vmem:[%s950 + $0xf4] sm:$0xf]
        %v5696 = vld [vmem:[%s950 + $0xf8] sm:$0xf]
        %v5697 = vld [vmem:[%s950 + $0xfc] sm:$0xf]
        %v5698 = vld [vmem:[%s958] sm:$0x1]
        %v5700 = vlaneseq
        %v5701 = vshrl.u32 %v5700, 7
        %v5702 = vsub.s32 0, %v5701
        %v5703 = vrot.slane %v5698, %v5702
        %v5769 = vunpack.c.l.b16 %v5634
        %v5770 = vunpack.c.l.b16 %v5635
        %v5771 = vunpack.c.l.b16 %v5636
        %v5772 = vunpack.c.l.b16 %v5637
        %v5773 = vunpack.c.l.b16 %v5638
        %v5774 = vunpack.c.l.b16 %v5639
        %v5775 = vunpack.c.l.b16 %v5640
        %v5776 = vunpack.c.l.b16 %v5641
        %v5777 = vunpack.c.l.b16 %v5642
        %v5778 = vunpack.c.l.b16 %v5643
        %v5779 = vunpack.c.l.b16 %v5644
        %v5780 = vunpack.c.l.b16 %v5645
        %v5781 = vunpack.c.l.b16 %v5646
        %v5782 = vunpack.c.l.b16 %v5647
        %v5783 = vunpack.c.l.b16 %v5648
        %v5784 = vunpack.c.l.b16 %v5649
        %v5785 = vunpack.c.l.b16 %v5650
        %v5786 = vunpack.c.l.b16 %v5651
        %v5787 = vunpack.c.l.b16 %v5652
        %v5788 = vunpack.c.l.b16 %v5653
        %v5789 = vunpack.c.l.b16 %v5654
        %v5790 = vunpack.c.l.b16 %v5655
        %v5791 = vunpack.c.l.b16 %v5656
        %v5792 = vunpack.c.l.b16 %v5657
        %v5793 = vunpack.c.l.b16 %v5658
        %v5794 = vunpack.c.l.b16 %v5659
        %v5795 = vunpack.c.l.b16 %v5660
        %v5796 = vunpack.c.l.b16 %v5661
        %v5797 = vunpack.c.l.b16 %v5662
        %v5798 = vunpack.c.l.b16 %v5663
        %v5799 = vunpack.c.l.b16 %v5664
        %v5800 = vunpack.c.l.b16 %v5665
        %v5801 = vunpack.c.l.b16 %v5666
        %v5802 = vunpack.c.l.b16 %v5667
        %v5803 = vunpack.c.l.b16 %v5668
        %v5804 = vunpack.c.l.b16 %v5669
        %v5805 = vunpack.c.l.b16 %v5670
        %v5806 = vunpack.c.l.b16 %v5671
        %v5807 = vunpack.c.l.b16 %v5672
        %v5808 = vunpack.c.l.b16 %v5673
        %v5809 = vunpack.c.l.b16 %v5674
        %v5810 = vunpack.c.l.b16 %v5675
        %v5811 = vunpack.c.l.b16 %v5676
        %v5812 = vunpack.c.l.b16 %v5677
        %v5813 = vunpack.c.l.b16 %v5678
        %v5814 = vunpack.c.l.b16 %v5679
        %v5815 = vunpack.c.l.b16 %v5680
        %v5816 = vunpack.c.l.b16 %v5681
        %v5817 = vunpack.c.l.b16 %v5682
        %v5818 = vunpack.c.l.b16 %v5683
        %v5819 = vunpack.c.l.b16 %v5684
        %v5820 = vunpack.c.l.b16 %v5685
        %v5821 = vunpack.c.l.b16 %v5686
        %v5822 = vunpack.c.l.b16 %v5687
        %v5823 = vunpack.c.l.b16 %v5688
        %v5824 = vunpack.c.l.b16 %v5689
        %v5825 = vunpack.c.l.b16 %v5690
        %v5826 = vunpack.c.l.b16 %v5691
        %v5827 = vunpack.c.l.b16 %v5692
        %v5828 = vunpack.c.l.b16 %v5693
        %v5829 = vunpack.c.l.b16 %v5694
        %v5830 = vunpack.c.l.b16 %v5695
        %v5831 = vunpack.c.l.b16 %v5696
        %v5832 = vunpack.c.l.b16 %v5697
        %v5833 = vpack.c.b16 %v5770, %v5769
        %v5834 = vpack.c.b16 %v5772, %v5771
        %v5835 = vpack.c.b16 %v5774, %v5773
        %v5836 = vpack.c.b16 %v5776, %v5775
        %v5837 = vpack.c.b16 %v5778, %v5777
        %v5838 = vpack.c.b16 %v5780, %v5779
        %v5839 = vpack.c.b16 %v5782, %v5781
        %v5840 = vpack.c.b16 %v5784, %v5783
        %v5841 = vpack.c.b16 %v5786, %v5785
        %v5842 = vpack.c.b16 %v5788, %v5787
        %v5843 = vpack.c.b16 %v5790, %v5789
        %v5844 = vpack.c.b16 %v5792, %v5791
        %v5845 = vpack.c.b16 %v5794, %v5793
        %v5846 = vpack.c.b16 %v5796, %v5795
        %v5847 = vpack.c.b16 %v5798, %v5797
        %v5848 = vpack.c.b16 %v5800, %v5799
        %v5849 = vpack.c.b16 %v5802, %v5801
        %v5850 = vpack.c.b16 %v5804, %v5803
        %v5851 = vpack.c.b16 %v5806, %v5805
        %v5852 = vpack.c.b16 %v5808, %v5807
        %v5853 = vpack.c.b16 %v5810, %v5809
        %v5854 = vpack.c.b16 %v5812, %v5811
        %v5855 = vpack.c.b16 %v5814, %v5813
        %v5856 = vpack.c.b16 %v5816, %v5815
        %v5857 = vpack.c.b16 %v5818, %v5817
        %v5858 = vpack.c.b16 %v5820, %v5819
        %v5859 = vpack.c.b16 %v5822, %v5821
        %v5860 = vpack.c.b16 %v5824, %v5823
        %v5861 = vpack.c.b16 %v5826, %v5825
        %v5862 = vpack.c.b16 %v5828, %v5827
        %v5863 = vpack.c.b16 %v5830, %v5829
        %v5864 = vpack.c.b16 %v5832, %v5831
        %5897 = vmatprep.subr.bf16.mxu0 0
        %5898 = vmatpush1.bf16.msra.mxu0 %v5833
        %5899 = vmatprep.subr.bf16.mxu0 0
        %5900 = vmatpush1.bf16.msra.mxu0 %v5834
        %5901 = vmatprep.subr.bf16.mxu0 0
        %5902 = vmatpush1.bf16.msra.mxu0 %v5835
        %5903 = vmatprep.subr.bf16.mxu0 0
        %5904 = vmatpush1.bf16.msra.mxu0 %v5836
        %5905 = vmatprep.subr.bf16.mxu0 0
        %5906 = vmatpush1.bf16.msra.mxu0 %v5837
        %5907 = vmatprep.subr.bf16.mxu0 0
        %5908 = vmatpush1.bf16.msra.mxu0 %v5838
        %5909 = vmatprep.subr.bf16.mxu0 0
        %5910 = vmatpush1.bf16.msra.mxu0 %v5839
        %5911 = vmatprep.subr.bf16.mxu0 0
        %5912 = vmatpush1.bf16.msra.mxu0 %v5840
        %5913 = vmatprep.subr.bf16.mxu0 0
        %5914 = vmatpush1.bf16.msra.mxu0 %v5841
        %5915 = vmatprep.subr.bf16.mxu0 0
        %5916 = vmatpush1.bf16.msra.mxu0 %v5842
        %5917 = vmatprep.subr.bf16.mxu0 0
        %5918 = vmatpush1.bf16.msra.mxu0 %v5843
        %5919 = vmatprep.subr.bf16.mxu0 0
        %5920 = vmatpush1.bf16.msra.mxu0 %v5844
        %5921 = vmatprep.subr.bf16.mxu0 0
        %5922 = vmatpush1.bf16.msra.mxu0 %v5845
        %5923 = vmatprep.subr.bf16.mxu0 0
        %5924 = vmatpush1.bf16.msra.mxu0 %v5846
        %5925 = vmatprep.subr.bf16.mxu0 0
        %5926 = vmatpush1.bf16.msra.mxu0 %v5847
        %5927 = vmatprep.subr.bf16.mxu0 0
        %5928 = vmatpush1.bf16.msra.mxu0 %v5848
        %5929 = vmatprep.mubr.bf16.mxu0 %v5631
        %5930 = vmatmul.mubr.bf16.gmra.mrb[0].mxu0 %v5630
        %v5931 = vpop.f32.mrb[0].mxu0
        %v5932 = vadd.f32 %v5703, %v5931
        %v5933 = vpop.f32.mrb[0].mxu0
        %v5934 = vpop.f32.mrb[0].mxu0
        %v5935 = vadd.f32 %v5703, %v5934
        %v5936 = vpop.f32.mrb[0].mxu0
        %5937 = vdwg.mxu0
        %5938 = vmatprep.subr.bf16.mxu0 0
        %5939 = vmatpush1.bf16.msra.mxu0 %v5849
        %5940 = vmatprep.subr.bf16.mxu0 0
        %5941 = vmatpush1.bf16.msra.mxu0 %v5850
        %5942 = vmatprep.subr.bf16.mxu0 0
        %5943 = vmatpush1.bf16.msra.mxu0 %v5851
        %5944 = vmatprep.subr.bf16.mxu0 0
        %5945 = vmatpush1.bf16.msra.mxu0 %v5852
        %5946 = vmatprep.subr.bf16.mxu0 0
        %5947 = vmatpush1.bf16.msra.mxu0 %v5853
        %5948 = vmatprep.subr.bf16.mxu0 0
        %5949 = vmatpush1.bf16.msra.mxu0 %v5854
        %5950 = vmatprep.subr.bf16.mxu0 0
        %5951 = vmatpush1.bf16.msra.mxu0 %v5855
        %5952 = vmatprep.subr.bf16.mxu0 0
        %5953 = vmatpush1.bf16.msra.mxu0 %v5856
        %5954 = vmatprep.subr.bf16.mxu0 0
        %5955 = vmatpush1.bf16.msra.mxu0 %v5857
        %5956 = vmatprep.subr.bf16.mxu0 0
        %5957 = vmatpush1.bf16.msra.mxu0 %v5858
        %5958 = vmatprep.subr.bf16.mxu0 0
        %5959 = vmatpush1.bf16.msra.mxu0 %v5859
        %5960 = vmatprep.subr.bf16.mxu0 0
        %5961 = vmatpush1.bf16.msra.mxu0 %v5860
        %5962 = vmatprep.subr.bf16.mxu0 0
        %5963 = vmatpush1.bf16.msra.mxu0 %v5861
        %5964 = vmatprep.subr.bf16.mxu0 0
        %5965 = vmatpush1.bf16.msra.mxu0 %v5862
        %5966 = vmatprep.subr.bf16.mxu0 0
        %5967 = vmatpush1.bf16.msra.mxu0 %v5863
        %5968 = vmatprep.subr.bf16.mxu0 0
        %5969 = vmatpush1.bf16.msra.mxu0 %v5864
        %5970 = vmatprep.mubr.bf16.mxu0 %v5633
        %5971 = vmatmul.mubr.bf16.gmra.mrb[0].mxu0 %v5632
        %v5972 = vpop.f32.mrb[0].mxu0
        %v5973 = vadd.f32 %v5932, %v5972
        %v5974 = vpop.f32.mrb[0].mxu0
        %v5975 = vpop.f32.mrb[0].mxu0
        %v5976 = vadd.f32 %v5935, %v5975
        %v5977 = vpop.f32.mrb[0].mxu0
        %5978 = vdwg.mxu0
        %v5979 = vmax.f32 %v5973, 0.0
        %v5980 = vmax.f32 %v5976, 0.0
        %v5981 = vpack.c.bf16 %v5980, %v5979
        %v5982 = vld [vmem:[%s967] sm:$0xff]
        %v5983 = vld [vmem:[%s967 + $0x8] sm:$0xff]
        %v5984 = vld [vmem:[%s967 + $0x10] sm:$0xff]
        %v5985 = vld [vmem:[%s967 + $0x18] sm:$0xff]
        %v5986 = vld [vmem:[%s967 + $0x20] sm:$0xff]
        %v5987 = vld [vmem:[%s967 + $0x28] sm:$0xff]
        %v5988 = vld [vmem:[%s967 + $0x30] sm:$0xff]
        %v5989 = vld [vmem:[%s967 + $0x38] sm:$0xff]
        %v5990 = vld [vmem:[%s967 + $0x40] sm:$0xff]
        %v5991 = vld [vmem:[%s967 + $0x48] sm:$0xff]
        %v5992 = vld [vmem:[%s967 + $0x50] sm:$0xff]
        %v5993 = vld [vmem:[%s967 + $0x58] sm:$0xff]
        %v5994 = vld [vmem:[%s967 + $0x60] sm:$0xff]
        %v5995 = vld [vmem:[%s967 + $0x68] sm:$0xff]
        %v5996 = vld [vmem:[%s967 + $0x70] sm:$0xff]
        %v5997 = vld [vmem:[%s967 + $0x78] sm:$0xff]
        %v5998 = vld [vmem:[%s967 + $0x80] sm:$0xff]
        %v5999 = vld [vmem:[%s967 + $0x88] sm:$0xff]
        %v6000 = vld [vmem:[%s967 + $0x90] sm:$0xff]
        %v6001 = vld [vmem:[%s967 + $0x98] sm:$0xff]
        %v6002 = vld [vmem:[%s967 + $0xa0] sm:$0xff]
        %v6003 = vld [vmem:[%s967 + $0xa8] sm:$0xff]
        %v6004 = vld [vmem:[%s967 + $0xb0] sm:$0xff]
        %v6005 = vld [vmem:[%s967 + $0xb8] sm:$0xff]
        %v6006 = vld [vmem:[%s967 + $0xc0] sm:$0xff]
        %v6007 = vld [vmem:[%s967 + $0xc8] sm:$0xff]
        %v6008 = vld [vmem:[%s967 + $0xd0] sm:$0xff]
        %v6009 = vld [vmem:[%s967 + $0xd8] sm:$0xff]
        %v6010 = vld [vmem:[%s967 + $0xe0] sm:$0xff]
        %v6011 = vld [vmem:[%s967 + $0xe8] sm:$0xff]
        %v6012 = vld [vmem:[%s967 + $0xf0] sm:$0xff]
        %v6013 = vld [vmem:[%s967 + $0xf8] sm:$0xff]
        %v6014 = vld [vmem:[%s976] sm:$0xf]
        %v6016 = vlaneseq
        %v6017 = vshrl.u32 %v6016, 7
        %v6018 = vsub.s32 0, %v6017
        %v6019 = vrot.slane %v6014, %v6018
        %v6020 = vlaneseq
        %v6021 = vshrl.u32 %v6020, 7
        %v6022 = vsub.s32 1, %v6021
        %v6023 = vrot.slane %v6014, %v6022
        %v6024 = vlaneseq
        %v6025 = vshrl.u32 %v6024, 7
        %v6026 = vsub.s32 2, %v6025
        %v6027 = vrot.slane %v6014, %v6026
        %v6028 = vlaneseq
        %v6029 = vshrl.u32 %v6028, 7
        %v6030 = vsub.s32 3, %v6029
        %v6031 = vrot.slane %v6014, %v6030
        %v6068 = vunpack.c.l.b16 %v5982
        %v6069 = vunpack.c.h.b16 %v5982
        %v6070 = vunpack.c.l.b16 %v5983
        %v6071 = vunpack.c.h.b16 %v5983
        %v6072 = vunpack.c.l.b16 %v5984
        %v6073 = vunpack.c.h.b16 %v5984
        %v6074 = vunpack.c.l.b16 %v5985
        %v6075 = vunpack.c.h.b16 %v5985
        %v6076 = vunpack.c.l.b16 %v5986
        %v6077 = vunpack.c.h.b16 %v5986
        %v6078 = vunpack.c.l.b16 %v5987
        %v6079 = vunpack.c.h.b16 %v5987
        %v6080 = vunpack.c.l.b16 %v5988
        %v6081 = vunpack.c.h.b16 %v5988
        %v6082 = vunpack.c.l.b16 %v5989
        %v6083 = vunpack.c.h.b16 %v5989
        %v6084 = vunpack.c.l.b16 %v5990
        %v6085 = vunpack.c.h.b16 %v5990
        %v6086 = vunpack.c.l.b16 %v5991
        %v6087 = vunpack.c.h.b16 %v5991
        %v6088 = vunpack.c.l.b16 %v5992
        %v6089 = vunpack.c.h.b16 %v5992
        %v6090 = vunpack.c.l.b16 %v5993
        %v6091 = vunpack.c.h.b16 %v5993
        %v6092 = vunpack.c.l.b16 %v5994
        %v6093 = vunpack.c.h.b16 %v5994
        %v6094 = vunpack.c.l.b16 %v5995
        %v6095 = vunpack.c.h.b16 %v5995
        %v6096 = vunpack.c.l.b16 %v5996
        %v6097 = vunpack.c.h.b16 %v5996
        %v6098 = vunpack.c.l.b16 %v5997
        %v6099 = vunpack.c.h.b16 %v5997
        %v6100 = vunpack.c.l.b16 %v5998
        %v6101 = vunpack.c.h.b16 %v5998
        %v6102 = vunpack.c.l.b16 %v5999
        %v6103 = vunpack.c.h.b16 %v5999
        %v6104 = vunpack.c.l.b16 %v6000
        %v6105 = vunpack.c.h.b16 %v6000
        %v6106 = vunpack.c.l.b16 %v6001
        %v6107 = vunpack.c.h.b16 %v6001
        %v6108 = vunpack.c.l.b16 %v6002
        %v6109 = vunpack.c.h.b16 %v6002
        %v6110 = vunpack.c.l.b16 %v6003
        %v6111 = vunpack.c.h.b16 %v6003
        %v6112 = vunpack.c.l.b16 %v6004
        %v6113 = vunpack.c.h.b16 %v6004
        %v6114 = vunpack.c.l.b16 %v6005
        %v6115 = vunpack.c.h.b16 %v6005
        %v6116 = vunpack.c.l.b16 %v6006
        %v6117 = vunpack.c.h.b16 %v6006
        %v6118 = vunpack.c.l.b16 %v6007
        %v6119 = vunpack.c.h.b16 %v6007
        %v6120 = vunpack.c.l.b16 %v6008
        %v6121 = vunpack.c.h.b16 %v6008
        %v6122 = vunpack.c.l.b16 %v6009
        %v6123 = vunpack.c.h.b16 %v6009
        %v6124 = vunpack.c.l.b16 %v6010
        %v6125 = vunpack.c.h.b16 %v6010
        %v6126 = vunpack.c.l.b16 %v6011
        %v6127 = vunpack.c.h.b16 %v6011
        %v6128 = vunpack.c.l.b16 %v6012
        %v6129 = vunpack.c.h.b16 %v6012
        %v6130 = vunpack.c.l.b16 %v6013
        %v6131 = vunpack.c.h.b16 %v6013
        %v6132 = vpack.c.b16 %v6072, %v6068
        %v6133 = vpack.c.b16 %v6073, %v6069
        %v6134 = vpack.c.b16 %v6074, %v6070
        %v6135 = vpack.c.b16 %v6075, %v6071
        %v6136 = vpack.c.b16 %v6080, %v6076
        %v6137 = vpack.c.b16 %v6081, %v6077
        %v6138 = vpack.c.b16 %v6082, %v6078
        %v6139 = vpack.c.b16 %v6083, %v6079
        %v6140 = vpack.c.b16 %v6088, %v6084
        %v6141 = vpack.c.b16 %v6089, %v6085
        %v6142 = vpack.c.b16 %v6090, %v6086
        %v6143 = vpack.c.b16 %v6091, %v6087
        %v6144 = vpack.c.b16 %v6096, %v6092
        %v6145 = vpack.c.b16 %v6097, %v6093
        %v6146 = vpack.c.b16 %v6098, %v6094
        %v6147 = vpack.c.b16 %v6099, %v6095
        %v6148 = vpack.c.b16 %v6104, %v6100
        %v6149 = vpack.c.b16 %v6105, %v6101
        %v6150 = vpack.c.b16 %v6106, %v6102
        %v6151 = vpack.c.b16 %v6107, %v6103
        %v6152 = vpack.c.b16 %v6112, %v6108
        %v6153 = vpack.c.b16 %v6113, %v6109
        %v6154 = vpack.c.b16 %v6114, %v6110
        %v6155 = vpack.c.b16 %v6115, %v6111
        %v6156 = vpack.c.b16 %v6120, %v6116
        %v6157 = vpack.c.b16 %v6121, %v6117
        %v6158 = vpack.c.b16 %v6122, %v6118
        %v6159 = vpack.c.b16 %v6123, %v6119
        %v6160 = vpack.c.b16 %v6128, %v6124
        %v6161 = vpack.c.b16 %v6129, %v6125
        %v6162 = vpack.c.b16 %v6130, %v6126
        %v6163 = vpack.c.b16 %v6131, %v6127
        %6196 = vmatprep.subr.bf16.mxu0 %v6133
        %6197 = vmatpush1.bf16.msra.mxu0 %v6132
        %6198 = vmatprep.subr.bf16.mxu0 %v6137
        %6199 = vmatpush1.bf16.msra.mxu0 %v6136
        %6200 = vmatprep.subr.bf16.mxu0 %v6141
        %6201 = vmatpush1.bf16.msra.mxu0 %v6140
        %6202 = vmatprep.subr.bf16.mxu0 %v6145
        %6203 = vmatpush1.bf16.msra.mxu0 %v6144
        %6204 = vmatprep.subr.bf16.mxu0 %v6149
        %6205 = vmatpush1.bf16.msra.mxu0 %v6148
        %6206 = vmatprep.subr.bf16.mxu0 %v6153
        %6207 = vmatpush1.bf16.msra.mxu0 %v6152
        %6208 = vmatprep.subr.bf16.mxu0 %v6157
        %6209 = vmatpush1.bf16.msra.mxu0 %v6156
        %6210 = vmatprep.subr.bf16.mxu0 %v6161
        %6211 = vmatpush1.bf16.msra.mxu0 %v6160
        %6212 = vmatprep.subr.bf16.mxu0 0
        %6213 = vmatpush1.bf16.msra.mxu0 0
        %6214 = vmatprep.subr.bf16.mxu0 0
        %6215 = vmatpush1.bf16.msra.mxu0 0
        %6216 = vmatprep.subr.bf16.mxu0 0
        %6217 = vmatpush1.bf16.msra.mxu0 0
        %6218 = vmatprep.subr.bf16.mxu0 0
        %6219 = vmatpush1.bf16.msra.mxu0 0
        %6220 = vmatprep.subr.bf16.mxu0 0
        %6221 = vmatpush1.bf16.msra.mxu0 0
        %6222 = vmatprep.subr.bf16.mxu0 0
        %6223 = vmatpush1.bf16.msra.mxu0 0
        %6224 = vmatprep.subr.bf16.mxu0 0
        %6225 = vmatpush1.bf16.msra.mxu0 0
        %6226 = vmatprep.subr.bf16.mxu0 0
        %6227 = vmatpush1.bf16.msra.mxu0 0
        %6228 = vmatprep.mubr.bf16.mxu0 0
        %6229 = vmatmul.mubr.bf16.gmra.mrb[0].mxu0 %v5981
        %v6230 = vpop.f32.mrb[0].mxu0
        %v6231 = vadd.f32 %v6019, %v6230
        %v6232 = vpop.f32.mrb[0].mxu0
        %v6233 = vadd.f32 %v6023, %v6232
        %v6234 = vpop.f32.mrb[0].mxu0
        %v6235 = vadd.f32 %v6019, %v6234
        %v6236 = vpop.f32.mrb[0].mxu0
        %v6237 = vadd.f32 %v6023, %v6236
        %6238 = vdwg.mxu0
        %6239 = vmatprep.subr.bf16.mxu0 %v6135
        %6240 = vmatpush1.bf16.msra.mxu0 %v6134
        %6241 = vmatprep.subr.bf16.mxu0 %v6139
        %6242 = vmatpush1.bf16.msra.mxu0 %v6138
        %6243 = vmatprep.subr.bf16.mxu0 %v6143
        %6244 = vmatpush1.bf16.msra.mxu0 %v6142
        %6245 = vmatprep.subr.bf16.mxu0 %v6147
        %6246 = vmatpush1.bf16.msra.mxu0 %v6146
        %6247 = vmatprep.subr.bf16.mxu0 %v6151
        %6248 = vmatpush1.bf16.msra.mxu0 %v6150
        %6249 = vmatprep.subr.bf16.mxu0 %v6155
        %6250 = vmatpush1.bf16.msra.mxu0 %v6154
        %6251 = vmatprep.subr.bf16.mxu0 %v6159
        %6252 = vmatpush1.bf16.msra.mxu0 %v6158
        %6253 = vmatprep.subr.bf16.mxu0 %v6163
        %6254 = vmatpush1.bf16.msra.mxu0 %v6162
        %6255 = vmatprep.subr.bf16.mxu0 0
        %6256 = vmatpush1.bf16.msra.mxu0 0
        %6257 = vmatprep.subr.bf16.mxu0 0
        %6258 = vmatpush1.bf16.msra.mxu0 0
        %6259 = vmatprep.subr.bf16.mxu0 0
        %6260 = vmatpush1.bf16.msra.mxu0 0
        %6261 = vmatprep.subr.bf16.mxu0 0
        %6262 = vmatpush1.bf16.msra.mxu0 0
        %6263 = vmatprep.subr.bf16.mxu0 0
        %6264 = vmatpush1.bf16.msra.mxu0 0
        %6265 = vmatprep.subr.bf16.mxu0 0
        %6266 = vmatpush1.bf16.msra.mxu0 0
        %6267 = vmatprep.subr.bf16.mxu0 0
        %6268 = vmatpush1.bf16.msra.mxu0 0
        %6269 = vmatprep.subr.bf16.mxu0 0
        %6270 = vmatpush1.bf16.msra.mxu0 0
        %6271 = vmatprep.mubr.bf16.mxu0 0
        %6272 = vmatmul.mubr.bf16.gmra.mrb[0].mxu0 %v5981
        %v6273 = vpop.f32.mrb[0].mxu0
        %v6274 = vadd.f32 %v6027, %v6273
        %v6275 = vpop.f32.mrb[0].mxu0
        %v6276 = vadd.f32 %v6031, %v6275
        %v6277 = vpop.f32.mrb[0].mxu0
        %v6278 = vadd.f32 %v6027, %v6277
        %v6279 = vpop.f32.mrb[0].mxu0
        %v6280 = vadd.f32 %v6031, %v6279
        %6281 = vdwg.mxu0
        %v6282 = vadd.f32 %v5622, %v6231
        %v6283 = vadd.f32 %v5623, %v6233
        %v6284 = vadd.f32 %v5624, %v6274
        %v6285 = vadd.f32 %v5625, %v6276
        %v6286 = vadd.f32 %v5626, %v6235
        %v6287 = vadd.f32 %v5627, %v6237
        %v6288 = vadd.f32 %v5628, %v6278
        %v6289 = vadd.f32 %v5629, %v6280
        %v6290 = vld [vmem:[%s985] sm:$0xf]
        %v6291 = vld [vmem:[%s994] sm:$0xf]
        %v6292 = vadd.f32 %v6282, %v6283
        %v6293 = vadd.f32 %v6292, %v6284
        %v6294 = vadd.f32 %v6293, %v6285
        %6295 = vadd.xlane.f32.xlu0 %v6294
        %v6296 = vpop.xlane.xlu0 %6295
        %v6297 = vadd.f32 %v6286, %v6287
        %v6298 = vadd.f32 %v6297, %v6288
        %v6299 = vadd.f32 %v6298, %v6289
        %6300 = vadd.xlane.f32.xlu0 %v6299
        %v6301 = vpop.xlane.xlu0 %6300
        %v6302 = vmul.f32 %v6296, %v5525
        %v6303 = vmul.f32 %v6301, %v5525
        %v6304 = vmul.f32 %v6282, %v6282
        %v6305 = vmul.f32 %v6283, %v6283
        %v6306 = vmul.f32 %v6284, %v6284
        %v6307 = vmul.f32 %v6285, %v6285
        %v6308 = vmul.f32 %v6286, %v6286
        %v6309 = vmul.f32 %v6287, %v6287
        %v6310 = vmul.f32 %v6288, %v6288
        %v6311 = vmul.f32 %v6289, %v6289
        %v6312 = vadd.f32 %v6304, %v6305
        %v6313 = vadd.f32 %v6312, %v6306
        %v6314 = vadd.f32 %v6313, %v6307
        %6315 = vadd.xlane.f32.xlu0 %v6314
        %v6316 = vpop.xlane.xlu0 %6315
        %v6317 = vadd.f32 %v6308, %v6309
        %v6318 = vadd.f32 %v6317, %v6310
        %v6319 = vadd.f32 %v6318, %v6311
        %6320 = vadd.xlane.f32.xlu0 %v6319
        %v6321 = vpop.xlane.xlu0 %6320
        %v6322 = vmul.f32 %v6316, %v5525
        %v6323 = vmul.f32 %v6321, %v5525
        %v6324 = vmul.f32 %v6302, %v6302
        %v6325 = vmul.f32 %v6303, %v6303
        %v6326 = vsub.f32 %v6322, %v6324
        %v6327 = vsub.f32 %v6323, %v6325
        %v6328 = vsub.f32 %v6282, %v6302
        %v6329 = vsub.f32 %v6283, %v6302
        %v6330 = vsub.f32 %v6284, %v6302
        %v6331 = vsub.f32 %v6285, %v6302
        %v6332 = vsub.f32 %v6286, %v6303
        %v6333 = vsub.f32 %v6287, %v6303
        %v6334 = vsub.f32 %v6288, %v6303
        %v6335 = vsub.f32 %v6289, %v6303
        %v6336 = vadd.f32 %v6326, 1e-05
        %v6337 = vadd.f32 %v6327, 1e-05
        %v6338 = vrsqrt.pop %v6336
        %v6339 = vrsqrt.pop %v6337
        %v6340 = vmul.f32 %v6328, %v6338
        %v6341 = vmul.f32 %v6329, %v6338
        %v6342 = vmul.f32 %v6330, %v6338
        %v6343 = vmul.f32 %v6331, %v6338
        %v6344 = vmul.f32 %v6332, %v6339
        %v6345 = vmul.f32 %v6333, %v6339
        %v6346 = vmul.f32 %v6334, %v6339
        %v6347 = vmul.f32 %v6335, %v6339
        %v6349 = vlaneseq
        %v6350 = vshrl.u32 %v6349, 7
        %v6351 = vsub.s32 0, %v6350
        %v6352 = vrot.slane %v6290, %v6351
        %v6353 = vlaneseq
        %v6354 = vshrl.u32 %v6353, 7
        %v6355 = vsub.s32 1, %v6354
        %v6356 = vrot.slane %v6290, %v6355
        %v6357 = vlaneseq
        %v6358 = vshrl.u32 %v6357, 7
        %v6359 = vsub.s32 2, %v6358
        %v6360 = vrot.slane %v6290, %v6359
        %v6361 = vlaneseq
        %v6362 = vshrl.u32 %v6361, 7
        %v6363 = vsub.s32 3, %v6362
        %v6364 = vrot.slane %v6290, %v6363
        %v6369 = vmul.f32 %v6340, %v6352
        %v6370 = vmul.f32 %v6341, %v6356
        %v6371 = vmul.f32 %v6342, %v6360
        %v6372 = vmul.f32 %v6343, %v6364
        %v6373 = vmul.f32 %v6344, %v6352
        %v6374 = vmul.f32 %v6345, %v6356
        %v6375 = vmul.f32 %v6346, %v6360
        %v6376 = vmul.f32 %v6347, %v6364
        %v6378 = vlaneseq
        %v6379 = vshrl.u32 %v6378, 7
        %v6380 = vsub.s32 0, %v6379
        %v6381 = vrot.slane %v6291, %v6380
        %v6382 = vlaneseq
        %v6383 = vshrl.u32 %v6382, 7
        %v6384 = vsub.s32 1, %v6383
        %v6385 = vrot.slane %v6291, %v6384
        %v6386 = vlaneseq
        %v6387 = vshrl.u32 %v6386, 7
        %v6388 = vsub.s32 2, %v6387
        %v6389 = vrot.slane %v6291, %v6388
        %v6390 = vlaneseq
        %v6391 = vshrl.u32 %v6390, 7
        %v6392 = vsub.s32 3, %v6391
        %v6393 = vrot.slane %v6291, %v6392
        %v6398 = vadd.f32 %v6369, %v6381
        %v6399 = vadd.f32 %v6370, %v6385
        %v6400 = vadd.f32 %v6371, %v6389
        %v6401 = vadd.f32 %v6372, %v6393
        %v6402 = vadd.f32 %v6373, %v6381
        %v6403 = vadd.f32 %v6374, %v6385
        %v6404 = vadd.f32 %v6375, %v6389
        %v6405 = vadd.f32 %v6376, %v6393
        %p6406 = scmp.lt.s32.totalorder %s62, 1
        // Predicated region
        $region165: #{tpu_custom_call.1} parent=87 // pred_check
          %p6407 = pneg %p6406
        $region166: #{tpu_custom_call.1} parent=87 // pred_check_branch
          %6409 = sbr.rel (%p6407) target = $region168
        $region167: #{tpu_custom_call.1} parent=87 // pred_region
          %6410 = vst [vmem:[#allocation2] sm:$0xff] %v6398
          %6411 = vst [vmem:[#allocation2 + $0x8] sm:$0xff] %v6399
          %6412 = vst [vmem:[#allocation2 + $0x10] sm:$0xff] %v6400
          %6413 = vst [vmem:[#allocation2 + $0x18] sm:$0xff] %v6401
          %6414 = vst [vmem:[#allocation2 + $0x20] sm:$0xff] %v6402
          %6415 = vst [vmem:[#allocation2 + $0x28] sm:$0xff] %v6403
          %6416 = vst [vmem:[#allocation2 + $0x30] sm:$0xff] %v6404
          %6417 = vst [vmem:[#allocation2 + $0x38] sm:$0xff] %v6405
        $region168: #{tpu_custom_call.1} parent=87 // pred_fallthru
          _
        %p6418 = scmp.eq.s32.totalorder %s62, 1
        // Predicated region
        $region169: #{tpu_custom_call.1} parent=87 // pred_check
          %p6419 = pneg %p6418
        $region170: #{tpu_custom_call.1} parent=87 // pred_check_branch
          %6421 = sbr.rel (%p6419) target = $region172
        $region171: #{tpu_custom_call.1} parent=87 // pred_region
          %v6422 = vld [vmem:[#allocation31] sm:$0xf]
          %v6423 = vld [vmem:[#allocation33] sm:$0xf]
          %v6424 = vadd.f32 %v6398, %v6399
          %v6425 = vadd.f32 %v6424, %v6400
          %v6426 = vadd.f32 %v6425, %v6401
          %6427 = vadd.xlane.f32.xlu0 %v6426
          %v6428 = vpop.xlane.xlu0 %6427
          %v6429 = vadd.f32 %v6402, %v6403
          %v6430 = vadd.f32 %v6429, %v6404
          %v6431 = vadd.f32 %v6430, %v6405
          %6432 = vadd.xlane.f32.xlu0 %v6431
          %v6433 = vpop.xlane.xlu0 %6432
          %v6434 = vmul.f32 %v6428, %v5525
          %v6435 = vmul.f32 %v6433, %v5525
          %v6436 = vmul.f32 %v6398, %v6398
          %v6437 = vmul.f32 %v6399, %v6399
          %v6438 = vmul.f32 %v6400, %v6400
          %v6439 = vmul.f32 %v6401, %v6401
          %v6440 = vmul.f32 %v6402, %v6402
          %v6441 = vmul.f32 %v6403, %v6403
          %v6442 = vmul.f32 %v6404, %v6404
          %v6443 = vmul.f32 %v6405, %v6405
          %v6444 = vadd.f32 %v6436, %v6437
          %v6445 = vadd.f32 %v6444, %v6438
          %v6446 = vadd.f32 %v6445, %v6439
          %6447 = vadd.xlane.f32.xlu0 %v6446
          %v6448 = vpop.xlane.xlu0 %6447
          %v6449 = vadd.f32 %v6440, %v6441
          %v6450 = vadd.f32 %v6449, %v6442
          %v6451 = vadd.f32 %v6450, %v6443
          %6452 = vadd.xlane.f32.xlu0 %v6451
          %v6453 = vpop.xlane.xlu0 %6452
          %v6454 = vmul.f32 %v6448, %v5525
          %v6455 = vmul.f32 %v6453, %v5525
          %v6456 = vmul.f32 %v6434, %v6434
          %v6457 = vmul.f32 %v6435, %v6435
          %v6458 = vsub.f32 %v6454, %v6456
          %v6459 = vsub.f32 %v6455, %v6457
          %v6460 = vsub.f32 %v6398, %v6434
          %v6461 = vsub.f32 %v6399, %v6434
          %v6462 = vsub.f32 %v6400, %v6434
          %v6463 = vsub.f32 %v6401, %v6434
          %v6464 = vsub.f32 %v6402, %v6435
          %v6465 = vsub.f32 %v6403, %v6435
          %v6466 = vsub.f32 %v6404, %v6435
          %v6467 = vsub.f32 %v6405, %v6435
          %v6468 = vadd.f32 %v6458, 1e-05
          %v6469 = vadd.f32 %v6459, 1e-05
          %v6470 = vrsqrt.pop %v6468
          %v6471 = vrsqrt.pop %v6469
          %v6472 = vmul.f32 %v6460, %v6470
          %v6473 = vmul.f32 %v6461, %v6470
          %v6474 = vmul.f32 %v6462, %v6470
          %v6475 = vmul.f32 %v6463, %v6470
          %v6476 = vmul.f32 %v6464, %v6471
          %v6477 = vmul.f32 %v6465, %v6471
          %v6478 = vmul.f32 %v6466, %v6471
          %v6479 = vmul.f32 %v6467, %v6471
          %v6481 = vlaneseq
          %v6482 = vshrl.u32 %v6481, 7
          %v6483 = vsub.s32 0, %v6482
          %v6484 = vrot.slane %v6422, %v6483
          %v6485 = vlaneseq
          %v6486 = vshrl.u32 %v6485, 7
          %v6487 = vsub.s32 1, %v6486
          %v6488 = vrot.slane %v6422, %v6487
          %v6489 = vlaneseq
          %v6490 = vshrl.u32 %v6489, 7
          %v6491 = vsub.s32 2, %v6490
          %v6492 = vrot.slane %v6422, %v6491
          %v6493 = vlaneseq
          %v6494 = vshrl.u32 %v6493, 7
          %v6495 = vsub.s32 3, %v6494
          %v6496 = vrot.slane %v6422, %v6495
          %v6501 = vmul.f32 %v6472, %v6484
          %v6502 = vmul.f32 %v6473, %v6488
          %v6503 = vmul.f32 %v6474, %v6492
          %v6504 = vmul.f32 %v6475, %v6496
          %v6505 = vmul.f32 %v6476, %v6484
          %v6506 = vmul.f32 %v6477, %v6488
          %v6507 = vmul.f32 %v6478, %v6492
          %v6508 = vmul.f32 %v6479, %v6496
          %v6510 = vlaneseq
          %v6511 = vshrl.u32 %v6510, 7
          %v6512 = vsub.s32 0, %v6511
          %v6513 = vrot.slane %v6423, %v6512
          %v6514 = vlaneseq
          %v6515 = vshrl.u32 %v6514, 7
          %v6516 = vsub.s32 1, %v6515
          %v6517 = vrot.slane %v6423, %v6516
          %v6518 = vlaneseq
          %v6519 = vshrl.u32 %v6518, 7
          %v6520 = vsub.s32 2, %v6519
          %v6521 = vrot.slane %v6423, %v6520
          %v6522 = vlaneseq
          %v6523 = vshrl.u32 %v6522, 7
          %v6524 = vsub.s32 3, %v6523
          %v6525 = vrot.slane %v6423, %v6524
          %v6530 = vadd.f32 %v6501, %v6513
          %v6531 = vadd.f32 %v6502, %v6517
          %v6532 = vadd.f32 %v6503, %v6521
          %v6533 = vadd.f32 %v6504, %v6525
          %v6534 = vadd.f32 %v6505, %v6513
          %v6535 = vadd.f32 %v6506, %v6517
          %v6536 = vadd.f32 %v6507, %v6521
          %v6537 = vadd.f32 %v6508, %v6525
          %6538 = vst [vmem:[%s1121] sm:$0xff] %v6530
          %6539 = vst [vmem:[%s1121 + $0x8] sm:$0xff] %v6531
          %6540 = vst [vmem:[%s1121 + $0x10] sm:$0xff] %v6532
          %6541 = vst [vmem:[%s1121 + $0x18] sm:$0xff] %v6533
          %6542 = vst [vmem:[%s1121 + $0x20] sm:$0xff] %v6534
          %6543 = vst [vmem:[%s1121 + $0x28] sm:$0xff] %v6535
          %6544 = vst [vmem:[%s1121 + $0x30] sm:$0xff] %v6536
          %6545 = vst [vmem:[%s1121 + $0x38] sm:$0xff] %v6537
        $region172: #{tpu_custom_call.1} parent=87 // pred_fallthru
          _
        %s6546 = sand.u32 %s509, 1
        %s6547 = scalar_lea.sflag [#allocation9], %s6546
        %s6548 = sand.u32 %s509, 1
        %s6549 = smul.addr %s6548, 64
        %s6550 = scalar_lea.vmem [#allocation34], %s6549
        // Predicated region
        $region173: #{tpu_custom_call.1} parent=87 // pred_check
          %p6551 = pneg %p519
        $region174: #{tpu_custom_call.1} parent=87 // pred_check_branch
          %6553 = sbr.rel (%p6551) target = $region176
        $region175: #{tpu_custom_call.1} parent=87 // pred_region
          %s6555 = ssub.s32 1024, 1024
          %6556 = vsyncadd %s6547, %s6555
          %s6557 = smul.addr %s61, 8
          %s6558 = smul.addr %s6557, 128
          %s6559 = scalar_lea.hbm %s18, %s6558
          %s6560 = sshll.u32 %s6550, 4
          %s6561 = int_to_ptr.vmem [resolvable:$true] %s6560
          %6566 = dma.vmem_to_hbm [thread:$0]  %s6561, 1024, %s6559, %s6547, 512, 512, 32
        $region176: #{tpu_custom_call.1} parent=87 // pred_fallthru
          _
      $region88: #{tpu_custom_call.1} parent=5 // pred_fallthru
        _
      %p6567 = scmp.le.s32.totalorder 2, %s52
      // Predicated region
      $region177: #{tpu_custom_call.1} parent=5 // pred_check
        %p6568 = pneg %p6567
      $region178: #{tpu_custom_call.1} parent=5 // pred_check_branch
        %6570 = sbr.rel (%p6568) target = $region180
      $region179: #{tpu_custom_call.1} parent=5 // pred_region
        %s6571 = ssub.s32 %s52, 2
        // Predicated region
        $region181: #{tpu_custom_call.1} parent=179 // pred_check
          %p6572 = pneg %p525
        $region182: #{tpu_custom_call.1} parent=179 // pred_check_branch
          %6574 = sbr.rel (%p6572) target = $region184
        $region183: #{tpu_custom_call.1} parent=179 // pred_region
          %s6575 = sand.u32 %s510, 1
          %s6576 = scalar_lea.sflag [#allocation9], %s6575
          %s6577 = sand.u32 %s510, 1
          %s6578 = smul.addr %s6577, 64
          %s6579 = scalar_lea.vmem [#allocation34], %s6578
          %6580 = dma.done %s6576, 1024
        $region184: #{tpu_custom_call.1} parent=179 // pred_fallthru
          _
      $region180: #{tpu_custom_call.1} parent=5 // pred_fallthru
        _
    $region6: #{tpu_custom_call.1} parent=1 // loop_footer
      %s56 = sadd.s32 1, %s52
    $region7: #{tpu_custom_call.1} parent=1 // loop_footer_branch
      %51 = sbr.rel target = $region3
    $region8: #{tpu_custom_call.1} parent=1 // loop_exit
      _
    %6581 = vsyncpa [#allocation8], 1
    %s6582 = scalar_lea.sflag [#allocation8], 1
    %6583 = vsyncpa %s6582, 1
    %6584 = vsyncpa [#allocation11], 1
    %s6585 = scalar_lea.sflag [#allocation11], 1
    %6586 = vsyncpa %s6585, 1
    %6587 = vsyncpa [#allocation14], 1
    %s6588 = scalar_lea.sflag [#allocation14], 1
    %6589 = vsyncpa %s6588, 1
    %6590 = vsyncpa [#allocation17], 1
    %s6591 = scalar_lea.sflag [#allocation17], 1
    %6592 = vsyncpa %s6591, 1
    %6593 = vsyncpa [#allocation20], 1
    %s6594 = scalar_lea.sflag [#allocation20], 1
    %6595 = vsyncpa %s6594, 1
    %6596 = vsyncpa [#allocation23], 1
    %s6597 = scalar_lea.sflag [#allocation23], 1
    %6598 = vsyncpa %s6597, 1
    %6599 = vsyncpa [#allocation26], 1
    %s6600 = scalar_lea.sflag [#allocation26], 1
    %6601 = vsyncpa %s6600, 1
    %6602 = vsyncpa [#allocation29], 1
    %s6603 = scalar_lea.sflag [#allocation29], 1
    %6604 = vsyncpa %s6603, 1
    %6605 = vsyncpa [#allocation32], 1
    %6606 = vsyncpa [#allocation9], 1
    %s6607 = scalar_lea.sflag [#allocation9], 1
    %6608 = vsyncpa %s6607, 1
  %6609 = vsyncmov [#allocation6]
  %s6610 = vpop.sfrf %6609
  %p6611 = scmp.eq.s32.totalorder %s6610, 0
  %p6612 = pneg %p6611
  %6614 = shalt.err (%p6612)

</llo_original>
